<compile_context>
chip_gen: v5e
topology: v5e:2x2
jax: 0.10.0
libtpu: 0.0.40
codegen_flags: <defaults>
</compile_context>

<pallas_src>
import functools

import jax
import jax.numpy as jnp
from jax.experimental import pallas as pl
from jax.experimental.pallas import tpu as pltpu


_BN_EPS = 1e-5
_HALO = 7            # 7 stacked 3x3 convs between the input and the output


# ----------------------------------------------------------------------------
# Fused whole-network kernel
# ----------------------------------------------------------------------------
def _merge_net_kernel(win_ref, mask_ref,
                      w11, b11, w12, b12, wsc1, bsc1,
                      w21, b21, w22, b22, wsc2, bsc2,
                      w31, b31, w32, b32,
                      wd, bd,
                      out_ref, pad_ref,
                      *, W, WIN, PADP, RB):
    """One (batch, row-block) step: whole MergeNetMP on a halo'd pixel window.

    win_ref : (1, 8, WIN) f32   ref(4) + warped-alt(4), raster of (RB+2*HALO, W)
    mask_ref: (1, 3, WIN) f32   [in-image-row, dx=-1 valid, dx=+1 valid]
    w*/b*   : folded conv+BN weights (Cout, 9*Cin) / (Cout, Cin), biases (Cout, 1)
    out_ref : (1, 4, RB*W) f32  blended output rows of this block
    pad_ref : (32, WIN+2*PADP) f32 scratch used to zero-pad the conv inputs
    """
    # Border columns of the tap scratch must be exactly zero (they provide the
    # +-1 row / +-1 col shifts past the window ends); the body only ever
    # writes the middle columns, so a single clear per step keeps them zero.
    pad_ref[...] = jnp.zeros_like(pad_ref)

    m = mask_ref[0]
    rowm = m[0:1, :]      # 1.0 on rows inside the true image, else 0.0
    col_l = m[1:2, :]     # 1.0 where an x-1 neighbour exists (x != 0)
    col_r = m[2:3, :]     # 1.0 where an x+1 neighbour exists (x != W-1)

    def conv3x3(x, w_ref, b_ref):
        """3x3 same-conv (+ folded-BN bias) on a (Cin, WIN) slab.

        x's out-of-image rows are assumed to be exactly zero, which together
        with the column masks reproduces PyTorch's zero padding.
        """
        cin = x.shape[0]
        pad_ref[0:cin, PADP:PADP + WIN] = x
        xp = pad_ref[0:cin, :]                       # (cin, WIN + 2*PADP)
        taps = []
        for i in range(3):                           # dy = i - 1
            for j in range(3):                       # dx = j - 1
                off = PADP + (i - 1) * W + (j - 1)
                t = xp[:, off:off + WIN]
                if j == 0:
                    t = t * col_l
                elif j == 2:
                    t = t * col_r
                taps.append(t)
        cols = jnp.concatenate(taps, axis=0)         # (9*cin, WIN), VMEM only
        return jnp.dot(w_ref[...], cols,
                       preferred_element_type=jnp.float32) + b_ref[...]

    def basic_block(x, w1, b1, w2, b2, wsc, bsc):
        """conv+BN+ReLU -> conv+BN + (1x1 conv+BN | identity) + ReLU (fused)."""
        y = jnp.maximum(conv3x3(x, w1, b1), 0.0) * rowm
        z = conv3x3(y, w2, b2)
        if wsc is None:
            ident = x
        else:
            ident = jnp.dot(wsc[...], x,
                            preferred_element_type=jnp.float32) + bsc[...]
        return jnp.maximum(z + ident, 0.0) * rowm

    win = win_ref[0]                                        # (8, WIN) f32
    h = basic_block(win, w11, b11, w12, b12, wsc1, bsc1)    # (16, WIN)
    h = basic_block(h, w21, b21, w22, b22, wsc2, bsc2)      # (32, WIN)
    h = basic_block(h, w31, b31, w32, b32, None, None)      # (32, WIN)

    # layer4 head: softmax over 2 channels followed by the blend is exactly
    # sigmoid(z1 - z0); only the logit-difference row is ever computed.
    z = conv3x3(h, wd, bd)                                  # (1, WIN)
    p1 = pl.reciprocal(1.0 + jnp.exp(-z), approx=True)      # sigmoid, EUP slot

    lo = _HALO * W                                          # first output pixel
    sl = slice(lo, lo + RB * W)
    ref = win[0:4, sl]
    alt = win[4:8, sl]
    out_ref[0] = ref + (alt - ref) * p1[:, sl]


# ----------------------------------------------------------------------------
# JAX glue: warp (grid_sample) and helpers
# ----------------------------------------------------------------------------
def warp_bilinear(img, flo):
    """img: (B,H,W,C), flo: (B,H,W,2) with flo[...,0]=dx, flo[...,1]=dy.
    Matches torch grid_sample(align_corners=True, padding_mode='zeros') + mask."""
    B, H, W, C = img.shape
    xx = jnp.arange(W, dtype=jnp.float32)[None, None, :]
    yy = jnp.arange(H, dtype=jnp.float32)[None, :, None]
    sx = xx + flo[..., 0]
    sy = yy + flo[..., 1]
    x0 = jnp.floor(sx)
    y0 = jnp.floor(sy)
    x1 = x0 + 1.0
    y1 = y0 + 1.0
    wx1 = sx - x0
    wx0 = 1.0 - wx1
    wy1 = sy - y0
    wy0 = 1.0 - wy1
    img_flat = img.reshape(B, H * W, C)

    def corner(xi, yi, w):
        valid = ((xi >= 0) & (xi <= W - 1) & (yi >= 0) & (yi <= H - 1))
        valid = valid.astype(jnp.float32)
        xc = jnp.clip(xi, 0, W - 1).astype(jnp.int32)
        yc = jnp.clip(yi, 0, H - 1).astype(jnp.int32)
        idx = (yc * W + xc).reshape(B, H * W)
        vals = jnp.take_along_axis(img_flat, idx[..., None], axis=1)
        vals = vals.reshape(B, H, W, C)
        wv = w * valid
        return vals * wv[..., None], wv

    o00, m00 = corner(x0, y0, wx0 * wy0)
    o10, m10 = corner(x1, y0, wx1 * wy0)
    o01, m01 = corner(x0, y1, wx0 * wy1)
    o11, m11 = corner(x1, y1, wx1 * wy1)
    out = o00 + o10 + o01 + o11
    mask = m00 + m10 + m01 + m11
    mask = jnp.where(mask < 0.9999, 0.0, 1.0)
    return out * mask[..., None]


def _cdiv(a, b):
    return -(-a // b)


def _round_up(n, m):
    return _cdiv(n, m) * m


# ----------------------------------------------------------------------------
# Parameters (kaiming init, BN folded in eval mode)
# ----------------------------------------------------------------------------
def _bn_affine(cout):
    # module init: gamma=1, beta=0, running_mean=0, running_var=1 (eval mode)
    gamma = jnp.ones((cout,), jnp.float32)
    beta = jnp.zeros((cout,), jnp.float32)
    mean = jnp.zeros((cout,), jnp.float32)
    var = jnp.ones((cout,), jnp.float32)
    scale = gamma / jnp.sqrt(var + _BN_EPS)
    bias = beta - mean * scale
    return scale, bias


def _fold_bn(w_t, scale, bias):
    # y = BN(conv(x)) == (w * scale) . cols + bias
    return (w_t * scale[:, None]).astype(jnp.float32), bias[:, None].astype(jnp.float32)


def _kaiming3x3_t(key, cin, cout):
    # torch kaiming_normal_(mode='fan_out', relu): std = sqrt(2 / (cout*3*3))
    std = (2.0 / (cout * 9)) ** 0.5
    w = jax.random.normal(key, (3, 3, cin, cout), jnp.float32) * std      # HWIO
    # (cout, 9*cin) with column index k*cin + ci, k = 3*ky + kx — matches the
    # in-kernel tap ordering.
    return w.reshape(9, cin, cout).transpose(2, 0, 1).reshape(cout, 9 * cin)


def _kaiming1x1_t(key, cin, cout):
    std = (2.0 / cout) ** 0.5
    w = jax.random.normal(key, (cin, cout), jnp.float32) * std
    return w.T                                                            # (cout, cin)


def _block_params(key, cin, cout, proj):
    k1, k2, k3 = jax.random.split(key, 3)
    w1, b1 = _fold_bn(_kaiming3x3_t(k1, cin, cout), *_bn_affine(cout))
    w2, b2 = _fold_bn(_kaiming3x3_t(k2, cout, cout), *_bn_affine(cout))
    p = {"w1": w1, "b1": b1, "w2": w2, "b2": b2}
    if proj:
        wsc, bsc = _fold_bn(_kaiming1x1_t(k3, cin, cout), *_bn_affine(cout))
        p["wsc"], p["bsc"] = wsc, bsc
    return p


def init_params(key):
    k1, k2, k3, k4, k5 = jax.random.split(key, 5)
    params = {
        "layer1": _block_params(k1, 8, 16, proj=True),
        "layer2": _block_params(k2, 16, 32, proj=True),
        "layer3": _block_params(k3, 32, 32, proj=False),
    }
    w4 = _kaiming3x3_t(k4, 32, 2)                     # (2, 288)
    bound = 1.0 / (32 * 9) ** 0.5                     # torch conv bias default
    b4 = jax.random.uniform(k5, (2, 1), jnp.float32, -bound, bound)
    # 2-class softmax + blend only needs the logit difference.
    params["wd"] = w4[1:2] - w4[0:1]                  # (1, 288)
    params["bd"] = b4[1:2] - b4[0:1]                  # (1, 1)
    return params


# ----------------------------------------------------------------------------
# Network: one fused pallas_call over (batch x row-block) halo windows
# ----------------------------------------------------------------------------
def merge_net_forward(x_nchw, params, target_win_pixels=4096):
    """x_nchw: (B, 10, H, W) = [ref(4) | alt(4) | flow(2)] -> (B, 4, H, W)."""
    B, C, H, W = x_nchw.shape
    assert C == 10
    x = x_nchw.astype(jnp.float32)
    ref = x[:, 0:4]
    alt = x[:, 4:8]
    flo = x[:, 8:10]

    # warp (bilinear grid_sample + validity mask) in plain JAX (NHWC)
    alt_warp = warp_bilinear(jnp.transpose(alt, (0, 2, 3, 1)),
                             jnp.transpose(flo, (0, 2, 3, 1)))
    alt_warp = jnp.transpose(alt_warp, (0, 3, 1, 2))        # (B,4,H,W)
    x8 = jnp.concatenate([ref, alt_warp], axis=1)           # (B,8,H,W)

    # --- row-block / halo-window geometry ---------------------------------
    halo = _HALO
    rb = max(1, min(H, target_win_pixels // W - 2 * halo))  # output rows/block
    nblk = _cdiv(H, rb)
    if B * nblk < 2 and H >= 2:       # guarantee >=2 grid steps (v7x megacore)
        rb = _cdiv(H, 2)
        nblk = _cdiv(H, rb)
    hr = nblk * rb
    ht = rb + 2 * halo                                      # window rows
    win_px = ht * W                                         # window pixels
    hp = hr + 2 * halo
    g = B * nblk
    padp = _round_up(W + 1, 128)                            # lane-aligned scratch pad

    # halo'd, zero-padded input windows: (G, 8, WIN)
    xpad = jnp.pad(x8, ((0, 0), (0, 0), (halo, hp - H - halo), (0, 0)))
    wins = jnp.stack([xpad[:, :, r * rb:r * rb + ht, :] for r in range(nblk)],
                     axis=1)                                # (B, nblk, 8, ht, W)
    wins = wins.reshape(g, 8, win_px)

    # per-window masks: in-image-row validity + left/right column neighbours
    pix = jnp.arange(win_px, dtype=jnp.int32)
    xcol = pix % W
    col_l = (xcol != 0).astype(jnp.float32)
    col_r = (xcol != W - 1).astype(jnp.float32)
    lrow = pix // W
    per_blk = []
    for r in range(nblk):
        grow = r * rb + lrow                                # padded-image row
        rowm = ((grow >= halo) & (grow < halo + H)).astype(jnp.float32)
        per_blk.append(jnp.stack([rowm, col_l, col_r], axis=0))
    masks = jnp.stack(per_blk, axis=0)                      # (nblk, 3, WIN)
    masks = jnp.broadcast_to(masks[None], (B, nblk, 3, win_px)).reshape(g, 3, win_px)

    lp1, lp2, lp3 = params["layer1"], params["layer2"], params["layer3"]
    weights = (lp1["w1"], lp1["b1"], lp1["w2"], lp1["b2"], lp1["wsc"], lp1["bsc"],
               lp2["w1"], lp2["b1"], lp2["w2"], lp2["b2"], lp2["wsc"], lp2["bsc"],
               lp3["w1"], lp3["b1"], lp3["w2"], lp3["b2"],
               params["wd"], params["bd"])

    kernel = functools.partial(_merge_net_kernel,
                               W=W, WIN=win_px, PADP=padp, RB=rb)
    in_specs = [pl.BlockSpec((1, 8, win_px), lambda i: (i, 0, 0)),
                pl.BlockSpec((1, 3, win_px), lambda i: (i, 0, 0))]
    # weights/biases: full blocks with constant index_map -> DMA'd once, resident
    in_specs += [pl.BlockSpec(a.shape, lambda i: (0, 0)) for a in weights]

    out = pl.pallas_call(
        kernel,
        out_shape=jax.ShapeDtypeStruct((g, 4, rb * W), jnp.float32),
        grid=(g,),
        in_specs=in_specs,
        out_specs=pl.BlockSpec((1, 4, rb * W), lambda i: (i, 0, 0)),
        scratch_shapes=[pltpu.VMEM((32, win_px + 2 * padp), jnp.float32)],
        compiler_params=pltpu.CompilerParams(
            dimension_semantics=("parallel",)),   # shard steps across v7x's 2 TCs
    )(wins, masks, *weights)

    out = out.reshape(B, nblk, 4, rb, W)
    out = jnp.transpose(out, (0, 2, 1, 3, 4)).reshape(B, 4, hr, W)
    return out[:, :, :H, :]


if __name__ == "__main__":
    key = jax.random.PRNGKey(0)
    kx, kp = jax.random.split(key)
    B, H, W = 2, 16, 16
    x = jax.random.normal(kx, (B, 10, H, W), jnp.float32)
    params = init_params(kp)

    fwd = jax.jit(merge_net_forward)
    out = jax.block_until_ready(fwd(x, params))
    assert out.shape == (B, 4, H, W), out.shape
    assert bool(jnp.all(jnp.isfinite(out)))
    print("KERNEL_OK")
</pallas_src>

<mosaic_0001>
module attributes {stable_mosaic.version = 11 : i64} {
  func.func @_merge_net_kernel(%arg0: i32, %arg1: memref<1x8x480xf32, #tpu.memory_space<vmem>>, %arg2: memref<1x3x480xf32, #tpu.memory_space<vmem>>, %arg3: memref<16x72xf32, #tpu.memory_space<vmem>>, %arg4: memref<16x1xf32, #tpu.memory_space<vmem>>, %arg5: memref<16x144xf32, #tpu.memory_space<vmem>>, %arg6: memref<16x1xf32, #tpu.memory_space<vmem>>, %arg7: memref<16x8xf32, #tpu.memory_space<vmem>>, %arg8: memref<16x1xf32, #tpu.memory_space<vmem>>, %arg9: memref<32x144xf32, #tpu.memory_space<vmem>>, %arg10: memref<32x1xf32, #tpu.memory_space<vmem>>, %arg11: memref<32x288xf32, #tpu.memory_space<vmem>>, %arg12: memref<32x1xf32, #tpu.memory_space<vmem>>, %arg13: memref<32x16xf32, #tpu.memory_space<vmem>>, %arg14: memref<32x1xf32, #tpu.memory_space<vmem>>, %arg15: memref<32x288xf32, #tpu.memory_space<vmem>>, %arg16: memref<32x1xf32, #tpu.memory_space<vmem>>, %arg17: memref<32x288xf32, #tpu.memory_space<vmem>>, %arg18: memref<32x1xf32, #tpu.memory_space<vmem>>, %arg19: memref<1x288xf32, #tpu.memory_space<vmem>>, %arg20: memref<1x1xf32, #tpu.memory_space<vmem>>, %arg21: memref<1x4x256xf32, #tpu.memory_space<vmem>>, %arg22: memref<32x736xf32, #tpu.memory_space<vmem>>) attributes {dimension_semantics = [#tpu.dimension_semantics<parallel>], iteration_bounds = array<i64: 2>, scalar_prefetch = 0 : i64, scratch_operands = 1 : i64, tpu.core_type = #tpu.core_type<tc>, window_params = [{transform_indices = @transform_0, window_bounds = array<i64: 1, 8, 480>}, {transform_indices = @transform_1, window_bounds = array<i64: 1, 3, 480>}, {pipeline_mode = #tpu.pipeline_mode<synchronous>, transform_indices = @transform_2, window_bounds = array<i64: 16, 72>}, {pipeline_mode = #tpu.pipeline_mode<synchronous>, transform_indices = @transform_3, window_bounds = array<i64: 16, 1>}, {pipeline_mode = #tpu.pipeline_mode<synchronous>, transform_indices = @transform_4, window_bounds = array<i64: 16, 144>}, {pipeline_mode = #tpu.pipeline_mode<synchronous>, transform_indices = @transform_5, window_bounds = array<i64: 16, 1>}, {pipeline_mode = #tpu.pipeline_mode<synchronous>, transform_indices = @transform_6, window_bounds = array<i64: 16, 8>}, {pipeline_mode = #tpu.pipeline_mode<synchronous>, transform_indices = @transform_7, window_bounds = array<i64: 16, 1>}, {pipeline_mode = #tpu.pipeline_mode<synchronous>, transform_indices = @transform_8, window_bounds = array<i64: 32, 144>}, {pipeline_mode = #tpu.pipeline_mode<synchronous>, transform_indices = @transform_9, window_bounds = array<i64: 32, 1>}, {pipeline_mode = #tpu.pipeline_mode<synchronous>, transform_indices = @transform_10, window_bounds = array<i64: 32, 288>}, {pipeline_mode = #tpu.pipeline_mode<synchronous>, transform_indices = @transform_11, window_bounds = array<i64: 32, 1>}, {pipeline_mode = #tpu.pipeline_mode<synchronous>, transform_indices = @transform_12, window_bounds = array<i64: 32, 16>}, {pipeline_mode = #tpu.pipeline_mode<synchronous>, transform_indices = @transform_13, window_bounds = array<i64: 32, 1>}, {pipeline_mode = #tpu.pipeline_mode<synchronous>, transform_indices = @transform_14, window_bounds = array<i64: 32, 288>}, {pipeline_mode = #tpu.pipeline_mode<synchronous>, transform_indices = @transform_15, window_bounds = array<i64: 32, 1>}, {pipeline_mode = #tpu.pipeline_mode<synchronous>, transform_indices = @transform_16, window_bounds = array<i64: 32, 288>}, {pipeline_mode = #tpu.pipeline_mode<synchronous>, transform_indices = @transform_17, window_bounds = array<i64: 32, 1>}, {pipeline_mode = #tpu.pipeline_mode<synchronous>, transform_indices = @transform_18, window_bounds = array<i64: 1, 288>}, {pipeline_mode = #tpu.pipeline_mode<synchronous>, transform_indices = @transform_19, window_bounds = array<i64: 1, 1>}, {transform_indices = @transform_20, window_bounds = array<i64: 1, 4, 256>}]} {
    %cst = arith.constant 0.000000e+00 : f32
    %0 = vector.broadcast %cst : f32 to vector<32x736xf32>
    %c0 = arith.constant 0 : index
    %c0_0 = arith.constant 0 : index
    %1 = vector.load %arg22[%c0, %c0_0] : memref<32x736xf32, #tpu.memory_space<vmem>>, vector<32x736xf32>
    tpu.vector_store %arg22[%c0, %c0_0], %0 {strides = array<i32>} : memref<32x736xf32, #tpu.memory_space<vmem>>, vector<32x736xf32>,
    %c0_1 = arith.constant 0 : index
    %c0_2 = arith.constant 0 : index
    %c0_3 = arith.constant 0 : index
    %2 = vector.load %arg2[%c0_1, %c0_2, %c0_3] : memref<1x3x480xf32, #tpu.memory_space<vmem>>, vector<1x3x480xf32>
    %3 = vector.shape_cast %2 : vector<1x3x480xf32> to vector<3x480xf32>
    %4 = vector.extract_strided_slice %3 {offsets = [0, 0], sizes = [1, 480], strides = [1, 1]} : vector<3x480xf32> to vector<1x480xf32>
    %5 = vector.extract_strided_slice %3 {offsets = [1, 0], sizes = [1, 480], strides = [1, 1]} : vector<3x480xf32> to vector<1x480xf32>
    %6 = vector.extract_strided_slice %3 {offsets = [2, 0], sizes = [1, 480], strides = [1, 1]} : vector<3x480xf32> to vector<1x480xf32>
    %c0_4 = arith.constant 0 : index
    %c0_5 = arith.constant 0 : index
    %c0_6 = arith.constant 0 : index
    %7 = vector.load %arg1[%c0_4, %c0_5, %c0_6] : memref<1x8x480xf32, #tpu.memory_space<vmem>>, vector<1x8x480xf32>
    %8 = vector.shape_cast %7 : vector<1x8x480xf32> to vector<8x480xf32>
    %c0_7 = arith.constant 0 : index
    %c128 = arith.constant 128 : index
    %9 = vector.load %arg22[%c0_7, %c128] : memref<32x736xf32, #tpu.memory_space<vmem>>, vector<8x480xf32>
    tpu.vector_store %arg22[%c0_7, %c128], %8 {strides = array<i32>} : memref<32x736xf32, #tpu.memory_space<vmem>>, vector<8x480xf32>,
    %c0_8 = arith.constant 0 : index
    %c0_9 = arith.constant 0 : index
    %10 = vector.load %arg22[%c0_8, %c0_9] : memref<32x736xf32, #tpu.memory_space<vmem>>, vector<8x736xf32>
    %11 = vector.extract_strided_slice %10 {offsets = [0, 111], sizes = [8, 480], strides = [1, 1]} : vector<8x736xf32> to vector<8x480xf32>
    %12 = vector.broadcast %5 : vector<1x480xf32> to vector<8x480xf32>
    %13 = arith.mulf %11, %12 : vector<8x480xf32>
    %14 = vector.extract_strided_slice %10 {offsets = [0, 112], sizes = [8, 480], strides = [1, 1]} : vector<8x736xf32> to vector<8x480xf32>
    %15 = vector.extract_strided_slice %10 {offsets = [0, 113], sizes = [8, 480], strides = [1, 1]} : vector<8x736xf32> to vector<8x480xf32>
    %16 = vector.broadcast %6 : vector<1x480xf32> to vector<8x480xf32>
    %17 = arith.mulf %15, %16 : vector<8x480xf32>
    %18 = vector.extract_strided_slice %10 {offsets = [0, 127], sizes = [8, 480], strides = [1, 1]} : vector<8x736xf32> to vector<8x480xf32>
    %19 = vector.broadcast %5 : vector<1x480xf32> to vector<8x480xf32>
    %20 = arith.mulf %18, %19 : vector<8x480xf32>
    %21 = vector.extract_strided_slice %10 {offsets = [0, 128], sizes = [8, 480], strides = [1, 1]} : vector<8x736xf32> to vector<8x480xf32>
    %22 = vector.extract_strided_slice %10 {offsets = [0, 129], sizes = [8, 480], strides = [1, 1]} : vector<8x736xf32> to vector<8x480xf32>
    %23 = vector.broadcast %6 : vector<1x480xf32> to vector<8x480xf32>
    %24 = arith.mulf %22, %23 : vector<8x480xf32>
    %25 = vector.extract_strided_slice %10 {offsets = [0, 143], sizes = [8, 480], strides = [1, 1]} : vector<8x736xf32> to vector<8x480xf32>
    %26 = vector.broadcast %5 : vector<1x480xf32> to vector<8x480xf32>
    %27 = arith.mulf %25, %26 : vector<8x480xf32>
    %28 = vector.extract_strided_slice %10 {offsets = [0, 144], sizes = [8, 480], strides = [1, 1]} : vector<8x736xf32> to vector<8x480xf32>
    %29 = vector.extract_strided_slice %10 {offsets = [0, 145], sizes = [8, 480], strides = [1, 1]} : vector<8x736xf32> to vector<8x480xf32>
    %30 = vector.broadcast %6 : vector<1x480xf32> to vector<8x480xf32>
    %31 = arith.mulf %29, %30 : vector<8x480xf32>
    %32 = tpu.concatenate %13, %14, %17, %20, %21, %24, %27, %28, %31 in 0 : vector<8x480xf32>, vector<8x480xf32>, vector<8x480xf32>, vector<8x480xf32>, vector<8x480xf32>, vector<8x480xf32>, vector<8x480xf32>, vector<8x480xf32>, vector<8x480xf32> -> vector<72x480xf32>
    %c0_10 = arith.constant 0 : index
    %c0_11 = arith.constant 0 : index
    %33 = vector.load %arg3[%c0_10, %c0_11] : memref<16x72xf32, #tpu.memory_space<vmem>>, vector<16x72xf32>
    %cst_12 = arith.constant dense<0.000000e+00> : vector<16x480xf32>
    %34 = tpu.matmul %33, %32, %cst_12 {dimension_numbers = #tpu.dot_dimension_numbers<[1], [0], [0], [1], [0, 0, 1, 1], [], []>} : vector<16x72xf32>, vector<72x480xf32>, vector<16x480xf32> -> vector<16x480xf32>
    %c0_13 = arith.constant 0 : index
    %c0_14 = arith.constant 0 : index
    %35 = vector.load %arg4[%c0_13, %c0_14] : memref<16x1xf32, #tpu.memory_space<vmem>>, vector<16x1xf32>
    %36 = vector.broadcast %35 : vector<16x1xf32> to vector<16x480xf32>
    %37 = arith.addf %34, %36 : vector<16x480xf32>
    %cst_15 = arith.constant 0.000000e+00 : f32
    %38 = vector.broadcast %cst_15 : f32 to vector<16x480xf32>
    %39 = arith.maximumf %37, %38 : vector<16x480xf32>
    %40 = vector.broadcast %4 : vector<1x480xf32> to vector<16x480xf32>
    %41 = arith.mulf %39, %40 : vector<16x480xf32>
    %c0_16 = arith.constant 0 : index
    %c128_17 = arith.constant 128 : index
    %42 = vector.load %arg22[%c0_16, %c128_17] : memref<32x736xf32, #tpu.memory_space<vmem>>, vector<16x480xf32>
    tpu.vector_store %arg22[%c0_16, %c128_17], %41 {strides = array<i32>} : memref<32x736xf32, #tpu.memory_space<vmem>>, vector<16x480xf32>,
    %c0_18 = arith.constant 0 : index
    %c0_19 = arith.constant 0 : index
    %43 = vector.load %arg22[%c0_18, %c0_19] : memref<32x736xf32, #tpu.memory_space<vmem>>, vector<16x736xf32>
    %44 = vector.extract_strided_slice %43 {offsets = [0, 111], sizes = [16, 480], strides = [1, 1]} : vector<16x736xf32> to vector<16x480xf32>
    %45 = vector.broadcast %5 : vector<1x480xf32> to vector<16x480xf32>
    %46 = arith.mulf %44, %45 : vector<16x480xf32>
    %47 = vector.extract_strided_slice %43 {offsets = [0, 112], sizes = [16, 480], strides = [1, 1]} : vector<16x736xf32> to vector<16x480xf32>
    %48 = vector.extract_strided_slice %43 {offsets = [0, 113], sizes = [16, 480], strides = [1, 1]} : vector<16x736xf32> to vector<16x480xf32>
    %49 = vector.broadcast %6 : vector<1x480xf32> to vector<16x480xf32>
    %50 = arith.mulf %48, %49 : vector<16x480xf32>
    %51 = vector.extract_strided_slice %43 {offsets = [0, 127], sizes = [16, 480], strides = [1, 1]} : vector<16x736xf32> to vector<16x480xf32>
    %52 = vector.broadcast %5 : vector<1x480xf32> to vector<16x480xf32>
    %53 = arith.mulf %51, %52 : vector<16x480xf32>
    %54 = vector.extract_strided_slice %43 {offsets = [0, 128], sizes = [16, 480], strides = [1, 1]} : vector<16x736xf32> to vector<16x480xf32>
    %55 = vector.extract_strided_slice %43 {offsets = [0, 129], sizes = [16, 480], strides = [1, 1]} : vector<16x736xf32> to vector<16x480xf32>
    %56 = vector.broadcast %6 : vector<1x480xf32> to vector<16x480xf32>
    %57 = arith.mulf %55, %56 : vector<16x480xf32>
    %58 = vector.extract_strided_slice %43 {offsets = [0, 143], sizes = [16, 480], strides = [1, 1]} : vector<16x736xf32> to vector<16x480xf32>
    %59 = vector.broadcast %5 : vector<1x480xf32> to vector<16x480xf32>
    %60 = arith.mulf %58, %59 : vector<16x480xf32>
    %61 = vector.extract_strided_slice %43 {offsets = [0, 144], sizes = [16, 480], strides = [1, 1]} : vector<16x736xf32> to vector<16x480xf32>
    %62 = vector.extract_strided_slice %43 {offsets = [0, 145], sizes = [16, 480], strides = [1, 1]} : vector<16x736xf32> to vector<16x480xf32>
    %63 = vector.broadcast %6 : vector<1x480xf32> to vector<16x480xf32>
    %64 = arith.mulf %62, %63 : vector<16x480xf32>
    %65 = tpu.concatenate %46, %47, %50, %53, %54, %57, %60, %61, %64 in 0 : vector<16x480xf32>, vector<16x480xf32>, vector<16x480xf32>, vector<16x480xf32>, vector<16x480xf32>, vector<16x480xf32>, vector<16x480xf32>, vector<16x480xf32>, vector<16x480xf32> -> vector<144x480xf32>
    %c0_20 = arith.constant 0 : index
    %c0_21 = arith.constant 0 : index
    %66 = vector.load %arg5[%c0_20, %c0_21] : memref<16x144xf32, #tpu.memory_space<vmem>>, vector<16x144xf32>
    %cst_22 = arith.constant dense<0.000000e+00> : vector<16x480xf32>
    %67 = tpu.matmul %66, %65, %cst_22 {dimension_numbers = #tpu.dot_dimension_numbers<[1], [0], [0], [1], [0, 0, 1, 1], [], []>} : vector<16x144xf32>, vector<144x480xf32>, vector<16x480xf32> -> vector<16x480xf32>
    %c0_23 = arith.constant 0 : index
    %c0_24 = arith.constant 0 : index
    %68 = vector.load %arg6[%c0_23, %c0_24] : memref<16x1xf32, #tpu.memory_space<vmem>>, vector<16x1xf32>
    %69 = vector.broadcast %68 : vector<16x1xf32> to vector<16x480xf32>
    %70 = arith.addf %67, %69 : vector<16x480xf32>
    %c0_25 = arith.constant 0 : index
    %c0_26 = arith.constant 0 : index
    %71 = vector.load %arg7[%c0_25, %c0_26] : memref<16x8xf32, #tpu.memory_space<vmem>>, vector<16x8xf32>
    %cst_27 = arith.constant dense<0.000000e+00> : vector<16x480xf32>
    %72 = tpu.matmul %71, %8, %cst_27 {dimension_numbers = #tpu.dot_dimension_numbers<[1], [0], [0], [1], [0, 0, 1, 1], [], []>} : vector<16x8xf32>, vector<8x480xf32>, vector<16x480xf32> -> vector<16x480xf32>
    %c0_28 = arith.constant 0 : index
    %c0_29 = arith.constant 0 : index
    %73 = vector.load %arg8[%c0_28, %c0_29] : memref<16x1xf32, #tpu.memory_space<vmem>>, vector<16x1xf32>
    %74 = vector.broadcast %73 : vector<16x1xf32> to vector<16x480xf32>
    %75 = arith.addf %72, %74 : vector<16x480xf32>
    %76 = arith.addf %70, %75 : vector<16x480xf32>
    %cst_30 = arith.constant 0.000000e+00 : f32
    %77 = vector.broadcast %cst_30 : f32 to vector<16x480xf32>
    %78 = arith.maximumf %76, %77 : vector<16x480xf32>
    %79 = vector.broadcast %4 : vector<1x480xf32> to vector<16x480xf32>
    %80 = arith.mulf %78, %79 : vector<16x480xf32>
    %c0_31 = arith.constant 0 : index
    %c128_32 = arith.constant 128 : index
    %81 = vector.load %arg22[%c0_31, %c128_32] : memref<32x736xf32, #tpu.memory_space<vmem>>, vector<16x480xf32>
    tpu.vector_store %arg22[%c0_31, %c128_32], %80 {strides = array<i32>} : memref<32x736xf32, #tpu.memory_space<vmem>>, vector<16x480xf32>,
    %c0_33 = arith.constant 0 : index
    %c0_34 = arith.constant 0 : index
    %82 = vector.load %arg22[%c0_33, %c0_34] : memref<32x736xf32, #tpu.memory_space<vmem>>, vector<16x736xf32>
    %83 = vector.extract_strided_slice %82 {offsets = [0, 111], sizes = [16, 480], strides = [1, 1]} : vector<16x736xf32> to vector<16x480xf32>
    %84 = vector.broadcast %5 : vector<1x480xf32> to vector<16x480xf32>
    %85 = arith.mulf %83, %84 : vector<16x480xf32>
    %86 = vector.extract_strided_slice %82 {offsets = [0, 112], sizes = [16, 480], strides = [1, 1]} : vector<16x736xf32> to vector<16x480xf32>
    %87 = vector.extract_strided_slice %82 {offsets = [0, 113], sizes = [16, 480], strides = [1, 1]} : vector<16x736xf32> to vector<16x480xf32>
    %88 = vector.broadcast %6 : vector<1x480xf32> to vector<16x480xf32>
    %89 = arith.mulf %87, %88 : vector<16x480xf32>
    %90 = vector.extract_strided_slice %82 {offsets = [0, 127], sizes = [16, 480], strides = [1, 1]} : vector<16x736xf32> to vector<16x480xf32>
    %91 = vector.broadcast %5 : vector<1x480xf32> to vector<16x480xf32>
    %92 = arith.mulf %90, %91 : vector<16x480xf32>
    %93 = vector.extract_strided_slice %82 {offsets = [0, 128], sizes = [16, 480], strides = [1, 1]} : vector<16x736xf32> to vector<16x480xf32>
    %94 = vector.extract_strided_slice %82 {offsets = [0, 129], sizes = [16, 480], strides = [1, 1]} : vector<16x736xf32> to vector<16x480xf32>
    %95 = vector.broadcast %6 : vector<1x480xf32> to vector<16x480xf32>
    %96 = arith.mulf %94, %95 : vector<16x480xf32>
    %97 = vector.extract_strided_slice %82 {offsets = [0, 143], sizes = [16, 480], strides = [1, 1]} : vector<16x736xf32> to vector<16x480xf32>
    %98 = vector.broadcast %5 : vector<1x480xf32> to vector<16x480xf32>
    %99 = arith.mulf %97, %98 : vector<16x480xf32>
    %100 = vector.extract_strided_slice %82 {offsets = [0, 144], sizes = [16, 480], strides = [1, 1]} : vector<16x736xf32> to vector<16x480xf32>
    %101 = vector.extract_strided_slice %82 {offsets = [0, 145], sizes = [16, 480], strides = [1, 1]} : vector<16x736xf32> to vector<16x480xf32>
    %102 = vector.broadcast %6 : vector<1x480xf32> to vector<16x480xf32>
    %103 = arith.mulf %101, %102 : vector<16x480xf32>
    %104 = tpu.concatenate %85, %86, %89, %92, %93, %96, %99, %100, %103 in 0 : vector<16x480xf32>, vector<16x480xf32>, vector<16x480xf32>, vector<16x480xf32>, vector<16x480xf32>, vector<16x480xf32>, vector<16x480xf32>, vector<16x480xf32>, vector<16x480xf32> -> vector<144x480xf32>
    %c0_35 = arith.constant 0 : index
    %c0_36 = arith.constant 0 : index
    %105 = vector.load %arg9[%c0_35, %c0_36] : memref<32x144xf32, #tpu.memory_space<vmem>>, vector<32x144xf32>
    %cst_37 = arith.constant dense<0.000000e+00> : vector<32x480xf32>
    %106 = tpu.matmul %105, %104, %cst_37 {dimension_numbers = #tpu.dot_dimension_numbers<[1], [0], [0], [1], [0, 0, 1, 1], [], []>} : vector<32x144xf32>, vector<144x480xf32>, vector<32x480xf32> -> vector<32x480xf32>
    %c0_38 = arith.constant 0 : index
    %c0_39 = arith.constant 0 : index
    %107 = vector.load %arg10[%c0_38, %c0_39] : memref<32x1xf32, #tpu.memory_space<vmem>>, vector<32x1xf32>
    %108 = vector.broadcast %107 : vector<32x1xf32> to vector<32x480xf32>
    %109 = arith.addf %106, %108 : vector<32x480xf32>
    %cst_40 = arith.constant 0.000000e+00 : f32
    %110 = vector.broadcast %cst_40 : f32 to vector<32x480xf32>
    %111 = arith.maximumf %109, %110 : vector<32x480xf32>
    %112 = vector.broadcast %4 : vector<1x480xf32> to vector<32x480xf32>
    %113 = arith.mulf %111, %112 : vector<32x480xf32>
    %c0_41 = arith.constant 0 : index
    %c128_42 = arith.constant 128 : index
    %114 = vector.load %arg22[%c0_41, %c128_42] : memref<32x736xf32, #tpu.memory_space<vmem>>, vector<32x480xf32>
    tpu.vector_store %arg22[%c0_41, %c128_42], %113 {strides = array<i32>} : memref<32x736xf32, #tpu.memory_space<vmem>>, vector<32x480xf32>,
    %c0_43 = arith.constant 0 : index
    %c0_44 = arith.constant 0 : index
    %115 = vector.load %arg22[%c0_43, %c0_44] : memref<32x736xf32, #tpu.memory_space<vmem>>, vector<32x736xf32>
    %116 = vector.extract_strided_slice %115 {offsets = [0, 111], sizes = [32, 480], strides = [1, 1]} : vector<32x736xf32> to vector<32x480xf32>
    %117 = vector.broadcast %5 : vector<1x480xf32> to vector<32x480xf32>
    %118 = arith.mulf %116, %117 : vector<32x480xf32>
    %119 = vector.extract_strided_slice %115 {offsets = [0, 112], sizes = [32, 480], strides = [1, 1]} : vector<32x736xf32> to vector<32x480xf32>
    %120 = vector.extract_strided_slice %115 {offsets = [0, 113], sizes = [32, 480], strides = [1, 1]} : vector<32x736xf32> to vector<32x480xf32>
    %121 = vector.broadcast %6 : vector<1x480xf32> to vector<32x480xf32>
    %122 = arith.mulf %120, %121 : vector<32x480xf32>
    %123 = vector.extract_strided_slice %115 {offsets = [0, 127], sizes = [32, 480], strides = [1, 1]} : vector<32x736xf32> to vector<32x480xf32>
    %124 = vector.broadcast %5 : vector<1x480xf32> to vector<32x480xf32>
    %125 = arith.mulf %123, %124 : vector<32x480xf32>
    %126 = vector.extract_strided_slice %115 {offsets = [0, 128], sizes = [32, 480], strides = [1, 1]} : vector<32x736xf32> to vector<32x480xf32>
    %127 = vector.extract_strided_slice %115 {offsets = [0, 129], sizes = [32, 480], strides = [1, 1]} : vector<32x736xf32> to vector<32x480xf32>
    %128 = vector.broadcast %6 : vector<1x480xf32> to vector<32x480xf32>
    %129 = arith.mulf %127, %128 : vector<32x480xf32>
    %130 = vector.extract_strided_slice %115 {offsets = [0, 143], sizes = [32, 480], strides = [1, 1]} : vector<32x736xf32> to vector<32x480xf32>
    %131 = vector.broadcast %5 : vector<1x480xf32> to vector<32x480xf32>
    %132 = arith.mulf %130, %131 : vector<32x480xf32>
    %133 = vector.extract_strided_slice %115 {offsets = [0, 144], sizes = [32, 480], strides = [1, 1]} : vector<32x736xf32> to vector<32x480xf32>
    %134 = vector.extract_strided_slice %115 {offsets = [0, 145], sizes = [32, 480], strides = [1, 1]} : vector<32x736xf32> to vector<32x480xf32>
    %135 = vector.broadcast %6 : vector<1x480xf32> to vector<32x480xf32>
    %136 = arith.mulf %134, %135 : vector<32x480xf32>
    %137 = tpu.concatenate %118, %119, %122, %125, %126, %129, %132, %133, %136 in 0 : vector<32x480xf32>, vector<32x480xf32>, vector<32x480xf32>, vector<32x480xf32>, vector<32x480xf32>, vector<32x480xf32>, vector<32x480xf32>, vector<32x480xf32>, vector<32x480xf32> -> vector<288x480xf32>
    %c0_45 = arith.constant 0 : index
    %c0_46 = arith.constant 0 : index
    %138 = vector.load %arg11[%c0_45, %c0_46] : memref<32x288xf32, #tpu.memory_space<vmem>>, vector<32x288xf32>
    %cst_47 = arith.constant dense<0.000000e+00> : vector<32x480xf32>
    %139 = tpu.matmul %138, %137, %cst_47 {dimension_numbers = #tpu.dot_dimension_numbers<[1], [0], [0], [1], [0, 0, 1, 1], [], []>} : vector<32x288xf32>, vector<288x480xf32>, vector<32x480xf32> -> vector<32x480xf32>
    %c0_48 = arith.constant 0 : index
    %c0_49 = arith.constant 0 : index
    %140 = vector.load %arg12[%c0_48, %c0_49] : memref<32x1xf32, #tpu.memory_space<vmem>>, vector<32x1xf32>
    %141 = vector.broadcast %140 : vector<32x1xf32> to vector<32x480xf32>
    %142 = arith.addf %139, %141 : vector<32x480xf32>
    %c0_50 = arith.constant 0 : index
    %c0_51 = arith.constant 0 : index
    %143 = vector.load %arg13[%c0_50, %c0_51] : memref<32x16xf32, #tpu.memory_space<vmem>>, vector<32x16xf32>
    %cst_52 = arith.constant dense<0.000000e+00> : vector<32x480xf32>
    %144 = tpu.matmul %143, %80, %cst_52 {dimension_numbers = #tpu.dot_dimension_numbers<[1], [0], [0], [1], [0, 0, 1, 1], [], []>} : vector<32x16xf32>, vector<16x480xf32>, vector<32x480xf32> -> vector<32x480xf32>
    %c0_53 = arith.constant 0 : index
    %c0_54 = arith.constant 0 : index
    %145 = vector.load %arg14[%c0_53, %c0_54] : memref<32x1xf32, #tpu.memory_space<vmem>>, vector<32x1xf32>
    %146 = vector.broadcast %145 : vector<32x1xf32> to vector<32x480xf32>
    %147 = arith.addf %144, %146 : vector<32x480xf32>
    %148 = arith.addf %142, %147 : vector<32x480xf32>
    %cst_55 = arith.constant 0.000000e+00 : f32
    %149 = vector.broadcast %cst_55 : f32 to vector<32x480xf32>
    %150 = arith.maximumf %148, %149 : vector<32x480xf32>
    %151 = vector.broadcast %4 : vector<1x480xf32> to vector<32x480xf32>
    %152 = arith.mulf %150, %151 : vector<32x480xf32>
    %c0_56 = arith.constant 0 : index
    %c128_57 = arith.constant 128 : index
    %153 = vector.load %arg22[%c0_56, %c128_57] : memref<32x736xf32, #tpu.memory_space<vmem>>, vector<32x480xf32>
    tpu.vector_store %arg22[%c0_56, %c128_57], %152 {strides = array<i32>} : memref<32x736xf32, #tpu.memory_space<vmem>>, vector<32x480xf32>,
    %c0_58 = arith.constant 0 : index
    %c0_59 = arith.constant 0 : index
    %154 = vector.load %arg22[%c0_58, %c0_59] : memref<32x736xf32, #tpu.memory_space<vmem>>, vector<32x736xf32>
    %155 = vector.extract_strided_slice %154 {offsets = [0, 111], sizes = [32, 480], strides = [1, 1]} : vector<32x736xf32> to vector<32x480xf32>
    %156 = vector.broadcast %5 : vector<1x480xf32> to vector<32x480xf32>
    %157 = arith.mulf %155, %156 : vector<32x480xf32>
    %158 = vector.extract_strided_slice %154 {offsets = [0, 112], sizes = [32, 480], strides = [1, 1]} : vector<32x736xf32> to vector<32x480xf32>
    %159 = vector.extract_strided_slice %154 {offsets = [0, 113], sizes = [32, 480], strides = [1, 1]} : vector<32x736xf32> to vector<32x480xf32>
    %160 = vector.broadcast %6 : vector<1x480xf32> to vector<32x480xf32>
    %161 = arith.mulf %159, %160 : vector<32x480xf32>
    %162 = vector.extract_strided_slice %154 {offsets = [0, 127], sizes = [32, 480], strides = [1, 1]} : vector<32x736xf32> to vector<32x480xf32>
    %163 = vector.broadcast %5 : vector<1x480xf32> to vector<32x480xf32>
    %164 = arith.mulf %162, %163 : vector<32x480xf32>
    %165 = vector.extract_strided_slice %154 {offsets = [0, 128], sizes = [32, 480], strides = [1, 1]} : vector<32x736xf32> to vector<32x480xf32>
    %166 = vector.extract_strided_slice %154 {offsets = [0, 129], sizes = [32, 480], strides = [1, 1]} : vector<32x736xf32> to vector<32x480xf32>
    %167 = vector.broadcast %6 : vector<1x480xf32> to vector<32x480xf32>
    %168 = arith.mulf %166, %167 : vector<32x480xf32>
    %169 = vector.extract_strided_slice %154 {offsets = [0, 143], sizes = [32, 480], strides = [1, 1]} : vector<32x736xf32> to vector<32x480xf32>
    %170 = vector.broadcast %5 : vector<1x480xf32> to vector<32x480xf32>
    %171 = arith.mulf %169, %170 : vector<32x480xf32>
    %172 = vector.extract_strided_slice %154 {offsets = [0, 144], sizes = [32, 480], strides = [1, 1]} : vector<32x736xf32> to vector<32x480xf32>
    %173 = vector.extract_strided_slice %154 {offsets = [0, 145], sizes = [32, 480], strides = [1, 1]} : vector<32x736xf32> to vector<32x480xf32>
    %174 = vector.broadcast %6 : vector<1x480xf32> to vector<32x480xf32>
    %175 = arith.mulf %173, %174 : vector<32x480xf32>
    %176 = tpu.concatenate %157, %158, %161, %164, %165, %168, %171, %172, %175 in 0 : vector<32x480xf32>, vector<32x480xf32>, vector<32x480xf32>, vector<32x480xf32>, vector<32x480xf32>, vector<32x480xf32>, vector<32x480xf32>, vector<32x480xf32>, vector<32x480xf32> -> vector<288x480xf32>
    %c0_60 = arith.constant 0 : index
    %c0_61 = arith.constant 0 : index
    %177 = vector.load %arg15[%c0_60, %c0_61] : memref<32x288xf32, #tpu.memory_space<vmem>>, vector<32x288xf32>
    %cst_62 = arith.constant dense<0.000000e+00> : vector<32x480xf32>
    %178 = tpu.matmul %177, %176, %cst_62 {dimension_numbers = #tpu.dot_dimension_numbers<[1], [0], [0], [1], [0, 0, 1, 1], [], []>} : vector<32x288xf32>, vector<288x480xf32>, vector<32x480xf32> -> vector<32x480xf32>
    %c0_63 = arith.constant 0 : index
    %c0_64 = arith.constant 0 : index
    %179 = vector.load %arg16[%c0_63, %c0_64] : memref<32x1xf32, #tpu.memory_space<vmem>>, vector<32x1xf32>
    %180 = vector.broadcast %179 : vector<32x1xf32> to vector<32x480xf32>
    %181 = arith.addf %178, %180 : vector<32x480xf32>
    %cst_65 = arith.constant 0.000000e+00 : f32
    %182 = vector.broadcast %cst_65 : f32 to vector<32x480xf32>
    %183 = arith.maximumf %181, %182 : vector<32x480xf32>
    %184 = vector.broadcast %4 : vector<1x480xf32> to vector<32x480xf32>
    %185 = arith.mulf %183, %184 : vector<32x480xf32>
    %c0_66 = arith.constant 0 : index
    %c128_67 = arith.constant 128 : index
    %186 = vector.load %arg22[%c0_66, %c128_67] : memref<32x736xf32, #tpu.memory_space<vmem>>, vector<32x480xf32>
    tpu.vector_store %arg22[%c0_66, %c128_67], %185 {strides = array<i32>} : memref<32x736xf32, #tpu.memory_space<vmem>>, vector<32x480xf32>,
    %c0_68 = arith.constant 0 : index
    %c0_69 = arith.constant 0 : index
    %187 = vector.load %arg22[%c0_68, %c0_69] : memref<32x736xf32, #tpu.memory_space<vmem>>, vector<32x736xf32>
    %188 = vector.extract_strided_slice %187 {offsets = [0, 111], sizes = [32, 480], strides = [1, 1]} : vector<32x736xf32> to vector<32x480xf32>
    %189 = vector.broadcast %5 : vector<1x480xf32> to vector<32x480xf32>
    %190 = arith.mulf %188, %189 : vector<32x480xf32>
    %191 = vector.extract_strided_slice %187 {offsets = [0, 112], sizes = [32, 480], strides = [1, 1]} : vector<32x736xf32> to vector<32x480xf32>
    %192 = vector.extract_strided_slice %187 {offsets = [0, 113], sizes = [32, 480], strides = [1, 1]} : vector<32x736xf32> to vector<32x480xf32>
    %193 = vector.broadcast %6 : vector<1x480xf32> to vector<32x480xf32>
    %194 = arith.mulf %192, %193 : vector<32x480xf32>
    %195 = vector.extract_strided_slice %187 {offsets = [0, 127], sizes = [32, 480], strides = [1, 1]} : vector<32x736xf32> to vector<32x480xf32>
    %196 = vector.broadcast %5 : vector<1x480xf32> to vector<32x480xf32>
    %197 = arith.mulf %195, %196 : vector<32x480xf32>
    %198 = vector.extract_strided_slice %187 {offsets = [0, 128], sizes = [32, 480], strides = [1, 1]} : vector<32x736xf32> to vector<32x480xf32>
    %199 = vector.extract_strided_slice %187 {offsets = [0, 129], sizes = [32, 480], strides = [1, 1]} : vector<32x736xf32> to vector<32x480xf32>
    %200 = vector.broadcast %6 : vector<1x480xf32> to vector<32x480xf32>
    %201 = arith.mulf %199, %200 : vector<32x480xf32>
    %202 = vector.extract_strided_slice %187 {offsets = [0, 143], sizes = [32, 480], strides = [1, 1]} : vector<32x736xf32> to vector<32x480xf32>
    %203 = vector.broadcast %5 : vector<1x480xf32> to vector<32x480xf32>
    %204 = arith.mulf %202, %203 : vector<32x480xf32>
    %205 = vector.extract_strided_slice %187 {offsets = [0, 144], sizes = [32, 480], strides = [1, 1]} : vector<32x736xf32> to vector<32x480xf32>
    %206 = vector.extract_strided_slice %187 {offsets = [0, 145], sizes = [32, 480], strides = [1, 1]} : vector<32x736xf32> to vector<32x480xf32>
    %207 = vector.broadcast %6 : vector<1x480xf32> to vector<32x480xf32>
    %208 = arith.mulf %206, %207 : vector<32x480xf32>
    %209 = tpu.concatenate %190, %191, %194, %197, %198, %201, %204, %205, %208 in 0 : vector<32x480xf32>, vector<32x480xf32>, vector<32x480xf32>, vector<32x480xf32>, vector<32x480xf32>, vector<32x480xf32>, vector<32x480xf32>, vector<32x480xf32>, vector<32x480xf32> -> vector<288x480xf32>
    %c0_70 = arith.constant 0 : index
    %c0_71 = arith.constant 0 : index
    %210 = vector.load %arg17[%c0_70, %c0_71] : memref<32x288xf32, #tpu.memory_space<vmem>>, vector<32x288xf32>
    %cst_72 = arith.constant dense<0.000000e+00> : vector<32x480xf32>
    %211 = tpu.matmul %210, %209, %cst_72 {dimension_numbers = #tpu.dot_dimension_numbers<[1], [0], [0], [1], [0, 0, 1, 1], [], []>} : vector<32x288xf32>, vector<288x480xf32>, vector<32x480xf32> -> vector<32x480xf32>
    %c0_73 = arith.constant 0 : index
    %c0_74 = arith.constant 0 : index
    %212 = vector.load %arg18[%c0_73, %c0_74] : memref<32x1xf32, #tpu.memory_space<vmem>>, vector<32x1xf32>
    %213 = vector.broadcast %212 : vector<32x1xf32> to vector<32x480xf32>
    %214 = arith.addf %211, %213 : vector<32x480xf32>
    %215 = arith.addf %214, %152 : vector<32x480xf32>
    %cst_75 = arith.constant 0.000000e+00 : f32
    %216 = vector.broadcast %cst_75 : f32 to vector<32x480xf32>
    %217 = arith.maximumf %215, %216 : vector<32x480xf32>
    %218 = vector.broadcast %4 : vector<1x480xf32> to vector<32x480xf32>
    %219 = arith.mulf %217, %218 : vector<32x480xf32>
    %c0_76 = arith.constant 0 : index
    %c128_77 = arith.constant 128 : index
    %220 = vector.load %arg22[%c0_76, %c128_77] : memref<32x736xf32, #tpu.memory_space<vmem>>, vector<32x480xf32>
    tpu.vector_store %arg22[%c0_76, %c128_77], %219 {strides = array<i32>} : memref<32x736xf32, #tpu.memory_space<vmem>>, vector<32x480xf32>,
    %c0_78 = arith.constant 0 : index
    %c0_79 = arith.constant 0 : index
    %221 = vector.load %arg22[%c0_78, %c0_79] : memref<32x736xf32, #tpu.memory_space<vmem>>, vector<32x736xf32>
    %222 = vector.extract_strided_slice %221 {offsets = [0, 111], sizes = [32, 480], strides = [1, 1]} : vector<32x736xf32> to vector<32x480xf32>
    %223 = vector.broadcast %5 : vector<1x480xf32> to vector<32x480xf32>
    %224 = arith.mulf %222, %223 : vector<32x480xf32>
    %225 = vector.extract_strided_slice %221 {offsets = [0, 112], sizes = [32, 480], strides = [1, 1]} : vector<32x736xf32> to vector<32x480xf32>
    %226 = vector.extract_strided_slice %221 {offsets = [0, 113], sizes = [32, 480], strides = [1, 1]} : vector<32x736xf32> to vector<32x480xf32>
    %227 = vector.broadcast %6 : vector<1x480xf32> to vector<32x480xf32>
    %228 = arith.mulf %226, %227 : vector<32x480xf32>
    %229 = vector.extract_strided_slice %221 {offsets = [0, 127], sizes = [32, 480], strides = [1, 1]} : vector<32x736xf32> to vector<32x480xf32>
    %230 = vector.broadcast %5 : vector<1x480xf32> to vector<32x480xf32>
    %231 = arith.mulf %229, %230 : vector<32x480xf32>
    %232 = vector.extract_strided_slice %221 {offsets = [0, 128], sizes = [32, 480], strides = [1, 1]} : vector<32x736xf32> to vector<32x480xf32>
    %233 = vector.extract_strided_slice %221 {offsets = [0, 129], sizes = [32, 480], strides = [1, 1]} : vector<32x736xf32> to vector<32x480xf32>
    %234 = vector.broadcast %6 : vector<1x480xf32> to vector<32x480xf32>
    %235 = arith.mulf %233, %234 : vector<32x480xf32>
    %236 = vector.extract_strided_slice %221 {offsets = [0, 143], sizes = [32, 480], strides = [1, 1]} : vector<32x736xf32> to vector<32x480xf32>
    %237 = vector.broadcast %5 : vector<1x480xf32> to vector<32x480xf32>
    %238 = arith.mulf %236, %237 : vector<32x480xf32>
    %239 = vector.extract_strided_slice %221 {offsets = [0, 144], sizes = [32, 480], strides = [1, 1]} : vector<32x736xf32> to vector<32x480xf32>
    %240 = vector.extract_strided_slice %221 {offsets = [0, 145], sizes = [32, 480], strides = [1, 1]} : vector<32x736xf32> to vector<32x480xf32>
    %241 = vector.broadcast %6 : vector<1x480xf32> to vector<32x480xf32>
    %242 = arith.mulf %240, %241 : vector<32x480xf32>
    %243 = tpu.concatenate %224, %225, %228, %231, %232, %235, %238, %239, %242 in 0 : vector<32x480xf32>, vector<32x480xf32>, vector<32x480xf32>, vector<32x480xf32>, vector<32x480xf32>, vector<32x480xf32>, vector<32x480xf32>, vector<32x480xf32>, vector<32x480xf32> -> vector<288x480xf32>
    %c0_80 = arith.constant 0 : index
    %c0_81 = arith.constant 0 : index
    %244 = vector.load %arg19[%c0_80, %c0_81] : memref<1x288xf32, #tpu.memory_space<vmem>>, vector<1x288xf32>
    %cst_82 = arith.constant dense<0.000000e+00> : vector<1x480xf32>
    %245 = tpu.matmul %244, %243, %cst_82 {dimension_numbers = #tpu.dot_dimension_numbers<[1], [0], [0], [1], [0, 0, 1, 1], [], []>} : vector<1x288xf32>, vector<288x480xf32>, vector<1x480xf32> -> vector<1x480xf32>
    %c0_83 = arith.constant 0 : index
    %c0_84 = arith.constant 0 : index
    %246 = vector.load %arg20[%c0_83, %c0_84] : memref<1x1xf32, #tpu.memory_space<vmem>>, vector<1x1xf32>
    %247 = vector.broadcast %246 : vector<1x1xf32> to vector<1x480xf32>
    %248 = arith.addf %245, %247 : vector<1x480xf32>
    %cst_85 = arith.constant 0.000000e+00 : f32
    %249 = vector.broadcast %cst_85 : f32 to vector<1x480xf32>
    %250 = arith.subf %249, %248 : vector<1x480xf32>
    %251 = math.exp %250 : vector<1x480xf32>
    %cst_86 = arith.constant 1.000000e+00 : f32
    %252 = vector.broadcast %cst_86 : f32 to vector<1x480xf32>
    %253 = arith.addf %252, %251 : vector<1x480xf32>
    %254 = tpu.reciprocal %253 {approx = true} : vector<1x480xf32> -> vector<1x480xf32>
    %255 = vector.extract_strided_slice %8 {offsets = [0, 112], sizes = [4, 256], strides = [1, 1]} : vector<8x480xf32> to vector<4x256xf32>
    %256 = vector.extract_strided_slice %8 {offsets = [4, 112], sizes = [4, 256], strides = [1, 1]} : vector<8x480xf32> to vector<4x256xf32>
    %257 = arith.subf %256, %255 : vector<4x256xf32>
    %258 = vector.extract_strided_slice %254 {offsets = [0, 112], sizes = [1, 256], strides = [1, 1]} : vector<1x480xf32> to vector<1x256xf32>
    %259 = vector.broadcast %258 : vector<1x256xf32> to vector<4x256xf32>
    %260 = arith.mulf %257, %259 : vector<4x256xf32>
    %261 = arith.addf %255, %260 : vector<4x256xf32>
    %c0_87 = arith.constant 0 : index
    %c0_88 = arith.constant 0 : index
    %c0_89 = arith.constant 0 : index
    %262 = vector.load %arg21[%c0_87, %c0_88, %c0_89] : memref<1x4x256xf32, #tpu.memory_space<vmem>>, vector<1x4x256xf32>
    %263 = vector.shape_cast %262 : vector<1x4x256xf32> to vector<4x256xf32>
    %264 = vector.shape_cast %261 : vector<4x256xf32> to vector<1x4x256xf32>
    tpu.vector_store %arg21[%c0_87, %c0_88, %c0_89], %264 {strides = array<i32>} : memref<1x4x256xf32, #tpu.memory_space<vmem>>, vector<1x4x256xf32>,
    return
  }
  func.func @transform_0(%arg0: i32) -> (i32, i32, i32) {
    %c0_i32 = arith.constant 0 : i32
    %c0_i32_0 = arith.constant 0 : i32
    %c0_i32_1 = arith.constant 0 : i32
    return %arg0, %c0_i32, %c0_i32_0 : i32, i32, i32
  }
  func.func @transform_1(%arg0: i32) -> (i32, i32, i32) {
    %c0_i32 = arith.constant 0 : i32
    %c0_i32_0 = arith.constant 0 : i32
    %c0_i32_1 = arith.constant 0 : i32
    return %arg0, %c0_i32, %c0_i32_0 : i32, i32, i32
  }
  func.func @transform_2(%arg0: i32) -> (i32, i32) {
    %c0_i32 = arith.constant 0 : i32
    %c0_i32_0 = arith.constant 0 : i32
    %c0_i32_1 = arith.constant 0 : i32
    return %c0_i32, %c0_i32_0 : i32, i32
  }
  func.func @transform_3(%arg0: i32) -> (i32, i32) {
    %c0_i32 = arith.constant 0 : i32
    %c0_i32_0 = arith.constant 0 : i32
    %c0_i32_1 = arith.constant 0 : i32
    return %c0_i32, %c0_i32_0 : i32, i32
  }
  func.func @transform_4(%arg0: i32) -> (i32, i32) {
    %c0_i32 = arith.constant 0 : i32
    %c0_i32_0 = arith.constant 0 : i32
    %c0_i32_1 = arith.constant 0 : i32
    return %c0_i32, %c0_i32_0 : i32, i32
  }
  func.func @transform_5(%arg0: i32) -> (i32, i32) {
    %c0_i32 = arith.constant 0 : i32
    %c0_i32_0 = arith.constant 0 : i32
    %c0_i32_1 = arith.constant 0 : i32
    return %c0_i32, %c0_i32_0 : i32, i32
  }
  func.func @transform_6(%arg0: i32) -> (i32, i32) {
    %c0_i32 = arith.constant 0 : i32
    %c0_i32_0 = arith.constant 0 : i32
    %c0_i32_1 = arith.constant 0 : i32
    return %c0_i32, %c0_i32_0 : i32, i32
  }
  func.func @transform_7(%arg0: i32) -> (i32, i32) {
    %c0_i32 = arith.constant 0 : i32
    %c0_i32_0 = arith.constant 0 : i32
    %c0_i32_1 = arith.constant 0 : i32
    return %c0_i32, %c0_i32_0 : i32, i32
  }
  func.func @transform_8(%arg0: i32) -> (i32, i32) {
    %c0_i32 = arith.constant 0 : i32
    %c0_i32_0 = arith.constant 0 : i32
    %c0_i32_1 = arith.constant 0 : i32
    return %c0_i32, %c0_i32_0 : i32, i32
  }
  func.func @transform_9(%arg0: i32) -> (i32, i32) {
    %c0_i32 = arith.constant 0 : i32
    %c0_i32_0 = arith.constant 0 : i32
    %c0_i32_1 = arith.constant 0 : i32
    return %c0_i32, %c0_i32_0 : i32, i32
  }
  func.func @transform_10(%arg0: i32) -> (i32, i32) {
    %c0_i32 = arith.constant 0 : i32
    %c0_i32_0 = arith.constant 0 : i32
    %c0_i32_1 = arith.constant 0 : i32
    return %c0_i32, %c0_i32_0 : i32, i32
  }
  func.func @transform_11(%arg0: i32) -> (i32, i32) {
    %c0_i32 = arith.constant 0 : i32
    %c0_i32_0 = arith.constant 0 : i32
    %c0_i32_1 = arith.constant 0 : i32
    return %c0_i32, %c0_i32_0 : i32, i32
  }
  func.func @transform_12(%arg0: i32) -> (i32, i32) {
    %c0_i32 = arith.constant 0 : i32
    %c0_i32_0 = arith.constant 0 : i32
    %c0_i32_1 = arith.constant 0 : i32
    return %c0_i32, %c0_i32_0 : i32, i32
  }
  func.func @transform_13(%arg0: i32) -> (i32, i32) {
    %c0_i32 = arith.constant 0 : i32
    %c0_i32_0 = arith.constant 0 : i32
    %c0_i32_1 = arith.constant 0 : i32
    return %c0_i32, %c0_i32_0 : i32, i32
  }
  func.func @transform_14(%arg0: i32) -> (i32, i32) {
    %c0_i32 = arith.constant 0 : i32
    %c0_i32_0 = arith.constant 0 : i32
    %c0_i32_1 = arith.constant 0 : i32
    return %c0_i32, %c0_i32_0 : i32, i32
  }
  func.func @transform_15(%arg0: i32) -> (i32, i32) {
    %c0_i32 = arith.constant 0 : i32
    %c0_i32_0 = arith.constant 0 : i32
    %c0_i32_1 = arith.constant 0 : i32
    return %c0_i32, %c0_i32_0 : i32, i32
  }
  func.func @transform_16(%arg0: i32) -> (i32, i32) {
    %c0_i32 = arith.constant 0 : i32
    %c0_i32_0 = arith.constant 0 : i32
    %c0_i32_1 = arith.constant 0 : i32
    return %c0_i32, %c0_i32_0 : i32, i32
  }
  func.func @transform_17(%arg0: i32) -> (i32, i32) {
    %c0_i32 = arith.constant 0 : i32
    %c0_i32_0 = arith.constant 0 : i32
    %c0_i32_1 = arith.constant 0 : i32
    return %c0_i32, %c0_i32_0 : i32, i32
  }
  func.func @transform_18(%arg0: i32) -> (i32, i32) {
    %c0_i32 = arith.constant 0 : i32
    %c0_i32_0 = arith.constant 0 : i32
    %c0_i32_1 = arith.constant 0 : i32
    return %c0_i32, %c0_i32_0 : i32, i32
  }
  func.func @transform_19(%arg0: i32) -> (i32, i32) {
    %c0_i32 = arith.constant 0 : i32
    %c0_i32_0 = arith.constant 0 : i32
    %c0_i32_1 = arith.constant 0 : i32
    return %c0_i32, %c0_i32_0 : i32, i32
  }
  func.func @transform_20(%arg0: i32) -> (i32, i32, i32) {
    %c0_i32 = arith.constant 0 : i32
    %c0_i32_0 = arith.constant 0 : i32
    %c0_i32_1 = arith.constant 0 : i32
    return %arg0, %c0_i32, %c0_i32_0 : i32, i32, i32
  }
}

</mosaic_0001>

<llo_original>
// kernel: merge_net_forward.1
$region0: #{merge_net_forward.1}
  #allocation0 [shape = 'u32[]', space=smem, size = 0x4, offset = 0x4, fixed_abs, tag = 'smem constant byte address 0x4 - core index']
  #allocation1 [shape = 'u32[72,128]{1,0:T(1,128)}', space=vmem, size = 0x9000, scoped, tag = 'internal scratch']
  #allocation2 [shape = 'f32[32,736]{1,0:T(8,128)}', space=vmem, size = 0x18000, scoped, tag = 'scratch operand']
  #allocation3 [shape = 'f32[1,1]{1,0:T(1,128)S(1)}', space=vmem, size = 0x200, scoped, tag = 'scoped memory for merge_net_forward.1']
  %s0 = inlined_call_operand.vmem [shape: f32[2,8,480], index: 0, kind: input, shape index: {}]
  %s1 = inlined_call_operand.vmem [shape: f32[2,3,480], index: 1, kind: input, shape index: {}]
  %s2 = inlined_call_operand.vmem [shape: f32[16,72], index: 2, kind: input, shape index: {}]
  %s3 = inlined_call_operand.vmem [shape: f32[16,1], index: 3, kind: input, shape index: {}]
  %s4 = inlined_call_operand.vmem [shape: f32[16,144], index: 4, kind: input, shape index: {}]
  %s5 = inlined_call_operand.vmem [shape: f32[16,1], index: 5, kind: input, shape index: {}]
  %s6 = inlined_call_operand.vmem [shape: f32[16,8], index: 6, kind: input, shape index: {}]
  %s7 = inlined_call_operand.vmem [shape: f32[16,1], index: 7, kind: input, shape index: {}]
  %s8 = inlined_call_operand.vmem [shape: f32[32,144], index: 8, kind: input, shape index: {}]
  %s9 = inlined_call_operand.vmem [shape: f32[32,1], index: 9, kind: input, shape index: {}]
  %s10 = inlined_call_operand.vmem [shape: f32[32,288], index: 10, kind: input, shape index: {}]
  %s11 = inlined_call_operand.vmem [shape: f32[32,1], index: 11, kind: input, shape index: {}]
  %s12 = inlined_call_operand.vmem [shape: f32[32,16], index: 12, kind: input, shape index: {}]
  %s13 = inlined_call_operand.vmem [shape: f32[32,1], index: 13, kind: input, shape index: {}]
  %s14 = inlined_call_operand.vmem [shape: f32[32,288], index: 14, kind: input, shape index: {}]
  %s15 = inlined_call_operand.vmem [shape: f32[32,1], index: 15, kind: input, shape index: {}]
  %s16 = inlined_call_operand.vmem [shape: f32[32,288], index: 16, kind: input, shape index: {}]
  %s17 = inlined_call_operand.vmem [shape: f32[32,1], index: 17, kind: input, shape index: {}]
  %s18 = inlined_call_operand.vmem [shape: f32[1,288], index: 18, kind: input, shape index: {}]
  %s19 = inlined_call_operand.<no memory space> [shape: f32[1,1], index: 19, kind: input, shape index: {}]
  %s20 = inlined_call_operand.vmem [shape: f32[2,4,256], index: 20, kind: output, shape index: {}]
  %s21 = sld [smem:[#allocation0]]
  $region113: #{merge_net_forward.1} parent=0
    _
  %s23 = ssub.s32 1, %s21
  %s24 = scalar_select 0, %s23, %s21
  %v25 = vstv %s19
  %26 = vst [vmem:[#allocation3] sm:$0x1] %v25
  loop: start=0, step=1, limit=4
  $region2: #{merge_net_forward.1} parent=0 // loop_pre_header
    _
  $region3: #{merge_net_forward.1} parent=0 // loop_header
    %s28 = sphi 0, %s32
    %p29 = scmp.ge.s32.totalorder %s28, 4
    %s38 = sphi 0, %s40
    %s41 = sphi 0, %s38
    %s42 = sphi 0, %s41
    %s58 = sphi 0, %s42
    %s64 = sphi 0, %s66
    %s67 = sphi 0, %s64
    %s68 = sphi 0, %s67
    %s84 = sphi 0, %s68
    %s88 = sphi 0, %s88
    %s90 = sphi 0, %s88
    %s91 = sphi 0, %s90
    %s105 = sphi 0, %s91
    %s109 = sphi 0, %s109
    %s111 = sphi 0, %s109
    %s112 = sphi 0, %s111
    %s126 = sphi 0, %s112
    %s130 = sphi 0, %s130
    %s132 = sphi 0, %s130
    %s133 = sphi 0, %s132
    %s147 = sphi 0, %s133
    %s151 = sphi 0, %s151
    %s153 = sphi 0, %s151
    %s154 = sphi 0, %s153
    %s168 = sphi 0, %s154
    %s172 = sphi 0, %s172
    %s174 = sphi 0, %s172
    %s175 = sphi 0, %s174
    %s189 = sphi 0, %s175
    %s193 = sphi 0, %s193
    %s195 = sphi 0, %s193
    %s196 = sphi 0, %s195
    %s210 = sphi 0, %s196
    %s214 = sphi 0, %s214
    %s216 = sphi 0, %s214
    %s217 = sphi 0, %s216
    %s231 = sphi 0, %s217
    %s235 = sphi 0, %s235
    %s237 = sphi 0, %s235
    %s238 = sphi 0, %s237
    %s252 = sphi 0, %s238
    %s256 = sphi 0, %s256
    %s258 = sphi 0, %s256
    %s259 = sphi 0, %s258
    %s273 = sphi 0, %s259
    %s277 = sphi 0, %s277
    %s279 = sphi 0, %s277
    %s280 = sphi 0, %s279
    %s294 = sphi 0, %s280
    %s298 = sphi 0, %s298
    %s300 = sphi 0, %s298
    %s301 = sphi 0, %s300
    %s315 = sphi 0, %s301
    %s319 = sphi 0, %s319
    %s321 = sphi 0, %s319
    %s322 = sphi 0, %s321
    %s336 = sphi 0, %s322
    %s340 = sphi 0, %s340
    %s342 = sphi 0, %s340
    %s343 = sphi 0, %s342
    %s357 = sphi 0, %s343
    %s361 = sphi 0, %s361
    %s363 = sphi 0, %s361
    %s364 = sphi 0, %s363
    %s378 = sphi 0, %s364
    %s382 = sphi 0, %s382
    %s384 = sphi 0, %s382
    %s385 = sphi 0, %s384
    %s399 = sphi 0, %s385
    %s403 = sphi 0, %s403
    %s405 = sphi 0, %s403
    %s406 = sphi 0, %s405
    %s420 = sphi 0, %s406
    %s424 = sphi 0, %s424
    %s426 = sphi 0, %s424
    %s427 = sphi 0, %s426
    %s441 = sphi 0, %s427
    %s445 = sphi 0, %s445
    %s447 = sphi 0, %s445
    %s448 = sphi 0, %s447
    %s462 = sphi 0, %s448
    %s468 = sphi 0, %s470
    %s471 = sphi 0, %s468
    %s472 = sphi 0, %s471
    %s488 = sphi 0, %s472
  $region4: #{merge_net_forward.1} parent=0 // loop_header_branch
    %31 = sbr.rel (%p29) target = $region8
  $region5: #{merge_net_forward.1} parent=0 // loop_body
    %s33 = ssub.s32 %s28, 1
    %s34 = ssub.s32 %s28, 2
    %s35 = sadd.s32 %s28, 1
    %s36 = ssub.s32 %s28, %s35
    %p37 = scmp.eq.s32.totalorder %s36, 0
    %s39 = sadd.s32 %s38, 1
    %s40 = scalar_select %p37, %s38, %s39
    %p43 = pneg %p37
    %p44 = scmp.eq.s32.totalorder %s28, 1
    %p45 = por %p43, %p44
    %p46 = scmp.ne.s32.totalorder %s38, %s41
    %p47 = scmp.eq.s32.totalorder %s28, 0
    %p48 = por %p46, %p47
    %p49 = scmp.ne.s32.totalorder %s38, %s41
    %p50 = scmp.eq.s32.totalorder %s33, 1
    %p51 = por %p49, %p50
    %p52 = scmp.ne.s32.totalorder %s41, %s42
    %p53 = scmp.eq.s32.totalorder %s33, 0
    %p54 = por %p52, %p53
    %p55 = scmp.ne.s32.totalorder %s41, %s42
    %p56 = scmp.eq.s32.totalorder %s34, 1
    %p57 = por %p55, %p56
    %p59 = scmp.ne.s32.totalorder %s42, %s58
    %p60 = scmp.eq.s32.totalorder %s34, 0
    %p61 = por %p59, %p60
    %s62 = ssub.s32 %s28, %s35
    %p63 = scmp.eq.s32.totalorder %s62, 0
    %s65 = sadd.s32 %s64, 1
    %s66 = scalar_select %p63, %s64, %s65
    %p69 = pneg %p63
    %p70 = scmp.eq.s32.totalorder %s28, 1
    %p71 = por %p69, %p70
    %p72 = scmp.ne.s32.totalorder %s64, %s67
    %p73 = scmp.eq.s32.totalorder %s28, 0
    %p74 = por %p72, %p73
    %p75 = scmp.ne.s32.totalorder %s64, %s67
    %p76 = scmp.eq.s32.totalorder %s33, 1
    %p77 = por %p75, %p76
    %p78 = scmp.ne.s32.totalorder %s67, %s68
    %p79 = scmp.eq.s32.totalorder %s33, 0
    %p80 = por %p78, %p79
    %p81 = scmp.ne.s32.totalorder %s67, %s68
    %p82 = scmp.eq.s32.totalorder %s34, 1
    %p83 = por %p81, %p82
    %p85 = scmp.ne.s32.totalorder %s68, %s84
    %p86 = scmp.eq.s32.totalorder %s34, 0
    %p87 = por %p85, %p86
    %s89 = sadd.s32 %s88, 1
    %p92 = scmp.eq.s32.totalorder %s28, 1
    %p93 = scmp.ne.s32.totalorder %s88, %s90
    %p94 = scmp.eq.s32.totalorder %s28, 0
    %p95 = por %p93, %p94
    %p96 = scmp.ne.s32.totalorder %s88, %s90
    %p97 = scmp.eq.s32.totalorder %s33, 1
    %p98 = por %p96, %p97
    %p99 = scmp.ne.s32.totalorder %s90, %s91
    %p100 = scmp.eq.s32.totalorder %s33, 0
    %p101 = por %p99, %p100
    %p102 = scmp.ne.s32.totalorder %s90, %s91
    %p103 = scmp.eq.s32.totalorder %s34, 1
    %p104 = por %p102, %p103
    %p106 = scmp.ne.s32.totalorder %s91, %s105
    %p107 = scmp.eq.s32.totalorder %s34, 0
    %p108 = por %p106, %p107
    %s110 = sadd.s32 %s109, 1
    %p113 = scmp.eq.s32.totalorder %s28, 1
    %p114 = scmp.ne.s32.totalorder %s109, %s111
    %p115 = scmp.eq.s32.totalorder %s28, 0
    %p116 = por %p114, %p115
    %p117 = scmp.ne.s32.totalorder %s109, %s111
    %p118 = scmp.eq.s32.totalorder %s33, 1
    %p119 = por %p117, %p118
    %p120 = scmp.ne.s32.totalorder %s111, %s112
    %p121 = scmp.eq.s32.totalorder %s33, 0
    %p122 = por %p120, %p121
    %p123 = scmp.ne.s32.totalorder %s111, %s112
    %p124 = scmp.eq.s32.totalorder %s34, 1
    %p125 = por %p123, %p124
    %p127 = scmp.ne.s32.totalorder %s112, %s126
    %p128 = scmp.eq.s32.totalorder %s34, 0
    %p129 = por %p127, %p128
    %s131 = sadd.s32 %s130, 1
    %p134 = scmp.eq.s32.totalorder %s28, 1
    %p135 = scmp.ne.s32.totalorder %s130, %s132
    %p136 = scmp.eq.s32.totalorder %s28, 0
    %p137 = por %p135, %p136
    %p138 = scmp.ne.s32.totalorder %s130, %s132
    %p139 = scmp.eq.s32.totalorder %s33, 1
    %p140 = por %p138, %p139
    %p141 = scmp.ne.s32.totalorder %s132, %s133
    %p142 = scmp.eq.s32.totalorder %s33, 0
    %p143 = por %p141, %p142
    %p144 = scmp.ne.s32.totalorder %s132, %s133
    %p145 = scmp.eq.s32.totalorder %s34, 1
    %p146 = por %p144, %p145
    %p148 = scmp.ne.s32.totalorder %s133, %s147
    %p149 = scmp.eq.s32.totalorder %s34, 0
    %p150 = por %p148, %p149
    %s152 = sadd.s32 %s151, 1
    %p155 = scmp.eq.s32.totalorder %s28, 1
    %p156 = scmp.ne.s32.totalorder %s151, %s153
    %p157 = scmp.eq.s32.totalorder %s28, 0
    %p158 = por %p156, %p157
    %p159 = scmp.ne.s32.totalorder %s151, %s153
    %p160 = scmp.eq.s32.totalorder %s33, 1
    %p161 = por %p159, %p160
    %p162 = scmp.ne.s32.totalorder %s153, %s154
    %p163 = scmp.eq.s32.totalorder %s33, 0
    %p164 = por %p162, %p163
    %p165 = scmp.ne.s32.totalorder %s153, %s154
    %p166 = scmp.eq.s32.totalorder %s34, 1
    %p167 = por %p165, %p166
    %p169 = scmp.ne.s32.totalorder %s154, %s168
    %p170 = scmp.eq.s32.totalorder %s34, 0
    %p171 = por %p169, %p170
    %s173 = sadd.s32 %s172, 1
    %p176 = scmp.eq.s32.totalorder %s28, 1
    %p177 = scmp.ne.s32.totalorder %s172, %s174
    %p178 = scmp.eq.s32.totalorder %s28, 0
    %p179 = por %p177, %p178
    %p180 = scmp.ne.s32.totalorder %s172, %s174
    %p181 = scmp.eq.s32.totalorder %s33, 1
    %p182 = por %p180, %p181
    %p183 = scmp.ne.s32.totalorder %s174, %s175
    %p184 = scmp.eq.s32.totalorder %s33, 0
    %p185 = por %p183, %p184
    %p186 = scmp.ne.s32.totalorder %s174, %s175
    %p187 = scmp.eq.s32.totalorder %s34, 1
    %p188 = por %p186, %p187
    %p190 = scmp.ne.s32.totalorder %s175, %s189
    %p191 = scmp.eq.s32.totalorder %s34, 0
    %p192 = por %p190, %p191
    %s194 = sadd.s32 %s193, 1
    %p197 = scmp.eq.s32.totalorder %s28, 1
    %p198 = scmp.ne.s32.totalorder %s193, %s195
    %p199 = scmp.eq.s32.totalorder %s28, 0
    %p200 = por %p198, %p199
    %p201 = scmp.ne.s32.totalorder %s193, %s195
    %p202 = scmp.eq.s32.totalorder %s33, 1
    %p203 = por %p201, %p202
    %p204 = scmp.ne.s32.totalorder %s195, %s196
    %p205 = scmp.eq.s32.totalorder %s33, 0
    %p206 = por %p204, %p205
    %p207 = scmp.ne.s32.totalorder %s195, %s196
    %p208 = scmp.eq.s32.totalorder %s34, 1
    %p209 = por %p207, %p208
    %p211 = scmp.ne.s32.totalorder %s196, %s210
    %p212 = scmp.eq.s32.totalorder %s34, 0
    %p213 = por %p211, %p212
    %s215 = sadd.s32 %s214, 1
    %p218 = scmp.eq.s32.totalorder %s28, 1
    %p219 = scmp.ne.s32.totalorder %s214, %s216
    %p220 = scmp.eq.s32.totalorder %s28, 0
    %p221 = por %p219, %p220
    %p222 = scmp.ne.s32.totalorder %s214, %s216
    %p223 = scmp.eq.s32.totalorder %s33, 1
    %p224 = por %p222, %p223
    %p225 = scmp.ne.s32.totalorder %s216, %s217
    %p226 = scmp.eq.s32.totalorder %s33, 0
    %p227 = por %p225, %p226
    %p228 = scmp.ne.s32.totalorder %s216, %s217
    %p229 = scmp.eq.s32.totalorder %s34, 1
    %p230 = por %p228, %p229
    %p232 = scmp.ne.s32.totalorder %s217, %s231
    %p233 = scmp.eq.s32.totalorder %s34, 0
    %p234 = por %p232, %p233
    %s236 = sadd.s32 %s235, 1
    %p239 = scmp.eq.s32.totalorder %s28, 1
    %p240 = scmp.ne.s32.totalorder %s235, %s237
    %p241 = scmp.eq.s32.totalorder %s28, 0
    %p242 = por %p240, %p241
    %p243 = scmp.ne.s32.totalorder %s235, %s237
    %p244 = scmp.eq.s32.totalorder %s33, 1
    %p245 = por %p243, %p244
    %p246 = scmp.ne.s32.totalorder %s237, %s238
    %p247 = scmp.eq.s32.totalorder %s33, 0
    %p248 = por %p246, %p247
    %p249 = scmp.ne.s32.totalorder %s237, %s238
    %p250 = scmp.eq.s32.totalorder %s34, 1
    %p251 = por %p249, %p250
    %p253 = scmp.ne.s32.totalorder %s238, %s252
    %p254 = scmp.eq.s32.totalorder %s34, 0
    %p255 = por %p253, %p254
    %s257 = sadd.s32 %s256, 1
    %p260 = scmp.eq.s32.totalorder %s28, 1
    %p261 = scmp.ne.s32.totalorder %s256, %s258
    %p262 = scmp.eq.s32.totalorder %s28, 0
    %p263 = por %p261, %p262
    %p264 = scmp.ne.s32.totalorder %s256, %s258
    %p265 = scmp.eq.s32.totalorder %s33, 1
    %p266 = por %p264, %p265
    %p267 = scmp.ne.s32.totalorder %s258, %s259
    %p268 = scmp.eq.s32.totalorder %s33, 0
    %p269 = por %p267, %p268
    %p270 = scmp.ne.s32.totalorder %s258, %s259
    %p271 = scmp.eq.s32.totalorder %s34, 1
    %p272 = por %p270, %p271
    %p274 = scmp.ne.s32.totalorder %s259, %s273
    %p275 = scmp.eq.s32.totalorder %s34, 0
    %p276 = por %p274, %p275
    %s278 = sadd.s32 %s277, 1
    %p281 = scmp.eq.s32.totalorder %s28, 1
    %p282 = scmp.ne.s32.totalorder %s277, %s279
    %p283 = scmp.eq.s32.totalorder %s28, 0
    %p284 = por %p282, %p283
    %p285 = scmp.ne.s32.totalorder %s277, %s279
    %p286 = scmp.eq.s32.totalorder %s33, 1
    %p287 = por %p285, %p286
    %p288 = scmp.ne.s32.totalorder %s279, %s280
    %p289 = scmp.eq.s32.totalorder %s33, 0
    %p290 = por %p288, %p289
    %p291 = scmp.ne.s32.totalorder %s279, %s280
    %p292 = scmp.eq.s32.totalorder %s34, 1
    %p293 = por %p291, %p292
    %p295 = scmp.ne.s32.totalorder %s280, %s294
    %p296 = scmp.eq.s32.totalorder %s34, 0
    %p297 = por %p295, %p296
    %s299 = sadd.s32 %s298, 1
    %p302 = scmp.eq.s32.totalorder %s28, 1
    %p303 = scmp.ne.s32.totalorder %s298, %s300
    %p304 = scmp.eq.s32.totalorder %s28, 0
    %p305 = por %p303, %p304
    %p306 = scmp.ne.s32.totalorder %s298, %s300
    %p307 = scmp.eq.s32.totalorder %s33, 1
    %p308 = por %p306, %p307
    %p309 = scmp.ne.s32.totalorder %s300, %s301
    %p310 = scmp.eq.s32.totalorder %s33, 0
    %p311 = por %p309, %p310
    %p312 = scmp.ne.s32.totalorder %s300, %s301
    %p313 = scmp.eq.s32.totalorder %s34, 1
    %p314 = por %p312, %p313
    %p316 = scmp.ne.s32.totalorder %s301, %s315
    %p317 = scmp.eq.s32.totalorder %s34, 0
    %p318 = por %p316, %p317
    %s320 = sadd.s32 %s319, 1
    %p323 = scmp.eq.s32.totalorder %s28, 1
    %p324 = scmp.ne.s32.totalorder %s319, %s321
    %p325 = scmp.eq.s32.totalorder %s28, 0
    %p326 = por %p324, %p325
    %p327 = scmp.ne.s32.totalorder %s319, %s321
    %p328 = scmp.eq.s32.totalorder %s33, 1
    %p329 = por %p327, %p328
    %p330 = scmp.ne.s32.totalorder %s321, %s322
    %p331 = scmp.eq.s32.totalorder %s33, 0
    %p332 = por %p330, %p331
    %p333 = scmp.ne.s32.totalorder %s321, %s322
    %p334 = scmp.eq.s32.totalorder %s34, 1
    %p335 = por %p333, %p334
    %p337 = scmp.ne.s32.totalorder %s322, %s336
    %p338 = scmp.eq.s32.totalorder %s34, 0
    %p339 = por %p337, %p338
    %s341 = sadd.s32 %s340, 1
    %p344 = scmp.eq.s32.totalorder %s28, 1
    %p345 = scmp.ne.s32.totalorder %s340, %s342
    %p346 = scmp.eq.s32.totalorder %s28, 0
    %p347 = por %p345, %p346
    %p348 = scmp.ne.s32.totalorder %s340, %s342
    %p349 = scmp.eq.s32.totalorder %s33, 1
    %p350 = por %p348, %p349
    %p351 = scmp.ne.s32.totalorder %s342, %s343
    %p352 = scmp.eq.s32.totalorder %s33, 0
    %p353 = por %p351, %p352
    %p354 = scmp.ne.s32.totalorder %s342, %s343
    %p355 = scmp.eq.s32.totalorder %s34, 1
    %p356 = por %p354, %p355
    %p358 = scmp.ne.s32.totalorder %s343, %s357
    %p359 = scmp.eq.s32.totalorder %s34, 0
    %p360 = por %p358, %p359
    %s362 = sadd.s32 %s361, 1
    %p365 = scmp.eq.s32.totalorder %s28, 1
    %p366 = scmp.ne.s32.totalorder %s361, %s363
    %p367 = scmp.eq.s32.totalorder %s28, 0
    %p368 = por %p366, %p367
    %p369 = scmp.ne.s32.totalorder %s361, %s363
    %p370 = scmp.eq.s32.totalorder %s33, 1
    %p371 = por %p369, %p370
    %p372 = scmp.ne.s32.totalorder %s363, %s364
    %p373 = scmp.eq.s32.totalorder %s33, 0
    %p374 = por %p372, %p373
    %p375 = scmp.ne.s32.totalorder %s363, %s364
    %p376 = scmp.eq.s32.totalorder %s34, 1
    %p377 = por %p375, %p376
    %p379 = scmp.ne.s32.totalorder %s364, %s378
    %p380 = scmp.eq.s32.totalorder %s34, 0
    %p381 = por %p379, %p380
    %s383 = sadd.s32 %s382, 1
    %p386 = scmp.eq.s32.totalorder %s28, 1
    %p387 = scmp.ne.s32.totalorder %s382, %s384
    %p388 = scmp.eq.s32.totalorder %s28, 0
    %p389 = por %p387, %p388
    %p390 = scmp.ne.s32.totalorder %s382, %s384
    %p391 = scmp.eq.s32.totalorder %s33, 1
    %p392 = por %p390, %p391
    %p393 = scmp.ne.s32.totalorder %s384, %s385
    %p394 = scmp.eq.s32.totalorder %s33, 0
    %p395 = por %p393, %p394
    %p396 = scmp.ne.s32.totalorder %s384, %s385
    %p397 = scmp.eq.s32.totalorder %s34, 1
    %p398 = por %p396, %p397
    %p400 = scmp.ne.s32.totalorder %s385, %s399
    %p401 = scmp.eq.s32.totalorder %s34, 0
    %p402 = por %p400, %p401
    %s404 = sadd.s32 %s403, 1
    %p407 = scmp.eq.s32.totalorder %s28, 1
    %p408 = scmp.ne.s32.totalorder %s403, %s405
    %p409 = scmp.eq.s32.totalorder %s28, 0
    %p410 = por %p408, %p409
    %p411 = scmp.ne.s32.totalorder %s403, %s405
    %p412 = scmp.eq.s32.totalorder %s33, 1
    %p413 = por %p411, %p412
    %p414 = scmp.ne.s32.totalorder %s405, %s406
    %p415 = scmp.eq.s32.totalorder %s33, 0
    %p416 = por %p414, %p415
    %p417 = scmp.ne.s32.totalorder %s405, %s406
    %p418 = scmp.eq.s32.totalorder %s34, 1
    %p419 = por %p417, %p418
    %p421 = scmp.ne.s32.totalorder %s406, %s420
    %p422 = scmp.eq.s32.totalorder %s34, 0
    %p423 = por %p421, %p422
    %s425 = sadd.s32 %s424, 1
    %p428 = scmp.eq.s32.totalorder %s28, 1
    %p429 = scmp.ne.s32.totalorder %s424, %s426
    %p430 = scmp.eq.s32.totalorder %s28, 0
    %p431 = por %p429, %p430
    %p432 = scmp.ne.s32.totalorder %s424, %s426
    %p433 = scmp.eq.s32.totalorder %s33, 1
    %p434 = por %p432, %p433
    %p435 = scmp.ne.s32.totalorder %s426, %s427
    %p436 = scmp.eq.s32.totalorder %s33, 0
    %p437 = por %p435, %p436
    %p438 = scmp.ne.s32.totalorder %s426, %s427
    %p439 = scmp.eq.s32.totalorder %s34, 1
    %p440 = por %p438, %p439
    %p442 = scmp.ne.s32.totalorder %s427, %s441
    %p443 = scmp.eq.s32.totalorder %s34, 0
    %p444 = por %p442, %p443
    %s446 = sadd.s32 %s445, 1
    %p449 = scmp.eq.s32.totalorder %s28, 1
    %p450 = scmp.ne.s32.totalorder %s445, %s447
    %p451 = scmp.eq.s32.totalorder %s28, 0
    %p452 = por %p450, %p451
    %p453 = scmp.ne.s32.totalorder %s445, %s447
    %p454 = scmp.eq.s32.totalorder %s33, 1
    %p455 = por %p453, %p454
    %p456 = scmp.ne.s32.totalorder %s447, %s448
    %p457 = scmp.eq.s32.totalorder %s33, 0
    %p458 = por %p456, %p457
    %p459 = scmp.ne.s32.totalorder %s447, %s448
    %p460 = scmp.eq.s32.totalorder %s34, 1
    %p461 = por %p459, %p460
    %p463 = scmp.ne.s32.totalorder %s448, %s462
    %p464 = scmp.eq.s32.totalorder %s34, 0
    %p465 = por %p463, %p464
    %s466 = ssub.s32 %s28, %s35
    %p467 = scmp.eq.s32.totalorder %s466, 0
    %s469 = sadd.s32 %s468, 1
    %s470 = scalar_select %p467, %s468, %s469
    %p473 = pneg %p467
    %p474 = scmp.eq.s32.totalorder %s28, 1
    %p475 = por %p473, %p474
    %p476 = scmp.ne.s32.totalorder %s468, %s471
    %p477 = scmp.eq.s32.totalorder %s28, 0
    %p478 = por %p476, %p477
    %p479 = scmp.ne.s32.totalorder %s468, %s471
    %p480 = scmp.eq.s32.totalorder %s33, 1
    %p481 = por %p479, %p480
    %p482 = scmp.ne.s32.totalorder %s471, %s472
    %p483 = scmp.eq.s32.totalorder %s33, 0
    %p484 = por %p482, %p483
    %p485 = scmp.ne.s32.totalorder %s471, %s472
    %p486 = scmp.eq.s32.totalorder %s34, 1
    %p487 = por %p485, %p486
    %p489 = scmp.ne.s32.totalorder %s472, %s488
    %p490 = scmp.eq.s32.totalorder %s34, 0
    %p491 = por %p489, %p490
    %p492 = scmp.le.s32.totalorder 1, %s28
    %p493 = scmp.lt.s32.totalorder %s28, 3
    %p494 = pnand %p492, %p493
    %p495 = pneg %p494
    // Predicated region
    $region9: #{merge_net_forward.1} parent=5 // pred_check
      _
    $region10: #{merge_net_forward.1} parent=5 // pred_check_branch
      %497 = sbr.rel (%p494) target = $region12
    $region11: #{merge_net_forward.1} parent=5 // pred_region
      %s498 = ssub.s32 %s28, 1
      // Predicated region
      $region13: #{merge_net_forward.1} parent=11 // pred_check
        %p499 = pneg %p101
      $region14: #{merge_net_forward.1} parent=11 // pred_check_branch
        %501 = sbr.rel (%p499) target = $region16
      $region15: #{merge_net_forward.1} parent=11 // pred_region
        _
      $region16: #{merge_net_forward.1} parent=11 // pred_fallthru
        _
      // Predicated region
      $region17: #{merge_net_forward.1} parent=11 // pred_check
        %p502 = pneg %p122
      $region18: #{merge_net_forward.1} parent=11 // pred_check_branch
        %504 = sbr.rel (%p502) target = $region20
      $region19: #{merge_net_forward.1} parent=11 // pred_region
        _
      $region20: #{merge_net_forward.1} parent=11 // pred_fallthru
        _
      // Predicated region
      $region21: #{merge_net_forward.1} parent=11 // pred_check
        %p505 = pneg %p143
      $region22: #{merge_net_forward.1} parent=11 // pred_check_branch
        %507 = sbr.rel (%p505) target = $region24
      $region23: #{merge_net_forward.1} parent=11 // pred_region
        _
      $region24: #{merge_net_forward.1} parent=11 // pred_fallthru
        _
      // Predicated region
      $region25: #{merge_net_forward.1} parent=11 // pred_check
        %p508 = pneg %p164
      $region26: #{merge_net_forward.1} parent=11 // pred_check_branch
        %510 = sbr.rel (%p508) target = $region28
      $region27: #{merge_net_forward.1} parent=11 // pred_region
        _
      $region28: #{merge_net_forward.1} parent=11 // pred_fallthru
        _
      // Predicated region
      $region29: #{merge_net_forward.1} parent=11 // pred_check
        %p511 = pneg %p185
      $region30: #{merge_net_forward.1} parent=11 // pred_check_branch
        %513 = sbr.rel (%p511) target = $region32
      $region31: #{merge_net_forward.1} parent=11 // pred_region
        _
      $region32: #{merge_net_forward.1} parent=11 // pred_fallthru
        _
      // Predicated region
      $region33: #{merge_net_forward.1} parent=11 // pred_check
        %p514 = pneg %p206
      $region34: #{merge_net_forward.1} parent=11 // pred_check_branch
        %516 = sbr.rel (%p514) target = $region36
      $region35: #{merge_net_forward.1} parent=11 // pred_region
        _
      $region36: #{merge_net_forward.1} parent=11 // pred_fallthru
        _
      // Predicated region
      $region37: #{merge_net_forward.1} parent=11 // pred_check
        %p517 = pneg %p227
      $region38: #{merge_net_forward.1} parent=11 // pred_check_branch
        %519 = sbr.rel (%p517) target = $region40
      $region39: #{merge_net_forward.1} parent=11 // pred_region
        _
      $region40: #{merge_net_forward.1} parent=11 // pred_fallthru
        _
      // Predicated region
      $region41: #{merge_net_forward.1} parent=11 // pred_check
        %p520 = pneg %p248
      $region42: #{merge_net_forward.1} parent=11 // pred_check_branch
        %522 = sbr.rel (%p520) target = $region44
      $region43: #{merge_net_forward.1} parent=11 // pred_region
        _
      $region44: #{merge_net_forward.1} parent=11 // pred_fallthru
        _
      // Predicated region
      $region45: #{merge_net_forward.1} parent=11 // pred_check
        %p523 = pneg %p269
      $region46: #{merge_net_forward.1} parent=11 // pred_check_branch
        %525 = sbr.rel (%p523) target = $region48
      $region47: #{merge_net_forward.1} parent=11 // pred_region
        _
      $region48: #{merge_net_forward.1} parent=11 // pred_fallthru
        _
      // Predicated region
      $region49: #{merge_net_forward.1} parent=11 // pred_check
        %p526 = pneg %p290
      $region50: #{merge_net_forward.1} parent=11 // pred_check_branch
        %528 = sbr.rel (%p526) target = $region52
      $region51: #{merge_net_forward.1} parent=11 // pred_region
        _
      $region52: #{merge_net_forward.1} parent=11 // pred_fallthru
        _
      // Predicated region
      $region53: #{merge_net_forward.1} parent=11 // pred_check
        %p529 = pneg %p311
      $region54: #{merge_net_forward.1} parent=11 // pred_check_branch
        %531 = sbr.rel (%p529) target = $region56
      $region55: #{merge_net_forward.1} parent=11 // pred_region
        _
      $region56: #{merge_net_forward.1} parent=11 // pred_fallthru
        _
      // Predicated region
      $region57: #{merge_net_forward.1} parent=11 // pred_check
        %p532 = pneg %p332
      $region58: #{merge_net_forward.1} parent=11 // pred_check_branch
        %534 = sbr.rel (%p532) target = $region60
      $region59: #{merge_net_forward.1} parent=11 // pred_region
        _
      $region60: #{merge_net_forward.1} parent=11 // pred_fallthru
        _
      // Predicated region
      $region61: #{merge_net_forward.1} parent=11 // pred_check
        %p535 = pneg %p353
      $region62: #{merge_net_forward.1} parent=11 // pred_check_branch
        %537 = sbr.rel (%p535) target = $region64
      $region63: #{merge_net_forward.1} parent=11 // pred_region
        _
      $region64: #{merge_net_forward.1} parent=11 // pred_fallthru
        _
      // Predicated region
      $region65: #{merge_net_forward.1} parent=11 // pred_check
        %p538 = pneg %p374
      $region66: #{merge_net_forward.1} parent=11 // pred_check_branch
        %540 = sbr.rel (%p538) target = $region68
      $region67: #{merge_net_forward.1} parent=11 // pred_region
        _
      $region68: #{merge_net_forward.1} parent=11 // pred_fallthru
        _
      // Predicated region
      $region69: #{merge_net_forward.1} parent=11 // pred_check
        %p541 = pneg %p395
      $region70: #{merge_net_forward.1} parent=11 // pred_check_branch
        %543 = sbr.rel (%p541) target = $region72
      $region71: #{merge_net_forward.1} parent=11 // pred_region
        _
      $region72: #{merge_net_forward.1} parent=11 // pred_fallthru
        _
      // Predicated region
      $region73: #{merge_net_forward.1} parent=11 // pred_check
        %p544 = pneg %p416
      $region74: #{merge_net_forward.1} parent=11 // pred_check_branch
        %546 = sbr.rel (%p544) target = $region76
      $region75: #{merge_net_forward.1} parent=11 // pred_region
        _
      $region76: #{merge_net_forward.1} parent=11 // pred_fallthru
        _
      // Predicated region
      $region77: #{merge_net_forward.1} parent=11 // pred_check
        %p547 = pneg %p437
      $region78: #{merge_net_forward.1} parent=11 // pred_check_branch
        %549 = sbr.rel (%p547) target = $region80
      $region79: #{merge_net_forward.1} parent=11 // pred_region
        _
      $region80: #{merge_net_forward.1} parent=11 // pred_fallthru
        _
      // Predicated region
      $region81: #{merge_net_forward.1} parent=11 // pred_check
        %p550 = pneg %p458
      $region82: #{merge_net_forward.1} parent=11 // pred_check_branch
        %552 = sbr.rel (%p550) target = $region84
      $region83: #{merge_net_forward.1} parent=11 // pred_region
        _
      $region84: #{merge_net_forward.1} parent=11 // pred_fallthru
        _
    $region12: #{merge_net_forward.1} parent=5 // pred_fallthru
      _
    %p553 = scmp.lt.s32.totalorder %s28, 2
    // Predicated region
    $region85: #{merge_net_forward.1} parent=5 // pred_check
      %p554 = pneg %p553
    $region86: #{merge_net_forward.1} parent=5 // pred_check_branch
      %556 = sbr.rel (%p554) target = $region88
    $region87: #{merge_net_forward.1} parent=5 // pred_region
      // Predicated region
      $region89: #{merge_net_forward.1} parent=87 // pred_check
        %p557 = pneg %p48
      $region90: #{merge_net_forward.1} parent=87 // pred_check_branch
        %559 = sbr.rel (%p557) target = $region92
      $region91: #{merge_net_forward.1} parent=87 // pred_region
        %p560 = scmp.lt.s32.totalorder %s28, 1
        %s561 = scalar_select %p560, %s28, 1
        %s562 = smul.addr %s561, 4
        %s563 = smul.addr %s562, 8
        %s564 = scalar_lea.vmem %s0, %s563
      $region92: #{merge_net_forward.1} parent=87 // pred_fallthru
        _
      // Predicated region
      $region93: #{merge_net_forward.1} parent=87 // pred_check
        %p565 = pneg %p74
      $region94: #{merge_net_forward.1} parent=87 // pred_check_branch
        %567 = sbr.rel (%p565) target = $region96
      $region95: #{merge_net_forward.1} parent=87 // pred_region
        %p568 = scmp.lt.s32.totalorder %s28, 1
        %s569 = scalar_select %p568, %s28, 1
        %s570 = smul.addr %s569, 4
        %s571 = smul.addr %s570, 4
        %s572 = scalar_lea.vmem %s1, %s571
      $region96: #{merge_net_forward.1} parent=87 // pred_fallthru
        _
    $region88: #{merge_net_forward.1} parent=5 // pred_fallthru
      _
    %p573 = scmp.le.s32.totalorder 1, %s28
    %p574 = scmp.lt.s32.totalorder %s28, 3
    %p575 = pnand %p573, %p574
    %p576 = pneg %p575
    // Predicated region
    $region97: #{merge_net_forward.1} parent=5 // pred_check
      _
    $region98: #{merge_net_forward.1} parent=5 // pred_check_branch
      %578 = sbr.rel (%p575) target = $region100
    $region99: #{merge_net_forward.1} parent=5 // pred_region
      %s579 = ssub.s32 %s28, 1
      %p580 = scmp.lt.s32.totalorder %s33, 1
      %s581 = scalar_select %p580, %s33, 1
      %s582 = smul.addr %s581, 4
      %s583 = smul.addr %s582, 8
      %s584 = scalar_lea.vmem %s0, %s583
      %p585 = pneg %p54
      %p586 = pneg %p51
      %p587 = scmp.lt.s32.totalorder %s33, 1
      %s588 = scalar_select %p587, %s33, 1
      %s589 = smul.addr %s588, 4
      %s590 = smul.addr %s589, 4
      %s591 = scalar_lea.vmem %s1, %s590
      %p592 = pneg %p80
      %p593 = pneg %p77
      %p594 = pneg %p101
      %p595 = pneg %p98
      %p596 = pneg %p122
      %p597 = pneg %p119
      %p598 = pneg %p143
      %p599 = pneg %p140
      %p600 = pneg %p164
      %p601 = pneg %p161
      %p602 = pneg %p185
      %p603 = pneg %p182
      %p604 = pneg %p206
      %p605 = pneg %p203
      %p606 = pneg %p227
      %p607 = pneg %p224
      %p608 = pneg %p248
      %p609 = pneg %p245
      %p610 = pneg %p269
      %p611 = pneg %p266
      %p612 = pneg %p290
      %p613 = pneg %p287
      %p614 = pneg %p311
      %p615 = pneg %p308
      %p616 = pneg %p332
      %p617 = pneg %p329
      %p618 = pneg %p353
      %p619 = pneg %p350
      %p620 = pneg %p374
      %p621 = pneg %p371
      %p622 = pneg %p395
      %p623 = pneg %p392
      %p624 = pneg %p416
      %p625 = pneg %p413
      %p626 = pneg %p437
      %p627 = pneg %p434
      %p628 = pneg %p458
      %p629 = pneg %p455
      %p630 = pneg %p484
      %p631 = pneg %p481
      %p632 = scmp.lt.s32.totalorder %s33, 1
      %s633 = scalar_select %p632, %s33, 1
      %s634 = smul.addr %s633, 2
      %s635 = smul.addr %s634, 4
      %s636 = scalar_lea.vmem %s20, %s635
      %p637 = scmp.lt.s32.totalorder %s33, 1
      %s638 = scalar_select %p637, %s33, 1
      %s639 = smul.addr %s638, 4
      %s640 = smul.addr %s639, 8
      %s641 = scalar_lea.vmem %s0, %s640
      %p642 = scmp.lt.s32.totalorder %s33, 1
      %s643 = scalar_select %p642, %s33, 1
      %s644 = smul.addr %s643, 4
      %s645 = smul.addr %s644, 4
      %s646 = scalar_lea.vmem %s1, %s645
      %p647 = scmp.lt.s32.totalorder %s33, 1
      %s648 = scalar_select %p647, %s33, 1
      %s649 = smul.addr %s648, 2
      %s650 = smul.addr %s649, 4
      %s651 = scalar_lea.vmem %s20, %s650
      %652 = vst [vmem:[#allocation2] sm:$0xff] 0.0
      %653 = vst [vmem:[#allocation2 + $0x8] sm:$0xff] 0.0
      %654 = vst [vmem:[#allocation2 + $0x10] sm:$0xff] 0.0
      %655 = vst [vmem:[#allocation2 + $0x18] sm:$0xff] 0.0
      %656 = vst [vmem:[#allocation2 + $0x20] sm:$0xff] 0.0
      %vm657 = vcmask 785408
      %658 = vst.msk [vmem:[#allocation2 + $0x28] sm:$0xff] %vm657, 0.0
      %659 = vst [vmem:[#allocation2 + $0x30] sm:$0xff] 0.0
      %660 = vst [vmem:[#allocation2 + $0x38] sm:$0xff] 0.0
      %661 = vst [vmem:[#allocation2 + $0x40] sm:$0xff] 0.0
      %662 = vst [vmem:[#allocation2 + $0x48] sm:$0xff] 0.0
      %663 = vst [vmem:[#allocation2 + $0x50] sm:$0xff] 0.0
      %664 = vst.msk [vmem:[#allocation2 + $0x58] sm:$0xff] %vm657, 0.0
      %665 = vst [vmem:[#allocation2 + $0x60] sm:$0xff] 0.0
      %666 = vst [vmem:[#allocation2 + $0x68] sm:$0xff] 0.0
      %667 = vst [vmem:[#allocation2 + $0x70] sm:$0xff] 0.0
      %668 = vst [vmem:[#allocation2 + $0x78] sm:$0xff] 0.0
      %669 = vst [vmem:[#allocation2 + $0x80] sm:$0xff] 0.0
      %670 = vst.msk [vmem:[#allocation2 + $0x88] sm:$0xff] %vm657, 0.0
      %671 = vst [vmem:[#allocation2 + $0x90] sm:$0xff] 0.0
      %672 = vst [vmem:[#allocation2 + $0x98] sm:$0xff] 0.0
      %673 = vst [vmem:[#allocation2 + $0xa0] sm:$0xff] 0.0
      %674 = vst [vmem:[#allocation2 + $0xa8] sm:$0xff] 0.0
      %675 = vst [vmem:[#allocation2 + $0xb0] sm:$0xff] 0.0
      %676 = vst.msk [vmem:[#allocation2 + $0xb8] sm:$0xff] %vm657, 0.0
      %v677 = vld [vmem:[%s646] sm:$0x77]
      %v678 = vld [vmem:[%s646 + $0x8] sm:$0x77]
      %v679 = vld [vmem:[%s641] sm:$0xff]
      %v680 = vld [vmem:[%s641 + $0x8] sm:$0xff]
      %v681 = vld [vmem:[%s641 + $0x10] sm:$0xff]
      %v682 = vld [vmem:[%s641 + $0x18] sm:$0xff]
      %683 = vst [vmem:[#allocation2 + $0x8] sm:$0xff] %v679
      %684 = vst [vmem:[#allocation2 + $0x10] sm:$0xff] %v680
      %685 = vst [vmem:[#allocation2 + $0x18] sm:$0xff] %v681
      %686 = vst.msk [vmem:[#allocation2 + $0x20] sm:$0xff] %vm657, %v682
      %v687 = vld [vmem:[#allocation2] sm:$0xff]
      %v688 = vld [vmem:[#allocation2 + $0x8] sm:$0xff]
      %v689 = vld [vmem:[#allocation2 + $0x10] sm:$0xff]
      %v690 = vld [vmem:[#allocation2 + $0x18] sm:$0xff]
      %v691 = vld [vmem:[#allocation2 + $0x20] sm:$0xff]
      %v694 = vperm.slane %v677, 1
      %v695 = vperm.slane %v677, 5
      %v696 = vperm.slane %v678, 1
      %v697 = vperm.slane %v678, 5
      %v702 = vperm.slane %v694, 1
      %v703 = vperm.slane %v695, 1
      %v704 = vperm.slane %v696, 1
      %v705 = vperm.slane %v697, 1
      %710 = vrot.lane.b32.xlu0 %v702, 111
      %v711 = vpop.permute.xlu0 %710
      %712 = vrot.lane.b32.xlu0 %v703, 111
      %v713 = vpop.permute.xlu0 %712
      %714 = vrot.lane.b32.xlu0 %v704, 111
      %v715 = vpop.permute.xlu0 %714
      %716 = vrot.lane.b32.xlu0 %v705, 111
      %v717 = vpop.permute.xlu0 %716
      %vm718 = vcmask 908288
      %v719 = vsel %vm718, %v711, %v713
      %v720 = vsel %vm718, %v713, %v715
      %v721 = vsel %vm718, %v715, %v717
      %v727 = vmul.f32 %v687, %v711
      %v728 = vmul.f32 %v688, %v719
      %v729 = vmul.f32 %v689, %v720
      %v730 = vmul.f32 %v690, %v721
      %v731 = vmul.f32 %v691, %v717
      %v732 = vperm.slane %v677, 2
      %v733 = vperm.slane %v677, 6
      %v734 = vperm.slane %v678, 2
      %v735 = vperm.slane %v678, 6
      %v740 = vperm.slane %v732, 2
      %v741 = vperm.slane %v733, 2
      %v742 = vperm.slane %v734, 2
      %v743 = vperm.slane %v735, 2
      %748 = vrot.lane.b32.xlu0 %v740, 113
      %v749 = vpop.permute.xlu0 %748
      %750 = vrot.lane.b32.xlu0 %v741, 113
      %v751 = vpop.permute.xlu0 %750
      %752 = vrot.lane.b32.xlu0 %v742, 113
      %v753 = vpop.permute.xlu0 %752
      %754 = vrot.lane.b32.xlu0 %v743, 113
      %v755 = vpop.permute.xlu0 %754
      %vm756 = vcmask 924672
      %v757 = vsel %vm756, %v749, %v751
      %v758 = vsel %vm756, %v751, %v753
      %v759 = vsel %vm756, %v753, %v755
      %v765 = vmul.f32 %v687, %v749
      %v766 = vmul.f32 %v688, %v757
      %v767 = vmul.f32 %v689, %v758
      %v768 = vmul.f32 %v690, %v759
      %v769 = vmul.f32 %v691, %v755
      %770 = vrot.lane.b32.xlu0 %v702, 127
      %v771 = vpop.permute.xlu0 %770
      %772 = vrot.lane.b32.xlu0 %v703, 127
      %v773 = vpop.permute.xlu0 %772
      %774 = vrot.lane.b32.xlu0 %v704, 127
      %v775 = vpop.permute.xlu0 %774
      %776 = vrot.lane.b32.xlu0 %v705, 127
      %v777 = vpop.permute.xlu0 %776
      %vm778 = vcmask 1039360
      %v779 = vsel %vm778, %v771, %v773
      %v780 = vsel %vm778, %v773, %v775
      %v781 = vsel %vm778, %v775, %v777
      %v787 = vmul.f32 %v687, %v771
      %v788 = vmul.f32 %v688, %v779
      %v789 = vmul.f32 %v689, %v780
      %v790 = vmul.f32 %v690, %v781
      %v791 = vmul.f32 %v691, %v777
      %792 = vrot.lane.b32.xlu0 %v740, 1
      %v793 = vpop.permute.xlu0 %792
      %794 = vrot.lane.b32.xlu0 %v741, 1
      %v795 = vpop.permute.xlu0 %794
      %796 = vrot.lane.b32.xlu0 %v742, 1
      %v797 = vpop.permute.xlu0 %796
      %798 = vrot.lane.b32.xlu0 %v743, 1
      %v799 = vpop.permute.xlu0 %798
      %vm800 = vcmask 7168
      %v801 = vsel %vm800, %v793, %v795
      %v802 = vsel %vm800, %v795, %v797
      %v803 = vsel %vm800, %v797, %v799
      %v808 = vmul.f32 %v688, %v793
      %v809 = vmul.f32 %v689, %v801
      %v810 = vmul.f32 %v690, %v802
      %v811 = vmul.f32 %v691, %v803
      %812 = vrot.lane.b32.xlu0 %v702, 15
      %v813 = vpop.permute.xlu0 %812
      %814 = vrot.lane.b32.xlu0 %v703, 15
      %v815 = vpop.permute.xlu0 %814
      %816 = vrot.lane.b32.xlu0 %v704, 15
      %v817 = vpop.permute.xlu0 %816
      %818 = vrot.lane.b32.xlu0 %v705, 15
      %v819 = vpop.permute.xlu0 %818
      %vm820 = vcmask 121856
      %v821 = vsel %vm820, %v813, %v815
      %v822 = vsel %vm820, %v815, %v817
      %v823 = vsel %vm820, %v817, %v819
      %v828 = vmul.f32 %v688, %v813
      %v829 = vmul.f32 %v689, %v821
      %v830 = vmul.f32 %v690, %v822
      %v831 = vmul.f32 %v691, %v823
      %832 = vrot.lane.b32.xlu0 %v740, 17
      %v833 = vpop.permute.xlu0 %832
      %834 = vrot.lane.b32.xlu0 %v741, 17
      %v835 = vpop.permute.xlu0 %834
      %836 = vrot.lane.b32.xlu0 %v742, 17
      %v837 = vpop.permute.xlu0 %836
      %838 = vrot.lane.b32.xlu0 %v743, 17
      %v839 = vpop.permute.xlu0 %838
      %vm840 = vcmask 138240
      %v841 = vsel %vm840, %v833, %v835
      %v842 = vsel %vm840, %v835, %v837
      %v843 = vsel %vm840, %v837, %v839
      %v848 = vmul.f32 %v688, %v833
      %v849 = vmul.f32 %v689, %v841
      %v850 = vmul.f32 %v690, %v842
      %v851 = vmul.f32 %v691, %v843
      %857 = vrot.lane.b32.xlu0 %v687, 127
      %v858 = vpop.permute.xlu0 %857
      %859 = vrot.lane.b32.xlu0 %v688, 127
      %v860 = vpop.permute.xlu0 %859
      %861 = vrot.lane.b32.xlu0 %v689, 127
      %v862 = vpop.permute.xlu0 %861
      %863 = vrot.lane.b32.xlu0 %v690, 127
      %v864 = vpop.permute.xlu0 %863
      %865 = vrot.lane.b32.xlu0 %v691, 127
      %v866 = vpop.permute.xlu0 %865
      %v867 = vsel %vm778, %v858, %v860
      %v868 = vsel %vm778, %v860, %v862
      %v869 = vsel %vm778, %v862, %v864
      %v870 = vsel %vm778, %v864, %v866
      %876 = vrot.lane.b32.xlu0 %v765, 126
      %v877 = vpop.permute.xlu0 %876
      %878 = vrot.lane.b32.xlu0 %v766, 126
      %v879 = vpop.permute.xlu0 %878
      %880 = vrot.lane.b32.xlu0 %v767, 126
      %v881 = vpop.permute.xlu0 %880
      %882 = vrot.lane.b32.xlu0 %v768, 126
      %v883 = vpop.permute.xlu0 %882
      %884 = vrot.lane.b32.xlu0 %v769, 126
      %v885 = vpop.permute.xlu0 %884
      %vm886 = vcmask 1031168
      %v887 = vsel %vm886, %v877, %v879
      %v888 = vsel %vm886, %v879, %v881
      %v889 = vsel %vm886, %v881, %v883
      %v890 = vsel %vm886, %v883, %v885
      %896 = vrot.lane.b32.xlu0 %v787, 112
      %v897 = vpop.permute.xlu0 %896
      %898 = vrot.lane.b32.xlu0 %v788, 112
      %v899 = vpop.permute.xlu0 %898
      %900 = vrot.lane.b32.xlu0 %v789, 112
      %v901 = vpop.permute.xlu0 %900
      %902 = vrot.lane.b32.xlu0 %v790, 112
      %v903 = vpop.permute.xlu0 %902
      %904 = vrot.lane.b32.xlu0 %v791, 112
      %v905 = vpop.permute.xlu0 %904
      %vm906 = vcmask 916480
      %v907 = vsel %vm906, %v897, %v899
      %v908 = vsel %vm906, %v899, %v901
      %v909 = vsel %vm906, %v901, %v903
      %v910 = vsel %vm906, %v903, %v905
      %911 = vrot.lane.b32.xlu0 %v688, 111
      %v912 = vpop.permute.xlu0 %911
      %913 = vrot.lane.b32.xlu0 %v689, 111
      %v914 = vpop.permute.xlu0 %913
      %915 = vrot.lane.b32.xlu0 %v690, 111
      %v916 = vpop.permute.xlu0 %915
      %917 = vrot.lane.b32.xlu0 %v691, 111
      %v918 = vpop.permute.xlu0 %917
      %v919 = vsel %vm718, %v912, %v914
      %v920 = vsel %vm718, %v914, %v916
      %v921 = vsel %vm718, %v916, %v918
      %926 = vrot.lane.b32.xlu0 %v808, 110
      %v927 = vpop.permute.xlu0 %926
      %928 = vrot.lane.b32.xlu0 %v809, 110
      %v929 = vpop.permute.xlu0 %928
      %930 = vrot.lane.b32.xlu0 %v810, 110
      %v931 = vpop.permute.xlu0 %930
      %932 = vrot.lane.b32.xlu0 %v811, 110
      %v933 = vpop.permute.xlu0 %932
      %vm934 = vcmask 900096
      %v935 = vsel %vm934, %v927, %v929
      %v936 = vsel %vm934, %v929, %v931
      %v937 = vsel %vm934, %v931, %v933
      %942 = vrot.lane.b32.xlu0 %v828, 96
      %v943 = vpop.permute.xlu0 %942
      %944 = vrot.lane.b32.xlu0 %v829, 96
      %v945 = vpop.permute.xlu0 %944
      %946 = vrot.lane.b32.xlu0 %v830, 96
      %v947 = vpop.permute.xlu0 %946
      %948 = vrot.lane.b32.xlu0 %v831, 96
      %v949 = vpop.permute.xlu0 %948
      %v950 = vsel %vm657, %v943, %v945
      %v951 = vsel %vm657, %v945, %v947
      %v952 = vsel %vm657, %v947, %v949
      %953 = vrot.lane.b32.xlu0 %v688, 95
      %v954 = vpop.permute.xlu0 %953
      %955 = vrot.lane.b32.xlu0 %v689, 95
      %v956 = vpop.permute.xlu0 %955
      %957 = vrot.lane.b32.xlu0 %v690, 95
      %v958 = vpop.permute.xlu0 %957
      %959 = vrot.lane.b32.xlu0 %v691, 95
      %v960 = vpop.permute.xlu0 %959
      %vm961 = vcmask 777216
      %v962 = vsel %vm961, %v954, %v956
      %v963 = vsel %vm961, %v956, %v958
      %v964 = vsel %vm961, %v958, %v960
      %969 = vrot.lane.b32.xlu0 %v848, 94
      %v970 = vpop.permute.xlu0 %969
      %971 = vrot.lane.b32.xlu0 %v849, 94
      %v972 = vpop.permute.xlu0 %971
      %973 = vrot.lane.b32.xlu0 %v850, 94
      %v974 = vpop.permute.xlu0 %973
      %975 = vrot.lane.b32.xlu0 %v851, 94
      %v976 = vpop.permute.xlu0 %975
      %vm977 = vcmask 769024
      %v978 = vsel %vm977, %v970, %v972
      %v979 = vsel %vm977, %v972, %v974
      %v980 = vsel %vm977, %v974, %v976
      %v981 = vld [vmem:[%s2] sm:$0xff]
      %v982 = vld [vmem:[%s2 + $0x8] sm:$0xff]
      %v983 = vld [vmem:[%s3] sm:$0xff]
      %v984 = vld [vmem:[%s3 + $0x8] sm:$0xff]
      %986 = vset.pattern.permute.xlu0 0
      %987 = vperm.xlu0 %986, %v983
      %v988 = vpop.permute.xlu0 %987
      %991 = vset.pattern.permute.xlu0 0
      %992 = vperm.xlu0 %991, %v984
      %v993 = vpop.permute.xlu0 %992
      %1000 = vrot.lane.b32.xlu0 %v727, 17
      %v1001 = vpop.permute.xlu0 %1000
      %1002 = vrot.lane.b32.xlu0 %v728, 17
      %v1003 = vpop.permute.xlu0 %1002
      %1004 = vrot.lane.b32.xlu0 %v729, 17
      %v1005 = vpop.permute.xlu0 %1004
      %1006 = vrot.lane.b32.xlu0 %v730, 17
      %v1007 = vpop.permute.xlu0 %1006
      %1008 = vrot.lane.b32.xlu0 %v731, 17
      %v1009 = vpop.permute.xlu0 %1008
      %1010 = vrot.lane.b32.xlu0 %v867, 17
      %v1011 = vpop.permute.xlu0 %1010
      %1012 = vrot.lane.b32.xlu0 %v868, 17
      %v1013 = vpop.permute.xlu0 %1012
      %1014 = vrot.lane.b32.xlu0 %v869, 17
      %v1015 = vpop.permute.xlu0 %1014
      %1016 = vrot.lane.b32.xlu0 %v870, 17
      %v1017 = vpop.permute.xlu0 %1016
      %1018 = vrot.lane.b32.xlu0 %v866, 17
      %v1019 = vpop.permute.xlu0 %1018
      %1020 = vrot.lane.b32.xlu0 %v887, 17
      %v1021 = vpop.permute.xlu0 %1020
      %1022 = vrot.lane.b32.xlu0 %v888, 17
      %v1023 = vpop.permute.xlu0 %1022
      %1024 = vrot.lane.b32.xlu0 %v889, 17
      %v1025 = vpop.permute.xlu0 %1024
      %1026 = vrot.lane.b32.xlu0 %v890, 17
      %v1027 = vpop.permute.xlu0 %1026
      %1028 = vrot.lane.b32.xlu0 %v885, 17
      %v1029 = vpop.permute.xlu0 %1028
      %1030 = vrot.lane.b32.xlu0 %v907, 17
      %v1031 = vpop.permute.xlu0 %1030
      %1032 = vrot.lane.b32.xlu0 %v908, 17
      %v1033 = vpop.permute.xlu0 %1032
      %1034 = vrot.lane.b32.xlu0 %v909, 17
      %v1035 = vpop.permute.xlu0 %1034
      %1036 = vrot.lane.b32.xlu0 %v910, 17
      %v1037 = vpop.permute.xlu0 %1036
      %1038 = vrot.lane.b32.xlu0 %v905, 17
      %v1039 = vpop.permute.xlu0 %1038
      %1040 = vrot.lane.b32.xlu0 %v912, 17
      %v1041 = vpop.permute.xlu0 %1040
      %1042 = vrot.lane.b32.xlu0 %v919, 17
      %v1043 = vpop.permute.xlu0 %1042
      %1044 = vrot.lane.b32.xlu0 %v920, 17
      %v1045 = vpop.permute.xlu0 %1044
      %1046 = vrot.lane.b32.xlu0 %v921, 17
      %v1047 = vpop.permute.xlu0 %1046
      %1048 = vrot.lane.b32.xlu0 %v918, 17
      %v1049 = vpop.permute.xlu0 %1048
      %1050 = vrot.lane.b32.xlu0 %v927, 17
      %v1051 = vpop.permute.xlu0 %1050
      %1052 = vrot.lane.b32.xlu0 %v935, 17
      %v1053 = vpop.permute.xlu0 %1052
      %1054 = vrot.lane.b32.xlu0 %v936, 17
      %v1055 = vpop.permute.xlu0 %1054
      %1056 = vrot.lane.b32.xlu0 %v937, 17
      %v1057 = vpop.permute.xlu0 %1056
      %1058 = vrot.lane.b32.xlu0 %v933, 17
      %v1059 = vpop.permute.xlu0 %1058
      %1060 = vrot.lane.b32.xlu0 %v943, 17
      %v1061 = vpop.permute.xlu0 %1060
      %1062 = vrot.lane.b32.xlu0 %v950, 17
      %v1063 = vpop.permute.xlu0 %1062
      %1064 = vrot.lane.b32.xlu0 %v951, 17
      %v1065 = vpop.permute.xlu0 %1064
      %1066 = vrot.lane.b32.xlu0 %v952, 17
      %v1067 = vpop.permute.xlu0 %1066
      %1068 = vrot.lane.b32.xlu0 %v949, 17
      %v1069 = vpop.permute.xlu0 %1068
      %1070 = vrot.lane.b32.xlu0 %v954, 17
      %v1071 = vpop.permute.xlu0 %1070
      %1072 = vrot.lane.b32.xlu0 %v962, 17
      %v1073 = vpop.permute.xlu0 %1072
      %1074 = vrot.lane.b32.xlu0 %v963, 17
      %v1075 = vpop.permute.xlu0 %1074
      %1076 = vrot.lane.b32.xlu0 %v964, 17
      %v1077 = vpop.permute.xlu0 %1076
      %1078 = vrot.lane.b32.xlu0 %v960, 17
      %v1079 = vpop.permute.xlu0 %1078
      %1080 = vrot.lane.b32.xlu0 %v970, 17
      %v1081 = vpop.permute.xlu0 %1080
      %1082 = vrot.lane.b32.xlu0 %v978, 17
      %v1083 = vpop.permute.xlu0 %1082
      %1084 = vrot.lane.b32.xlu0 %v979, 17
      %v1085 = vpop.permute.xlu0 %1084
      %1086 = vrot.lane.b32.xlu0 %v980, 17
      %v1087 = vpop.permute.xlu0 %1086
      %1088 = vrot.lane.b32.xlu0 %v976, 17
      %v1089 = vpop.permute.xlu0 %1088
      %v1090 = vsel %vm840, %v1001, %v1003
      %v1091 = vsel %vm840, %v1003, %v1005
      %v1092 = vsel %vm840, %v1005, %v1007
      %v1093 = vsel %vm840, %v1007, %v1009
      %v1094 = vsel %vm840, %v1011, %v1013
      %v1095 = vsel %vm840, %v1013, %v1015
      %v1096 = vsel %vm840, %v1015, %v1017
      %v1097 = vsel %vm840, %v1017, %v1019
      %v1098 = vsel %vm840, %v1021, %v1023
      %v1099 = vsel %vm840, %v1023, %v1025
      %v1100 = vsel %vm840, %v1025, %v1027
      %v1101 = vsel %vm840, %v1027, %v1029
      %v1102 = vsel %vm840, %v1031, %v1033
      %v1103 = vsel %vm840, %v1033, %v1035
      %v1104 = vsel %vm840, %v1035, %v1037
      %v1105 = vsel %vm840, %v1037, %v1039
      %v1106 = vsel %vm840, %v1041, %v1043
      %v1107 = vsel %vm840, %v1043, %v1045
      %v1108 = vsel %vm840, %v1045, %v1047
      %v1109 = vsel %vm840, %v1047, %v1049
      %v1110 = vsel %vm840, %v1051, %v1053
      %v1111 = vsel %vm840, %v1053, %v1055
      %v1112 = vsel %vm840, %v1055, %v1057
      %v1113 = vsel %vm840, %v1057, %v1059
      %v1114 = vsel %vm840, %v1061, %v1063
      %v1115 = vsel %vm840, %v1063, %v1065
      %v1116 = vsel %vm840, %v1065, %v1067
      %v1117 = vsel %vm840, %v1067, %v1069
      %v1118 = vsel %vm840, %v1071, %v1073
      %v1119 = vsel %vm840, %v1073, %v1075
      %v1120 = vsel %vm840, %v1075, %v1077
      %v1121 = vsel %vm840, %v1077, %v1079
      %v1122 = vsel %vm840, %v1081, %v1083
      %v1123 = vsel %vm840, %v1083, %v1085
      %v1124 = vsel %vm840, %v1085, %v1087
      %v1125 = vsel %vm840, %v1087, %v1089
      %vm1162 = vcmask 588800
      %v1164 = vsel %vm1162, %v981, 0
      %v1167 = vsel %vm1162, %v982, 0
      %1169 = vmatpush.msra.mxu0 0.0
      %1170 = vmatpush.msra.mxu0 0.0
      %1171 = vmatpush.msra.mxu0 0.0
      %1172 = vmatpush.msra.mxu0 0.0
      %1173 = vmatpush.msra.mxu0 0.0
      %1174 = vmatpush.msra.mxu0 0.0
      %1175 = vmatpush.msra.mxu0 0.0
      %1176 = vmatpush.msra.mxu0 %v1122
      %1177 = vmatpush.msra.mxu0 %v1118
      %1178 = vmatpush.msra.mxu0 %v1114
      %1179 = vmatpush.msra.mxu0 %v1110
      %1180 = vmatpush.msra.mxu0 %v1106
      %1181 = vmatpush.msra.mxu0 %v1102
      %1182 = vmatpush.msra.mxu0 %v1098
      %1183 = vmatpush.msra.mxu0 %v1094
      %1184 = vmatpush.msra.mxu0 %v1090
      %1185 = vmatmul.f32.gmra.mxu0 %v1164
      %v1186 = vpop.f32.mrf.mxu0
      %v1187 = vadd.f32 %v988, %v1186
      %1188 = vmatmul.f32.gmra.mxu0 %v1167
      %v1189 = vpop.f32.mrf.mxu0
      %v1190 = vadd.f32 %v993, %v1189
      %1191 = vdwg.mxu0
      %1192 = vmatpush.msra.mxu0 0.0
      %1193 = vmatpush.msra.mxu0 0.0
      %1194 = vmatpush.msra.mxu0 0.0
      %1195 = vmatpush.msra.mxu0 0.0
      %1196 = vmatpush.msra.mxu0 0.0
      %1197 = vmatpush.msra.mxu0 0.0
      %1198 = vmatpush.msra.mxu0 0.0
      %1199 = vmatpush.msra.mxu0 %v1123
      %1200 = vmatpush.msra.mxu0 %v1119
      %1201 = vmatpush.msra.mxu0 %v1115
      %1202 = vmatpush.msra.mxu0 %v1111
      %1203 = vmatpush.msra.mxu0 %v1107
      %1204 = vmatpush.msra.mxu0 %v1103
      %1205 = vmatpush.msra.mxu0 %v1099
      %1206 = vmatpush.msra.mxu0 %v1095
      %1207 = vmatpush.msra.mxu0 %v1091
      %1208 = vmatmul.f32.gmra.mxu0 %v1164
      %v1209 = vpop.f32.mrf.mxu0
      %v1210 = vadd.f32 %v988, %v1209
      %1211 = vmatmul.f32.gmra.mxu0 %v1167
      %v1212 = vpop.f32.mrf.mxu0
      %v1213 = vadd.f32 %v993, %v1212
      %1214 = vdwg.mxu0
      %1215 = vmatpush.msra.mxu0 0.0
      %1216 = vmatpush.msra.mxu0 0.0
      %1217 = vmatpush.msra.mxu0 0.0
      %1218 = vmatpush.msra.mxu0 0.0
      %1219 = vmatpush.msra.mxu0 0.0
      %1220 = vmatpush.msra.mxu0 0.0
      %1221 = vmatpush.msra.mxu0 0.0
      %1222 = vmatpush.msra.mxu0 %v1124
      %1223 = vmatpush.msra.mxu0 %v1120
      %1224 = vmatpush.msra.mxu0 %v1116
      %1225 = vmatpush.msra.mxu0 %v1112
      %1226 = vmatpush.msra.mxu0 %v1108
      %1227 = vmatpush.msra.mxu0 %v1104
      %1228 = vmatpush.msra.mxu0 %v1100
      %1229 = vmatpush.msra.mxu0 %v1096
      %1230 = vmatpush.msra.mxu0 %v1092
      %1231 = vmatmul.f32.gmra.mxu0 %v1164
      %v1232 = vpop.f32.mrf.mxu0
      %v1233 = vadd.f32 %v988, %v1232
      %1234 = vmatmul.f32.gmra.mxu0 %v1167
      %v1235 = vpop.f32.mrf.mxu0
      %v1236 = vadd.f32 %v993, %v1235
      %1237 = vdwg.mxu0
      %1238 = vmatpush.msra.mxu0 0.0
      %1239 = vmatpush.msra.mxu0 0.0
      %1240 = vmatpush.msra.mxu0 0.0
      %1241 = vmatpush.msra.mxu0 0.0
      %1242 = vmatpush.msra.mxu0 0.0
      %1243 = vmatpush.msra.mxu0 0.0
      %1244 = vmatpush.msra.mxu0 0.0
      %1245 = vmatpush.msra.mxu0 %v1125
      %1246 = vmatpush.msra.mxu0 %v1121
      %1247 = vmatpush.msra.mxu0 %v1117
      %1248 = vmatpush.msra.mxu0 %v1113
      %1249 = vmatpush.msra.mxu0 %v1109
      %1250 = vmatpush.msra.mxu0 %v1105
      %1251 = vmatpush.msra.mxu0 %v1101
      %1252 = vmatpush.msra.mxu0 %v1097
      %1253 = vmatpush.msra.mxu0 %v1093
      %1254 = vmatmul.f32.gmra.mxu0 %v1164
      %v1255 = vpop.f32.mrf.mxu0
      %v1256 = vadd.f32 %v988, %v1255
      %1257 = vmatmul.f32.gmra.mxu0 %v1167
      %v1258 = vpop.f32.mrf.mxu0
      %v1259 = vadd.f32 %v993, %v1258
      %1260 = vdwg.mxu0
      %v1261 = vmax.f32 %v1187, 0.0
      %v1262 = vmax.f32 %v1210, 0.0
      %v1263 = vmax.f32 %v1233, 0.0
      %v1264 = vmax.f32 %v1256, 0.0
      %v1265 = vmax.f32 %v1190, 0.0
      %v1266 = vmax.f32 %v1213, 0.0
      %v1267 = vmax.f32 %v1236, 0.0
      %v1268 = vmax.f32 %v1259, 0.0
      %v1269 = vperm.slane %v677, 0
      %v1270 = vperm.slane %v677, 4
      %v1271 = vperm.slane %v678, 0
      %v1272 = vperm.slane %v678, 4
      %v1277 = vperm.slane %v1269, 0
      %v1278 = vperm.slane %v1270, 0
      %v1279 = vperm.slane %v1271, 0
      %v1280 = vperm.slane %v1272, 0
      %v1281 = vmul.f32 %v1261, %v1277
      %v1282 = vmul.f32 %v1262, %v1278
      %v1283 = vmul.f32 %v1263, %v1279
      %v1284 = vmul.f32 %v1264, %v1280
      %v1285 = vmul.f32 %v1265, %v1277
      %v1286 = vmul.f32 %v1266, %v1278
      %v1287 = vmul.f32 %v1267, %v1279
      %v1288 = vmul.f32 %v1268, %v1280
      %1289 = vst [vmem:[#allocation2 + $0x8] sm:$0xff] %v1281
      %1290 = vst [vmem:[#allocation2 + $0x10] sm:$0xff] %v1282
      %1291 = vst [vmem:[#allocation2 + $0x18] sm:$0xff] %v1283
      %1292 = vst.msk [vmem:[#allocation2 + $0x20] sm:$0xff] %vm657, %v1284
      %1293 = vst [vmem:[#allocation2 + $0x38] sm:$0xff] %v1285
      %1294 = vst [vmem:[#allocation2 + $0x40] sm:$0xff] %v1286
      %1295 = vst [vmem:[#allocation2 + $0x48] sm:$0xff] %v1287
      %1296 = vst.msk [vmem:[#allocation2 + $0x50] sm:$0xff] %vm657, %v1288
      %v1297 = vld [vmem:[#allocation2] sm:$0xff]
      %v1298 = vld [vmem:[#allocation2 + $0x8] sm:$0xff]
      %v1299 = vld [vmem:[#allocation2 + $0x10] sm:$0xff]
      %v1300 = vld [vmem:[#allocation2 + $0x18] sm:$0xff]
      %v1301 = vld [vmem:[#allocation2 + $0x20] sm:$0xff]
      %v1302 = vld [vmem:[#allocation2 + $0x30] sm:$0xff]
      %v1303 = vld [vmem:[#allocation2 + $0x38] sm:$0xff]
      %v1304 = vld [vmem:[#allocation2 + $0x40] sm:$0xff]
      %v1305 = vld [vmem:[#allocation2 + $0x48] sm:$0xff]
      %v1306 = vld [vmem:[#allocation2 + $0x50] sm:$0xff]
      %v1307 = vmul.f32 %v1297, %v711
      %v1308 = vmul.f32 %v1298, %v719
      %v1309 = vmul.f32 %v1299, %v720
      %v1310 = vmul.f32 %v1300, %v721
      %v1311 = vmul.f32 %v1301, %v717
      %v1312 = vmul.f32 %v1302, %v711
      %v1313 = vmul.f32 %v1303, %v719
      %v1314 = vmul.f32 %v1304, %v720
      %v1315 = vmul.f32 %v1305, %v721
      %v1316 = vmul.f32 %v1306, %v717
      %v1317 = vmul.f32 %v1297, %v749
      %v1318 = vmul.f32 %v1298, %v757
      %v1319 = vmul.f32 %v1299, %v758
      %v1320 = vmul.f32 %v1300, %v759
      %v1321 = vmul.f32 %v1301, %v755
      %v1322 = vmul.f32 %v1302, %v749
      %v1323 = vmul.f32 %v1303, %v757
      %v1324 = vmul.f32 %v1304, %v758
      %v1325 = vmul.f32 %v1305, %v759
      %v1326 = vmul.f32 %v1306, %v755
      %v1327 = vmul.f32 %v1297, %v771
      %v1328 = vmul.f32 %v1298, %v779
      %v1329 = vmul.f32 %v1299, %v780
      %v1330 = vmul.f32 %v1300, %v781
      %v1331 = vmul.f32 %v1301, %v777
      %v1332 = vmul.f32 %v1302, %v771
      %v1333 = vmul.f32 %v1303, %v779
      %v1334 = vmul.f32 %v1304, %v780
      %v1335 = vmul.f32 %v1305, %v781
      %v1336 = vmul.f32 %v1306, %v777
      %v1337 = vmul.f32 %v1298, %v793
      %v1338 = vmul.f32 %v1299, %v801
      %v1339 = vmul.f32 %v1300, %v802
      %v1340 = vmul.f32 %v1301, %v803
      %v1341 = vmul.f32 %v1303, %v793
      %v1342 = vmul.f32 %v1304, %v801
      %v1343 = vmul.f32 %v1305, %v802
      %v1344 = vmul.f32 %v1306, %v803
      %v1345 = vmul.f32 %v1298, %v813
      %v1346 = vmul.f32 %v1299, %v821
      %v1347 = vmul.f32 %v1300, %v822
      %v1348 = vmul.f32 %v1301, %v823
      %v1349 = vmul.f32 %v1303, %v813
      %v1350 = vmul.f32 %v1304, %v821
      %v1351 = vmul.f32 %v1305, %v822
      %v1352 = vmul.f32 %v1306, %v823
      %v1353 = vmul.f32 %v1298, %v833
      %v1354 = vmul.f32 %v1299, %v841
      %v1355 = vmul.f32 %v1300, %v842
      %v1356 = vmul.f32 %v1301, %v843
      %v1357 = vmul.f32 %v1303, %v833
      %v1358 = vmul.f32 %v1304, %v841
      %v1359 = vmul.f32 %v1305, %v842
      %v1360 = vmul.f32 %v1306, %v843
      %1371 = vrot.lane.b32.xlu0 %v1297, 127
      %v1372 = vpop.permute.xlu0 %1371
      %1373 = vrot.lane.b32.xlu0 %v1298, 127
      %v1374 = vpop.permute.xlu0 %1373
      %1375 = vrot.lane.b32.xlu0 %v1299, 127
      %v1376 = vpop.permute.xlu0 %1375
      %1377 = vrot.lane.b32.xlu0 %v1300, 127
      %v1378 = vpop.permute.xlu0 %1377
      %1379 = vrot.lane.b32.xlu0 %v1301, 127
      %v1380 = vpop.permute.xlu0 %1379
      %1381 = vrot.lane.b32.xlu0 %v1302, 127
      %v1382 = vpop.permute.xlu0 %1381
      %1383 = vrot.lane.b32.xlu0 %v1303, 127
      %v1384 = vpop.permute.xlu0 %1383
      %1385 = vrot.lane.b32.xlu0 %v1304, 127
      %v1386 = vpop.permute.xlu0 %1385
      %1387 = vrot.lane.b32.xlu0 %v1305, 127
      %v1388 = vpop.permute.xlu0 %1387
      %1389 = vrot.lane.b32.xlu0 %v1306, 127
      %v1390 = vpop.permute.xlu0 %1389
      %v1391 = vsel %vm778, %v1372, %v1374
      %v1392 = vsel %vm778, %v1374, %v1376
      %v1393 = vsel %vm778, %v1376, %v1378
      %v1394 = vsel %vm778, %v1378, %v1380
      %v1395 = vsel %vm778, %v1382, %v1384
      %v1396 = vsel %vm778, %v1384, %v1386
      %v1397 = vsel %vm778, %v1386, %v1388
      %v1398 = vsel %vm778, %v1388, %v1390
      %1409 = vrot.lane.b32.xlu0 %v1317, 126
      %v1410 = vpop.permute.xlu0 %1409
      %1411 = vrot.lane.b32.xlu0 %v1318, 126
      %v1412 = vpop.permute.xlu0 %1411
      %1413 = vrot.lane.b32.xlu0 %v1319, 126
      %v1414 = vpop.permute.xlu0 %1413
      %1415 = vrot.lane.b32.xlu0 %v1320, 126
      %v1416 = vpop.permute.xlu0 %1415
      %1417 = vrot.lane.b32.xlu0 %v1321, 126
      %v1418 = vpop.permute.xlu0 %1417
      %1419 = vrot.lane.b32.xlu0 %v1322, 126
      %v1420 = vpop.permute.xlu0 %1419
      %1421 = vrot.lane.b32.xlu0 %v1323, 126
      %v1422 = vpop.permute.xlu0 %1421
      %1423 = vrot.lane.b32.xlu0 %v1324, 126
      %v1424 = vpop.permute.xlu0 %1423
      %1425 = vrot.lane.b32.xlu0 %v1325, 126
      %v1426 = vpop.permute.xlu0 %1425
      %1427 = vrot.lane.b32.xlu0 %v1326, 126
      %v1428 = vpop.permute.xlu0 %1427
      %v1429 = vsel %vm886, %v1410, %v1412
      %v1430 = vsel %vm886, %v1412, %v1414
      %v1431 = vsel %vm886, %v1414, %v1416
      %v1432 = vsel %vm886, %v1416, %v1418
      %v1433 = vsel %vm886, %v1420, %v1422
      %v1434 = vsel %vm886, %v1422, %v1424
      %v1435 = vsel %vm886, %v1424, %v1426
      %v1436 = vsel %vm886, %v1426, %v1428
      %1447 = vrot.lane.b32.xlu0 %v1327, 112
      %v1448 = vpop.permute.xlu0 %1447
      %1449 = vrot.lane.b32.xlu0 %v1328, 112
      %v1450 = vpop.permute.xlu0 %1449
      %1451 = vrot.lane.b32.xlu0 %v1329, 112
      %v1452 = vpop.permute.xlu0 %1451
      %1453 = vrot.lane.b32.xlu0 %v1330, 112
      %v1454 = vpop.permute.xlu0 %1453
      %1455 = vrot.lane.b32.xlu0 %v1331, 112
      %v1456 = vpop.permute.xlu0 %1455
      %1457 = vrot.lane.b32.xlu0 %v1332, 112
      %v1458 = vpop.permute.xlu0 %1457
      %1459 = vrot.lane.b32.xlu0 %v1333, 112
      %v1460 = vpop.permute.xlu0 %1459
      %1461 = vrot.lane.b32.xlu0 %v1334, 112
      %v1462 = vpop.permute.xlu0 %1461
      %1463 = vrot.lane.b32.xlu0 %v1335, 112
      %v1464 = vpop.permute.xlu0 %1463
      %1465 = vrot.lane.b32.xlu0 %v1336, 112
      %v1466 = vpop.permute.xlu0 %1465
      %v1467 = vsel %vm906, %v1448, %v1450
      %v1468 = vsel %vm906, %v1450, %v1452
      %v1469 = vsel %vm906, %v1452, %v1454
      %v1470 = vsel %vm906, %v1454, %v1456
      %v1471 = vsel %vm906, %v1458, %v1460
      %v1472 = vsel %vm906, %v1460, %v1462
      %v1473 = vsel %vm906, %v1462, %v1464
      %v1474 = vsel %vm906, %v1464, %v1466
      %1475 = vrot.lane.b32.xlu0 %v1298, 111
      %v1476 = vpop.permute.xlu0 %1475
      %1477 = vrot.lane.b32.xlu0 %v1299, 111
      %v1478 = vpop.permute.xlu0 %1477
      %1479 = vrot.lane.b32.xlu0 %v1300, 111
      %v1480 = vpop.permute.xlu0 %1479
      %1481 = vrot.lane.b32.xlu0 %v1301, 111
      %v1482 = vpop.permute.xlu0 %1481
      %1483 = vrot.lane.b32.xlu0 %v1303, 111
      %v1484 = vpop.permute.xlu0 %1483
      %1485 = vrot.lane.b32.xlu0 %v1304, 111
      %v1486 = vpop.permute.xlu0 %1485
      %1487 = vrot.lane.b32.xlu0 %v1305, 111
      %v1488 = vpop.permute.xlu0 %1487
      %1489 = vrot.lane.b32.xlu0 %v1306, 111
      %v1490 = vpop.permute.xlu0 %1489
      %v1491 = vsel %vm718, %v1476, %v1478
      %v1492 = vsel %vm718, %v1478, %v1480
      %v1493 = vsel %vm718, %v1480, %v1482
      %v1494 = vsel %vm718, %v1484, %v1486
      %v1495 = vsel %vm718, %v1486, %v1488
      %v1496 = vsel %vm718, %v1488, %v1490
      %1505 = vrot.lane.b32.xlu0 %v1337, 110
      %v1506 = vpop.permute.xlu0 %1505
      %1507 = vrot.lane.b32.xlu0 %v1338, 110
      %v1508 = vpop.permute.xlu0 %1507
      %1509 = vrot.lane.b32.xlu0 %v1339, 110
      %v1510 = vpop.permute.xlu0 %1509
      %1511 = vrot.lane.b32.xlu0 %v1340, 110
      %v1512 = vpop.permute.xlu0 %1511
      %1513 = vrot.lane.b32.xlu0 %v1341, 110
      %v1514 = vpop.permute.xlu0 %1513
      %1515 = vrot.lane.b32.xlu0 %v1342, 110
      %v1516 = vpop.permute.xlu0 %1515
      %1517 = vrot.lane.b32.xlu0 %v1343, 110
      %v1518 = vpop.permute.xlu0 %1517
      %1519 = vrot.lane.b32.xlu0 %v1344, 110
      %v1520 = vpop.permute.xlu0 %1519
      %v1521 = vsel %vm934, %v1506, %v1508
      %v1522 = vsel %vm934, %v1508, %v1510
      %v1523 = vsel %vm934, %v1510, %v1512
      %v1524 = vsel %vm934, %v1514, %v1516
      %v1525 = vsel %vm934, %v1516, %v1518
      %v1526 = vsel %vm934, %v1518, %v1520
      %1535 = vrot.lane.b32.xlu0 %v1345, 96
      %v1536 = vpop.permute.xlu0 %1535
      %1537 = vrot.lane.b32.xlu0 %v1346, 96
      %v1538 = vpop.permute.xlu0 %1537
      %1539 = vrot.lane.b32.xlu0 %v1347, 96
      %v1540 = vpop.permute.xlu0 %1539
      %1541 = vrot.lane.b32.xlu0 %v1348, 96
      %v1542 = vpop.permute.xlu0 %1541
      %1543 = vrot.lane.b32.xlu0 %v1349, 96
      %v1544 = vpop.permute.xlu0 %1543
      %1545 = vrot.lane.b32.xlu0 %v1350, 96
      %v1546 = vpop.permute.xlu0 %1545
      %1547 = vrot.lane.b32.xlu0 %v1351, 96
      %v1548 = vpop.permute.xlu0 %1547
      %1549 = vrot.lane.b32.xlu0 %v1352, 96
      %v1550 = vpop.permute.xlu0 %1549
      %v1551 = vsel %vm657, %v1536, %v1538
      %v1552 = vsel %vm657, %v1538, %v1540
      %v1553 = vsel %vm657, %v1540, %v1542
      %v1554 = vsel %vm657, %v1544, %v1546
      %v1555 = vsel %vm657, %v1546, %v1548
      %v1556 = vsel %vm657, %v1548, %v1550
      %1557 = vrot.lane.b32.xlu0 %v1298, 95
      %v1558 = vpop.permute.xlu0 %1557
      %1559 = vrot.lane.b32.xlu0 %v1299, 95
      %v1560 = vpop.permute.xlu0 %1559
      %1561 = vrot.lane.b32.xlu0 %v1300, 95
      %v1562 = vpop.permute.xlu0 %1561
      %1563 = vrot.lane.b32.xlu0 %v1301, 95
      %v1564 = vpop.permute.xlu0 %1563
      %1565 = vrot.lane.b32.xlu0 %v1303, 95
      %v1566 = vpop.permute.xlu0 %1565
      %1567 = vrot.lane.b32.xlu0 %v1304, 95
      %v1568 = vpop.permute.xlu0 %1567
      %1569 = vrot.lane.b32.xlu0 %v1305, 95
      %v1570 = vpop.permute.xlu0 %1569
      %1571 = vrot.lane.b32.xlu0 %v1306, 95
      %v1572 = vpop.permute.xlu0 %1571
      %v1573 = vsel %vm961, %v1558, %v1560
      %v1574 = vsel %vm961, %v1560, %v1562
      %v1575 = vsel %vm961, %v1562, %v1564
      %v1576 = vsel %vm961, %v1566, %v1568
      %v1577 = vsel %vm961, %v1568, %v1570
      %v1578 = vsel %vm961, %v1570, %v1572
      %1587 = vrot.lane.b32.xlu0 %v1353, 94
      %v1588 = vpop.permute.xlu0 %1587
      %1589 = vrot.lane.b32.xlu0 %v1354, 94
      %v1590 = vpop.permute.xlu0 %1589
      %1591 = vrot.lane.b32.xlu0 %v1355, 94
      %v1592 = vpop.permute.xlu0 %1591
      %1593 = vrot.lane.b32.xlu0 %v1356, 94
      %v1594 = vpop.permute.xlu0 %1593
      %1595 = vrot.lane.b32.xlu0 %v1357, 94
      %v1596 = vpop.permute.xlu0 %1595
      %1597 = vrot.lane.b32.xlu0 %v1358, 94
      %v1598 = vpop.permute.xlu0 %1597
      %1599 = vrot.lane.b32.xlu0 %v1359, 94
      %v1600 = vpop.permute.xlu0 %1599
      %1601 = vrot.lane.b32.xlu0 %v1360, 94
      %v1602 = vpop.permute.xlu0 %1601
      %v1603 = vsel %vm977, %v1588, %v1590
      %v1604 = vsel %vm977, %v1590, %v1592
      %v1605 = vsel %vm977, %v1592, %v1594
      %v1606 = vsel %vm977, %v1596, %v1598
      %v1607 = vsel %vm977, %v1598, %v1600
      %v1608 = vsel %vm977, %v1600, %v1602
      %v1609 = vld [vmem:[%s4] sm:$0xff]
      %v1610 = vld [vmem:[%s4 + $0x8] sm:$0xff]
      %v1611 = vld [vmem:[%s4 + $0x10] sm:$0xff]
      %v1612 = vld [vmem:[%s4 + $0x18] sm:$0xff]
      %v1613 = vld [vmem:[%s5] sm:$0xff]
      %v1614 = vld [vmem:[%s5 + $0x8] sm:$0xff]
      %1616 = vset.pattern.permute.xlu0 0
      %1617 = vperm.xlu0 %1616, %v1613
      %v1618 = vpop.permute.xlu0 %1617
      %1621 = vset.pattern.permute.xlu0 0
      %1622 = vperm.xlu0 %1621, %v1614
      %v1623 = vpop.permute.xlu0 %1622
      %1635 = vrot.lane.b32.xlu0 %v1307, 17
      %v1636 = vpop.permute.xlu0 %1635
      %1637 = vrot.lane.b32.xlu0 %v1308, 17
      %v1638 = vpop.permute.xlu0 %1637
      %1639 = vrot.lane.b32.xlu0 %v1309, 17
      %v1640 = vpop.permute.xlu0 %1639
      %1641 = vrot.lane.b32.xlu0 %v1310, 17
      %v1642 = vpop.permute.xlu0 %1641
      %1643 = vrot.lane.b32.xlu0 %v1311, 17
      %v1644 = vpop.permute.xlu0 %1643
      %1645 = vrot.lane.b32.xlu0 %v1312, 17
      %v1646 = vpop.permute.xlu0 %1645
      %1647 = vrot.lane.b32.xlu0 %v1313, 17
      %v1648 = vpop.permute.xlu0 %1647
      %1649 = vrot.lane.b32.xlu0 %v1314, 17
      %v1650 = vpop.permute.xlu0 %1649
      %1651 = vrot.lane.b32.xlu0 %v1315, 17
      %v1652 = vpop.permute.xlu0 %1651
      %1653 = vrot.lane.b32.xlu0 %v1316, 17
      %v1654 = vpop.permute.xlu0 %1653
      %1655 = vrot.lane.b32.xlu0 %v1391, 17
      %v1656 = vpop.permute.xlu0 %1655
      %1657 = vrot.lane.b32.xlu0 %v1392, 17
      %v1658 = vpop.permute.xlu0 %1657
      %1659 = vrot.lane.b32.xlu0 %v1393, 17
      %v1660 = vpop.permute.xlu0 %1659
      %1661 = vrot.lane.b32.xlu0 %v1394, 17
      %v1662 = vpop.permute.xlu0 %1661
      %1663 = vrot.lane.b32.xlu0 %v1380, 17
      %v1664 = vpop.permute.xlu0 %1663
      %1665 = vrot.lane.b32.xlu0 %v1395, 17
      %v1666 = vpop.permute.xlu0 %1665
      %1667 = vrot.lane.b32.xlu0 %v1396, 17
      %v1668 = vpop.permute.xlu0 %1667
      %1669 = vrot.lane.b32.xlu0 %v1397, 17
      %v1670 = vpop.permute.xlu0 %1669
      %1671 = vrot.lane.b32.xlu0 %v1398, 17
      %v1672 = vpop.permute.xlu0 %1671
      %1673 = vrot.lane.b32.xlu0 %v1390, 17
      %v1674 = vpop.permute.xlu0 %1673
      %1675 = vrot.lane.b32.xlu0 %v1429, 17
      %v1676 = vpop.permute.xlu0 %1675
      %1677 = vrot.lane.b32.xlu0 %v1430, 17
      %v1678 = vpop.permute.xlu0 %1677
      %1679 = vrot.lane.b32.xlu0 %v1431, 17
      %v1680 = vpop.permute.xlu0 %1679
      %1681 = vrot.lane.b32.xlu0 %v1432, 17
      %v1682 = vpop.permute.xlu0 %1681
      %1683 = vrot.lane.b32.xlu0 %v1418, 17
      %v1684 = vpop.permute.xlu0 %1683
      %1685 = vrot.lane.b32.xlu0 %v1433, 17
      %v1686 = vpop.permute.xlu0 %1685
      %1687 = vrot.lane.b32.xlu0 %v1434, 17
      %v1688 = vpop.permute.xlu0 %1687
      %1689 = vrot.lane.b32.xlu0 %v1435, 17
      %v1690 = vpop.permute.xlu0 %1689
      %1691 = vrot.lane.b32.xlu0 %v1436, 17
      %v1692 = vpop.permute.xlu0 %1691
      %1693 = vrot.lane.b32.xlu0 %v1428, 17
      %v1694 = vpop.permute.xlu0 %1693
      %1695 = vrot.lane.b32.xlu0 %v1467, 17
      %v1696 = vpop.permute.xlu0 %1695
      %1697 = vrot.lane.b32.xlu0 %v1468, 17
      %v1698 = vpop.permute.xlu0 %1697
      %1699 = vrot.lane.b32.xlu0 %v1469, 17
      %v1700 = vpop.permute.xlu0 %1699
      %1701 = vrot.lane.b32.xlu0 %v1470, 17
      %v1702 = vpop.permute.xlu0 %1701
      %1703 = vrot.lane.b32.xlu0 %v1456, 17
      %v1704 = vpop.permute.xlu0 %1703
      %1705 = vrot.lane.b32.xlu0 %v1471, 17
      %v1706 = vpop.permute.xlu0 %1705
      %1707 = vrot.lane.b32.xlu0 %v1472, 17
      %v1708 = vpop.permute.xlu0 %1707
      %1709 = vrot.lane.b32.xlu0 %v1473, 17
      %v1710 = vpop.permute.xlu0 %1709
      %1711 = vrot.lane.b32.xlu0 %v1474, 17
      %v1712 = vpop.permute.xlu0 %1711
      %1713 = vrot.lane.b32.xlu0 %v1466, 17
      %v1714 = vpop.permute.xlu0 %1713
      %1715 = vrot.lane.b32.xlu0 %v1476, 17
      %v1716 = vpop.permute.xlu0 %1715
      %1717 = vrot.lane.b32.xlu0 %v1491, 17
      %v1718 = vpop.permute.xlu0 %1717
      %1719 = vrot.lane.b32.xlu0 %v1492, 17
      %v1720 = vpop.permute.xlu0 %1719
      %1721 = vrot.lane.b32.xlu0 %v1493, 17
      %v1722 = vpop.permute.xlu0 %1721
      %1723 = vrot.lane.b32.xlu0 %v1482, 17
      %v1724 = vpop.permute.xlu0 %1723
      %1725 = vrot.lane.b32.xlu0 %v1484, 17
      %v1726 = vpop.permute.xlu0 %1725
      %1727 = vrot.lane.b32.xlu0 %v1494, 17
      %v1728 = vpop.permute.xlu0 %1727
      %1729 = vrot.lane.b32.xlu0 %v1495, 17
      %v1730 = vpop.permute.xlu0 %1729
      %1731 = vrot.lane.b32.xlu0 %v1496, 17
      %v1732 = vpop.permute.xlu0 %1731
      %1733 = vrot.lane.b32.xlu0 %v1490, 17
      %v1734 = vpop.permute.xlu0 %1733
      %1735 = vrot.lane.b32.xlu0 %v1506, 17
      %v1736 = vpop.permute.xlu0 %1735
      %1737 = vrot.lane.b32.xlu0 %v1521, 17
      %v1738 = vpop.permute.xlu0 %1737
      %1739 = vrot.lane.b32.xlu0 %v1522, 17
      %v1740 = vpop.permute.xlu0 %1739
      %1741 = vrot.lane.b32.xlu0 %v1523, 17
      %v1742 = vpop.permute.xlu0 %1741
      %1743 = vrot.lane.b32.xlu0 %v1512, 17
      %v1744 = vpop.permute.xlu0 %1743
      %1745 = vrot.lane.b32.xlu0 %v1514, 17
      %v1746 = vpop.permute.xlu0 %1745
      %1747 = vrot.lane.b32.xlu0 %v1524, 17
      %v1748 = vpop.permute.xlu0 %1747
      %1749 = vrot.lane.b32.xlu0 %v1525, 17
      %v1750 = vpop.permute.xlu0 %1749
      %1751 = vrot.lane.b32.xlu0 %v1526, 17
      %v1752 = vpop.permute.xlu0 %1751
      %1753 = vrot.lane.b32.xlu0 %v1520, 17
      %v1754 = vpop.permute.xlu0 %1753
      %1755 = vrot.lane.b32.xlu0 %v1536, 17
      %v1756 = vpop.permute.xlu0 %1755
      %1757 = vrot.lane.b32.xlu0 %v1551, 17
      %v1758 = vpop.permute.xlu0 %1757
      %1759 = vrot.lane.b32.xlu0 %v1552, 17
      %v1760 = vpop.permute.xlu0 %1759
      %1761 = vrot.lane.b32.xlu0 %v1553, 17
      %v1762 = vpop.permute.xlu0 %1761
      %1763 = vrot.lane.b32.xlu0 %v1542, 17
      %v1764 = vpop.permute.xlu0 %1763
      %1765 = vrot.lane.b32.xlu0 %v1544, 17
      %v1766 = vpop.permute.xlu0 %1765
      %1767 = vrot.lane.b32.xlu0 %v1554, 17
      %v1768 = vpop.permute.xlu0 %1767
      %1769 = vrot.lane.b32.xlu0 %v1555, 17
      %v1770 = vpop.permute.xlu0 %1769
      %1771 = vrot.lane.b32.xlu0 %v1556, 17
      %v1772 = vpop.permute.xlu0 %1771
      %1773 = vrot.lane.b32.xlu0 %v1550, 17
      %v1774 = vpop.permute.xlu0 %1773
      %1775 = vrot.lane.b32.xlu0 %v1558, 17
      %v1776 = vpop.permute.xlu0 %1775
      %1777 = vrot.lane.b32.xlu0 %v1573, 17
      %v1778 = vpop.permute.xlu0 %1777
      %1779 = vrot.lane.b32.xlu0 %v1574, 17
      %v1780 = vpop.permute.xlu0 %1779
      %1781 = vrot.lane.b32.xlu0 %v1575, 17
      %v1782 = vpop.permute.xlu0 %1781
      %1783 = vrot.lane.b32.xlu0 %v1564, 17
      %v1784 = vpop.permute.xlu0 %1783
      %1785 = vrot.lane.b32.xlu0 %v1566, 17
      %v1786 = vpop.permute.xlu0 %1785
      %1787 = vrot.lane.b32.xlu0 %v1576, 17
      %v1788 = vpop.permute.xlu0 %1787
      %1789 = vrot.lane.b32.xlu0 %v1577, 17
      %v1790 = vpop.permute.xlu0 %1789
      %1791 = vrot.lane.b32.xlu0 %v1578, 17
      %v1792 = vpop.permute.xlu0 %1791
      %1793 = vrot.lane.b32.xlu0 %v1572, 17
      %v1794 = vpop.permute.xlu0 %1793
      %1795 = vrot.lane.b32.xlu0 %v1588, 17
      %v1796 = vpop.permute.xlu0 %1795
      %1797 = vrot.lane.b32.xlu0 %v1603, 17
      %v1798 = vpop.permute.xlu0 %1797
      %1799 = vrot.lane.b32.xlu0 %v1604, 17
      %v1800 = vpop.permute.xlu0 %1799
      %1801 = vrot.lane.b32.xlu0 %v1605, 17
      %v1802 = vpop.permute.xlu0 %1801
      %1803 = vrot.lane.b32.xlu0 %v1594, 17
      %v1804 = vpop.permute.xlu0 %1803
      %1805 = vrot.lane.b32.xlu0 %v1596, 17
      %v1806 = vpop.permute.xlu0 %1805
      %1807 = vrot.lane.b32.xlu0 %v1606, 17
      %v1808 = vpop.permute.xlu0 %1807
      %1809 = vrot.lane.b32.xlu0 %v1607, 17
      %v1810 = vpop.permute.xlu0 %1809
      %1811 = vrot.lane.b32.xlu0 %v1608, 17
      %v1812 = vpop.permute.xlu0 %1811
      %1813 = vrot.lane.b32.xlu0 %v1602, 17
      %v1814 = vpop.permute.xlu0 %1813
      %v1815 = vsel %vm840, %v1636, %v1638
      %v1816 = vsel %vm840, %v1638, %v1640
      %v1817 = vsel %vm840, %v1640, %v1642
      %v1818 = vsel %vm840, %v1642, %v1644
      %v1819 = vsel %vm840, %v1646, %v1648
      %v1820 = vsel %vm840, %v1648, %v1650
      %v1821 = vsel %vm840, %v1650, %v1652
      %v1822 = vsel %vm840, %v1652, %v1654
      %v1823 = vsel %vm840, %v1656, %v1658
      %v1824 = vsel %vm840, %v1658, %v1660
      %v1825 = vsel %vm840, %v1660, %v1662
      %v1826 = vsel %vm840, %v1662, %v1664
      %v1827 = vsel %vm840, %v1666, %v1668
      %v1828 = vsel %vm840, %v1668, %v1670
      %v1829 = vsel %vm840, %v1670, %v1672
      %v1830 = vsel %vm840, %v1672, %v1674
      %v1831 = vsel %vm840, %v1676, %v1678
      %v1832 = vsel %vm840, %v1678, %v1680
      %v1833 = vsel %vm840, %v1680, %v1682
      %v1834 = vsel %vm840, %v1682, %v1684
      %v1835 = vsel %vm840, %v1686, %v1688
      %v1836 = vsel %vm840, %v1688, %v1690
      %v1837 = vsel %vm840, %v1690, %v1692
      %v1838 = vsel %vm840, %v1692, %v1694
      %v1839 = vsel %vm840, %v1696, %v1698
      %v1840 = vsel %vm840, %v1698, %v1700
      %v1841 = vsel %vm840, %v1700, %v1702
      %v1842 = vsel %vm840, %v1702, %v1704
      %v1843 = vsel %vm840, %v1706, %v1708
      %v1844 = vsel %vm840, %v1708, %v1710
      %v1845 = vsel %vm840, %v1710, %v1712
      %v1846 = vsel %vm840, %v1712, %v1714
      %v1847 = vsel %vm840, %v1716, %v1718
      %v1848 = vsel %vm840, %v1718, %v1720
      %v1849 = vsel %vm840, %v1720, %v1722
      %v1850 = vsel %vm840, %v1722, %v1724
      %v1851 = vsel %vm840, %v1726, %v1728
      %v1852 = vsel %vm840, %v1728, %v1730
      %v1853 = vsel %vm840, %v1730, %v1732
      %v1854 = vsel %vm840, %v1732, %v1734
      %v1855 = vsel %vm840, %v1736, %v1738
      %v1856 = vsel %vm840, %v1738, %v1740
      %v1857 = vsel %vm840, %v1740, %v1742
      %v1858 = vsel %vm840, %v1742, %v1744
      %v1859 = vsel %vm840, %v1746, %v1748
      %v1860 = vsel %vm840, %v1748, %v1750
      %v1861 = vsel %vm840, %v1750, %v1752
      %v1862 = vsel %vm840, %v1752, %v1754
      %v1863 = vsel %vm840, %v1756, %v1758
      %v1864 = vsel %vm840, %v1758, %v1760
      %v1865 = vsel %vm840, %v1760, %v1762
      %v1866 = vsel %vm840, %v1762, %v1764
      %v1867 = vsel %vm840, %v1766, %v1768
      %v1868 = vsel %vm840, %v1768, %v1770
      %v1869 = vsel %vm840, %v1770, %v1772
      %v1870 = vsel %vm840, %v1772, %v1774
      %v1871 = vsel %vm840, %v1776, %v1778
      %v1872 = vsel %vm840, %v1778, %v1780
      %v1873 = vsel %vm840, %v1780, %v1782
      %v1874 = vsel %vm840, %v1782, %v1784
      %v1875 = vsel %vm840, %v1786, %v1788
      %v1876 = vsel %vm840, %v1788, %v1790
      %v1877 = vsel %vm840, %v1790, %v1792
      %v1878 = vsel %vm840, %v1792, %v1794
      %v1879 = vsel %vm840, %v1796, %v1798
      %v1880 = vsel %vm840, %v1798, %v1800
      %v1881 = vsel %vm840, %v1800, %v1802
      %v1882 = vsel %vm840, %v1802, %v1804
      %v1883 = vsel %vm840, %v1806, %v1808
      %v1884 = vsel %vm840, %v1808, %v1810
      %v1885 = vsel %vm840, %v1810, %v1812
      %v1886 = vsel %vm840, %v1812, %v1814
      %vm1959 = vcmask 130048
      %v1961 = vsel %vm1959, %v1610, 0
      %v1964 = vsel %vm1959, %v1612, 0
      %1966 = vmatpush.msra.mxu0 %v1875
      %1967 = vmatpush.msra.mxu0 %v1871
      %1968 = vmatpush.msra.mxu0 %v1867
      %1969 = vmatpush.msra.mxu0 %v1863
      %1970 = vmatpush.msra.mxu0 %v1859
      %1971 = vmatpush.msra.mxu0 %v1855
      %1972 = vmatpush.msra.mxu0 %v1851
      %1973 = vmatpush.msra.mxu0 %v1847
      %1974 = vmatpush.msra.mxu0 %v1843
      %1975 = vmatpush.msra.mxu0 %v1839
      %1976 = vmatpush.msra.mxu0 %v1835
      %1977 = vmatpush.msra.mxu0 %v1831
      %1978 = vmatpush.msra.mxu0 %v1827
      %1979 = vmatpush.msra.mxu0 %v1823
      %1980 = vmatpush.msra.mxu0 %v1819
      %1981 = vmatpush.msra.mxu0 %v1815
      %1982 = vmatmul.f32.gmra.mxu0 %v1609
      %v1983 = vpop.f32.mrf.mxu0
      %v1984 = vadd.f32 %v1618, %v1983
      %1985 = vmatmul.f32.gmra.mxu0 %v1611
      %v1986 = vpop.f32.mrf.mxu0
      %v1987 = vadd.f32 %v1623, %v1986
      %1988 = vdwg.mxu0
      %1989 = vmatpush.msra.mxu0 0.0
      %1990 = vmatpush.msra.mxu0 0.0
      %1991 = vmatpush.msra.mxu0 0.0
      %1992 = vmatpush.msra.mxu0 0.0
      %1993 = vmatpush.msra.mxu0 0.0
      %1994 = vmatpush.msra.mxu0 0.0
      %1995 = vmatpush.msra.mxu0 0.0
      %1996 = vmatpush.msra.mxu0 0.0
      %1997 = vmatpush.msra.mxu0 0.0
      %1998 = vmatpush.msra.mxu0 0.0
      %1999 = vmatpush.msra.mxu0 0.0
      %2000 = vmatpush.msra.mxu0 0.0
      %2001 = vmatpush.msra.mxu0 0.0
      %2002 = vmatpush.msra.mxu0 0.0
      %2003 = vmatpush.msra.mxu0 %v1883
      %2004 = vmatpush.msra.mxu0 %v1879
      %2005 = vmatmul.f32.gmra.mxu0 %v1961
      %v2006 = vpop.f32.mrf.mxu0
      %v2007 = vadd.f32 %v1984, %v2006
      %2008 = vmatmul.f32.gmra.mxu0 %v1964
      %v2009 = vpop.f32.mrf.mxu0
      %v2010 = vadd.f32 %v1987, %v2009
      %2011 = vdwg.mxu0
      %2012 = vmatpush.msra.mxu0 %v1876
      %2013 = vmatpush.msra.mxu0 %v1872
      %2014 = vmatpush.msra.mxu0 %v1868
      %2015 = vmatpush.msra.mxu0 %v1864
      %2016 = vmatpush.msra.mxu0 %v1860
      %2017 = vmatpush.msra.mxu0 %v1856
      %2018 = vmatpush.msra.mxu0 %v1852
      %2019 = vmatpush.msra.mxu0 %v1848
      %2020 = vmatpush.msra.mxu0 %v1844
      %2021 = vmatpush.msra.mxu0 %v1840
      %2022 = vmatpush.msra.mxu0 %v1836
      %2023 = vmatpush.msra.mxu0 %v1832
      %2024 = vmatpush.msra.mxu0 %v1828
      %2025 = vmatpush.msra.mxu0 %v1824
      %2026 = vmatpush.msra.mxu0 %v1820
      %2027 = vmatpush.msra.mxu0 %v1816
      %2028 = vmatmul.f32.gmra.mxu0 %v1609
      %v2029 = vpop.f32.mrf.mxu0
      %v2030 = vadd.f32 %v1618, %v2029
      %2031 = vmatmul.f32.gmra.mxu0 %v1611
      %v2032 = vpop.f32.mrf.mxu0
      %v2033 = vadd.f32 %v1623, %v2032
      %2034 = vdwg.mxu0
      %2035 = vmatpush.msra.mxu0 0.0
      %2036 = vmatpush.msra.mxu0 0.0
      %2037 = vmatpush.msra.mxu0 0.0
      %2038 = vmatpush.msra.mxu0 0.0
      %2039 = vmatpush.msra.mxu0 0.0
      %2040 = vmatpush.msra.mxu0 0.0
      %2041 = vmatpush.msra.mxu0 0.0
      %2042 = vmatpush.msra.mxu0 0.0
      %2043 = vmatpush.msra.mxu0 0.0
      %2044 = vmatpush.msra.mxu0 0.0
      %2045 = vmatpush.msra.mxu0 0.0
      %2046 = vmatpush.msra.mxu0 0.0
      %2047 = vmatpush.msra.mxu0 0.0
      %2048 = vmatpush.msra.mxu0 0.0
      %2049 = vmatpush.msra.mxu0 %v1884
      %2050 = vmatpush.msra.mxu0 %v1880
      %2051 = vmatmul.f32.gmra.mxu0 %v1961
      %v2052 = vpop.f32.mrf.mxu0
      %v2053 = vadd.f32 %v2030, %v2052
      %2054 = vmatmul.f32.gmra.mxu0 %v1964
      %v2055 = vpop.f32.mrf.mxu0
      %v2056 = vadd.f32 %v2033, %v2055
      %2057 = vdwg.mxu0
      %2058 = vmatpush.msra.mxu0 %v1877
      %2059 = vmatpush.msra.mxu0 %v1873
      %2060 = vmatpush.msra.mxu0 %v1869
      %2061 = vmatpush.msra.mxu0 %v1865
      %2062 = vmatpush.msra.mxu0 %v1861
      %2063 = vmatpush.msra.mxu0 %v1857
      %2064 = vmatpush.msra.mxu0 %v1853
      %2065 = vmatpush.msra.mxu0 %v1849
      %2066 = vmatpush.msra.mxu0 %v1845
      %2067 = vmatpush.msra.mxu0 %v1841
      %2068 = vmatpush.msra.mxu0 %v1837
      %2069 = vmatpush.msra.mxu0 %v1833
      %2070 = vmatpush.msra.mxu0 %v1829
      %2071 = vmatpush.msra.mxu0 %v1825
      %2072 = vmatpush.msra.mxu0 %v1821
      %2073 = vmatpush.msra.mxu0 %v1817
      %2074 = vmatmul.f32.gmra.mxu0 %v1609
      %v2075 = vpop.f32.mrf.mxu0
      %v2076 = vadd.f32 %v1618, %v2075
      %2077 = vmatmul.f32.gmra.mxu0 %v1611
      %v2078 = vpop.f32.mrf.mxu0
      %v2079 = vadd.f32 %v1623, %v2078
      %2080 = vdwg.mxu0
      %2081 = vmatpush.msra.mxu0 0.0
      %2082 = vmatpush.msra.mxu0 0.0
      %2083 = vmatpush.msra.mxu0 0.0
      %2084 = vmatpush.msra.mxu0 0.0
      %2085 = vmatpush.msra.mxu0 0.0
      %2086 = vmatpush.msra.mxu0 0.0
      %2087 = vmatpush.msra.mxu0 0.0
      %2088 = vmatpush.msra.mxu0 0.0
      %2089 = vmatpush.msra.mxu0 0.0
      %2090 = vmatpush.msra.mxu0 0.0
      %2091 = vmatpush.msra.mxu0 0.0
      %2092 = vmatpush.msra.mxu0 0.0
      %2093 = vmatpush.msra.mxu0 0.0
      %2094 = vmatpush.msra.mxu0 0.0
      %2095 = vmatpush.msra.mxu0 %v1885
      %2096 = vmatpush.msra.mxu0 %v1881
      %2097 = vmatmul.f32.gmra.mxu0 %v1961
      %v2098 = vpop.f32.mrf.mxu0
      %v2099 = vadd.f32 %v2076, %v2098
      %2100 = vmatmul.f32.gmra.mxu0 %v1964
      %v2101 = vpop.f32.mrf.mxu0
      %v2102 = vadd.f32 %v2079, %v2101
      %2103 = vdwg.mxu0
      %2104 = vmatpush.msra.mxu0 %v1878
      %2105 = vmatpush.msra.mxu0 %v1874
      %2106 = vmatpush.msra.mxu0 %v1870
      %2107 = vmatpush.msra.mxu0 %v1866
      %2108 = vmatpush.msra.mxu0 %v1862
      %2109 = vmatpush.msra.mxu0 %v1858
      %2110 = vmatpush.msra.mxu0 %v1854
      %2111 = vmatpush.msra.mxu0 %v1850
      %2112 = vmatpush.msra.mxu0 %v1846
      %2113 = vmatpush.msra.mxu0 %v1842
      %2114 = vmatpush.msra.mxu0 %v1838
      %2115 = vmatpush.msra.mxu0 %v1834
      %2116 = vmatpush.msra.mxu0 %v1830
      %2117 = vmatpush.msra.mxu0 %v1826
      %2118 = vmatpush.msra.mxu0 %v1822
      %2119 = vmatpush.msra.mxu0 %v1818
      %2120 = vmatmul.f32.gmra.mxu0 %v1609
      %v2121 = vpop.f32.mrf.mxu0
      %v2122 = vadd.f32 %v1618, %v2121
      %2123 = vmatmul.f32.gmra.mxu0 %v1611
      %v2124 = vpop.f32.mrf.mxu0
      %v2125 = vadd.f32 %v1623, %v2124
      %2126 = vdwg.mxu0
      %2127 = vmatpush.msra.mxu0 0.0
      %2128 = vmatpush.msra.mxu0 0.0
      %2129 = vmatpush.msra.mxu0 0.0
      %2130 = vmatpush.msra.mxu0 0.0
      %2131 = vmatpush.msra.mxu0 0.0
      %2132 = vmatpush.msra.mxu0 0.0
      %2133 = vmatpush.msra.mxu0 0.0
      %2134 = vmatpush.msra.mxu0 0.0
      %2135 = vmatpush.msra.mxu0 0.0
      %2136 = vmatpush.msra.mxu0 0.0
      %2137 = vmatpush.msra.mxu0 0.0
      %2138 = vmatpush.msra.mxu0 0.0
      %2139 = vmatpush.msra.mxu0 0.0
      %2140 = vmatpush.msra.mxu0 0.0
      %2141 = vmatpush.msra.mxu0 %v1886
      %2142 = vmatpush.msra.mxu0 %v1882
      %2143 = vmatmul.f32.gmra.mxu0 %v1961
      %v2144 = vpop.f32.mrf.mxu0
      %v2145 = vadd.f32 %v2122, %v2144
      %2146 = vmatmul.f32.gmra.mxu0 %v1964
      %v2147 = vpop.f32.mrf.mxu0
      %v2148 = vadd.f32 %v2125, %v2147
      %2149 = vdwg.mxu0
      %v2150 = vld [vmem:[%s6] sm:$0xff]
      %v2151 = vld [vmem:[%s6 + $0x8] sm:$0xff]
      %v2152 = vld [vmem:[%s7] sm:$0xff]
      %v2153 = vld [vmem:[%s7 + $0x8] sm:$0xff]
      %2155 = vset.pattern.permute.xlu0 0
      %2156 = vperm.xlu0 %2155, %v2152
      %v2157 = vpop.permute.xlu0 %2156
      %2160 = vset.pattern.permute.xlu0 0
      %2161 = vperm.xlu0 %2160, %v2153
      %v2162 = vpop.permute.xlu0 %2161
      %vm2164 = vcmask 64512
      %v2166 = vsel %vm2164, %v2150, 0
      %v2169 = vsel %vm2164, %v2151, 0
      %2171 = vmatpush.msra.mxu0 0.0
      %2172 = vmatpush.msra.mxu0 0.0
      %2173 = vmatpush.msra.mxu0 0.0
      %2174 = vmatpush.msra.mxu0 0.0
      %2175 = vmatpush.msra.mxu0 0.0
      %2176 = vmatpush.msra.mxu0 0.0
      %2177 = vmatpush.msra.mxu0 0.0
      %2178 = vmatpush.msra.mxu0 0.0
      %2179 = vmatpush.msra.mxu0 0.0
      %2180 = vmatpush.msra.mxu0 0.0
      %2181 = vmatpush.msra.mxu0 0.0
      %2182 = vmatpush.msra.mxu0 0.0
      %2183 = vmatpush.msra.mxu0 0.0
      %2184 = vmatpush.msra.mxu0 0.0
      %2185 = vmatpush.msra.mxu0 0.0
      %2186 = vmatpush.msra.mxu0 %v679
      %2187 = vmatmul.f32.gmra.mxu0 %v2166
      %v2188 = vpop.f32.mrf.mxu0
      %v2189 = vadd.f32 %v2157, %v2188
      %2190 = vmatmul.f32.gmra.mxu0 %v2169
      %v2191 = vpop.f32.mrf.mxu0
      %v2192 = vadd.f32 %v2162, %v2191
      %2193 = vdwg.mxu0
      %2194 = vmatpush.msra.mxu0 0.0
      %2195 = vmatpush.msra.mxu0 0.0
      %2196 = vmatpush.msra.mxu0 0.0
      %2197 = vmatpush.msra.mxu0 0.0
      %2198 = vmatpush.msra.mxu0 0.0
      %2199 = vmatpush.msra.mxu0 0.0
      %2200 = vmatpush.msra.mxu0 0.0
      %2201 = vmatpush.msra.mxu0 0.0
      %2202 = vmatpush.msra.mxu0 0.0
      %2203 = vmatpush.msra.mxu0 0.0
      %2204 = vmatpush.msra.mxu0 0.0
      %2205 = vmatpush.msra.mxu0 0.0
      %2206 = vmatpush.msra.mxu0 0.0
      %2207 = vmatpush.msra.mxu0 0.0
      %2208 = vmatpush.msra.mxu0 0.0
      %2209 = vmatpush.msra.mxu0 %v680
      %2210 = vmatmul.f32.gmra.mxu0 %v2166
      %v2211 = vpop.f32.mrf.mxu0
      %v2212 = vadd.f32 %v2157, %v2211
      %2213 = vmatmul.f32.gmra.mxu0 %v2169
      %v2214 = vpop.f32.mrf.mxu0
      %v2215 = vadd.f32 %v2162, %v2214
      %2216 = vdwg.mxu0
      %2217 = vmatpush.msra.mxu0 0.0
      %2218 = vmatpush.msra.mxu0 0.0
      %2219 = vmatpush.msra.mxu0 0.0
      %2220 = vmatpush.msra.mxu0 0.0
      %2221 = vmatpush.msra.mxu0 0.0
      %2222 = vmatpush.msra.mxu0 0.0
      %2223 = vmatpush.msra.mxu0 0.0
      %2224 = vmatpush.msra.mxu0 0.0
      %2225 = vmatpush.msra.mxu0 0.0
      %2226 = vmatpush.msra.mxu0 0.0
      %2227 = vmatpush.msra.mxu0 0.0
      %2228 = vmatpush.msra.mxu0 0.0
      %2229 = vmatpush.msra.mxu0 0.0
      %2230 = vmatpush.msra.mxu0 0.0
      %2231 = vmatpush.msra.mxu0 0.0
      %2232 = vmatpush.msra.mxu0 %v681
      %2233 = vmatmul.f32.gmra.mxu0 %v2166
      %v2234 = vpop.f32.mrf.mxu0
      %v2235 = vadd.f32 %v2157, %v2234
      %2236 = vmatmul.f32.gmra.mxu0 %v2169
      %v2237 = vpop.f32.mrf.mxu0
      %v2238 = vadd.f32 %v2162, %v2237
      %2239 = vdwg.mxu0
      %2240 = vmatpush.msra.mxu0 0.0
      %2241 = vmatpush.msra.mxu0 0.0
      %2242 = vmatpush.msra.mxu0 0.0
      %2243 = vmatpush.msra.mxu0 0.0
      %2244 = vmatpush.msra.mxu0 0.0
      %2245 = vmatpush.msra.mxu0 0.0
      %2246 = vmatpush.msra.mxu0 0.0
      %2247 = vmatpush.msra.mxu0 0.0
      %2248 = vmatpush.msra.mxu0 0.0
      %2249 = vmatpush.msra.mxu0 0.0
      %2250 = vmatpush.msra.mxu0 0.0
      %2251 = vmatpush.msra.mxu0 0.0
      %2252 = vmatpush.msra.mxu0 0.0
      %2253 = vmatpush.msra.mxu0 0.0
      %2254 = vmatpush.msra.mxu0 0.0
      %2255 = vmatpush.msra.mxu0 %v682
      %2256 = vmatmul.f32.gmra.mxu0 %v2166
      %v2257 = vpop.f32.mrf.mxu0
      %v2258 = vadd.f32 %v2157, %v2257
      %2259 = vmatmul.f32.gmra.mxu0 %v2169
      %v2260 = vpop.f32.mrf.mxu0
      %v2261 = vadd.f32 %v2162, %v2260
      %2262 = vdwg.mxu0
      %v2263 = vadd.f32 %v2007, %v2189
      %v2264 = vadd.f32 %v2053, %v2212
      %v2265 = vadd.f32 %v2099, %v2235
      %v2266 = vadd.f32 %v2145, %v2258
      %v2267 = vadd.f32 %v2010, %v2192
      %v2268 = vadd.f32 %v2056, %v2215
      %v2269 = vadd.f32 %v2102, %v2238
      %v2270 = vadd.f32 %v2148, %v2261
      %v2271 = vmax.f32 %v2263, 0.0
      %v2272 = vmax.f32 %v2264, 0.0
      %v2273 = vmax.f32 %v2265, 0.0
      %v2274 = vmax.f32 %v2266, 0.0
      %v2275 = vmax.f32 %v2267, 0.0
      %v2276 = vmax.f32 %v2268, 0.0
      %v2277 = vmax.f32 %v2269, 0.0
      %v2278 = vmax.f32 %v2270, 0.0
      %v2279 = vmul.f32 %v2271, %v1277
      %v2280 = vmul.f32 %v2272, %v1278
      %v2281 = vmul.f32 %v2273, %v1279
      %v2282 = vmul.f32 %v2274, %v1280
      %v2283 = vmul.f32 %v2275, %v1277
      %v2284 = vmul.f32 %v2276, %v1278
      %v2285 = vmul.f32 %v2277, %v1279
      %v2286 = vmul.f32 %v2278, %v1280
      %2287 = vst [vmem:[#allocation2 + $0x8] sm:$0xff] %v2279
      %2288 = vst [vmem:[#allocation2 + $0x10] sm:$0xff] %v2280
      %2289 = vst [vmem:[#allocation2 + $0x18] sm:$0xff] %v2281
      %2290 = vst.msk [vmem:[#allocation2 + $0x20] sm:$0xff] %vm657, %v2282
      %2291 = vst [vmem:[#allocation2 + $0x38] sm:$0xff] %v2283
      %2292 = vst [vmem:[#allocation2 + $0x40] sm:$0xff] %v2284
      %2293 = vst [vmem:[#allocation2 + $0x48] sm:$0xff] %v2285
      %2294 = vst.msk [vmem:[#allocation2 + $0x50] sm:$0xff] %vm657, %v2286
      %v2295 = vld [vmem:[#allocation2] sm:$0xff]
      %v2296 = vld [vmem:[#allocation2 + $0x8] sm:$0xff]
      %v2297 = vld [vmem:[#allocation2 + $0x10] sm:$0xff]
      %v2298 = vld [vmem:[#allocation2 + $0x18] sm:$0xff]
      %v2299 = vld [vmem:[#allocation2 + $0x20] sm:$0xff]
      %v2300 = vld [vmem:[#allocation2 + $0x30] sm:$0xff]
      %v2301 = vld [vmem:[#allocation2 + $0x38] sm:$0xff]
      %v2302 = vld [vmem:[#allocation2 + $0x40] sm:$0xff]
      %v2303 = vld [vmem:[#allocation2 + $0x48] sm:$0xff]
      %v2304 = vld [vmem:[#allocation2 + $0x50] sm:$0xff]
      %v2305 = vmul.f32 %v2295, %v711
      %v2306 = vmul.f32 %v2296, %v719
      %v2307 = vmul.f32 %v2297, %v720
      %v2308 = vmul.f32 %v2298, %v721
      %v2309 = vmul.f32 %v2299, %v717
      %v2310 = vmul.f32 %v2300, %v711
      %v2311 = vmul.f32 %v2301, %v719
      %v2312 = vmul.f32 %v2302, %v720
      %v2313 = vmul.f32 %v2303, %v721
      %v2314 = vmul.f32 %v2304, %v717
      %v2315 = vmul.f32 %v2295, %v749
      %v2316 = vmul.f32 %v2296, %v757
      %v2317 = vmul.f32 %v2297, %v758
      %v2318 = vmul.f32 %v2298, %v759
      %v2319 = vmul.f32 %v2299, %v755
      %v2320 = vmul.f32 %v2300, %v749
      %v2321 = vmul.f32 %v2301, %v757
      %v2322 = vmul.f32 %v2302, %v758
      %v2323 = vmul.f32 %v2303, %v759
      %v2324 = vmul.f32 %v2304, %v755
      %v2325 = vmul.f32 %v2295, %v771
      %v2326 = vmul.f32 %v2296, %v779
      %v2327 = vmul.f32 %v2297, %v780
      %v2328 = vmul.f32 %v2298, %v781
      %v2329 = vmul.f32 %v2299, %v777
      %v2330 = vmul.f32 %v2300, %v771
      %v2331 = vmul.f32 %v2301, %v779
      %v2332 = vmul.f32 %v2302, %v780
      %v2333 = vmul.f32 %v2303, %v781
      %v2334 = vmul.f32 %v2304, %v777
      %v2335 = vmul.f32 %v2296, %v793
      %v2336 = vmul.f32 %v2297, %v801
      %v2337 = vmul.f32 %v2298, %v802
      %v2338 = vmul.f32 %v2299, %v803
      %v2339 = vmul.f32 %v2301, %v793
      %v2340 = vmul.f32 %v2302, %v801
      %v2341 = vmul.f32 %v2303, %v802
      %v2342 = vmul.f32 %v2304, %v803
      %v2343 = vmul.f32 %v2296, %v813
      %v2344 = vmul.f32 %v2297, %v821
      %v2345 = vmul.f32 %v2298, %v822
      %v2346 = vmul.f32 %v2299, %v823
      %v2347 = vmul.f32 %v2301, %v813
      %v2348 = vmul.f32 %v2302, %v821
      %v2349 = vmul.f32 %v2303, %v822
      %v2350 = vmul.f32 %v2304, %v823
      %v2351 = vmul.f32 %v2296, %v833
      %v2352 = vmul.f32 %v2297, %v841
      %v2353 = vmul.f32 %v2298, %v842
      %v2354 = vmul.f32 %v2299, %v843
      %v2355 = vmul.f32 %v2301, %v833
      %v2356 = vmul.f32 %v2302, %v841
      %v2357 = vmul.f32 %v2303, %v842
      %v2358 = vmul.f32 %v2304, %v843
      %2369 = vrot.lane.b32.xlu0 %v2295, 127
      %v2370 = vpop.permute.xlu0 %2369
      %2371 = vrot.lane.b32.xlu0 %v2296, 127
      %v2372 = vpop.permute.xlu0 %2371
      %2373 = vrot.lane.b32.xlu0 %v2297, 127
      %v2374 = vpop.permute.xlu0 %2373
      %2375 = vrot.lane.b32.xlu0 %v2298, 127
      %v2376 = vpop.permute.xlu0 %2375
      %2377 = vrot.lane.b32.xlu0 %v2299, 127
      %v2378 = vpop.permute.xlu0 %2377
      %2379 = vrot.lane.b32.xlu0 %v2300, 127
      %v2380 = vpop.permute.xlu0 %2379
      %2381 = vrot.lane.b32.xlu0 %v2301, 127
      %v2382 = vpop.permute.xlu0 %2381
      %2383 = vrot.lane.b32.xlu0 %v2302, 127
      %v2384 = vpop.permute.xlu0 %2383
      %2385 = vrot.lane.b32.xlu0 %v2303, 127
      %v2386 = vpop.permute.xlu0 %2385
      %2387 = vrot.lane.b32.xlu0 %v2304, 127
      %v2388 = vpop.permute.xlu0 %2387
      %v2389 = vsel %vm778, %v2370, %v2372
      %v2390 = vsel %vm778, %v2372, %v2374
      %v2391 = vsel %vm778, %v2374, %v2376
      %v2392 = vsel %vm778, %v2376, %v2378
      %v2393 = vsel %vm778, %v2380, %v2382
      %v2394 = vsel %vm778, %v2382, %v2384
      %v2395 = vsel %vm778, %v2384, %v2386
      %v2396 = vsel %vm778, %v2386, %v2388
      %2407 = vrot.lane.b32.xlu0 %v2315, 126
      %v2408 = vpop.permute.xlu0 %2407
      %2409 = vrot.lane.b32.xlu0 %v2316, 126
      %v2410 = vpop.permute.xlu0 %2409
      %2411 = vrot.lane.b32.xlu0 %v2317, 126
      %v2412 = vpop.permute.xlu0 %2411
      %2413 = vrot.lane.b32.xlu0 %v2318, 126
      %v2414 = vpop.permute.xlu0 %2413
      %2415 = vrot.lane.b32.xlu0 %v2319, 126
      %v2416 = vpop.permute.xlu0 %2415
      %2417 = vrot.lane.b32.xlu0 %v2320, 126
      %v2418 = vpop.permute.xlu0 %2417
      %2419 = vrot.lane.b32.xlu0 %v2321, 126
      %v2420 = vpop.permute.xlu0 %2419
      %2421 = vrot.lane.b32.xlu0 %v2322, 126
      %v2422 = vpop.permute.xlu0 %2421
      %2423 = vrot.lane.b32.xlu0 %v2323, 126
      %v2424 = vpop.permute.xlu0 %2423
      %2425 = vrot.lane.b32.xlu0 %v2324, 126
      %v2426 = vpop.permute.xlu0 %2425
      %v2427 = vsel %vm886, %v2408, %v2410
      %v2428 = vsel %vm886, %v2410, %v2412
      %v2429 = vsel %vm886, %v2412, %v2414
      %v2430 = vsel %vm886, %v2414, %v2416
      %v2431 = vsel %vm886, %v2418, %v2420
      %v2432 = vsel %vm886, %v2420, %v2422
      %v2433 = vsel %vm886, %v2422, %v2424
      %v2434 = vsel %vm886, %v2424, %v2426
      %2445 = vrot.lane.b32.xlu0 %v2325, 112
      %v2446 = vpop.permute.xlu0 %2445
      %2447 = vrot.lane.b32.xlu0 %v2326, 112
      %v2448 = vpop.permute.xlu0 %2447
      %2449 = vrot.lane.b32.xlu0 %v2327, 112
      %v2450 = vpop.permute.xlu0 %2449
      %2451 = vrot.lane.b32.xlu0 %v2328, 112
      %v2452 = vpop.permute.xlu0 %2451
      %2453 = vrot.lane.b32.xlu0 %v2329, 112
      %v2454 = vpop.permute.xlu0 %2453
      %2455 = vrot.lane.b32.xlu0 %v2330, 112
      %v2456 = vpop.permute.xlu0 %2455
      %2457 = vrot.lane.b32.xlu0 %v2331, 112
      %v2458 = vpop.permute.xlu0 %2457
      %2459 = vrot.lane.b32.xlu0 %v2332, 112
      %v2460 = vpop.permute.xlu0 %2459
      %2461 = vrot.lane.b32.xlu0 %v2333, 112
      %v2462 = vpop.permute.xlu0 %2461
      %2463 = vrot.lane.b32.xlu0 %v2334, 112
      %v2464 = vpop.permute.xlu0 %2463
      %v2465 = vsel %vm906, %v2446, %v2448
      %v2466 = vsel %vm906, %v2448, %v2450
      %v2467 = vsel %vm906, %v2450, %v2452
      %v2468 = vsel %vm906, %v2452, %v2454
      %v2469 = vsel %vm906, %v2456, %v2458
      %v2470 = vsel %vm906, %v2458, %v2460
      %v2471 = vsel %vm906, %v2460, %v2462
      %v2472 = vsel %vm906, %v2462, %v2464
      %2473 = vrot.lane.b32.xlu0 %v2296, 111
      %v2474 = vpop.permute.xlu0 %2473
      %2475 = vrot.lane.b32.xlu0 %v2297, 111
      %v2476 = vpop.permute.xlu0 %2475
      %2477 = vrot.lane.b32.xlu0 %v2298, 111
      %v2478 = vpop.permute.xlu0 %2477
      %2479 = vrot.lane.b32.xlu0 %v2299, 111
      %v2480 = vpop.permute.xlu0 %2479
      %2481 = vrot.lane.b32.xlu0 %v2301, 111
      %v2482 = vpop.permute.xlu0 %2481
      %2483 = vrot.lane.b32.xlu0 %v2302, 111
      %v2484 = vpop.permute.xlu0 %2483
      %2485 = vrot.lane.b32.xlu0 %v2303, 111
      %v2486 = vpop.permute.xlu0 %2485
      %2487 = vrot.lane.b32.xlu0 %v2304, 111
      %v2488 = vpop.permute.xlu0 %2487
      %v2489 = vsel %vm718, %v2474, %v2476
      %v2490 = vsel %vm718, %v2476, %v2478
      %v2491 = vsel %vm718, %v2478, %v2480
      %v2492 = vsel %vm718, %v2482, %v2484
      %v2493 = vsel %vm718, %v2484, %v2486
      %v2494 = vsel %vm718, %v2486, %v2488
      %2503 = vrot.lane.b32.xlu0 %v2335, 110
      %v2504 = vpop.permute.xlu0 %2503
      %2505 = vrot.lane.b32.xlu0 %v2336, 110
      %v2506 = vpop.permute.xlu0 %2505
      %2507 = vrot.lane.b32.xlu0 %v2337, 110
      %v2508 = vpop.permute.xlu0 %2507
      %2509 = vrot.lane.b32.xlu0 %v2338, 110
      %v2510 = vpop.permute.xlu0 %2509
      %2511 = vrot.lane.b32.xlu0 %v2339, 110
      %v2512 = vpop.permute.xlu0 %2511
      %2513 = vrot.lane.b32.xlu0 %v2340, 110
      %v2514 = vpop.permute.xlu0 %2513
      %2515 = vrot.lane.b32.xlu0 %v2341, 110
      %v2516 = vpop.permute.xlu0 %2515
      %2517 = vrot.lane.b32.xlu0 %v2342, 110
      %v2518 = vpop.permute.xlu0 %2517
      %v2519 = vsel %vm934, %v2504, %v2506
      %v2520 = vsel %vm934, %v2506, %v2508
      %v2521 = vsel %vm934, %v2508, %v2510
      %v2522 = vsel %vm934, %v2512, %v2514
      %v2523 = vsel %vm934, %v2514, %v2516
      %v2524 = vsel %vm934, %v2516, %v2518
      %2533 = vrot.lane.b32.xlu0 %v2343, 96
      %v2534 = vpop.permute.xlu0 %2533
      %2535 = vrot.lane.b32.xlu0 %v2344, 96
      %v2536 = vpop.permute.xlu0 %2535
      %2537 = vrot.lane.b32.xlu0 %v2345, 96
      %v2538 = vpop.permute.xlu0 %2537
      %2539 = vrot.lane.b32.xlu0 %v2346, 96
      %v2540 = vpop.permute.xlu0 %2539
      %2541 = vrot.lane.b32.xlu0 %v2347, 96
      %v2542 = vpop.permute.xlu0 %2541
      %2543 = vrot.lane.b32.xlu0 %v2348, 96
      %v2544 = vpop.permute.xlu0 %2543
      %2545 = vrot.lane.b32.xlu0 %v2349, 96
      %v2546 = vpop.permute.xlu0 %2545
      %2547 = vrot.lane.b32.xlu0 %v2350, 96
      %v2548 = vpop.permute.xlu0 %2547
      %v2549 = vsel %vm657, %v2534, %v2536
      %v2550 = vsel %vm657, %v2536, %v2538
      %v2551 = vsel %vm657, %v2538, %v2540
      %v2552 = vsel %vm657, %v2542, %v2544
      %v2553 = vsel %vm657, %v2544, %v2546
      %v2554 = vsel %vm657, %v2546, %v2548
      %2555 = vrot.lane.b32.xlu0 %v2296, 95
      %v2556 = vpop.permute.xlu0 %2555
      %2557 = vrot.lane.b32.xlu0 %v2297, 95
      %v2558 = vpop.permute.xlu0 %2557
      %2559 = vrot.lane.b32.xlu0 %v2298, 95
      %v2560 = vpop.permute.xlu0 %2559
      %2561 = vrot.lane.b32.xlu0 %v2299, 95
      %v2562 = vpop.permute.xlu0 %2561
      %2563 = vrot.lane.b32.xlu0 %v2301, 95
      %v2564 = vpop.permute.xlu0 %2563
      %2565 = vrot.lane.b32.xlu0 %v2302, 95
      %v2566 = vpop.permute.xlu0 %2565
      %2567 = vrot.lane.b32.xlu0 %v2303, 95
      %v2568 = vpop.permute.xlu0 %2567
      %2569 = vrot.lane.b32.xlu0 %v2304, 95
      %v2570 = vpop.permute.xlu0 %2569
      %v2571 = vsel %vm961, %v2556, %v2558
      %v2572 = vsel %vm961, %v2558, %v2560
      %v2573 = vsel %vm961, %v2560, %v2562
      %v2574 = vsel %vm961, %v2564, %v2566
      %v2575 = vsel %vm961, %v2566, %v2568
      %v2576 = vsel %vm961, %v2568, %v2570
      %2585 = vrot.lane.b32.xlu0 %v2351, 94
      %v2586 = vpop.permute.xlu0 %2585
      %2587 = vrot.lane.b32.xlu0 %v2352, 94
      %v2588 = vpop.permute.xlu0 %2587
      %2589 = vrot.lane.b32.xlu0 %v2353, 94
      %v2590 = vpop.permute.xlu0 %2589
      %2591 = vrot.lane.b32.xlu0 %v2354, 94
      %v2592 = vpop.permute.xlu0 %2591
      %2593 = vrot.lane.b32.xlu0 %v2355, 94
      %v2594 = vpop.permute.xlu0 %2593
      %2595 = vrot.lane.b32.xlu0 %v2356, 94
      %v2596 = vpop.permute.xlu0 %2595
      %2597 = vrot.lane.b32.xlu0 %v2357, 94
      %v2598 = vpop.permute.xlu0 %2597
      %2599 = vrot.lane.b32.xlu0 %v2358, 94
      %v2600 = vpop.permute.xlu0 %2599
      %v2601 = vsel %vm977, %v2586, %v2588
      %v2602 = vsel %vm977, %v2588, %v2590
      %v2603 = vsel %vm977, %v2590, %v2592
      %v2604 = vsel %vm977, %v2594, %v2596
      %v2605 = vsel %vm977, %v2596, %v2598
      %v2606 = vsel %vm977, %v2598, %v2600
      %v2607 = vld [vmem:[%s8] sm:$0xff]
      %v2608 = vld [vmem:[%s8 + $0x8] sm:$0xff]
      %v2609 = vld [vmem:[%s8 + $0x10] sm:$0xff]
      %v2610 = vld [vmem:[%s8 + $0x18] sm:$0xff]
      %v2611 = vld [vmem:[%s8 + $0x20] sm:$0xff]
      %v2612 = vld [vmem:[%s8 + $0x28] sm:$0xff]
      %v2613 = vld [vmem:[%s8 + $0x30] sm:$0xff]
      %v2614 = vld [vmem:[%s8 + $0x38] sm:$0xff]
      %v2615 = vld [vmem:[%s9] sm:$0xff]
      %v2616 = vld [vmem:[%s9 + $0x8] sm:$0xff]
      %v2617 = vld [vmem:[%s9 + $0x10] sm:$0xff]
      %v2618 = vld [vmem:[%s9 + $0x18] sm:$0xff]
      %2620 = vset.pattern.permute.xlu0 0
      %2621 = vperm.xlu0 %2620, %v2615
      %v2622 = vpop.permute.xlu0 %2621
      %2625 = vset.pattern.permute.xlu0 0
      %2626 = vperm.xlu0 %2625, %v2616
      %v2627 = vpop.permute.xlu0 %2626
      %2630 = vset.pattern.permute.xlu0 0
      %2631 = vperm.xlu0 %2630, %v2617
      %v2632 = vpop.permute.xlu0 %2631
      %2635 = vset.pattern.permute.xlu0 0
      %2636 = vperm.xlu0 %2635, %v2618
      %v2637 = vpop.permute.xlu0 %2636
      %2649 = vrot.lane.b32.xlu0 %v2305, 17
      %v2650 = vpop.permute.xlu0 %2649
      %2651 = vrot.lane.b32.xlu0 %v2306, 17
      %v2652 = vpop.permute.xlu0 %2651
      %2653 = vrot.lane.b32.xlu0 %v2307, 17
      %v2654 = vpop.permute.xlu0 %2653
      %2655 = vrot.lane.b32.xlu0 %v2308, 17
      %v2656 = vpop.permute.xlu0 %2655
      %2657 = vrot.lane.b32.xlu0 %v2309, 17
      %v2658 = vpop.permute.xlu0 %2657
      %2659 = vrot.lane.b32.xlu0 %v2310, 17
      %v2660 = vpop.permute.xlu0 %2659
      %2661 = vrot.lane.b32.xlu0 %v2311, 17
      %v2662 = vpop.permute.xlu0 %2661
      %2663 = vrot.lane.b32.xlu0 %v2312, 17
      %v2664 = vpop.permute.xlu0 %2663
      %2665 = vrot.lane.b32.xlu0 %v2313, 17
      %v2666 = vpop.permute.xlu0 %2665
      %2667 = vrot.lane.b32.xlu0 %v2314, 17
      %v2668 = vpop.permute.xlu0 %2667
      %2669 = vrot.lane.b32.xlu0 %v2389, 17
      %v2670 = vpop.permute.xlu0 %2669
      %2671 = vrot.lane.b32.xlu0 %v2390, 17
      %v2672 = vpop.permute.xlu0 %2671
      %2673 = vrot.lane.b32.xlu0 %v2391, 17
      %v2674 = vpop.permute.xlu0 %2673
      %2675 = vrot.lane.b32.xlu0 %v2392, 17
      %v2676 = vpop.permute.xlu0 %2675
      %2677 = vrot.lane.b32.xlu0 %v2378, 17
      %v2678 = vpop.permute.xlu0 %2677
      %2679 = vrot.lane.b32.xlu0 %v2393, 17
      %v2680 = vpop.permute.xlu0 %2679
      %2681 = vrot.lane.b32.xlu0 %v2394, 17
      %v2682 = vpop.permute.xlu0 %2681
      %2683 = vrot.lane.b32.xlu0 %v2395, 17
      %v2684 = vpop.permute.xlu0 %2683
      %2685 = vrot.lane.b32.xlu0 %v2396, 17
      %v2686 = vpop.permute.xlu0 %2685
      %2687 = vrot.lane.b32.xlu0 %v2388, 17
      %v2688 = vpop.permute.xlu0 %2687
      %2689 = vrot.lane.b32.xlu0 %v2427, 17
      %v2690 = vpop.permute.xlu0 %2689
      %2691 = vrot.lane.b32.xlu0 %v2428, 17
      %v2692 = vpop.permute.xlu0 %2691
      %2693 = vrot.lane.b32.xlu0 %v2429, 17
      %v2694 = vpop.permute.xlu0 %2693
      %2695 = vrot.lane.b32.xlu0 %v2430, 17
      %v2696 = vpop.permute.xlu0 %2695
      %2697 = vrot.lane.b32.xlu0 %v2416, 17
      %v2698 = vpop.permute.xlu0 %2697
      %2699 = vrot.lane.b32.xlu0 %v2431, 17
      %v2700 = vpop.permute.xlu0 %2699
      %2701 = vrot.lane.b32.xlu0 %v2432, 17
      %v2702 = vpop.permute.xlu0 %2701
      %2703 = vrot.lane.b32.xlu0 %v2433, 17
      %v2704 = vpop.permute.xlu0 %2703
      %2705 = vrot.lane.b32.xlu0 %v2434, 17
      %v2706 = vpop.permute.xlu0 %2705
      %2707 = vrot.lane.b32.xlu0 %v2426, 17
      %v2708 = vpop.permute.xlu0 %2707
      %2709 = vrot.lane.b32.xlu0 %v2465, 17
      %v2710 = vpop.permute.xlu0 %2709
      %2711 = vrot.lane.b32.xlu0 %v2466, 17
      %v2712 = vpop.permute.xlu0 %2711
      %2713 = vrot.lane.b32.xlu0 %v2467, 17
      %v2714 = vpop.permute.xlu0 %2713
      %2715 = vrot.lane.b32.xlu0 %v2468, 17
      %v2716 = vpop.permute.xlu0 %2715
      %2717 = vrot.lane.b32.xlu0 %v2454, 17
      %v2718 = vpop.permute.xlu0 %2717
      %2719 = vrot.lane.b32.xlu0 %v2469, 17
      %v2720 = vpop.permute.xlu0 %2719
      %2721 = vrot.lane.b32.xlu0 %v2470, 17
      %v2722 = vpop.permute.xlu0 %2721
      %2723 = vrot.lane.b32.xlu0 %v2471, 17
      %v2724 = vpop.permute.xlu0 %2723
      %2725 = vrot.lane.b32.xlu0 %v2472, 17
      %v2726 = vpop.permute.xlu0 %2725
      %2727 = vrot.lane.b32.xlu0 %v2464, 17
      %v2728 = vpop.permute.xlu0 %2727
      %2729 = vrot.lane.b32.xlu0 %v2474, 17
      %v2730 = vpop.permute.xlu0 %2729
      %2731 = vrot.lane.b32.xlu0 %v2489, 17
      %v2732 = vpop.permute.xlu0 %2731
      %2733 = vrot.lane.b32.xlu0 %v2490, 17
      %v2734 = vpop.permute.xlu0 %2733
      %2735 = vrot.lane.b32.xlu0 %v2491, 17
      %v2736 = vpop.permute.xlu0 %2735
      %2737 = vrot.lane.b32.xlu0 %v2480, 17
      %v2738 = vpop.permute.xlu0 %2737
      %2739 = vrot.lane.b32.xlu0 %v2482, 17
      %v2740 = vpop.permute.xlu0 %2739
      %2741 = vrot.lane.b32.xlu0 %v2492, 17
      %v2742 = vpop.permute.xlu0 %2741
      %2743 = vrot.lane.b32.xlu0 %v2493, 17
      %v2744 = vpop.permute.xlu0 %2743
      %2745 = vrot.lane.b32.xlu0 %v2494, 17
      %v2746 = vpop.permute.xlu0 %2745
      %2747 = vrot.lane.b32.xlu0 %v2488, 17
      %v2748 = vpop.permute.xlu0 %2747
      %2749 = vrot.lane.b32.xlu0 %v2504, 17
      %v2750 = vpop.permute.xlu0 %2749
      %2751 = vrot.lane.b32.xlu0 %v2519, 17
      %v2752 = vpop.permute.xlu0 %2751
      %2753 = vrot.lane.b32.xlu0 %v2520, 17
      %v2754 = vpop.permute.xlu0 %2753
      %2755 = vrot.lane.b32.xlu0 %v2521, 17
      %v2756 = vpop.permute.xlu0 %2755
      %2757 = vrot.lane.b32.xlu0 %v2510, 17
      %v2758 = vpop.permute.xlu0 %2757
      %2759 = vrot.lane.b32.xlu0 %v2512, 17
      %v2760 = vpop.permute.xlu0 %2759
      %2761 = vrot.lane.b32.xlu0 %v2522, 17
      %v2762 = vpop.permute.xlu0 %2761
      %2763 = vrot.lane.b32.xlu0 %v2523, 17
      %v2764 = vpop.permute.xlu0 %2763
      %2765 = vrot.lane.b32.xlu0 %v2524, 17
      %v2766 = vpop.permute.xlu0 %2765
      %2767 = vrot.lane.b32.xlu0 %v2518, 17
      %v2768 = vpop.permute.xlu0 %2767
      %2769 = vrot.lane.b32.xlu0 %v2534, 17
      %v2770 = vpop.permute.xlu0 %2769
      %2771 = vrot.lane.b32.xlu0 %v2549, 17
      %v2772 = vpop.permute.xlu0 %2771
      %2773 = vrot.lane.b32.xlu0 %v2550, 17
      %v2774 = vpop.permute.xlu0 %2773
      %2775 = vrot.lane.b32.xlu0 %v2551, 17
      %v2776 = vpop.permute.xlu0 %2775
      %2777 = vrot.lane.b32.xlu0 %v2540, 17
      %v2778 = vpop.permute.xlu0 %2777
      %2779 = vrot.lane.b32.xlu0 %v2542, 17
      %v2780 = vpop.permute.xlu0 %2779
      %2781 = vrot.lane.b32.xlu0 %v2552, 17
      %v2782 = vpop.permute.xlu0 %2781
      %2783 = vrot.lane.b32.xlu0 %v2553, 17
      %v2784 = vpop.permute.xlu0 %2783
      %2785 = vrot.lane.b32.xlu0 %v2554, 17
      %v2786 = vpop.permute.xlu0 %2785
      %2787 = vrot.lane.b32.xlu0 %v2548, 17
      %v2788 = vpop.permute.xlu0 %2787
      %2789 = vrot.lane.b32.xlu0 %v2556, 17
      %v2790 = vpop.permute.xlu0 %2789
      %2791 = vrot.lane.b32.xlu0 %v2571, 17
      %v2792 = vpop.permute.xlu0 %2791
      %2793 = vrot.lane.b32.xlu0 %v2572, 17
      %v2794 = vpop.permute.xlu0 %2793
      %2795 = vrot.lane.b32.xlu0 %v2573, 17
      %v2796 = vpop.permute.xlu0 %2795
      %2797 = vrot.lane.b32.xlu0 %v2562, 17
      %v2798 = vpop.permute.xlu0 %2797
      %2799 = vrot.lane.b32.xlu0 %v2564, 17
      %v2800 = vpop.permute.xlu0 %2799
      %2801 = vrot.lane.b32.xlu0 %v2574, 17
      %v2802 = vpop.permute.xlu0 %2801
      %2803 = vrot.lane.b32.xlu0 %v2575, 17
      %v2804 = vpop.permute.xlu0 %2803
      %2805 = vrot.lane.b32.xlu0 %v2576, 17
      %v2806 = vpop.permute.xlu0 %2805
      %2807 = vrot.lane.b32.xlu0 %v2570, 17
      %v2808 = vpop.permute.xlu0 %2807
      %2809 = vrot.lane.b32.xlu0 %v2586, 17
      %v2810 = vpop.permute.xlu0 %2809
      %2811 = vrot.lane.b32.xlu0 %v2601, 17
      %v2812 = vpop.permute.xlu0 %2811
      %2813 = vrot.lane.b32.xlu0 %v2602, 17
      %v2814 = vpop.permute.xlu0 %2813
      %2815 = vrot.lane.b32.xlu0 %v2603, 17
      %v2816 = vpop.permute.xlu0 %2815
      %2817 = vrot.lane.b32.xlu0 %v2592, 17
      %v2818 = vpop.permute.xlu0 %2817
      %2819 = vrot.lane.b32.xlu0 %v2594, 17
      %v2820 = vpop.permute.xlu0 %2819
      %2821 = vrot.lane.b32.xlu0 %v2604, 17
      %v2822 = vpop.permute.xlu0 %2821
      %2823 = vrot.lane.b32.xlu0 %v2605, 17
      %v2824 = vpop.permute.xlu0 %2823
      %2825 = vrot.lane.b32.xlu0 %v2606, 17
      %v2826 = vpop.permute.xlu0 %2825
      %2827 = vrot.lane.b32.xlu0 %v2600, 17
      %v2828 = vpop.permute.xlu0 %2827
      %v2829 = vsel %vm840, %v2650, %v2652
      %v2830 = vsel %vm840, %v2652, %v2654
      %v2831 = vsel %vm840, %v2654, %v2656
      %v2832 = vsel %vm840, %v2656, %v2658
      %v2833 = vsel %vm840, %v2660, %v2662
      %v2834 = vsel %vm840, %v2662, %v2664
      %v2835 = vsel %vm840, %v2664, %v2666
      %v2836 = vsel %vm840, %v2666, %v2668
      %v2837 = vsel %vm840, %v2670, %v2672
      %v2838 = vsel %vm840, %v2672, %v2674
      %v2839 = vsel %vm840, %v2674, %v2676
      %v2840 = vsel %vm840, %v2676, %v2678
      %v2841 = vsel %vm840, %v2680, %v2682
      %v2842 = vsel %vm840, %v2682, %v2684
      %v2843 = vsel %vm840, %v2684, %v2686
      %v2844 = vsel %vm840, %v2686, %v2688
      %v2845 = vsel %vm840, %v2690, %v2692
      %v2846 = vsel %vm840, %v2692, %v2694
      %v2847 = vsel %vm840, %v2694, %v2696
      %v2848 = vsel %vm840, %v2696, %v2698
      %v2849 = vsel %vm840, %v2700, %v2702
      %v2850 = vsel %vm840, %v2702, %v2704
      %v2851 = vsel %vm840, %v2704, %v2706
      %v2852 = vsel %vm840, %v2706, %v2708
      %v2853 = vsel %vm840, %v2710, %v2712
      %v2854 = vsel %vm840, %v2712, %v2714
      %v2855 = vsel %vm840, %v2714, %v2716
      %v2856 = vsel %vm840, %v2716, %v2718
      %v2857 = vsel %vm840, %v2720, %v2722
      %v2858 = vsel %vm840, %v2722, %v2724
      %v2859 = vsel %vm840, %v2724, %v2726
      %v2860 = vsel %vm840, %v2726, %v2728
      %v2861 = vsel %vm840, %v2730, %v2732
      %v2862 = vsel %vm840, %v2732, %v2734
      %v2863 = vsel %vm840, %v2734, %v2736
      %v2864 = vsel %vm840, %v2736, %v2738
      %v2865 = vsel %vm840, %v2740, %v2742
      %v2866 = vsel %vm840, %v2742, %v2744
      %v2867 = vsel %vm840, %v2744, %v2746
      %v2868 = vsel %vm840, %v2746, %v2748
      %v2869 = vsel %vm840, %v2750, %v2752
      %v2870 = vsel %vm840, %v2752, %v2754
      %v2871 = vsel %vm840, %v2754, %v2756
      %v2872 = vsel %vm840, %v2756, %v2758
      %v2873 = vsel %vm840, %v2760, %v2762
      %v2874 = vsel %vm840, %v2762, %v2764
      %v2875 = vsel %vm840, %v2764, %v2766
      %v2876 = vsel %vm840, %v2766, %v2768
      %v2877 = vsel %vm840, %v2770, %v2772
      %v2878 = vsel %vm840, %v2772, %v2774
      %v2879 = vsel %vm840, %v2774, %v2776
      %v2880 = vsel %vm840, %v2776, %v2778
      %v2881 = vsel %vm840, %v2780, %v2782
      %v2882 = vsel %vm840, %v2782, %v2784
      %v2883 = vsel %vm840, %v2784, %v2786
      %v2884 = vsel %vm840, %v2786, %v2788
      %v2885 = vsel %vm840, %v2790, %v2792
      %v2886 = vsel %vm840, %v2792, %v2794
      %v2887 = vsel %vm840, %v2794, %v2796
      %v2888 = vsel %vm840, %v2796, %v2798
      %v2889 = vsel %vm840, %v2800, %v2802
      %v2890 = vsel %vm840, %v2802, %v2804
      %v2891 = vsel %vm840, %v2804, %v2806
      %v2892 = vsel %vm840, %v2806, %v2808
      %v2893 = vsel %vm840, %v2810, %v2812
      %v2894 = vsel %vm840, %v2812, %v2814
      %v2895 = vsel %vm840, %v2814, %v2816
      %v2896 = vsel %vm840, %v2816, %v2818
      %v2897 = vsel %vm840, %v2820, %v2822
      %v2898 = vsel %vm840, %v2822, %v2824
      %v2899 = vsel %vm840, %v2824, %v2826
      %v2900 = vsel %vm840, %v2826, %v2828
      %v2974 = vsel %vm1959, %v2608, 0
      %v2977 = vsel %vm1959, %v2610, 0
      %v2980 = vsel %vm1959, %v2612, 0
      %v2983 = vsel %vm1959, %v2614, 0
      %2985 = vmatpush.msra.mxu0 %v2889
      %2986 = vmatpush.msra.mxu0 %v2885
      %2987 = vmatpush.msra.mxu0 %v2881
      %2988 = vmatpush.msra.mxu0 %v2877
      %2989 = vmatpush.msra.mxu0 %v2873
      %2990 = vmatpush.msra.mxu0 %v2869
      %2991 = vmatpush.msra.mxu0 %v2865
      %2992 = vmatpush.msra.mxu0 %v2861
      %2993 = vmatpush.msra.mxu0 %v2857
      %2994 = vmatpush.msra.mxu0 %v2853
      %2995 = vmatpush.msra.mxu0 %v2849
      %2996 = vmatpush.msra.mxu0 %v2845
      %2997 = vmatpush.msra.mxu0 %v2841
      %2998 = vmatpush.msra.mxu0 %v2837
      %2999 = vmatpush.msra.mxu0 %v2833
      %3000 = vmatpush.msra.mxu0 %v2829
      %3001 = vmatmul.f32.gmra.mxu0 %v2607
      %v3002 = vpop.f32.mrf.mxu0
      %v3003 = vadd.f32 %v2622, %v3002
      %3004 = vmatmul.f32.gmra.mxu0 %v2609
      %v3005 = vpop.f32.mrf.mxu0
      %v3006 = vadd.f32 %v2627, %v3005
      %3007 = vmatmul.f32.gmra.mxu0 %v2611
      %v3008 = vpop.f32.mrf.mxu0
      %v3009 = vadd.f32 %v2632, %v3008
      %3010 = vmatmul.f32.gmra.mxu0 %v2613
      %v3011 = vpop.f32.mrf.mxu0
      %v3012 = vadd.f32 %v2637, %v3011
      %3013 = vdwg.mxu0
      %3014 = vmatpush.msra.mxu0 0.0
      %3015 = vmatpush.msra.mxu0 0.0
      %3016 = vmatpush.msra.mxu0 0.0
      %3017 = vmatpush.msra.mxu0 0.0
      %3018 = vmatpush.msra.mxu0 0.0
      %3019 = vmatpush.msra.mxu0 0.0
      %3020 = vmatpush.msra.mxu0 0.0
      %3021 = vmatpush.msra.mxu0 0.0
      %3022 = vmatpush.msra.mxu0 0.0
      %3023 = vmatpush.msra.mxu0 0.0
      %3024 = vmatpush.msra.mxu0 0.0
      %3025 = vmatpush.msra.mxu0 0.0
      %3026 = vmatpush.msra.mxu0 0.0
      %3027 = vmatpush.msra.mxu0 0.0
      %3028 = vmatpush.msra.mxu0 %v2897
      %3029 = vmatpush.msra.mxu0 %v2893
      %3030 = vmatmul.f32.gmra.mxu0 %v2974
      %v3031 = vpop.f32.mrf.mxu0
      %v3032 = vadd.f32 %v3003, %v3031
      %3033 = vmatmul.f32.gmra.mxu0 %v2977
      %v3034 = vpop.f32.mrf.mxu0
      %v3035 = vadd.f32 %v3006, %v3034
      %3036 = vmatmul.f32.gmra.mxu0 %v2980
      %v3037 = vpop.f32.mrf.mxu0
      %v3038 = vadd.f32 %v3009, %v3037
      %3039 = vmatmul.f32.gmra.mxu0 %v2983
      %v3040 = vpop.f32.mrf.mxu0
      %v3041 = vadd.f32 %v3012, %v3040
      %3042 = vdwg.mxu0
      %3043 = vmatpush.msra.mxu0 %v2890
      %3044 = vmatpush.msra.mxu0 %v2886
      %3045 = vmatpush.msra.mxu0 %v2882
      %3046 = vmatpush.msra.mxu0 %v2878
      %3047 = vmatpush.msra.mxu0 %v2874
      %3048 = vmatpush.msra.mxu0 %v2870
      %3049 = vmatpush.msra.mxu0 %v2866
      %3050 = vmatpush.msra.mxu0 %v2862
      %3051 = vmatpush.msra.mxu0 %v2858
      %3052 = vmatpush.msra.mxu0 %v2854
      %3053 = vmatpush.msra.mxu0 %v2850
      %3054 = vmatpush.msra.mxu0 %v2846
      %3055 = vmatpush.msra.mxu0 %v2842
      %3056 = vmatpush.msra.mxu0 %v2838
      %3057 = vmatpush.msra.mxu0 %v2834
      %3058 = vmatpush.msra.mxu0 %v2830
      %3059 = vmatmul.f32.gmra.mxu0 %v2607
      %v3060 = vpop.f32.mrf.mxu0
      %v3061 = vadd.f32 %v2622, %v3060
      %3062 = vmatmul.f32.gmra.mxu0 %v2609
      %v3063 = vpop.f32.mrf.mxu0
      %v3064 = vadd.f32 %v2627, %v3063
      %3065 = vmatmul.f32.gmra.mxu0 %v2611
      %v3066 = vpop.f32.mrf.mxu0
      %v3067 = vadd.f32 %v2632, %v3066
      %3068 = vmatmul.f32.gmra.mxu0 %v2613
      %v3069 = vpop.f32.mrf.mxu0
      %v3070 = vadd.f32 %v2637, %v3069
      %3071 = vdwg.mxu0
      %3072 = vmatpush.msra.mxu0 0.0
      %3073 = vmatpush.msra.mxu0 0.0
      %3074 = vmatpush.msra.mxu0 0.0
      %3075 = vmatpush.msra.mxu0 0.0
      %3076 = vmatpush.msra.mxu0 0.0
      %3077 = vmatpush.msra.mxu0 0.0
      %3078 = vmatpush.msra.mxu0 0.0
      %3079 = vmatpush.msra.mxu0 0.0
      %3080 = vmatpush.msra.mxu0 0.0
      %3081 = vmatpush.msra.mxu0 0.0
      %3082 = vmatpush.msra.mxu0 0.0
      %3083 = vmatpush.msra.mxu0 0.0
      %3084 = vmatpush.msra.mxu0 0.0
      %3085 = vmatpush.msra.mxu0 0.0
      %3086 = vmatpush.msra.mxu0 %v2898
      %3087 = vmatpush.msra.mxu0 %v2894
      %3088 = vmatmul.f32.gmra.mxu0 %v2974
      %v3089 = vpop.f32.mrf.mxu0
      %v3090 = vadd.f32 %v3061, %v3089
      %3091 = vmatmul.f32.gmra.mxu0 %v2977
      %v3092 = vpop.f32.mrf.mxu0
      %v3093 = vadd.f32 %v3064, %v3092
      %3094 = vmatmul.f32.gmra.mxu0 %v2980
      %v3095 = vpop.f32.mrf.mxu0
      %v3096 = vadd.f32 %v3067, %v3095
      %3097 = vmatmul.f32.gmra.mxu0 %v2983
      %v3098 = vpop.f32.mrf.mxu0
      %v3099 = vadd.f32 %v3070, %v3098
      %3100 = vdwg.mxu0
      %3101 = vmatpush.msra.mxu0 %v2891
      %3102 = vmatpush.msra.mxu0 %v2887
      %3103 = vmatpush.msra.mxu0 %v2883
      %3104 = vmatpush.msra.mxu0 %v2879
      %3105 = vmatpush.msra.mxu0 %v2875
      %3106 = vmatpush.msra.mxu0 %v2871
      %3107 = vmatpush.msra.mxu0 %v2867
      %3108 = vmatpush.msra.mxu0 %v2863
      %3109 = vmatpush.msra.mxu0 %v2859
      %3110 = vmatpush.msra.mxu0 %v2855
      %3111 = vmatpush.msra.mxu0 %v2851
      %3112 = vmatpush.msra.mxu0 %v2847
      %3113 = vmatpush.msra.mxu0 %v2843
      %3114 = vmatpush.msra.mxu0 %v2839
      %3115 = vmatpush.msra.mxu0 %v2835
      %3116 = vmatpush.msra.mxu0 %v2831
      %3117 = vmatmul.f32.gmra.mxu0 %v2607
      %v3118 = vpop.f32.mrf.mxu0
      %v3119 = vadd.f32 %v2622, %v3118
      %3120 = vmatmul.f32.gmra.mxu0 %v2609
      %v3121 = vpop.f32.mrf.mxu0
      %v3122 = vadd.f32 %v2627, %v3121
      %3123 = vmatmul.f32.gmra.mxu0 %v2611
      %v3124 = vpop.f32.mrf.mxu0
      %v3125 = vadd.f32 %v2632, %v3124
      %3126 = vmatmul.f32.gmra.mxu0 %v2613
      %v3127 = vpop.f32.mrf.mxu0
      %v3128 = vadd.f32 %v2637, %v3127
      %3129 = vdwg.mxu0
      %3130 = vmatpush.msra.mxu0 0.0
      %3131 = vmatpush.msra.mxu0 0.0
      %3132 = vmatpush.msra.mxu0 0.0
      %3133 = vmatpush.msra.mxu0 0.0
      %3134 = vmatpush.msra.mxu0 0.0
      %3135 = vmatpush.msra.mxu0 0.0
      %3136 = vmatpush.msra.mxu0 0.0
      %3137 = vmatpush.msra.mxu0 0.0
      %3138 = vmatpush.msra.mxu0 0.0
      %3139 = vmatpush.msra.mxu0 0.0
      %3140 = vmatpush.msra.mxu0 0.0
      %3141 = vmatpush.msra.mxu0 0.0
      %3142 = vmatpush.msra.mxu0 0.0
      %3143 = vmatpush.msra.mxu0 0.0
      %3144 = vmatpush.msra.mxu0 %v2899
      %3145 = vmatpush.msra.mxu0 %v2895
      %3146 = vmatmul.f32.gmra.mxu0 %v2974
      %v3147 = vpop.f32.mrf.mxu0
      %v3148 = vadd.f32 %v3119, %v3147
      %3149 = vmatmul.f32.gmra.mxu0 %v2977
      %v3150 = vpop.f32.mrf.mxu0
      %v3151 = vadd.f32 %v3122, %v3150
      %3152 = vmatmul.f32.gmra.mxu0 %v2980
      %v3153 = vpop.f32.mrf.mxu0
      %v3154 = vadd.f32 %v3125, %v3153
      %3155 = vmatmul.f32.gmra.mxu0 %v2983
      %v3156 = vpop.f32.mrf.mxu0
      %v3157 = vadd.f32 %v3128, %v3156
      %3158 = vdwg.mxu0
      %3159 = vmatpush.msra.mxu0 %v2892
      %3160 = vmatpush.msra.mxu0 %v2888
      %3161 = vmatpush.msra.mxu0 %v2884
      %3162 = vmatpush.msra.mxu0 %v2880
      %3163 = vmatpush.msra.mxu0 %v2876
      %3164 = vmatpush.msra.mxu0 %v2872
      %3165 = vmatpush.msra.mxu0 %v2868
      %3166 = vmatpush.msra.mxu0 %v2864
      %3167 = vmatpush.msra.mxu0 %v2860
      %3168 = vmatpush.msra.mxu0 %v2856
      %3169 = vmatpush.msra.mxu0 %v2852
      %3170 = vmatpush.msra.mxu0 %v2848
      %3171 = vmatpush.msra.mxu0 %v2844
      %3172 = vmatpush.msra.mxu0 %v2840
      %3173 = vmatpush.msra.mxu0 %v2836
      %3174 = vmatpush.msra.mxu0 %v2832
      %3175 = vmatmul.f32.gmra.mxu0 %v2607
      %v3176 = vpop.f32.mrf.mxu0
      %v3177 = vadd.f32 %v2622, %v3176
      %3178 = vmatmul.f32.gmra.mxu0 %v2609
      %v3179 = vpop.f32.mrf.mxu0
      %v3180 = vadd.f32 %v2627, %v3179
      %3181 = vmatmul.f32.gmra.mxu0 %v2611
      %v3182 = vpop.f32.mrf.mxu0
      %v3183 = vadd.f32 %v2632, %v3182
      %3184 = vmatmul.f32.gmra.mxu0 %v2613
      %v3185 = vpop.f32.mrf.mxu0
      %v3186 = vadd.f32 %v2637, %v3185
      %3187 = vdwg.mxu0
      %3188 = vmatpush.msra.mxu0 0.0
      %3189 = vmatpush.msra.mxu0 0.0
      %3190 = vmatpush.msra.mxu0 0.0
      %3191 = vmatpush.msra.mxu0 0.0
      %3192 = vmatpush.msra.mxu0 0.0
      %3193 = vmatpush.msra.mxu0 0.0
      %3194 = vmatpush.msra.mxu0 0.0
      %3195 = vmatpush.msra.mxu0 0.0
      %3196 = vmatpush.msra.mxu0 0.0
      %3197 = vmatpush.msra.mxu0 0.0
      %3198 = vmatpush.msra.mxu0 0.0
      %3199 = vmatpush.msra.mxu0 0.0
      %3200 = vmatpush.msra.mxu0 0.0
      %3201 = vmatpush.msra.mxu0 0.0
      %3202 = vmatpush.msra.mxu0 %v2900
      %3203 = vmatpush.msra.mxu0 %v2896
      %3204 = vmatmul.f32.gmra.mxu0 %v2974
      %v3205 = vpop.f32.mrf.mxu0
      %v3206 = vadd.f32 %v3177, %v3205
      %3207 = vmatmul.f32.gmra.mxu0 %v2977
      %v3208 = vpop.f32.mrf.mxu0
      %v3209 = vadd.f32 %v3180, %v3208
      %3210 = vmatmul.f32.gmra.mxu0 %v2980
      %v3211 = vpop.f32.mrf.mxu0
      %v3212 = vadd.f32 %v3183, %v3211
      %3213 = vmatmul.f32.gmra.mxu0 %v2983
      %v3214 = vpop.f32.mrf.mxu0
      %v3215 = vadd.f32 %v3186, %v3214
      %3216 = vdwg.mxu0
      %v3217 = vmax.f32 %v3032, 0.0
      %v3218 = vmax.f32 %v3090, 0.0
      %v3219 = vmax.f32 %v3148, 0.0
      %v3220 = vmax.f32 %v3206, 0.0
      %v3221 = vmax.f32 %v3035, 0.0
      %v3222 = vmax.f32 %v3093, 0.0
      %v3223 = vmax.f32 %v3151, 0.0
      %v3224 = vmax.f32 %v3209, 0.0
      %v3225 = vmax.f32 %v3038, 0.0
      %v3226 = vmax.f32 %v3096, 0.0
      %v3227 = vmax.f32 %v3154, 0.0
      %v3228 = vmax.f32 %v3212, 0.0
      %v3229 = vmax.f32 %v3041, 0.0
      %v3230 = vmax.f32 %v3099, 0.0
      %v3231 = vmax.f32 %v3157, 0.0
      %v3232 = vmax.f32 %v3215, 0.0
      %v3233 = vmul.f32 %v3217, %v1277
      %v3234 = vmul.f32 %v3218, %v1278
      %v3235 = vmul.f32 %v3219, %v1279
      %v3236 = vmul.f32 %v3220, %v1280
      %v3237 = vmul.f32 %v3221, %v1277
      %v3238 = vmul.f32 %v3222, %v1278
      %v3239 = vmul.f32 %v3223, %v1279
      %v3240 = vmul.f32 %v3224, %v1280
      %v3241 = vmul.f32 %v3225, %v1277
      %v3242 = vmul.f32 %v3226, %v1278
      %v3243 = vmul.f32 %v3227, %v1279
      %v3244 = vmul.f32 %v3228, %v1280
      %v3245 = vmul.f32 %v3229, %v1277
      %v3246 = vmul.f32 %v3230, %v1278
      %v3247 = vmul.f32 %v3231, %v1279
      %v3248 = vmul.f32 %v3232, %v1280
      %3249 = vst [vmem:[#allocation2 + $0x8] sm:$0xff] %v3233
      %3250 = vst [vmem:[#allocation2 + $0x10] sm:$0xff] %v3234
      %3251 = vst [vmem:[#allocation2 + $0x18] sm:$0xff] %v3235
      %3252 = vst.msk [vmem:[#allocation2 + $0x20] sm:$0xff] %vm657, %v3236
      %3253 = vst [vmem:[#allocation2 + $0x38] sm:$0xff] %v3237
      %3254 = vst [vmem:[#allocation2 + $0x40] sm:$0xff] %v3238
      %3255 = vst [vmem:[#allocation2 + $0x48] sm:$0xff] %v3239
      %3256 = vst.msk [vmem:[#allocation2 + $0x50] sm:$0xff] %vm657, %v3240
      %3257 = vst [vmem:[#allocation2 + $0x68] sm:$0xff] %v3241
      %3258 = vst [vmem:[#allocation2 + $0x70] sm:$0xff] %v3242
      %3259 = vst [vmem:[#allocation2 + $0x78] sm:$0xff] %v3243
      %3260 = vst.msk [vmem:[#allocation2 + $0x80] sm:$0xff] %vm657, %v3244
      %3261 = vst [vmem:[#allocation2 + $0x98] sm:$0xff] %v3245
      %3262 = vst [vmem:[#allocation2 + $0xa0] sm:$0xff] %v3246
      %3263 = vst [vmem:[#allocation2 + $0xa8] sm:$0xff] %v3247
      %3264 = vst.msk [vmem:[#allocation2 + $0xb0] sm:$0xff] %vm657, %v3248
      %v3265 = vld [vmem:[#allocation2] sm:$0xff]
      %v3266 = vld [vmem:[#allocation2 + $0x8] sm:$0xff]
      %v3267 = vld [vmem:[#allocation2 + $0x10] sm:$0xff]
      %v3268 = vld [vmem:[#allocation2 + $0x18] sm:$0xff]
      %v3269 = vld [vmem:[#allocation2 + $0x20] sm:$0xff]
      %v3270 = vld [vmem:[#allocation2 + $0x30] sm:$0xff]
      %v3271 = vld [vmem:[#allocation2 + $0x38] sm:$0xff]
      %v3272 = vld [vmem:[#allocation2 + $0x40] sm:$0xff]
      %v3273 = vld [vmem:[#allocation2 + $0x48] sm:$0xff]
      %v3274 = vld [vmem:[#allocation2 + $0x50] sm:$0xff]
      %v3275 = vld [vmem:[#allocation2 + $0x60] sm:$0xff]
      %v3276 = vld [vmem:[#allocation2 + $0x68] sm:$0xff]
      %v3277 = vld [vmem:[#allocation2 + $0x70] sm:$0xff]
      %v3278 = vld [vmem:[#allocation2 + $0x78] sm:$0xff]
      %v3279 = vld [vmem:[#allocation2 + $0x80] sm:$0xff]
      %v3280 = vld [vmem:[#allocation2 + $0x90] sm:$0xff]
      %v3281 = vld [vmem:[#allocation2 + $0x98] sm:$0xff]
      %v3282 = vld [vmem:[#allocation2 + $0xa0] sm:$0xff]
      %v3283 = vld [vmem:[#allocation2 + $0xa8] sm:$0xff]
      %v3284 = vld [vmem:[#allocation2 + $0xb0] sm:$0xff]
      %v3285 = vmul.f32 %v3265, %v711
      %v3286 = vmul.f32 %v3266, %v719
      %v3287 = vmul.f32 %v3267, %v720
      %v3288 = vmul.f32 %v3268, %v721
      %v3289 = vmul.f32 %v3269, %v717
      %v3290 = vmul.f32 %v3270, %v711
      %v3291 = vmul.f32 %v3271, %v719
      %v3292 = vmul.f32 %v3272, %v720
      %v3293 = vmul.f32 %v3273, %v721
      %v3294 = vmul.f32 %v3274, %v717
      %v3295 = vmul.f32 %v3275, %v711
      %v3296 = vmul.f32 %v3276, %v719
      %v3297 = vmul.f32 %v3277, %v720
      %v3298 = vmul.f32 %v3278, %v721
      %v3299 = vmul.f32 %v3279, %v717
      %v3300 = vmul.f32 %v3280, %v711
      %v3301 = vmul.f32 %v3281, %v719
      %v3302 = vmul.f32 %v3282, %v720
      %v3303 = vmul.f32 %v3283, %v721
      %v3304 = vmul.f32 %v3284, %v717
      %v3305 = vmul.f32 %v3265, %v749
      %v3306 = vmul.f32 %v3266, %v757
      %v3307 = vmul.f32 %v3267, %v758
      %v3308 = vmul.f32 %v3268, %v759
      %v3309 = vmul.f32 %v3269, %v755
      %v3310 = vmul.f32 %v3270, %v749
      %v3311 = vmul.f32 %v3271, %v757
      %v3312 = vmul.f32 %v3272, %v758
      %v3313 = vmul.f32 %v3273, %v759
      %v3314 = vmul.f32 %v3274, %v755
      %v3315 = vmul.f32 %v3275, %v749
      %v3316 = vmul.f32 %v3276, %v757
      %v3317 = vmul.f32 %v3277, %v758
      %v3318 = vmul.f32 %v3278, %v759
      %v3319 = vmul.f32 %v3279, %v755
      %v3320 = vmul.f32 %v3280, %v749
      %v3321 = vmul.f32 %v3281, %v757
      %v3322 = vmul.f32 %v3282, %v758
      %v3323 = vmul.f32 %v3283, %v759
      %v3324 = vmul.f32 %v3284, %v755
      %v3325 = vmul.f32 %v3265, %v771
      %v3326 = vmul.f32 %v3266, %v779
      %v3327 = vmul.f32 %v3267, %v780
      %v3328 = vmul.f32 %v3268, %v781
      %v3329 = vmul.f32 %v3269, %v777
      %v3330 = vmul.f32 %v3270, %v771
      %v3331 = vmul.f32 %v3271, %v779
      %v3332 = vmul.f32 %v3272, %v780
      %v3333 = vmul.f32 %v3273, %v781
      %v3334 = vmul.f32 %v3274, %v777
      %v3335 = vmul.f32 %v3275, %v771
      %v3336 = vmul.f32 %v3276, %v779
      %v3337 = vmul.f32 %v3277, %v780
      %v3338 = vmul.f32 %v3278, %v781
      %v3339 = vmul.f32 %v3279, %v777
      %v3340 = vmul.f32 %v3280, %v771
      %v3341 = vmul.f32 %v3281, %v779
      %v3342 = vmul.f32 %v3282, %v780
      %v3343 = vmul.f32 %v3283, %v781
      %v3344 = vmul.f32 %v3284, %v777
      %v3345 = vmul.f32 %v3266, %v793
      %v3346 = vmul.f32 %v3267, %v801
      %v3347 = vmul.f32 %v3268, %v802
      %v3348 = vmul.f32 %v3269, %v803
      %v3349 = vmul.f32 %v3271, %v793
      %v3350 = vmul.f32 %v3272, %v801
      %v3351 = vmul.f32 %v3273, %v802
      %v3352 = vmul.f32 %v3274, %v803
      %v3353 = vmul.f32 %v3276, %v793
      %v3354 = vmul.f32 %v3277, %v801
      %v3355 = vmul.f32 %v3278, %v802
      %v3356 = vmul.f32 %v3279, %v803
      %v3357 = vmul.f32 %v3281, %v793
      %v3358 = vmul.f32 %v3282, %v801
      %v3359 = vmul.f32 %v3283, %v802
      %v3360 = vmul.f32 %v3284, %v803
      %v3361 = vmul.f32 %v3266, %v813
      %v3362 = vmul.f32 %v3267, %v821
      %v3363 = vmul.f32 %v3268, %v822
      %v3364 = vmul.f32 %v3269, %v823
      %v3365 = vmul.f32 %v3271, %v813
      %v3366 = vmul.f32 %v3272, %v821
      %v3367 = vmul.f32 %v3273, %v822
      %v3368 = vmul.f32 %v3274, %v823
      %v3369 = vmul.f32 %v3276, %v813
      %v3370 = vmul.f32 %v3277, %v821
      %v3371 = vmul.f32 %v3278, %v822
      %v3372 = vmul.f32 %v3279, %v823
      %v3373 = vmul.f32 %v3281, %v813
      %v3374 = vmul.f32 %v3282, %v821
      %v3375 = vmul.f32 %v3283, %v822
      %v3376 = vmul.f32 %v3284, %v823
      %v3377 = vmul.f32 %v3266, %v833
      %v3378 = vmul.f32 %v3267, %v841
      %v3379 = vmul.f32 %v3268, %v842
      %v3380 = vmul.f32 %v3269, %v843
      %v3381 = vmul.f32 %v3271, %v833
      %v3382 = vmul.f32 %v3272, %v841
      %v3383 = vmul.f32 %v3273, %v842
      %v3384 = vmul.f32 %v3274, %v843
      %v3385 = vmul.f32 %v3276, %v833
      %v3386 = vmul.f32 %v3277, %v841
      %v3387 = vmul.f32 %v3278, %v842
      %v3388 = vmul.f32 %v3279, %v843
      %v3389 = vmul.f32 %v3281, %v833
      %v3390 = vmul.f32 %v3282, %v841
      %v3391 = vmul.f32 %v3283, %v842
      %v3392 = vmul.f32 %v3284, %v843
      %3413 = vrot.lane.b32.xlu0 %v3265, 127
      %v3414 = vpop.permute.xlu0 %3413
      %3415 = vrot.lane.b32.xlu0 %v3266, 127
      %v3416 = vpop.permute.xlu0 %3415
      %3417 = vrot.lane.b32.xlu0 %v3267, 127
      %v3418 = vpop.permute.xlu0 %3417
      %3419 = vrot.lane.b32.xlu0 %v3268, 127
      %v3420 = vpop.permute.xlu0 %3419
      %3421 = vrot.lane.b32.xlu0 %v3269, 127
      %v3422 = vpop.permute.xlu0 %3421
      %3423 = vrot.lane.b32.xlu0 %v3270, 127
      %v3424 = vpop.permute.xlu0 %3423
      %3425 = vrot.lane.b32.xlu0 %v3271, 127
      %v3426 = vpop.permute.xlu0 %3425
      %3427 = vrot.lane.b32.xlu0 %v3272, 127
      %v3428 = vpop.permute.xlu0 %3427
      %3429 = vrot.lane.b32.xlu0 %v3273, 127
      %v3430 = vpop.permute.xlu0 %3429
      %3431 = vrot.lane.b32.xlu0 %v3274, 127
      %v3432 = vpop.permute.xlu0 %3431
      %3433 = vrot.lane.b32.xlu0 %v3275, 127
      %v3434 = vpop.permute.xlu0 %3433
      %3435 = vrot.lane.b32.xlu0 %v3276, 127
      %v3436 = vpop.permute.xlu0 %3435
      %3437 = vrot.lane.b32.xlu0 %v3277, 127
      %v3438 = vpop.permute.xlu0 %3437
      %3439 = vrot.lane.b32.xlu0 %v3278, 127
      %v3440 = vpop.permute.xlu0 %3439
      %3441 = vrot.lane.b32.xlu0 %v3279, 127
      %v3442 = vpop.permute.xlu0 %3441
      %3443 = vrot.lane.b32.xlu0 %v3280, 127
      %v3444 = vpop.permute.xlu0 %3443
      %3445 = vrot.lane.b32.xlu0 %v3281, 127
      %v3446 = vpop.permute.xlu0 %3445
      %3447 = vrot.lane.b32.xlu0 %v3282, 127
      %v3448 = vpop.permute.xlu0 %3447
      %3449 = vrot.lane.b32.xlu0 %v3283, 127
      %v3450 = vpop.permute.xlu0 %3449
      %3451 = vrot.lane.b32.xlu0 %v3284, 127
      %v3452 = vpop.permute.xlu0 %3451
      %v3453 = vsel %vm778, %v3414, %v3416
      %v3454 = vsel %vm778, %v3416, %v3418
      %v3455 = vsel %vm778, %v3418, %v3420
      %v3456 = vsel %vm778, %v3420, %v3422
      %v3457 = vsel %vm778, %v3424, %v3426
      %v3458 = vsel %vm778, %v3426, %v3428
      %v3459 = vsel %vm778, %v3428, %v3430
      %v3460 = vsel %vm778, %v3430, %v3432
      %v3461 = vsel %vm778, %v3434, %v3436
      %v3462 = vsel %vm778, %v3436, %v3438
      %v3463 = vsel %vm778, %v3438, %v3440
      %v3464 = vsel %vm778, %v3440, %v3442
      %v3465 = vsel %vm778, %v3444, %v3446
      %v3466 = vsel %vm778, %v3446, %v3448
      %v3467 = vsel %vm778, %v3448, %v3450
      %v3468 = vsel %vm778, %v3450, %v3452
      %3489 = vrot.lane.b32.xlu0 %v3305, 126
      %v3490 = vpop.permute.xlu0 %3489
      %3491 = vrot.lane.b32.xlu0 %v3306, 126
      %v3492 = vpop.permute.xlu0 %3491
      %3493 = vrot.lane.b32.xlu0 %v3307, 126
      %v3494 = vpop.permute.xlu0 %3493
      %3495 = vrot.lane.b32.xlu0 %v3308, 126
      %v3496 = vpop.permute.xlu0 %3495
      %3497 = vrot.lane.b32.xlu0 %v3309, 126
      %v3498 = vpop.permute.xlu0 %3497
      %3499 = vrot.lane.b32.xlu0 %v3310, 126
      %v3500 = vpop.permute.xlu0 %3499
      %3501 = vrot.lane.b32.xlu0 %v3311, 126
      %v3502 = vpop.permute.xlu0 %3501
      %3503 = vrot.lane.b32.xlu0 %v3312, 126
      %v3504 = vpop.permute.xlu0 %3503
      %3505 = vrot.lane.b32.xlu0 %v3313, 126
      %v3506 = vpop.permute.xlu0 %3505
      %3507 = vrot.lane.b32.xlu0 %v3314, 126
      %v3508 = vpop.permute.xlu0 %3507
      %3509 = vrot.lane.b32.xlu0 %v3315, 126
      %v3510 = vpop.permute.xlu0 %3509
      %3511 = vrot.lane.b32.xlu0 %v3316, 126
      %v3512 = vpop.permute.xlu0 %3511
      %3513 = vrot.lane.b32.xlu0 %v3317, 126
      %v3514 = vpop.permute.xlu0 %3513
      %3515 = vrot.lane.b32.xlu0 %v3318, 126
      %v3516 = vpop.permute.xlu0 %3515
      %3517 = vrot.lane.b32.xlu0 %v3319, 126
      %v3518 = vpop.permute.xlu0 %3517
      %3519 = vrot.lane.b32.xlu0 %v3320, 126
      %v3520 = vpop.permute.xlu0 %3519
      %3521 = vrot.lane.b32.xlu0 %v3321, 126
      %v3522 = vpop.permute.xlu0 %3521
      %3523 = vrot.lane.b32.xlu0 %v3322, 126
      %v3524 = vpop.permute.xlu0 %3523
      %3525 = vrot.lane.b32.xlu0 %v3323, 126
      %v3526 = vpop.permute.xlu0 %3525
      %3527 = vrot.lane.b32.xlu0 %v3324, 126
      %v3528 = vpop.permute.xlu0 %3527
      %v3529 = vsel %vm886, %v3490, %v3492
      %v3530 = vsel %vm886, %v3492, %v3494
      %v3531 = vsel %vm886, %v3494, %v3496
      %v3532 = vsel %vm886, %v3496, %v3498
      %v3533 = vsel %vm886, %v3500, %v3502
      %v3534 = vsel %vm886, %v3502, %v3504
      %v3535 = vsel %vm886, %v3504, %v3506
      %v3536 = vsel %vm886, %v3506, %v3508
      %v3537 = vsel %vm886, %v3510, %v3512
      %v3538 = vsel %vm886, %v3512, %v3514
      %v3539 = vsel %vm886, %v3514, %v3516
      %v3540 = vsel %vm886, %v3516, %v3518
      %v3541 = vsel %vm886, %v3520, %v3522
      %v3542 = vsel %vm886, %v3522, %v3524
      %v3543 = vsel %vm886, %v3524, %v3526
      %v3544 = vsel %vm886, %v3526, %v3528
      %3565 = vrot.lane.b32.xlu0 %v3325, 112
      %v3566 = vpop.permute.xlu0 %3565
      %3567 = vrot.lane.b32.xlu0 %v3326, 112
      %v3568 = vpop.permute.xlu0 %3567
      %3569 = vrot.lane.b32.xlu0 %v3327, 112
      %v3570 = vpop.permute.xlu0 %3569
      %3571 = vrot.lane.b32.xlu0 %v3328, 112
      %v3572 = vpop.permute.xlu0 %3571
      %3573 = vrot.lane.b32.xlu0 %v3329, 112
      %v3574 = vpop.permute.xlu0 %3573
      %3575 = vrot.lane.b32.xlu0 %v3330, 112
      %v3576 = vpop.permute.xlu0 %3575
      %3577 = vrot.lane.b32.xlu0 %v3331, 112
      %v3578 = vpop.permute.xlu0 %3577
      %3579 = vrot.lane.b32.xlu0 %v3332, 112
      %v3580 = vpop.permute.xlu0 %3579
      %3581 = vrot.lane.b32.xlu0 %v3333, 112
      %v3582 = vpop.permute.xlu0 %3581
      %3583 = vrot.lane.b32.xlu0 %v3334, 112
      %v3584 = vpop.permute.xlu0 %3583
      %3585 = vrot.lane.b32.xlu0 %v3335, 112
      %v3586 = vpop.permute.xlu0 %3585
      %3587 = vrot.lane.b32.xlu0 %v3336, 112
      %v3588 = vpop.permute.xlu0 %3587
      %3589 = vrot.lane.b32.xlu0 %v3337, 112
      %v3590 = vpop.permute.xlu0 %3589
      %3591 = vrot.lane.b32.xlu0 %v3338, 112
      %v3592 = vpop.permute.xlu0 %3591
      %3593 = vrot.lane.b32.xlu0 %v3339, 112
      %v3594 = vpop.permute.xlu0 %3593
      %3595 = vrot.lane.b32.xlu0 %v3340, 112
      %v3596 = vpop.permute.xlu0 %3595
      %3597 = vrot.lane.b32.xlu0 %v3341, 112
      %v3598 = vpop.permute.xlu0 %3597
      %3599 = vrot.lane.b32.xlu0 %v3342, 112
      %v3600 = vpop.permute.xlu0 %3599
      %3601 = vrot.lane.b32.xlu0 %v3343, 112
      %v3602 = vpop.permute.xlu0 %3601
      %3603 = vrot.lane.b32.xlu0 %v3344, 112
      %v3604 = vpop.permute.xlu0 %3603
      %v3605 = vsel %vm906, %v3566, %v3568
      %v3606 = vsel %vm906, %v3568, %v3570
      %v3607 = vsel %vm906, %v3570, %v3572
      %v3608 = vsel %vm906, %v3572, %v3574
      %v3609 = vsel %vm906, %v3576, %v3578
      %v3610 = vsel %vm906, %v3578, %v3580
      %v3611 = vsel %vm906, %v3580, %v3582
      %v3612 = vsel %vm906, %v3582, %v3584
      %v3613 = vsel %vm906, %v3586, %v3588
      %v3614 = vsel %vm906, %v3588, %v3590
      %v3615 = vsel %vm906, %v3590, %v3592
      %v3616 = vsel %vm906, %v3592, %v3594
      %v3617 = vsel %vm906, %v3596, %v3598
      %v3618 = vsel %vm906, %v3598, %v3600
      %v3619 = vsel %vm906, %v3600, %v3602
      %v3620 = vsel %vm906, %v3602, %v3604
      %3621 = vrot.lane.b32.xlu0 %v3266, 111
      %v3622 = vpop.permute.xlu0 %3621
      %3623 = vrot.lane.b32.xlu0 %v3267, 111
      %v3624 = vpop.permute.xlu0 %3623
      %3625 = vrot.lane.b32.xlu0 %v3268, 111
      %v3626 = vpop.permute.xlu0 %3625
      %3627 = vrot.lane.b32.xlu0 %v3269, 111
      %v3628 = vpop.permute.xlu0 %3627
      %3629 = vrot.lane.b32.xlu0 %v3271, 111
      %v3630 = vpop.permute.xlu0 %3629
      %3631 = vrot.lane.b32.xlu0 %v3272, 111
      %v3632 = vpop.permute.xlu0 %3631
      %3633 = vrot.lane.b32.xlu0 %v3273, 111
      %v3634 = vpop.permute.xlu0 %3633
      %3635 = vrot.lane.b32.xlu0 %v3274, 111
      %v3636 = vpop.permute.xlu0 %3635
      %3637 = vrot.lane.b32.xlu0 %v3276, 111
      %v3638 = vpop.permute.xlu0 %3637
      %3639 = vrot.lane.b32.xlu0 %v3277, 111
      %v3640 = vpop.permute.xlu0 %3639
      %3641 = vrot.lane.b32.xlu0 %v3278, 111
      %v3642 = vpop.permute.xlu0 %3641
      %3643 = vrot.lane.b32.xlu0 %v3279, 111
      %v3644 = vpop.permute.xlu0 %3643
      %3645 = vrot.lane.b32.xlu0 %v3281, 111
      %v3646 = vpop.permute.xlu0 %3645
      %3647 = vrot.lane.b32.xlu0 %v3282, 111
      %v3648 = vpop.permute.xlu0 %3647
      %3649 = vrot.lane.b32.xlu0 %v3283, 111
      %v3650 = vpop.permute.xlu0 %3649
      %3651 = vrot.lane.b32.xlu0 %v3284, 111
      %v3652 = vpop.permute.xlu0 %3651
      %v3653 = vsel %vm718, %v3622, %v3624
      %v3654 = vsel %vm718, %v3624, %v3626
      %v3655 = vsel %vm718, %v3626, %v3628
      %v3656 = vsel %vm718, %v3630, %v3632
      %v3657 = vsel %vm718, %v3632, %v3634
      %v3658 = vsel %vm718, %v3634, %v3636
      %v3659 = vsel %vm718, %v3638, %v3640
      %v3660 = vsel %vm718, %v3640, %v3642
      %v3661 = vsel %vm718, %v3642, %v3644
      %v3662 = vsel %vm718, %v3646, %v3648
      %v3663 = vsel %vm718, %v3648, %v3650
      %v3664 = vsel %vm718, %v3650, %v3652
      %3681 = vrot.lane.b32.xlu0 %v3345, 110
      %v3682 = vpop.permute.xlu0 %3681
      %3683 = vrot.lane.b32.xlu0 %v3346, 110
      %v3684 = vpop.permute.xlu0 %3683
      %3685 = vrot.lane.b32.xlu0 %v3347, 110
      %v3686 = vpop.permute.xlu0 %3685
      %3687 = vrot.lane.b32.xlu0 %v3348, 110
      %v3688 = vpop.permute.xlu0 %3687
      %3689 = vrot.lane.b32.xlu0 %v3349, 110
      %v3690 = vpop.permute.xlu0 %3689
      %3691 = vrot.lane.b32.xlu0 %v3350, 110
      %v3692 = vpop.permute.xlu0 %3691
      %3693 = vrot.lane.b32.xlu0 %v3351, 110
      %v3694 = vpop.permute.xlu0 %3693
      %3695 = vrot.lane.b32.xlu0 %v3352, 110
      %v3696 = vpop.permute.xlu0 %3695
      %3697 = vrot.lane.b32.xlu0 %v3353, 110
      %v3698 = vpop.permute.xlu0 %3697
      %3699 = vrot.lane.b32.xlu0 %v3354, 110
      %v3700 = vpop.permute.xlu0 %3699
      %3701 = vrot.lane.b32.xlu0 %v3355, 110
      %v3702 = vpop.permute.xlu0 %3701
      %3703 = vrot.lane.b32.xlu0 %v3356, 110
      %v3704 = vpop.permute.xlu0 %3703
      %3705 = vrot.lane.b32.xlu0 %v3357, 110
      %v3706 = vpop.permute.xlu0 %3705
      %3707 = vrot.lane.b32.xlu0 %v3358, 110
      %v3708 = vpop.permute.xlu0 %3707
      %3709 = vrot.lane.b32.xlu0 %v3359, 110
      %v3710 = vpop.permute.xlu0 %3709
      %3711 = vrot.lane.b32.xlu0 %v3360, 110
      %v3712 = vpop.permute.xlu0 %3711
      %v3713 = vsel %vm934, %v3682, %v3684
      %v3714 = vsel %vm934, %v3684, %v3686
      %v3715 = vsel %vm934, %v3686, %v3688
      %v3716 = vsel %vm934, %v3690, %v3692
      %v3717 = vsel %vm934, %v3692, %v3694
      %v3718 = vsel %vm934, %v3694, %v3696
      %v3719 = vsel %vm934, %v3698, %v3700
      %v3720 = vsel %vm934, %v3700, %v3702
      %v3721 = vsel %vm934, %v3702, %v3704
      %v3722 = vsel %vm934, %v3706, %v3708
      %v3723 = vsel %vm934, %v3708, %v3710
      %v3724 = vsel %vm934, %v3710, %v3712
      %3741 = vrot.lane.b32.xlu0 %v3361, 96
      %v3742 = vpop.permute.xlu0 %3741
      %3743 = vrot.lane.b32.xlu0 %v3362, 96
      %v3744 = vpop.permute.xlu0 %3743
      %3745 = vrot.lane.b32.xlu0 %v3363, 96
      %v3746 = vpop.permute.xlu0 %3745
      %3747 = vrot.lane.b32.xlu0 %v3364, 96
      %v3748 = vpop.permute.xlu0 %3747
      %3749 = vrot.lane.b32.xlu0 %v3365, 96
      %v3750 = vpop.permute.xlu0 %3749
      %3751 = vrot.lane.b32.xlu0 %v3366, 96
      %v3752 = vpop.permute.xlu0 %3751
      %3753 = vrot.lane.b32.xlu0 %v3367, 96
      %v3754 = vpop.permute.xlu0 %3753
      %3755 = vrot.lane.b32.xlu0 %v3368, 96
      %v3756 = vpop.permute.xlu0 %3755
      %3757 = vrot.lane.b32.xlu0 %v3369, 96
      %v3758 = vpop.permute.xlu0 %3757
      %3759 = vrot.lane.b32.xlu0 %v3370, 96
      %v3760 = vpop.permute.xlu0 %3759
      %3761 = vrot.lane.b32.xlu0 %v3371, 96
      %v3762 = vpop.permute.xlu0 %3761
      %3763 = vrot.lane.b32.xlu0 %v3372, 96
      %v3764 = vpop.permute.xlu0 %3763
      %3765 = vrot.lane.b32.xlu0 %v3373, 96
      %v3766 = vpop.permute.xlu0 %3765
      %3767 = vrot.lane.b32.xlu0 %v3374, 96
      %v3768 = vpop.permute.xlu0 %3767
      %3769 = vrot.lane.b32.xlu0 %v3375, 96
      %v3770 = vpop.permute.xlu0 %3769
      %3771 = vrot.lane.b32.xlu0 %v3376, 96
      %v3772 = vpop.permute.xlu0 %3771
      %v3773 = vsel %vm657, %v3742, %v3744
      %v3774 = vsel %vm657, %v3744, %v3746
      %v3775 = vsel %vm657, %v3746, %v3748
      %v3776 = vsel %vm657, %v3750, %v3752
      %v3777 = vsel %vm657, %v3752, %v3754
      %v3778 = vsel %vm657, %v3754, %v3756
      %v3779 = vsel %vm657, %v3758, %v3760
      %v3780 = vsel %vm657, %v3760, %v3762
      %v3781 = vsel %vm657, %v3762, %v3764
      %v3782 = vsel %vm657, %v3766, %v3768
      %v3783 = vsel %vm657, %v3768, %v3770
      %v3784 = vsel %vm657, %v3770, %v3772
      %3785 = vrot.lane.b32.xlu0 %v3266, 95
      %v3786 = vpop.permute.xlu0 %3785
      %3787 = vrot.lane.b32.xlu0 %v3267, 95
      %v3788 = vpop.permute.xlu0 %3787
      %3789 = vrot.lane.b32.xlu0 %v3268, 95
      %v3790 = vpop.permute.xlu0 %3789
      %3791 = vrot.lane.b32.xlu0 %v3269, 95
      %v3792 = vpop.permute.xlu0 %3791
      %3793 = vrot.lane.b32.xlu0 %v3271, 95
      %v3794 = vpop.permute.xlu0 %3793
      %3795 = vrot.lane.b32.xlu0 %v3272, 95
      %v3796 = vpop.permute.xlu0 %3795
      %3797 = vrot.lane.b32.xlu0 %v3273, 95
      %v3798 = vpop.permute.xlu0 %3797
      %3799 = vrot.lane.b32.xlu0 %v3274, 95
      %v3800 = vpop.permute.xlu0 %3799
      %3801 = vrot.lane.b32.xlu0 %v3276, 95
      %v3802 = vpop.permute.xlu0 %3801
      %3803 = vrot.lane.b32.xlu0 %v3277, 95
      %v3804 = vpop.permute.xlu0 %3803
      %3805 = vrot.lane.b32.xlu0 %v3278, 95
      %v3806 = vpop.permute.xlu0 %3805
      %3807 = vrot.lane.b32.xlu0 %v3279, 95
      %v3808 = vpop.permute.xlu0 %3807
      %3809 = vrot.lane.b32.xlu0 %v3281, 95
      %v3810 = vpop.permute.xlu0 %3809
      %3811 = vrot.lane.b32.xlu0 %v3282, 95
      %v3812 = vpop.permute.xlu0 %3811
      %3813 = vrot.lane.b32.xlu0 %v3283, 95
      %v3814 = vpop.permute.xlu0 %3813
      %3815 = vrot.lane.b32.xlu0 %v3284, 95
      %v3816 = vpop.permute.xlu0 %3815
      %v3817 = vsel %vm961, %v3786, %v3788
      %v3818 = vsel %vm961, %v3788, %v3790
      %v3819 = vsel %vm961, %v3790, %v3792
      %v3820 = vsel %vm961, %v3794, %v3796
      %v3821 = vsel %vm961, %v3796, %v3798
      %v3822 = vsel %vm961, %v3798, %v3800
      %v3823 = vsel %vm961, %v3802, %v3804
      %v3824 = vsel %vm961, %v3804, %v3806
      %v3825 = vsel %vm961, %v3806, %v3808
      %v3826 = vsel %vm961, %v3810, %v3812
      %v3827 = vsel %vm961, %v3812, %v3814
      %v3828 = vsel %vm961, %v3814, %v3816
      %3845 = vrot.lane.b32.xlu0 %v3377, 94
      %v3846 = vpop.permute.xlu0 %3845
      %3847 = vrot.lane.b32.xlu0 %v3378, 94
      %v3848 = vpop.permute.xlu0 %3847
      %3849 = vrot.lane.b32.xlu0 %v3379, 94
      %v3850 = vpop.permute.xlu0 %3849
      %3851 = vrot.lane.b32.xlu0 %v3380, 94
      %v3852 = vpop.permute.xlu0 %3851
      %3853 = vrot.lane.b32.xlu0 %v3381, 94
      %v3854 = vpop.permute.xlu0 %3853
      %3855 = vrot.lane.b32.xlu0 %v3382, 94
      %v3856 = vpop.permute.xlu0 %3855
      %3857 = vrot.lane.b32.xlu0 %v3383, 94
      %v3858 = vpop.permute.xlu0 %3857
      %3859 = vrot.lane.b32.xlu0 %v3384, 94
      %v3860 = vpop.permute.xlu0 %3859
      %3861 = vrot.lane.b32.xlu0 %v3385, 94
      %v3862 = vpop.permute.xlu0 %3861
      %3863 = vrot.lane.b32.xlu0 %v3386, 94
      %v3864 = vpop.permute.xlu0 %3863
      %3865 = vrot.lane.b32.xlu0 %v3387, 94
      %v3866 = vpop.permute.xlu0 %3865
      %3867 = vrot.lane.b32.xlu0 %v3388, 94
      %v3868 = vpop.permute.xlu0 %3867
      %3869 = vrot.lane.b32.xlu0 %v3389, 94
      %v3870 = vpop.permute.xlu0 %3869
      %3871 = vrot.lane.b32.xlu0 %v3390, 94
      %v3872 = vpop.permute.xlu0 %3871
      %3873 = vrot.lane.b32.xlu0 %v3391, 94
      %v3874 = vpop.permute.xlu0 %3873
      %3875 = vrot.lane.b32.xlu0 %v3392, 94
      %v3876 = vpop.permute.xlu0 %3875
      %v3877 = vsel %vm977, %v3846, %v3848
      %v3878 = vsel %vm977, %v3848, %v3850
      %v3879 = vsel %vm977, %v3850, %v3852
      %v3880 = vsel %vm977, %v3854, %v3856
      %v3881 = vsel %vm977, %v3856, %v3858
      %v3882 = vsel %vm977, %v3858, %v3860
      %v3883 = vsel %vm977, %v3862, %v3864
      %v3884 = vsel %vm977, %v3864, %v3866
      %v3885 = vsel %vm977, %v3866, %v3868
      %v3886 = vsel %vm977, %v3870, %v3872
      %v3887 = vsel %vm977, %v3872, %v3874
      %v3888 = vsel %vm977, %v3874, %v3876
      %v3889 = vld [vmem:[%s10] sm:$0xff]
      %v3890 = vld [vmem:[%s10 + $0x8] sm:$0xff]
      %v3891 = vld [vmem:[%s10 + $0x10] sm:$0xff]
      %v3892 = vld [vmem:[%s10 + $0x18] sm:$0xff]
      %v3893 = vld [vmem:[%s10 + $0x20] sm:$0xff]
      %v3894 = vld [vmem:[%s10 + $0x28] sm:$0xff]
      %v3895 = vld [vmem:[%s10 + $0x30] sm:$0xff]
      %v3896 = vld [vmem:[%s10 + $0x38] sm:$0xff]
      %v3897 = vld [vmem:[%s10 + $0x40] sm:$0xff]
      %v3898 = vld [vmem:[%s10 + $0x48] sm:$0xff]
      %v3899 = vld [vmem:[%s10 + $0x50] sm:$0xff]
      %v3900 = vld [vmem:[%s10 + $0x58] sm:$0xff]
      %v3901 = vld [vmem:[%s11] sm:$0xff]
      %v3902 = vld [vmem:[%s11 + $0x8] sm:$0xff]
      %v3903 = vld [vmem:[%s11 + $0x10] sm:$0xff]
      %v3904 = vld [vmem:[%s11 + $0x18] sm:$0xff]
      %3906 = vset.pattern.permute.xlu0 0
      %3907 = vperm.xlu0 %3906, %v3901
      %v3908 = vpop.permute.xlu0 %3907
      %3911 = vset.pattern.permute.xlu0 0
      %3912 = vperm.xlu0 %3911, %v3902
      %v3913 = vpop.permute.xlu0 %3912
      %3916 = vset.pattern.permute.xlu0 0
      %3917 = vperm.xlu0 %3916, %v3903
      %v3918 = vpop.permute.xlu0 %3917
      %3921 = vset.pattern.permute.xlu0 0
      %3922 = vperm.xlu0 %3921, %v3904
      %v3923 = vpop.permute.xlu0 %3922
      %3945 = vrot.lane.b32.xlu0 %v3285, 17
      %v3946 = vpop.permute.xlu0 %3945
      %3947 = vrot.lane.b32.xlu0 %v3286, 17
      %v3948 = vpop.permute.xlu0 %3947
      %3949 = vrot.lane.b32.xlu0 %v3287, 17
      %v3950 = vpop.permute.xlu0 %3949
      %3951 = vrot.lane.b32.xlu0 %v3288, 17
      %v3952 = vpop.permute.xlu0 %3951
      %3953 = vrot.lane.b32.xlu0 %v3289, 17
      %v3954 = vpop.permute.xlu0 %3953
      %3955 = vrot.lane.b32.xlu0 %v3290, 17
      %v3956 = vpop.permute.xlu0 %3955
      %3957 = vrot.lane.b32.xlu0 %v3291, 17
      %v3958 = vpop.permute.xlu0 %3957
      %3959 = vrot.lane.b32.xlu0 %v3292, 17
      %v3960 = vpop.permute.xlu0 %3959
      %3961 = vrot.lane.b32.xlu0 %v3293, 17
      %v3962 = vpop.permute.xlu0 %3961
      %3963 = vrot.lane.b32.xlu0 %v3294, 17
      %v3964 = vpop.permute.xlu0 %3963
      %3965 = vrot.lane.b32.xlu0 %v3295, 17
      %v3966 = vpop.permute.xlu0 %3965
      %3967 = vrot.lane.b32.xlu0 %v3296, 17
      %v3968 = vpop.permute.xlu0 %3967
      %3969 = vrot.lane.b32.xlu0 %v3297, 17
      %v3970 = vpop.permute.xlu0 %3969
      %3971 = vrot.lane.b32.xlu0 %v3298, 17
      %v3972 = vpop.permute.xlu0 %3971
      %3973 = vrot.lane.b32.xlu0 %v3299, 17
      %v3974 = vpop.permute.xlu0 %3973
      %3975 = vrot.lane.b32.xlu0 %v3300, 17
      %v3976 = vpop.permute.xlu0 %3975
      %3977 = vrot.lane.b32.xlu0 %v3301, 17
      %v3978 = vpop.permute.xlu0 %3977
      %3979 = vrot.lane.b32.xlu0 %v3302, 17
      %v3980 = vpop.permute.xlu0 %3979
      %3981 = vrot.lane.b32.xlu0 %v3303, 17
      %v3982 = vpop.permute.xlu0 %3981
      %3983 = vrot.lane.b32.xlu0 %v3304, 17
      %v3984 = vpop.permute.xlu0 %3983
      %3985 = vrot.lane.b32.xlu0 %v3453, 17
      %v3986 = vpop.permute.xlu0 %3985
      %3987 = vrot.lane.b32.xlu0 %v3454, 17
      %v3988 = vpop.permute.xlu0 %3987
      %3989 = vrot.lane.b32.xlu0 %v3455, 17
      %v3990 = vpop.permute.xlu0 %3989
      %3991 = vrot.lane.b32.xlu0 %v3456, 17
      %v3992 = vpop.permute.xlu0 %3991
      %3993 = vrot.lane.b32.xlu0 %v3422, 17
      %v3994 = vpop.permute.xlu0 %3993
      %3995 = vrot.lane.b32.xlu0 %v3457, 17
      %v3996 = vpop.permute.xlu0 %3995
      %3997 = vrot.lane.b32.xlu0 %v3458, 17
      %v3998 = vpop.permute.xlu0 %3997
      %3999 = vrot.lane.b32.xlu0 %v3459, 17
      %v4000 = vpop.permute.xlu0 %3999
      %4001 = vrot.lane.b32.xlu0 %v3460, 17
      %v4002 = vpop.permute.xlu0 %4001
      %4003 = vrot.lane.b32.xlu0 %v3432, 17
      %v4004 = vpop.permute.xlu0 %4003
      %4005 = vrot.lane.b32.xlu0 %v3461, 17
      %v4006 = vpop.permute.xlu0 %4005
      %4007 = vrot.lane.b32.xlu0 %v3462, 17
      %v4008 = vpop.permute.xlu0 %4007
      %4009 = vrot.lane.b32.xlu0 %v3463, 17
      %v4010 = vpop.permute.xlu0 %4009
      %4011 = vrot.lane.b32.xlu0 %v3464, 17
      %v4012 = vpop.permute.xlu0 %4011
      %4013 = vrot.lane.b32.xlu0 %v3442, 17
      %v4014 = vpop.permute.xlu0 %4013
      %4015 = vrot.lane.b32.xlu0 %v3465, 17
      %v4016 = vpop.permute.xlu0 %4015
      %4017 = vrot.lane.b32.xlu0 %v3466, 17
      %v4018 = vpop.permute.xlu0 %4017
      %4019 = vrot.lane.b32.xlu0 %v3467, 17
      %v4020 = vpop.permute.xlu0 %4019
      %4021 = vrot.lane.b32.xlu0 %v3468, 17
      %v4022 = vpop.permute.xlu0 %4021
      %4023 = vrot.lane.b32.xlu0 %v3452, 17
      %v4024 = vpop.permute.xlu0 %4023
      %4025 = vrot.lane.b32.xlu0 %v3529, 17
      %v4026 = vpop.permute.xlu0 %4025
      %4027 = vrot.lane.b32.xlu0 %v3530, 17
      %v4028 = vpop.permute.xlu0 %4027
      %4029 = vrot.lane.b32.xlu0 %v3531, 17
      %v4030 = vpop.permute.xlu0 %4029
      %4031 = vrot.lane.b32.xlu0 %v3532, 17
      %v4032 = vpop.permute.xlu0 %4031
      %4033 = vrot.lane.b32.xlu0 %v3498, 17
      %v4034 = vpop.permute.xlu0 %4033
      %4035 = vrot.lane.b32.xlu0 %v3533, 17
      %v4036 = vpop.permute.xlu0 %4035
      %4037 = vrot.lane.b32.xlu0 %v3534, 17
      %v4038 = vpop.permute.xlu0 %4037
      %4039 = vrot.lane.b32.xlu0 %v3535, 17
      %v4040 = vpop.permute.xlu0 %4039
      %4041 = vrot.lane.b32.xlu0 %v3536, 17
      %v4042 = vpop.permute.xlu0 %4041
      %4043 = vrot.lane.b32.xlu0 %v3508, 17
      %v4044 = vpop.permute.xlu0 %4043
      %4045 = vrot.lane.b32.xlu0 %v3537, 17
      %v4046 = vpop.permute.xlu0 %4045
      %4047 = vrot.lane.b32.xlu0 %v3538, 17
      %v4048 = vpop.permute.xlu0 %4047
      %4049 = vrot.lane.b32.xlu0 %v3539, 17
      %v4050 = vpop.permute.xlu0 %4049
      %4051 = vrot.lane.b32.xlu0 %v3540, 17
      %v4052 = vpop.permute.xlu0 %4051
      %4053 = vrot.lane.b32.xlu0 %v3518, 17
      %v4054 = vpop.permute.xlu0 %4053
      %4055 = vrot.lane.b32.xlu0 %v3541, 17
      %v4056 = vpop.permute.xlu0 %4055
      %4057 = vrot.lane.b32.xlu0 %v3542, 17
      %v4058 = vpop.permute.xlu0 %4057
      %4059 = vrot.lane.b32.xlu0 %v3543, 17
      %v4060 = vpop.permute.xlu0 %4059
      %4061 = vrot.lane.b32.xlu0 %v3544, 17
      %v4062 = vpop.permute.xlu0 %4061
      %4063 = vrot.lane.b32.xlu0 %v3528, 17
      %v4064 = vpop.permute.xlu0 %4063
      %4065 = vrot.lane.b32.xlu0 %v3605, 17
      %v4066 = vpop.permute.xlu0 %4065
      %4067 = vrot.lane.b32.xlu0 %v3606, 17
      %v4068 = vpop.permute.xlu0 %4067
      %4069 = vrot.lane.b32.xlu0 %v3607, 17
      %v4070 = vpop.permute.xlu0 %4069
      %4071 = vrot.lane.b32.xlu0 %v3608, 17
      %v4072 = vpop.permute.xlu0 %4071
      %4073 = vrot.lane.b32.xlu0 %v3574, 17
      %v4074 = vpop.permute.xlu0 %4073
      %4075 = vrot.lane.b32.xlu0 %v3609, 17
      %v4076 = vpop.permute.xlu0 %4075
      %4077 = vrot.lane.b32.xlu0 %v3610, 17
      %v4078 = vpop.permute.xlu0 %4077
      %4079 = vrot.lane.b32.xlu0 %v3611, 17
      %v4080 = vpop.permute.xlu0 %4079
      %4081 = vrot.lane.b32.xlu0 %v3612, 17
      %v4082 = vpop.permute.xlu0 %4081
      %4083 = vrot.lane.b32.xlu0 %v3584, 17
      %v4084 = vpop.permute.xlu0 %4083
      %4085 = vrot.lane.b32.xlu0 %v3613, 17
      %v4086 = vpop.permute.xlu0 %4085
      %4087 = vrot.lane.b32.xlu0 %v3614, 17
      %v4088 = vpop.permute.xlu0 %4087
      %4089 = vrot.lane.b32.xlu0 %v3615, 17
      %v4090 = vpop.permute.xlu0 %4089
      %4091 = vrot.lane.b32.xlu0 %v3616, 17
      %v4092 = vpop.permute.xlu0 %4091
      %4093 = vrot.lane.b32.xlu0 %v3594, 17
      %v4094 = vpop.permute.xlu0 %4093
      %4095 = vrot.lane.b32.xlu0 %v3617, 17
      %v4096 = vpop.permute.xlu0 %4095
      %4097 = vrot.lane.b32.xlu0 %v3618, 17
      %v4098 = vpop.permute.xlu0 %4097
      %4099 = vrot.lane.b32.xlu0 %v3619, 17
      %v4100 = vpop.permute.xlu0 %4099
      %4101 = vrot.lane.b32.xlu0 %v3620, 17
      %v4102 = vpop.permute.xlu0 %4101
      %4103 = vrot.lane.b32.xlu0 %v3604, 17
      %v4104 = vpop.permute.xlu0 %4103
      %4105 = vrot.lane.b32.xlu0 %v3622, 17
      %v4106 = vpop.permute.xlu0 %4105
      %4107 = vrot.lane.b32.xlu0 %v3653, 17
      %v4108 = vpop.permute.xlu0 %4107
      %4109 = vrot.lane.b32.xlu0 %v3654, 17
      %v4110 = vpop.permute.xlu0 %4109
      %4111 = vrot.lane.b32.xlu0 %v3655, 17
      %v4112 = vpop.permute.xlu0 %4111
      %4113 = vrot.lane.b32.xlu0 %v3628, 17
      %v4114 = vpop.permute.xlu0 %4113
      %4115 = vrot.lane.b32.xlu0 %v3630, 17
      %v4116 = vpop.permute.xlu0 %4115
      %4117 = vrot.lane.b32.xlu0 %v3656, 17
      %v4118 = vpop.permute.xlu0 %4117
      %4119 = vrot.lane.b32.xlu0 %v3657, 17
      %v4120 = vpop.permute.xlu0 %4119
      %4121 = vrot.lane.b32.xlu0 %v3658, 17
      %v4122 = vpop.permute.xlu0 %4121
      %4123 = vrot.lane.b32.xlu0 %v3636, 17
      %v4124 = vpop.permute.xlu0 %4123
      %4125 = vrot.lane.b32.xlu0 %v3638, 17
      %v4126 = vpop.permute.xlu0 %4125
      %4127 = vrot.lane.b32.xlu0 %v3659, 17
      %v4128 = vpop.permute.xlu0 %4127
      %4129 = vrot.lane.b32.xlu0 %v3660, 17
      %v4130 = vpop.permute.xlu0 %4129
      %4131 = vrot.lane.b32.xlu0 %v3661, 17
      %v4132 = vpop.permute.xlu0 %4131
      %4133 = vrot.lane.b32.xlu0 %v3644, 17
      %v4134 = vpop.permute.xlu0 %4133
      %4135 = vrot.lane.b32.xlu0 %v3646, 17
      %v4136 = vpop.permute.xlu0 %4135
      %4137 = vrot.lane.b32.xlu0 %v3662, 17
      %v4138 = vpop.permute.xlu0 %4137
      %4139 = vrot.lane.b32.xlu0 %v3663, 17
      %v4140 = vpop.permute.xlu0 %4139
      %4141 = vrot.lane.b32.xlu0 %v3664, 17
      %v4142 = vpop.permute.xlu0 %4141
      %4143 = vrot.lane.b32.xlu0 %v3652, 17
      %v4144 = vpop.permute.xlu0 %4143
      %4145 = vrot.lane.b32.xlu0 %v3682, 17
      %v4146 = vpop.permute.xlu0 %4145
      %4147 = vrot.lane.b32.xlu0 %v3713, 17
      %v4148 = vpop.permute.xlu0 %4147
      %4149 = vrot.lane.b32.xlu0 %v3714, 17
      %v4150 = vpop.permute.xlu0 %4149
      %4151 = vrot.lane.b32.xlu0 %v3715, 17
      %v4152 = vpop.permute.xlu0 %4151
      %4153 = vrot.lane.b32.xlu0 %v3688, 17
      %v4154 = vpop.permute.xlu0 %4153
      %4155 = vrot.lane.b32.xlu0 %v3690, 17
      %v4156 = vpop.permute.xlu0 %4155
      %4157 = vrot.lane.b32.xlu0 %v3716, 17
      %v4158 = vpop.permute.xlu0 %4157
      %4159 = vrot.lane.b32.xlu0 %v3717, 17
      %v4160 = vpop.permute.xlu0 %4159
      %4161 = vrot.lane.b32.xlu0 %v3718, 17
      %v4162 = vpop.permute.xlu0 %4161
      %4163 = vrot.lane.b32.xlu0 %v3696, 17
      %v4164 = vpop.permute.xlu0 %4163
      %4165 = vrot.lane.b32.xlu0 %v3698, 17
      %v4166 = vpop.permute.xlu0 %4165
      %4167 = vrot.lane.b32.xlu0 %v3719, 17
      %v4168 = vpop.permute.xlu0 %4167
      %4169 = vrot.lane.b32.xlu0 %v3720, 17
      %v4170 = vpop.permute.xlu0 %4169
      %4171 = vrot.lane.b32.xlu0 %v3721, 17
      %v4172 = vpop.permute.xlu0 %4171
      %4173 = vrot.lane.b32.xlu0 %v3704, 17
      %v4174 = vpop.permute.xlu0 %4173
      %4175 = vrot.lane.b32.xlu0 %v3706, 17
      %v4176 = vpop.permute.xlu0 %4175
      %4177 = vrot.lane.b32.xlu0 %v3722, 17
      %v4178 = vpop.permute.xlu0 %4177
      %4179 = vrot.lane.b32.xlu0 %v3723, 17
      %v4180 = vpop.permute.xlu0 %4179
      %4181 = vrot.lane.b32.xlu0 %v3724, 17
      %v4182 = vpop.permute.xlu0 %4181
      %4183 = vrot.lane.b32.xlu0 %v3712, 17
      %v4184 = vpop.permute.xlu0 %4183
      %4185 = vrot.lane.b32.xlu0 %v3742, 17
      %v4186 = vpop.permute.xlu0 %4185
      %4187 = vrot.lane.b32.xlu0 %v3773, 17
      %v4188 = vpop.permute.xlu0 %4187
      %4189 = vrot.lane.b32.xlu0 %v3774, 17
      %v4190 = vpop.permute.xlu0 %4189
      %4191 = vrot.lane.b32.xlu0 %v3775, 17
      %v4192 = vpop.permute.xlu0 %4191
      %4193 = vrot.lane.b32.xlu0 %v3748, 17
      %v4194 = vpop.permute.xlu0 %4193
      %4195 = vrot.lane.b32.xlu0 %v3750, 17
      %v4196 = vpop.permute.xlu0 %4195
      %4197 = vrot.lane.b32.xlu0 %v3776, 17
      %v4198 = vpop.permute.xlu0 %4197
      %4199 = vrot.lane.b32.xlu0 %v3777, 17
      %v4200 = vpop.permute.xlu0 %4199
      %4201 = vrot.lane.b32.xlu0 %v3778, 17
      %v4202 = vpop.permute.xlu0 %4201
      %4203 = vrot.lane.b32.xlu0 %v3756, 17
      %v4204 = vpop.permute.xlu0 %4203
      %4205 = vrot.lane.b32.xlu0 %v3758, 17
      %v4206 = vpop.permute.xlu0 %4205
      %4207 = vrot.lane.b32.xlu0 %v3779, 17
      %v4208 = vpop.permute.xlu0 %4207
      %4209 = vrot.lane.b32.xlu0 %v3780, 17
      %v4210 = vpop.permute.xlu0 %4209
      %4211 = vrot.lane.b32.xlu0 %v3781, 17
      %v4212 = vpop.permute.xlu0 %4211
      %4213 = vrot.lane.b32.xlu0 %v3764, 17
      %v4214 = vpop.permute.xlu0 %4213
      %4215 = vrot.lane.b32.xlu0 %v3766, 17
      %v4216 = vpop.permute.xlu0 %4215
      %4217 = vrot.lane.b32.xlu0 %v3782, 17
      %v4218 = vpop.permute.xlu0 %4217
      %4219 = vrot.lane.b32.xlu0 %v3783, 17
      %v4220 = vpop.permute.xlu0 %4219
      %4221 = vrot.lane.b32.xlu0 %v3784, 17
      %v4222 = vpop.permute.xlu0 %4221
      %4223 = vrot.lane.b32.xlu0 %v3772, 17
      %v4224 = vpop.permute.xlu0 %4223
      %4225 = vrot.lane.b32.xlu0 %v3786, 17
      %v4226 = vpop.permute.xlu0 %4225
      %4227 = vrot.lane.b32.xlu0 %v3817, 17
      %v4228 = vpop.permute.xlu0 %4227
      %4229 = vrot.lane.b32.xlu0 %v3818, 17
      %v4230 = vpop.permute.xlu0 %4229
      %4231 = vrot.lane.b32.xlu0 %v3819, 17
      %v4232 = vpop.permute.xlu0 %4231
      %4233 = vrot.lane.b32.xlu0 %v3792, 17
      %v4234 = vpop.permute.xlu0 %4233
      %4235 = vrot.lane.b32.xlu0 %v3794, 17
      %v4236 = vpop.permute.xlu0 %4235
      %4237 = vrot.lane.b32.xlu0 %v3820, 17
      %v4238 = vpop.permute.xlu0 %4237
      %4239 = vrot.lane.b32.xlu0 %v3821, 17
      %v4240 = vpop.permute.xlu0 %4239
      %4241 = vrot.lane.b32.xlu0 %v3822, 17
      %v4242 = vpop.permute.xlu0 %4241
      %4243 = vrot.lane.b32.xlu0 %v3800, 17
      %v4244 = vpop.permute.xlu0 %4243
      %4245 = vrot.lane.b32.xlu0 %v3802, 17
      %v4246 = vpop.permute.xlu0 %4245
      %4247 = vrot.lane.b32.xlu0 %v3823, 17
      %v4248 = vpop.permute.xlu0 %4247
      %4249 = vrot.lane.b32.xlu0 %v3824, 17
      %v4250 = vpop.permute.xlu0 %4249
      %4251 = vrot.lane.b32.xlu0 %v3825, 17
      %v4252 = vpop.permute.xlu0 %4251
      %4253 = vrot.lane.b32.xlu0 %v3808, 17
      %v4254 = vpop.permute.xlu0 %4253
      %4255 = vrot.lane.b32.xlu0 %v3810, 17
      %v4256 = vpop.permute.xlu0 %4255
      %4257 = vrot.lane.b32.xlu0 %v3826, 17
      %v4258 = vpop.permute.xlu0 %4257
      %4259 = vrot.lane.b32.xlu0 %v3827, 17
      %v4260 = vpop.permute.xlu0 %4259
      %4261 = vrot.lane.b32.xlu0 %v3828, 17
      %v4262 = vpop.permute.xlu0 %4261
      %4263 = vrot.lane.b32.xlu0 %v3816, 17
      %v4264 = vpop.permute.xlu0 %4263
      %4265 = vrot.lane.b32.xlu0 %v3846, 17
      %v4266 = vpop.permute.xlu0 %4265
      %4267 = vrot.lane.b32.xlu0 %v3877, 17
      %v4268 = vpop.permute.xlu0 %4267
      %4269 = vrot.lane.b32.xlu0 %v3878, 17
      %v4270 = vpop.permute.xlu0 %4269
      %4271 = vrot.lane.b32.xlu0 %v3879, 17
      %v4272 = vpop.permute.xlu0 %4271
      %4273 = vrot.lane.b32.xlu0 %v3852, 17
      %v4274 = vpop.permute.xlu0 %4273
      %4275 = vrot.lane.b32.xlu0 %v3854, 17
      %v4276 = vpop.permute.xlu0 %4275
      %4277 = vrot.lane.b32.xlu0 %v3880, 17
      %v4278 = vpop.permute.xlu0 %4277
      %4279 = vrot.lane.b32.xlu0 %v3881, 17
      %v4280 = vpop.permute.xlu0 %4279
      %4281 = vrot.lane.b32.xlu0 %v3882, 17
      %v4282 = vpop.permute.xlu0 %4281
      %4283 = vrot.lane.b32.xlu0 %v3860, 17
      %v4284 = vpop.permute.xlu0 %4283
      %4285 = vrot.lane.b32.xlu0 %v3862, 17
      %v4286 = vpop.permute.xlu0 %4285
      %4287 = vrot.lane.b32.xlu0 %v3883, 17
      %v4288 = vpop.permute.xlu0 %4287
      %4289 = vrot.lane.b32.xlu0 %v3884, 17
      %v4290 = vpop.permute.xlu0 %4289
      %4291 = vrot.lane.b32.xlu0 %v3885, 17
      %v4292 = vpop.permute.xlu0 %4291
      %4293 = vrot.lane.b32.xlu0 %v3868, 17
      %v4294 = vpop.permute.xlu0 %4293
      %4295 = vrot.lane.b32.xlu0 %v3870, 17
      %v4296 = vpop.permute.xlu0 %4295
      %4297 = vrot.lane.b32.xlu0 %v3886, 17
      %v4298 = vpop.permute.xlu0 %4297
      %4299 = vrot.lane.b32.xlu0 %v3887, 17
      %v4300 = vpop.permute.xlu0 %4299
      %4301 = vrot.lane.b32.xlu0 %v3888, 17
      %v4302 = vpop.permute.xlu0 %4301
      %4303 = vrot.lane.b32.xlu0 %v3876, 17
      %v4304 = vpop.permute.xlu0 %4303
      %v4305 = vsel %vm840, %v3946, %v3948
      %v4306 = vsel %vm840, %v3948, %v3950
      %v4307 = vsel %vm840, %v3950, %v3952
      %v4308 = vsel %vm840, %v3952, %v3954
      %v4309 = vsel %vm840, %v3956, %v3958
      %v4310 = vsel %vm840, %v3958, %v3960
      %v4311 = vsel %vm840, %v3960, %v3962
      %v4312 = vsel %vm840, %v3962, %v3964
      %v4313 = vsel %vm840, %v3966, %v3968
      %v4314 = vsel %vm840, %v3968, %v3970
      %v4315 = vsel %vm840, %v3970, %v3972
      %v4316 = vsel %vm840, %v3972, %v3974
      %v4317 = vsel %vm840, %v3976, %v3978
      %v4318 = vsel %vm840, %v3978, %v3980
      %v4319 = vsel %vm840, %v3980, %v3982
      %v4320 = vsel %vm840, %v3982, %v3984
      %v4321 = vsel %vm840, %v3986, %v3988
      %v4322 = vsel %vm840, %v3988, %v3990
      %v4323 = vsel %vm840, %v3990, %v3992
      %v4324 = vsel %vm840, %v3992, %v3994
      %v4325 = vsel %vm840, %v3996, %v3998
      %v4326 = vsel %vm840, %v3998, %v4000
      %v4327 = vsel %vm840, %v4000, %v4002
      %v4328 = vsel %vm840, %v4002, %v4004
      %v4329 = vsel %vm840, %v4006, %v4008
      %v4330 = vsel %vm840, %v4008, %v4010
      %v4331 = vsel %vm840, %v4010, %v4012
      %v4332 = vsel %vm840, %v4012, %v4014
      %v4333 = vsel %vm840, %v4016, %v4018
      %v4334 = vsel %vm840, %v4018, %v4020
      %v4335 = vsel %vm840, %v4020, %v4022
      %v4336 = vsel %vm840, %v4022, %v4024
      %v4337 = vsel %vm840, %v4026, %v4028
      %v4338 = vsel %vm840, %v4028, %v4030
      %v4339 = vsel %vm840, %v4030, %v4032
      %v4340 = vsel %vm840, %v4032, %v4034
      %v4341 = vsel %vm840, %v4036, %v4038
      %v4342 = vsel %vm840, %v4038, %v4040
      %v4343 = vsel %vm840, %v4040, %v4042
      %v4344 = vsel %vm840, %v4042, %v4044
      %v4345 = vsel %vm840, %v4046, %v4048
      %v4346 = vsel %vm840, %v4048, %v4050
      %v4347 = vsel %vm840, %v4050, %v4052
      %v4348 = vsel %vm840, %v4052, %v4054
      %v4349 = vsel %vm840, %v4056, %v4058
      %v4350 = vsel %vm840, %v4058, %v4060
      %v4351 = vsel %vm840, %v4060, %v4062
      %v4352 = vsel %vm840, %v4062, %v4064
      %v4353 = vsel %vm840, %v4066, %v4068
      %v4354 = vsel %vm840, %v4068, %v4070
      %v4355 = vsel %vm840, %v4070, %v4072
      %v4356 = vsel %vm840, %v4072, %v4074
      %v4357 = vsel %vm840, %v4076, %v4078
      %v4358 = vsel %vm840, %v4078, %v4080
      %v4359 = vsel %vm840, %v4080, %v4082
      %v4360 = vsel %vm840, %v4082, %v4084
      %v4361 = vsel %vm840, %v4086, %v4088
      %v4362 = vsel %vm840, %v4088, %v4090
      %v4363 = vsel %vm840, %v4090, %v4092
      %v4364 = vsel %vm840, %v4092, %v4094
      %v4365 = vsel %vm840, %v4096, %v4098
      %v4366 = vsel %vm840, %v4098, %v4100
      %v4367 = vsel %vm840, %v4100, %v4102
      %v4368 = vsel %vm840, %v4102, %v4104
      %v4369 = vsel %vm840, %v4106, %v4108
      %v4370 = vsel %vm840, %v4108, %v4110
      %v4371 = vsel %vm840, %v4110, %v4112
      %v4372 = vsel %vm840, %v4112, %v4114
      %v4373 = vsel %vm840, %v4116, %v4118
      %v4374 = vsel %vm840, %v4118, %v4120
      %v4375 = vsel %vm840, %v4120, %v4122
      %v4376 = vsel %vm840, %v4122, %v4124
      %v4377 = vsel %vm840, %v4126, %v4128
      %v4378 = vsel %vm840, %v4128, %v4130
      %v4379 = vsel %vm840, %v4130, %v4132
      %v4380 = vsel %vm840, %v4132, %v4134
      %v4381 = vsel %vm840, %v4136, %v4138
      %v4382 = vsel %vm840, %v4138, %v4140
      %v4383 = vsel %vm840, %v4140, %v4142
      %v4384 = vsel %vm840, %v4142, %v4144
      %v4385 = vsel %vm840, %v4146, %v4148
      %v4386 = vsel %vm840, %v4148, %v4150
      %v4387 = vsel %vm840, %v4150, %v4152
      %v4388 = vsel %vm840, %v4152, %v4154
      %v4389 = vsel %vm840, %v4156, %v4158
      %v4390 = vsel %vm840, %v4158, %v4160
      %v4391 = vsel %vm840, %v4160, %v4162
      %v4392 = vsel %vm840, %v4162, %v4164
      %v4393 = vsel %vm840, %v4166, %v4168
      %v4394 = vsel %vm840, %v4168, %v4170
      %v4395 = vsel %vm840, %v4170, %v4172
      %v4396 = vsel %vm840, %v4172, %v4174
      %v4397 = vsel %vm840, %v4176, %v4178
      %v4398 = vsel %vm840, %v4178, %v4180
      %v4399 = vsel %vm840, %v4180, %v4182
      %v4400 = vsel %vm840, %v4182, %v4184
      %v4401 = vsel %vm840, %v4186, %v4188
      %v4402 = vsel %vm840, %v4188, %v4190
      %v4403 = vsel %vm840, %v4190, %v4192
      %v4404 = vsel %vm840, %v4192, %v4194
      %v4405 = vsel %vm840, %v4196, %v4198
      %v4406 = vsel %vm840, %v4198, %v4200
      %v4407 = vsel %vm840, %v4200, %v4202
      %v4408 = vsel %vm840, %v4202, %v4204
      %v4409 = vsel %vm840, %v4206, %v4208
      %v4410 = vsel %vm840, %v4208, %v4210
      %v4411 = vsel %vm840, %v4210, %v4212
      %v4412 = vsel %vm840, %v4212, %v4214
      %v4413 = vsel %vm840, %v4216, %v4218
      %v4414 = vsel %vm840, %v4218, %v4220
      %v4415 = vsel %vm840, %v4220, %v4222
      %v4416 = vsel %vm840, %v4222, %v4224
      %v4417 = vsel %vm840, %v4226, %v4228
      %v4418 = vsel %vm840, %v4228, %v4230
      %v4419 = vsel %vm840, %v4230, %v4232
      %v4420 = vsel %vm840, %v4232, %v4234
      %v4421 = vsel %vm840, %v4236, %v4238
      %v4422 = vsel %vm840, %v4238, %v4240
      %v4423 = vsel %vm840, %v4240, %v4242
      %v4424 = vsel %vm840, %v4242, %v4244
      %v4425 = vsel %vm840, %v4246, %v4248
      %v4426 = vsel %vm840, %v4248, %v4250
      %v4427 = vsel %vm840, %v4250, %v4252
      %v4428 = vsel %vm840, %v4252, %v4254
      %v4429 = vsel %vm840, %v4256, %v4258
      %v4430 = vsel %vm840, %v4258, %v4260
      %v4431 = vsel %vm840, %v4260, %v4262
      %v4432 = vsel %vm840, %v4262, %v4264
      %v4433 = vsel %vm840, %v4266, %v4268
      %v4434 = vsel %vm840, %v4268, %v4270
      %v4435 = vsel %vm840, %v4270, %v4272
      %v4436 = vsel %vm840, %v4272, %v4274
      %v4437 = vsel %vm840, %v4276, %v4278
      %v4438 = vsel %vm840, %v4278, %v4280
      %v4439 = vsel %vm840, %v4280, %v4282
      %v4440 = vsel %vm840, %v4282, %v4284
      %v4441 = vsel %vm840, %v4286, %v4288
      %v4442 = vsel %vm840, %v4288, %v4290
      %v4443 = vsel %vm840, %v4290, %v4292
      %v4444 = vsel %vm840, %v4292, %v4294
      %v4445 = vsel %vm840, %v4296, %v4298
      %v4446 = vsel %vm840, %v4298, %v4300
      %v4447 = vsel %vm840, %v4300, %v4302
      %v4448 = vsel %vm840, %v4302, %v4304
      %vm4593 = vcmask 261120
      %v4595 = vsel %vm4593, %v3891, 0
      %v4598 = vsel %vm4593, %v3894, 0
      %v4601 = vsel %vm4593, %v3897, 0
      %v4604 = vsel %vm4593, %v3900, 0
      %4606 = vmatpush.msra.mxu0 %v4365
      %4607 = vmatpush.msra.mxu0 %v4361
      %4608 = vmatpush.msra.mxu0 %v4357
      %4609 = vmatpush.msra.mxu0 %v4353
      %4610 = vmatpush.msra.mxu0 %v4349
      %4611 = vmatpush.msra.mxu0 %v4345
      %4612 = vmatpush.msra.mxu0 %v4341
      %4613 = vmatpush.msra.mxu0 %v4337
      %4614 = vmatpush.msra.mxu0 %v4333
      %4615 = vmatpush.msra.mxu0 %v4329
      %4616 = vmatpush.msra.mxu0 %v4325
      %4617 = vmatpush.msra.mxu0 %v4321
      %4618 = vmatpush.msra.mxu0 %v4317
      %4619 = vmatpush.msra.mxu0 %v4313
      %4620 = vmatpush.msra.mxu0 %v4309
      %4621 = vmatpush.msra.mxu0 %v4305
      %4622 = vmatmul.f32.gmra.mxu0 %v3889
      %v4623 = vpop.f32.mrf.mxu0
      %v4624 = vadd.f32 %v3908, %v4623
      %4625 = vmatmul.f32.gmra.mxu0 %v3892
      %v4626 = vpop.f32.mrf.mxu0
      %v4627 = vadd.f32 %v3913, %v4626
      %4628 = vmatmul.f32.gmra.mxu0 %v3895
      %v4629 = vpop.f32.mrf.mxu0
      %v4630 = vadd.f32 %v3918, %v4629
      %4631 = vmatmul.f32.gmra.mxu0 %v3898
      %v4632 = vpop.f32.mrf.mxu0
      %v4633 = vadd.f32 %v3923, %v4632
      %4634 = vdwg.mxu0
      %4635 = vmatpush.msra.mxu0 %v4429
      %4636 = vmatpush.msra.mxu0 %v4425
      %4637 = vmatpush.msra.mxu0 %v4421
      %4638 = vmatpush.msra.mxu0 %v4417
      %4639 = vmatpush.msra.mxu0 %v4413
      %4640 = vmatpush.msra.mxu0 %v4409
      %4641 = vmatpush.msra.mxu0 %v4405
      %4642 = vmatpush.msra.mxu0 %v4401
      %4643 = vmatpush.msra.mxu0 %v4397
      %4644 = vmatpush.msra.mxu0 %v4393
      %4645 = vmatpush.msra.mxu0 %v4389
      %4646 = vmatpush.msra.mxu0 %v4385
      %4647 = vmatpush.msra.mxu0 %v4381
      %4648 = vmatpush.msra.mxu0 %v4377
      %4649 = vmatpush.msra.mxu0 %v4373
      %4650 = vmatpush.msra.mxu0 %v4369
      %4651 = vmatmul.f32.gmra.mxu0 %v3890
      %v4652 = vpop.f32.mrf.mxu0
      %v4653 = vadd.f32 %v4624, %v4652
      %4654 = vmatmul.f32.gmra.mxu0 %v3893
      %v4655 = vpop.f32.mrf.mxu0
      %v4656 = vadd.f32 %v4627, %v4655
      %4657 = vmatmul.f32.gmra.mxu0 %v3896
      %v4658 = vpop.f32.mrf.mxu0
      %v4659 = vadd.f32 %v4630, %v4658
      %4660 = vmatmul.f32.gmra.mxu0 %v3899
      %v4661 = vpop.f32.mrf.mxu0
      %v4662 = vadd.f32 %v4633, %v4661
      %4663 = vdwg.mxu0
      %4664 = vmatpush.msra.mxu0 0.0
      %4665 = vmatpush.msra.mxu0 0.0
      %4666 = vmatpush.msra.mxu0 0.0
      %4667 = vmatpush.msra.mxu0 0.0
      %4668 = vmatpush.msra.mxu0 0.0
      %4669 = vmatpush.msra.mxu0 0.0
      %4670 = vmatpush.msra.mxu0 0.0
      %4671 = vmatpush.msra.mxu0 0.0
      %4672 = vmatpush.msra.mxu0 0.0
      %4673 = vmatpush.msra.mxu0 0.0
      %4674 = vmatpush.msra.mxu0 0.0
      %4675 = vmatpush.msra.mxu0 0.0
      %4676 = vmatpush.msra.mxu0 %v4445
      %4677 = vmatpush.msra.mxu0 %v4441
      %4678 = vmatpush.msra.mxu0 %v4437
      %4679 = vmatpush.msra.mxu0 %v4433
      %4680 = vmatmul.f32.gmra.mxu0 %v4595
      %v4681 = vpop.f32.mrf.mxu0
      %v4682 = vadd.f32 %v4653, %v4681
      %4683 = vmatmul.f32.gmra.mxu0 %v4598
      %v4684 = vpop.f32.mrf.mxu0
      %v4685 = vadd.f32 %v4656, %v4684
      %4686 = vmatmul.f32.gmra.mxu0 %v4601
      %v4687 = vpop.f32.mrf.mxu0
      %v4688 = vadd.f32 %v4659, %v4687
      %4689 = vmatmul.f32.gmra.mxu0 %v4604
      %v4690 = vpop.f32.mrf.mxu0
      %v4691 = vadd.f32 %v4662, %v4690
      %4692 = vdwg.mxu0
      %4693 = vmatpush.msra.mxu0 %v4366
      %4694 = vmatpush.msra.mxu0 %v4362
      %4695 = vmatpush.msra.mxu0 %v4358
      %4696 = vmatpush.msra.mxu0 %v4354
      %4697 = vmatpush.msra.mxu0 %v4350
      %4698 = vmatpush.msra.mxu0 %v4346
      %4699 = vmatpush.msra.mxu0 %v4342
      %4700 = vmatpush.msra.mxu0 %v4338
      %4701 = vmatpush.msra.mxu0 %v4334
      %4702 = vmatpush.msra.mxu0 %v4330
      %4703 = vmatpush.msra.mxu0 %v4326
      %4704 = vmatpush.msra.mxu0 %v4322
      %4705 = vmatpush.msra.mxu0 %v4318
      %4706 = vmatpush.msra.mxu0 %v4314
      %4707 = vmatpush.msra.mxu0 %v4310
      %4708 = vmatpush.msra.mxu0 %v4306
      %4709 = vmatmul.f32.gmra.mxu0 %v3889
      %v4710 = vpop.f32.mrf.mxu0
      %v4711 = vadd.f32 %v3908, %v4710
      %4712 = vmatmul.f32.gmra.mxu0 %v3892
      %v4713 = vpop.f32.mrf.mxu0
      %v4714 = vadd.f32 %v3913, %v4713
      %4715 = vmatmul.f32.gmra.mxu0 %v3895
      %v4716 = vpop.f32.mrf.mxu0
      %v4717 = vadd.f32 %v3918, %v4716
      %4718 = vmatmul.f32.gmra.mxu0 %v3898
      %v4719 = vpop.f32.mrf.mxu0
      %v4720 = vadd.f32 %v3923, %v4719
      %4721 = vdwg.mxu0
      %4722 = vmatpush.msra.mxu0 %v4430
      %4723 = vmatpush.msra.mxu0 %v4426
      %4724 = vmatpush.msra.mxu0 %v4422
      %4725 = vmatpush.msra.mxu0 %v4418
      %4726 = vmatpush.msra.mxu0 %v4414
      %4727 = vmatpush.msra.mxu0 %v4410
      %4728 = vmatpush.msra.mxu0 %v4406
      %4729 = vmatpush.msra.mxu0 %v4402
      %4730 = vmatpush.msra.mxu0 %v4398
      %4731 = vmatpush.msra.mxu0 %v4394
      %4732 = vmatpush.msra.mxu0 %v4390
      %4733 = vmatpush.msra.mxu0 %v4386
      %4734 = vmatpush.msra.mxu0 %v4382
      %4735 = vmatpush.msra.mxu0 %v4378
      %4736 = vmatpush.msra.mxu0 %v4374
      %4737 = vmatpush.msra.mxu0 %v4370
      %4738 = vmatmul.f32.gmra.mxu0 %v3890
      %v4739 = vpop.f32.mrf.mxu0
      %v4740 = vadd.f32 %v4711, %v4739
      %4741 = vmatmul.f32.gmra.mxu0 %v3893
      %v4742 = vpop.f32.mrf.mxu0
      %v4743 = vadd.f32 %v4714, %v4742
      %4744 = vmatmul.f32.gmra.mxu0 %v3896
      %v4745 = vpop.f32.mrf.mxu0
      %v4746 = vadd.f32 %v4717, %v4745
      %4747 = vmatmul.f32.gmra.mxu0 %v3899
      %v4748 = vpop.f32.mrf.mxu0
      %v4749 = vadd.f32 %v4720, %v4748
      %4750 = vdwg.mxu0
      %4751 = vmatpush.msra.mxu0 0.0
      %4752 = vmatpush.msra.mxu0 0.0
      %4753 = vmatpush.msra.mxu0 0.0
      %4754 = vmatpush.msra.mxu0 0.0
      %4755 = vmatpush.msra.mxu0 0.0
      %4756 = vmatpush.msra.mxu0 0.0
      %4757 = vmatpush.msra.mxu0 0.0
      %4758 = vmatpush.msra.mxu0 0.0
      %4759 = vmatpush.msra.mxu0 0.0
      %4760 = vmatpush.msra.mxu0 0.0
      %4761 = vmatpush.msra.mxu0 0.0
      %4762 = vmatpush.msra.mxu0 0.0
      %4763 = vmatpush.msra.mxu0 %v4446
      %4764 = vmatpush.msra.mxu0 %v4442
      %4765 = vmatpush.msra.mxu0 %v4438
      %4766 = vmatpush.msra.mxu0 %v4434
      %4767 = vmatmul.f32.gmra.mxu0 %v4595
      %v4768 = vpop.f32.mrf.mxu0
      %v4769 = vadd.f32 %v4740, %v4768
      %4770 = vmatmul.f32.gmra.mxu0 %v4598
      %v4771 = vpop.f32.mrf.mxu0
      %v4772 = vadd.f32 %v4743, %v4771
      %4773 = vmatmul.f32.gmra.mxu0 %v4601
      %v4774 = vpop.f32.mrf.mxu0
      %v4775 = vadd.f32 %v4746, %v4774
      %4776 = vmatmul.f32.gmra.mxu0 %v4604
      %v4777 = vpop.f32.mrf.mxu0
      %v4778 = vadd.f32 %v4749, %v4777
      %4779 = vdwg.mxu0
      %4780 = vmatpush.msra.mxu0 %v4367
      %4781 = vmatpush.msra.mxu0 %v4363
      %4782 = vmatpush.msra.mxu0 %v4359
      %4783 = vmatpush.msra.mxu0 %v4355
      %4784 = vmatpush.msra.mxu0 %v4351
      %4785 = vmatpush.msra.mxu0 %v4347
      %4786 = vmatpush.msra.mxu0 %v4343
      %4787 = vmatpush.msra.mxu0 %v4339
      %4788 = vmatpush.msra.mxu0 %v4335
      %4789 = vmatpush.msra.mxu0 %v4331
      %4790 = vmatpush.msra.mxu0 %v4327
      %4791 = vmatpush.msra.mxu0 %v4323
      %4792 = vmatpush.msra.mxu0 %v4319
      %4793 = vmatpush.msra.mxu0 %v4315
      %4794 = vmatpush.msra.mxu0 %v4311
      %4795 = vmatpush.msra.mxu0 %v4307
      %4796 = vmatmul.f32.gmra.mxu0 %v3889
      %v4797 = vpop.f32.mrf.mxu0
      %v4798 = vadd.f32 %v3908, %v4797
      %4799 = vmatmul.f32.gmra.mxu0 %v3892
      %v4800 = vpop.f32.mrf.mxu0
      %v4801 = vadd.f32 %v3913, %v4800
      %4802 = vmatmul.f32.gmra.mxu0 %v3895
      %v4803 = vpop.f32.mrf.mxu0
      %v4804 = vadd.f32 %v3918, %v4803
      %4805 = vmatmul.f32.gmra.mxu0 %v3898
      %v4806 = vpop.f32.mrf.mxu0
      %v4807 = vadd.f32 %v3923, %v4806
      %4808 = vdwg.mxu0
      %4809 = vmatpush.msra.mxu0 %v4431
      %4810 = vmatpush.msra.mxu0 %v4427
      %4811 = vmatpush.msra.mxu0 %v4423
      %4812 = vmatpush.msra.mxu0 %v4419
      %4813 = vmatpush.msra.mxu0 %v4415
      %4814 = vmatpush.msra.mxu0 %v4411
      %4815 = vmatpush.msra.mxu0 %v4407
      %4816 = vmatpush.msra.mxu0 %v4403
      %4817 = vmatpush.msra.mxu0 %v4399
      %4818 = vmatpush.msra.mxu0 %v4395
      %4819 = vmatpush.msra.mxu0 %v4391
      %4820 = vmatpush.msra.mxu0 %v4387
      %4821 = vmatpush.msra.mxu0 %v4383
      %4822 = vmatpush.msra.mxu0 %v4379
      %4823 = vmatpush.msra.mxu0 %v4375
      %4824 = vmatpush.msra.mxu0 %v4371
      %4825 = vmatmul.f32.gmra.mxu0 %v3890
      %v4826 = vpop.f32.mrf.mxu0
      %v4827 = vadd.f32 %v4798, %v4826
      %4828 = vmatmul.f32.gmra.mxu0 %v3893
      %v4829 = vpop.f32.mrf.mxu0
      %v4830 = vadd.f32 %v4801, %v4829
      %4831 = vmatmul.f32.gmra.mxu0 %v3896
      %v4832 = vpop.f32.mrf.mxu0
      %v4833 = vadd.f32 %v4804, %v4832
      %4834 = vmatmul.f32.gmra.mxu0 %v3899
      %v4835 = vpop.f32.mrf.mxu0
      %v4836 = vadd.f32 %v4807, %v4835
      %4837 = vdwg.mxu0
      %4838 = vmatpush.msra.mxu0 0.0
      %4839 = vmatpush.msra.mxu0 0.0
      %4840 = vmatpush.msra.mxu0 0.0
      %4841 = vmatpush.msra.mxu0 0.0
      %4842 = vmatpush.msra.mxu0 0.0
      %4843 = vmatpush.msra.mxu0 0.0
      %4844 = vmatpush.msra.mxu0 0.0
      %4845 = vmatpush.msra.mxu0 0.0
      %4846 = vmatpush.msra.mxu0 0.0
      %4847 = vmatpush.msra.mxu0 0.0
      %4848 = vmatpush.msra.mxu0 0.0
      %4849 = vmatpush.msra.mxu0 0.0
      %4850 = vmatpush.msra.mxu0 %v4447
      %4851 = vmatpush.msra.mxu0 %v4443
      %4852 = vmatpush.msra.mxu0 %v4439
      %4853 = vmatpush.msra.mxu0 %v4435
      %4854 = vmatmul.f32.gmra.mxu0 %v4595
      %v4855 = vpop.f32.mrf.mxu0
      %v4856 = vadd.f32 %v4827, %v4855
      %4857 = vmatmul.f32.gmra.mxu0 %v4598
      %v4858 = vpop.f32.mrf.mxu0
      %v4859 = vadd.f32 %v4830, %v4858
      %4860 = vmatmul.f32.gmra.mxu0 %v4601
      %v4861 = vpop.f32.mrf.mxu0
      %v4862 = vadd.f32 %v4833, %v4861
      %4863 = vmatmul.f32.gmra.mxu0 %v4604
      %v4864 = vpop.f32.mrf.mxu0
      %v4865 = vadd.f32 %v4836, %v4864
      %4866 = vdwg.mxu0
      %4867 = vmatpush.msra.mxu0 %v4368
      %4868 = vmatpush.msra.mxu0 %v4364
      %4869 = vmatpush.msra.mxu0 %v4360
      %4870 = vmatpush.msra.mxu0 %v4356
      %4871 = vmatpush.msra.mxu0 %v4352
      %4872 = vmatpush.msra.mxu0 %v4348
      %4873 = vmatpush.msra.mxu0 %v4344
      %4874 = vmatpush.msra.mxu0 %v4340
      %4875 = vmatpush.msra.mxu0 %v4336
      %4876 = vmatpush.msra.mxu0 %v4332
      %4877 = vmatpush.msra.mxu0 %v4328
      %4878 = vmatpush.msra.mxu0 %v4324
      %4879 = vmatpush.msra.mxu0 %v4320
      %4880 = vmatpush.msra.mxu0 %v4316
      %4881 = vmatpush.msra.mxu0 %v4312
      %4882 = vmatpush.msra.mxu0 %v4308
      %4883 = vmatmul.f32.gmra.mxu0 %v3889
      %v4884 = vpop.f32.mrf.mxu0
      %v4885 = vadd.f32 %v3908, %v4884
      %4886 = vmatmul.f32.gmra.mxu0 %v3892
      %v4887 = vpop.f32.mrf.mxu0
      %v4888 = vadd.f32 %v3913, %v4887
      %4889 = vmatmul.f32.gmra.mxu0 %v3895
      %v4890 = vpop.f32.mrf.mxu0
      %v4891 = vadd.f32 %v3918, %v4890
      %4892 = vmatmul.f32.gmra.mxu0 %v3898
      %v4893 = vpop.f32.mrf.mxu0
      %v4894 = vadd.f32 %v3923, %v4893
      %4895 = vdwg.mxu0
      %4896 = vmatpush.msra.mxu0 %v4432
      %4897 = vmatpush.msra.mxu0 %v4428
      %4898 = vmatpush.msra.mxu0 %v4424
      %4899 = vmatpush.msra.mxu0 %v4420
      %4900 = vmatpush.msra.mxu0 %v4416
      %4901 = vmatpush.msra.mxu0 %v4412
      %4902 = vmatpush.msra.mxu0 %v4408
      %4903 = vmatpush.msra.mxu0 %v4404
      %4904 = vmatpush.msra.mxu0 %v4400
      %4905 = vmatpush.msra.mxu0 %v4396
      %4906 = vmatpush.msra.mxu0 %v4392
      %4907 = vmatpush.msra.mxu0 %v4388
      %4908 = vmatpush.msra.mxu0 %v4384
      %4909 = vmatpush.msra.mxu0 %v4380
      %4910 = vmatpush.msra.mxu0 %v4376
      %4911 = vmatpush.msra.mxu0 %v4372
      %4912 = vmatmul.f32.gmra.mxu0 %v3890
      %v4913 = vpop.f32.mrf.mxu0
      %v4914 = vadd.f32 %v4885, %v4913
      %4915 = vmatmul.f32.gmra.mxu0 %v3893
      %v4916 = vpop.f32.mrf.mxu0
      %v4917 = vadd.f32 %v4888, %v4916
      %4918 = vmatmul.f32.gmra.mxu0 %v3896
      %v4919 = vpop.f32.mrf.mxu0
      %v4920 = vadd.f32 %v4891, %v4919
      %4921 = vmatmul.f32.gmra.mxu0 %v3899
      %v4922 = vpop.f32.mrf.mxu0
      %v4923 = vadd.f32 %v4894, %v4922
      %4924 = vdwg.mxu0
      %4925 = vmatpush.msra.mxu0 0.0
      %4926 = vmatpush.msra.mxu0 0.0
      %4927 = vmatpush.msra.mxu0 0.0
      %4928 = vmatpush.msra.mxu0 0.0
      %4929 = vmatpush.msra.mxu0 0.0
      %4930 = vmatpush.msra.mxu0 0.0
      %4931 = vmatpush.msra.mxu0 0.0
      %4932 = vmatpush.msra.mxu0 0.0
      %4933 = vmatpush.msra.mxu0 0.0
      %4934 = vmatpush.msra.mxu0 0.0
      %4935 = vmatpush.msra.mxu0 0.0
      %4936 = vmatpush.msra.mxu0 0.0
      %4937 = vmatpush.msra.mxu0 %v4448
      %4938 = vmatpush.msra.mxu0 %v4444
      %4939 = vmatpush.msra.mxu0 %v4440
      %4940 = vmatpush.msra.mxu0 %v4436
      %4941 = vmatmul.f32.gmra.mxu0 %v4595
      %v4942 = vpop.f32.mrf.mxu0
      %v4943 = vadd.f32 %v4914, %v4942
      %4944 = vmatmul.f32.gmra.mxu0 %v4598
      %v4945 = vpop.f32.mrf.mxu0
      %v4946 = vadd.f32 %v4917, %v4945
      %4947 = vmatmul.f32.gmra.mxu0 %v4601
      %v4948 = vpop.f32.mrf.mxu0
      %v4949 = vadd.f32 %v4920, %v4948
      %4950 = vmatmul.f32.gmra.mxu0 %v4604
      %v4951 = vpop.f32.mrf.mxu0
      %v4952 = vadd.f32 %v4923, %v4951
      %4953 = vdwg.mxu0
      %v4954 = vld [vmem:[%s12] sm:$0xff]
      %v4955 = vld [vmem:[%s12 + $0x8] sm:$0xff]
      %v4956 = vld [vmem:[%s12 + $0x10] sm:$0xff]
      %v4957 = vld [vmem:[%s12 + $0x18] sm:$0xff]
      %v4958 = vld [vmem:[%s13] sm:$0xff]
      %v4959 = vld [vmem:[%s13 + $0x8] sm:$0xff]
      %v4960 = vld [vmem:[%s13 + $0x10] sm:$0xff]
      %v4961 = vld [vmem:[%s13 + $0x18] sm:$0xff]
      %4963 = vset.pattern.permute.xlu0 0
      %4964 = vperm.xlu0 %4963, %v4958
      %v4965 = vpop.permute.xlu0 %4964
      %4968 = vset.pattern.permute.xlu0 0
      %4969 = vperm.xlu0 %4968, %v4959
      %v4970 = vpop.permute.xlu0 %4969
      %4973 = vset.pattern.permute.xlu0 0
      %4974 = vperm.xlu0 %4973, %v4960
      %v4975 = vpop.permute.xlu0 %4974
      %4978 = vset.pattern.permute.xlu0 0
      %4979 = vperm.xlu0 %4978, %v4961
      %v4980 = vpop.permute.xlu0 %4979
      %v4983 = vsel %vm1959, %v4954, 0
      %v4986 = vsel %vm1959, %v4955, 0
      %v4989 = vsel %vm1959, %v4956, 0
      %v4992 = vsel %vm1959, %v4957, 0
      %4994 = vmatpush.msra.mxu0 0.0
      %4995 = vmatpush.msra.mxu0 0.0
      %4996 = vmatpush.msra.mxu0 0.0
      %4997 = vmatpush.msra.mxu0 0.0
      %4998 = vmatpush.msra.mxu0 0.0
      %4999 = vmatpush.msra.mxu0 0.0
      %5000 = vmatpush.msra.mxu0 0.0
      %5001 = vmatpush.msra.mxu0 0.0
      %5002 = vmatpush.msra.mxu0 0.0
      %5003 = vmatpush.msra.mxu0 0.0
      %5004 = vmatpush.msra.mxu0 0.0
      %5005 = vmatpush.msra.mxu0 0.0
      %5006 = vmatpush.msra.mxu0 0.0
      %5007 = vmatpush.msra.mxu0 0.0
      %5008 = vmatpush.msra.mxu0 %v2283
      %5009 = vmatpush.msra.mxu0 %v2279
      %5010 = vmatmul.f32.gmra.mxu0 %v4983
      %v5011 = vpop.f32.mrf.mxu0
      %v5012 = vadd.f32 %v4965, %v5011
      %5013 = vmatmul.f32.gmra.mxu0 %v4986
      %v5014 = vpop.f32.mrf.mxu0
      %v5015 = vadd.f32 %v4970, %v5014
      %5016 = vmatmul.f32.gmra.mxu0 %v4989
      %v5017 = vpop.f32.mrf.mxu0
      %v5018 = vadd.f32 %v4975, %v5017
      %5019 = vmatmul.f32.gmra.mxu0 %v4992
      %v5020 = vpop.f32.mrf.mxu0
      %v5021 = vadd.f32 %v4980, %v5020
      %5022 = vdwg.mxu0
      %5023 = vmatpush.msra.mxu0 0.0
      %5024 = vmatpush.msra.mxu0 0.0
      %5025 = vmatpush.msra.mxu0 0.0
      %5026 = vmatpush.msra.mxu0 0.0
      %5027 = vmatpush.msra.mxu0 0.0
      %5028 = vmatpush.msra.mxu0 0.0
      %5029 = vmatpush.msra.mxu0 0.0
      %5030 = vmatpush.msra.mxu0 0.0
      %5031 = vmatpush.msra.mxu0 0.0
      %5032 = vmatpush.msra.mxu0 0.0
      %5033 = vmatpush.msra.mxu0 0.0
      %5034 = vmatpush.msra.mxu0 0.0
      %5035 = vmatpush.msra.mxu0 0.0
      %5036 = vmatpush.msra.mxu0 0.0
      %5037 = vmatpush.msra.mxu0 %v2284
      %5038 = vmatpush.msra.mxu0 %v2280
      %5039 = vmatmul.f32.gmra.mxu0 %v4983
      %v5040 = vpop.f32.mrf.mxu0
      %v5041 = vadd.f32 %v4965, %v5040
      %5042 = vmatmul.f32.gmra.mxu0 %v4986
      %v5043 = vpop.f32.mrf.mxu0
      %v5044 = vadd.f32 %v4970, %v5043
      %5045 = vmatmul.f32.gmra.mxu0 %v4989
      %v5046 = vpop.f32.mrf.mxu0
      %v5047 = vadd.f32 %v4975, %v5046
      %5048 = vmatmul.f32.gmra.mxu0 %v4992
      %v5049 = vpop.f32.mrf.mxu0
      %v5050 = vadd.f32 %v4980, %v5049
      %5051 = vdwg.mxu0
      %5052 = vmatpush.msra.mxu0 0.0
      %5053 = vmatpush.msra.mxu0 0.0
      %5054 = vmatpush.msra.mxu0 0.0
      %5055 = vmatpush.msra.mxu0 0.0
      %5056 = vmatpush.msra.mxu0 0.0
      %5057 = vmatpush.msra.mxu0 0.0
      %5058 = vmatpush.msra.mxu0 0.0
      %5059 = vmatpush.msra.mxu0 0.0
      %5060 = vmatpush.msra.mxu0 0.0
      %5061 = vmatpush.msra.mxu0 0.0
      %5062 = vmatpush.msra.mxu0 0.0
      %5063 = vmatpush.msra.mxu0 0.0
      %5064 = vmatpush.msra.mxu0 0.0
      %5065 = vmatpush.msra.mxu0 0.0
      %5066 = vmatpush.msra.mxu0 %v2285
      %5067 = vmatpush.msra.mxu0 %v2281
      %5068 = vmatmul.f32.gmra.mxu0 %v4983
      %v5069 = vpop.f32.mrf.mxu0
      %v5070 = vadd.f32 %v4965, %v5069
      %5071 = vmatmul.f32.gmra.mxu0 %v4986
      %v5072 = vpop.f32.mrf.mxu0
      %v5073 = vadd.f32 %v4970, %v5072
      %5074 = vmatmul.f32.gmra.mxu0 %v4989
      %v5075 = vpop.f32.mrf.mxu0
      %v5076 = vadd.f32 %v4975, %v5075
      %5077 = vmatmul.f32.gmra.mxu0 %v4992
      %v5078 = vpop.f32.mrf.mxu0
      %v5079 = vadd.f32 %v4980, %v5078
      %5080 = vdwg.mxu0
      %5081 = vmatpush.msra.mxu0 0.0
      %5082 = vmatpush.msra.mxu0 0.0
      %5083 = vmatpush.msra.mxu0 0.0
      %5084 = vmatpush.msra.mxu0 0.0
      %5085 = vmatpush.msra.mxu0 0.0
      %5086 = vmatpush.msra.mxu0 0.0
      %5087 = vmatpush.msra.mxu0 0.0
      %5088 = vmatpush.msra.mxu0 0.0
      %5089 = vmatpush.msra.mxu0 0.0
      %5090 = vmatpush.msra.mxu0 0.0
      %5091 = vmatpush.msra.mxu0 0.0
      %5092 = vmatpush.msra.mxu0 0.0
      %5093 = vmatpush.msra.mxu0 0.0
      %5094 = vmatpush.msra.mxu0 0.0
      %5095 = vmatpush.msra.mxu0 %v2286
      %5096 = vmatpush.msra.mxu0 %v2282
      %5097 = vmatmul.f32.gmra.mxu0 %v4983
      %v5098 = vpop.f32.mrf.mxu0
      %v5099 = vadd.f32 %v4965, %v5098
      %5100 = vmatmul.f32.gmra.mxu0 %v4986
      %v5101 = vpop.f32.mrf.mxu0
      %v5102 = vadd.f32 %v4970, %v5101
      %5103 = vmatmul.f32.gmra.mxu0 %v4989
      %v5104 = vpop.f32.mrf.mxu0
      %v5105 = vadd.f32 %v4975, %v5104
      %5106 = vmatmul.f32.gmra.mxu0 %v4992
      %v5107 = vpop.f32.mrf.mxu0
      %v5108 = vadd.f32 %v4980, %v5107
      %5109 = vdwg.mxu0
      %v5110 = vadd.f32 %v4682, %v5012
      %v5111 = vadd.f32 %v4769, %v5041
      %v5112 = vadd.f32 %v4856, %v5070
      %v5113 = vadd.f32 %v4943, %v5099
      %v5114 = vadd.f32 %v4685, %v5015
      %v5115 = vadd.f32 %v4772, %v5044
      %v5116 = vadd.f32 %v4859, %v5073
      %v5117 = vadd.f32 %v4946, %v5102
      %v5118 = vadd.f32 %v4688, %v5018
      %v5119 = vadd.f32 %v4775, %v5047
      %v5120 = vadd.f32 %v4862, %v5076
      %v5121 = vadd.f32 %v4949, %v5105
      %v5122 = vadd.f32 %v4691, %v5021
      %v5123 = vadd.f32 %v4778, %v5050
      %v5124 = vadd.f32 %v4865, %v5079
      %v5125 = vadd.f32 %v4952, %v5108
      %v5126 = vmax.f32 %v5110, 0.0
      %v5127 = vmax.f32 %v5111, 0.0
      %v5128 = vmax.f32 %v5112, 0.0
      %v5129 = vmax.f32 %v5113, 0.0
      %v5130 = vmax.f32 %v5114, 0.0
      %v5131 = vmax.f32 %v5115, 0.0
      %v5132 = vmax.f32 %v5116, 0.0
      %v5133 = vmax.f32 %v5117, 0.0
      %v5134 = vmax.f32 %v5118, 0.0
      %v5135 = vmax.f32 %v5119, 0.0
      %v5136 = vmax.f32 %v5120, 0.0
      %v5137 = vmax.f32 %v5121, 0.0
      %v5138 = vmax.f32 %v5122, 0.0
      %v5139 = vmax.f32 %v5123, 0.0
      %v5140 = vmax.f32 %v5124, 0.0
      %v5141 = vmax.f32 %v5125, 0.0
      %v5142 = vmul.f32 %v5126, %v1277
      %v5143 = vmul.f32 %v5127, %v1278
      %v5144 = vmul.f32 %v5128, %v1279
      %v5145 = vmul.f32 %v5129, %v1280
      %v5146 = vmul.f32 %v5130, %v1277
      %v5147 = vmul.f32 %v5131, %v1278
      %v5148 = vmul.f32 %v5132, %v1279
      %v5149 = vmul.f32 %v5133, %v1280
      %v5150 = vmul.f32 %v5134, %v1277
      %v5151 = vmul.f32 %v5135, %v1278
      %v5152 = vmul.f32 %v5136, %v1279
      %v5153 = vmul.f32 %v5137, %v1280
      %v5154 = vmul.f32 %v5138, %v1277
      %v5155 = vmul.f32 %v5139, %v1278
      %v5156 = vmul.f32 %v5140, %v1279
      %v5157 = vmul.f32 %v5141, %v1280
      %5158 = vst [vmem:[#allocation2 + $0x8] sm:$0xff] %v5142
      %5159 = vst [vmem:[#allocation2 + $0x10] sm:$0xff] %v5143
      %5160 = vst [vmem:[#allocation2 + $0x18] sm:$0xff] %v5144
      %5161 = vst.msk [vmem:[#allocation2 + $0x20] sm:$0xff] %vm657, %v5145
      %5162 = vst [vmem:[#allocation2 + $0x38] sm:$0xff] %v5146
      %5163 = vst [vmem:[#allocation2 + $0x40] sm:$0xff] %v5147
      %5164 = vst [vmem:[#allocation2 + $0x48] sm:$0xff] %v5148
      %5165 = vst.msk [vmem:[#allocation2 + $0x50] sm:$0xff] %vm657, %v5149
      %5166 = vst [vmem:[#allocation2 + $0x68] sm:$0xff] %v5150
      %5167 = vst [vmem:[#allocation2 + $0x70] sm:$0xff] %v5151
      %5168 = vst [vmem:[#allocation2 + $0x78] sm:$0xff] %v5152
      %5169 = vst.msk [vmem:[#allocation2 + $0x80] sm:$0xff] %vm657, %v5153
      %5170 = vst [vmem:[#allocation2 + $0x98] sm:$0xff] %v5154
      %5171 = vst [vmem:[#allocation2 + $0xa0] sm:$0xff] %v5155
      %5172 = vst [vmem:[#allocation2 + $0xa8] sm:$0xff] %v5156
      %5173 = vst.msk [vmem:[#allocation2 + $0xb0] sm:$0xff] %vm657, %v5157
      %v5174 = vld [vmem:[#allocation2] sm:$0xff]
      %v5175 = vld [vmem:[#allocation2 + $0x8] sm:$0xff]
      %v5176 = vld [vmem:[#allocation2 + $0x10] sm:$0xff]
      %v5177 = vld [vmem:[#allocation2 + $0x18] sm:$0xff]
      %v5178 = vld [vmem:[#allocation2 + $0x20] sm:$0xff]
      %v5179 = vld [vmem:[#allocation2 + $0x30] sm:$0xff]
      %v5180 = vld [vmem:[#allocation2 + $0x38] sm:$0xff]
      %v5181 = vld [vmem:[#allocation2 + $0x40] sm:$0xff]
      %v5182 = vld [vmem:[#allocation2 + $0x48] sm:$0xff]
      %v5183 = vld [vmem:[#allocation2 + $0x50] sm:$0xff]
      %v5184 = vld [vmem:[#allocation2 + $0x60] sm:$0xff]
      %v5185 = vld [vmem:[#allocation2 + $0x68] sm:$0xff]
      %v5186 = vld [vmem:[#allocation2 + $0x70] sm:$0xff]
      %v5187 = vld [vmem:[#allocation2 + $0x78] sm:$0xff]
      %v5188 = vld [vmem:[#allocation2 + $0x80] sm:$0xff]
      %v5189 = vld [vmem:[#allocation2 + $0x90] sm:$0xff]
      %v5190 = vld [vmem:[#allocation2 + $0x98] sm:$0xff]
      %v5191 = vld [vmem:[#allocation2 + $0xa0] sm:$0xff]
      %v5192 = vld [vmem:[#allocation2 + $0xa8] sm:$0xff]
      %v5193 = vld [vmem:[#allocation2 + $0xb0] sm:$0xff]
      %v5194 = vmul.f32 %v5174, %v711
      %v5195 = vmul.f32 %v5175, %v719
      %v5196 = vmul.f32 %v5176, %v720
      %v5197 = vmul.f32 %v5177, %v721
      %v5198 = vmul.f32 %v5178, %v717
      %v5199 = vmul.f32 %v5179, %v711
      %v5200 = vmul.f32 %v5180, %v719
      %v5201 = vmul.f32 %v5181, %v720
      %v5202 = vmul.f32 %v5182, %v721
      %v5203 = vmul.f32 %v5183, %v717
      %v5204 = vmul.f32 %v5184, %v711
      %v5205 = vmul.f32 %v5185, %v719
      %v5206 = vmul.f32 %v5186, %v720
      %v5207 = vmul.f32 %v5187, %v721
      %v5208 = vmul.f32 %v5188, %v717
      %v5209 = vmul.f32 %v5189, %v711
      %v5210 = vmul.f32 %v5190, %v719
      %v5211 = vmul.f32 %v5191, %v720
      %v5212 = vmul.f32 %v5192, %v721
      %v5213 = vmul.f32 %v5193, %v717
      %v5214 = vmul.f32 %v5174, %v749
      %v5215 = vmul.f32 %v5175, %v757
      %v5216 = vmul.f32 %v5176, %v758
      %v5217 = vmul.f32 %v5177, %v759
      %v5218 = vmul.f32 %v5178, %v755
      %v5219 = vmul.f32 %v5179, %v749
      %v5220 = vmul.f32 %v5180, %v757
      %v5221 = vmul.f32 %v5181, %v758
      %v5222 = vmul.f32 %v5182, %v759
      %v5223 = vmul.f32 %v5183, %v755
      %v5224 = vmul.f32 %v5184, %v749
      %v5225 = vmul.f32 %v5185, %v757
      %v5226 = vmul.f32 %v5186, %v758
      %v5227 = vmul.f32 %v5187, %v759
      %v5228 = vmul.f32 %v5188, %v755
      %v5229 = vmul.f32 %v5189, %v749
      %v5230 = vmul.f32 %v5190, %v757
      %v5231 = vmul.f32 %v5191, %v758
      %v5232 = vmul.f32 %v5192, %v759
      %v5233 = vmul.f32 %v5193, %v755
      %v5234 = vmul.f32 %v5174, %v771
      %v5235 = vmul.f32 %v5175, %v779
      %v5236 = vmul.f32 %v5176, %v780
      %v5237 = vmul.f32 %v5177, %v781
      %v5238 = vmul.f32 %v5178, %v777
      %v5239 = vmul.f32 %v5179, %v771
      %v5240 = vmul.f32 %v5180, %v779
      %v5241 = vmul.f32 %v5181, %v780
      %v5242 = vmul.f32 %v5182, %v781
      %v5243 = vmul.f32 %v5183, %v777
      %v5244 = vmul.f32 %v5184, %v771
      %v5245 = vmul.f32 %v5185, %v779
      %v5246 = vmul.f32 %v5186, %v780
      %v5247 = vmul.f32 %v5187, %v781
      %v5248 = vmul.f32 %v5188, %v777
      %v5249 = vmul.f32 %v5189, %v771
      %v5250 = vmul.f32 %v5190, %v779
      %v5251 = vmul.f32 %v5191, %v780
      %v5252 = vmul.f32 %v5192, %v781
      %v5253 = vmul.f32 %v5193, %v777
      %v5254 = vmul.f32 %v5175, %v793
      %v5255 = vmul.f32 %v5176, %v801
      %v5256 = vmul.f32 %v5177, %v802
      %v5257 = vmul.f32 %v5178, %v803
      %v5258 = vmul.f32 %v5180, %v793
      %v5259 = vmul.f32 %v5181, %v801
      %v5260 = vmul.f32 %v5182, %v802
      %v5261 = vmul.f32 %v5183, %v803
      %v5262 = vmul.f32 %v5185, %v793
      %v5263 = vmul.f32 %v5186, %v801
      %v5264 = vmul.f32 %v5187, %v802
      %v5265 = vmul.f32 %v5188, %v803
      %v5266 = vmul.f32 %v5190, %v793
      %v5267 = vmul.f32 %v5191, %v801
      %v5268 = vmul.f32 %v5192, %v802
      %v5269 = vmul.f32 %v5193, %v803
      %v5270 = vmul.f32 %v5175, %v813
      %v5271 = vmul.f32 %v5176, %v821
      %v5272 = vmul.f32 %v5177, %v822
      %v5273 = vmul.f32 %v5178, %v823
      %v5274 = vmul.f32 %v5180, %v813
      %v5275 = vmul.f32 %v5181, %v821
      %v5276 = vmul.f32 %v5182, %v822
      %v5277 = vmul.f32 %v5183, %v823
      %v5278 = vmul.f32 %v5185, %v813
      %v5279 = vmul.f32 %v5186, %v821
      %v5280 = vmul.f32 %v5187, %v822
      %v5281 = vmul.f32 %v5188, %v823
      %v5282 = vmul.f32 %v5190, %v813
      %v5283 = vmul.f32 %v5191, %v821
      %v5284 = vmul.f32 %v5192, %v822
      %v5285 = vmul.f32 %v5193, %v823
      %v5286 = vmul.f32 %v5175, %v833
      %v5287 = vmul.f32 %v5176, %v841
      %v5288 = vmul.f32 %v5177, %v842
      %v5289 = vmul.f32 %v5178, %v843
      %v5290 = vmul.f32 %v5180, %v833
      %v5291 = vmul.f32 %v5181, %v841
      %v5292 = vmul.f32 %v5182, %v842
      %v5293 = vmul.f32 %v5183, %v843
      %v5294 = vmul.f32 %v5185, %v833
      %v5295 = vmul.f32 %v5186, %v841
      %v5296 = vmul.f32 %v5187, %v842
      %v5297 = vmul.f32 %v5188, %v843
      %v5298 = vmul.f32 %v5190, %v833
      %v5299 = vmul.f32 %v5191, %v841
      %v5300 = vmul.f32 %v5192, %v842
      %v5301 = vmul.f32 %v5193, %v843
      %5322 = vrot.lane.b32.xlu0 %v5174, 127
      %v5323 = vpop.permute.xlu0 %5322
      %5324 = vrot.lane.b32.xlu0 %v5175, 127
      %v5325 = vpop.permute.xlu0 %5324
      %5326 = vrot.lane.b32.xlu0 %v5176, 127
      %v5327 = vpop.permute.xlu0 %5326
      %5328 = vrot.lane.b32.xlu0 %v5177, 127
      %v5329 = vpop.permute.xlu0 %5328
      %5330 = vrot.lane.b32.xlu0 %v5178, 127
      %v5331 = vpop.permute.xlu0 %5330
      %5332 = vrot.lane.b32.xlu0 %v5179, 127
      %v5333 = vpop.permute.xlu0 %5332
      %5334 = vrot.lane.b32.xlu0 %v5180, 127
      %v5335 = vpop.permute.xlu0 %5334
      %5336 = vrot.lane.b32.xlu0 %v5181, 127
      %v5337 = vpop.permute.xlu0 %5336
      %5338 = vrot.lane.b32.xlu0 %v5182, 127
      %v5339 = vpop.permute.xlu0 %5338
      %5340 = vrot.lane.b32.xlu0 %v5183, 127
      %v5341 = vpop.permute.xlu0 %5340
      %5342 = vrot.lane.b32.xlu0 %v5184, 127
      %v5343 = vpop.permute.xlu0 %5342
      %5344 = vrot.lane.b32.xlu0 %v5185, 127
      %v5345 = vpop.permute.xlu0 %5344
      %5346 = vrot.lane.b32.xlu0 %v5186, 127
      %v5347 = vpop.permute.xlu0 %5346
      %5348 = vrot.lane.b32.xlu0 %v5187, 127
      %v5349 = vpop.permute.xlu0 %5348
      %5350 = vrot.lane.b32.xlu0 %v5188, 127
      %v5351 = vpop.permute.xlu0 %5350
      %5352 = vrot.lane.b32.xlu0 %v5189, 127
      %v5353 = vpop.permute.xlu0 %5352
      %5354 = vrot.lane.b32.xlu0 %v5190, 127
      %v5355 = vpop.permute.xlu0 %5354
      %5356 = vrot.lane.b32.xlu0 %v5191, 127
      %v5357 = vpop.permute.xlu0 %5356
      %5358 = vrot.lane.b32.xlu0 %v5192, 127
      %v5359 = vpop.permute.xlu0 %5358
      %5360 = vrot.lane.b32.xlu0 %v5193, 127
      %v5361 = vpop.permute.xlu0 %5360
      %v5362 = vsel %vm778, %v5323, %v5325
      %v5363 = vsel %vm778, %v5325, %v5327
      %v5364 = vsel %vm778, %v5327, %v5329
      %v5365 = vsel %vm778, %v5329, %v5331
      %v5366 = vsel %vm778, %v5333, %v5335
      %v5367 = vsel %vm778, %v5335, %v5337
      %v5368 = vsel %vm778, %v5337, %v5339
      %v5369 = vsel %vm778, %v5339, %v5341
      %v5370 = vsel %vm778, %v5343, %v5345
      %v5371 = vsel %vm778, %v5345, %v5347
      %v5372 = vsel %vm778, %v5347, %v5349
      %v5373 = vsel %vm778, %v5349, %v5351
      %v5374 = vsel %vm778, %v5353, %v5355
      %v5375 = vsel %vm778, %v5355, %v5357
      %v5376 = vsel %vm778, %v5357, %v5359
      %v5377 = vsel %vm778, %v5359, %v5361
      %5398 = vrot.lane.b32.xlu0 %v5214, 126
      %v5399 = vpop.permute.xlu0 %5398
      %5400 = vrot.lane.b32.xlu0 %v5215, 126
      %v5401 = vpop.permute.xlu0 %5400
      %5402 = vrot.lane.b32.xlu0 %v5216, 126
      %v5403 = vpop.permute.xlu0 %5402
      %5404 = vrot.lane.b32.xlu0 %v5217, 126
      %v5405 = vpop.permute.xlu0 %5404
      %5406 = vrot.lane.b32.xlu0 %v5218, 126
      %v5407 = vpop.permute.xlu0 %5406
      %5408 = vrot.lane.b32.xlu0 %v5219, 126
      %v5409 = vpop.permute.xlu0 %5408
      %5410 = vrot.lane.b32.xlu0 %v5220, 126
      %v5411 = vpop.permute.xlu0 %5410
      %5412 = vrot.lane.b32.xlu0 %v5221, 126
      %v5413 = vpop.permute.xlu0 %5412
      %5414 = vrot.lane.b32.xlu0 %v5222, 126
      %v5415 = vpop.permute.xlu0 %5414
      %5416 = vrot.lane.b32.xlu0 %v5223, 126
      %v5417 = vpop.permute.xlu0 %5416
      %5418 = vrot.lane.b32.xlu0 %v5224, 126
      %v5419 = vpop.permute.xlu0 %5418
      %5420 = vrot.lane.b32.xlu0 %v5225, 126
      %v5421 = vpop.permute.xlu0 %5420
      %5422 = vrot.lane.b32.xlu0 %v5226, 126
      %v5423 = vpop.permute.xlu0 %5422
      %5424 = vrot.lane.b32.xlu0 %v5227, 126
      %v5425 = vpop.permute.xlu0 %5424
      %5426 = vrot.lane.b32.xlu0 %v5228, 126
      %v5427 = vpop.permute.xlu0 %5426
      %5428 = vrot.lane.b32.xlu0 %v5229, 126
      %v5429 = vpop.permute.xlu0 %5428
      %5430 = vrot.lane.b32.xlu0 %v5230, 126
      %v5431 = vpop.permute.xlu0 %5430
      %5432 = vrot.lane.b32.xlu0 %v5231, 126
      %v5433 = vpop.permute.xlu0 %5432
      %5434 = vrot.lane.b32.xlu0 %v5232, 126
      %v5435 = vpop.permute.xlu0 %5434
      %5436 = vrot.lane.b32.xlu0 %v5233, 126
      %v5437 = vpop.permute.xlu0 %5436
      %v5438 = vsel %vm886, %v5399, %v5401
      %v5439 = vsel %vm886, %v5401, %v5403
      %v5440 = vsel %vm886, %v5403, %v5405
      %v5441 = vsel %vm886, %v5405, %v5407
      %v5442 = vsel %vm886, %v5409, %v5411
      %v5443 = vsel %vm886, %v5411, %v5413
      %v5444 = vsel %vm886, %v5413, %v5415
      %v5445 = vsel %vm886, %v5415, %v5417
      %v5446 = vsel %vm886, %v5419, %v5421
      %v5447 = vsel %vm886, %v5421, %v5423
      %v5448 = vsel %vm886, %v5423, %v5425
      %v5449 = vsel %vm886, %v5425, %v5427
      %v5450 = vsel %vm886, %v5429, %v5431
      %v5451 = vsel %vm886, %v5431, %v5433
      %v5452 = vsel %vm886, %v5433, %v5435
      %v5453 = vsel %vm886, %v5435, %v5437
      %5474 = vrot.lane.b32.xlu0 %v5234, 112
      %v5475 = vpop.permute.xlu0 %5474
      %5476 = vrot.lane.b32.xlu0 %v5235, 112
      %v5477 = vpop.permute.xlu0 %5476
      %5478 = vrot.lane.b32.xlu0 %v5236, 112
      %v5479 = vpop.permute.xlu0 %5478
      %5480 = vrot.lane.b32.xlu0 %v5237, 112
      %v5481 = vpop.permute.xlu0 %5480
      %5482 = vrot.lane.b32.xlu0 %v5238, 112
      %v5483 = vpop.permute.xlu0 %5482
      %5484 = vrot.lane.b32.xlu0 %v5239, 112
      %v5485 = vpop.permute.xlu0 %5484
      %5486 = vrot.lane.b32.xlu0 %v5240, 112
      %v5487 = vpop.permute.xlu0 %5486
      %5488 = vrot.lane.b32.xlu0 %v5241, 112
      %v5489 = vpop.permute.xlu0 %5488
      %5490 = vrot.lane.b32.xlu0 %v5242, 112
      %v5491 = vpop.permute.xlu0 %5490
      %5492 = vrot.lane.b32.xlu0 %v5243, 112
      %v5493 = vpop.permute.xlu0 %5492
      %5494 = vrot.lane.b32.xlu0 %v5244, 112
      %v5495 = vpop.permute.xlu0 %5494
      %5496 = vrot.lane.b32.xlu0 %v5245, 112
      %v5497 = vpop.permute.xlu0 %5496
      %5498 = vrot.lane.b32.xlu0 %v5246, 112
      %v5499 = vpop.permute.xlu0 %5498
      %5500 = vrot.lane.b32.xlu0 %v5247, 112
      %v5501 = vpop.permute.xlu0 %5500
      %5502 = vrot.lane.b32.xlu0 %v5248, 112
      %v5503 = vpop.permute.xlu0 %5502
      %5504 = vrot.lane.b32.xlu0 %v5249, 112
      %v5505 = vpop.permute.xlu0 %5504
      %5506 = vrot.lane.b32.xlu0 %v5250, 112
      %v5507 = vpop.permute.xlu0 %5506
      %5508 = vrot.lane.b32.xlu0 %v5251, 112
      %v5509 = vpop.permute.xlu0 %5508
      %5510 = vrot.lane.b32.xlu0 %v5252, 112
      %v5511 = vpop.permute.xlu0 %5510
      %5512 = vrot.lane.b32.xlu0 %v5253, 112
      %v5513 = vpop.permute.xlu0 %5512
      %v5514 = vsel %vm906, %v5475, %v5477
      %v5515 = vsel %vm906, %v5477, %v5479
      %v5516 = vsel %vm906, %v5479, %v5481
      %v5517 = vsel %vm906, %v5481, %v5483
      %v5518 = vsel %vm906, %v5485, %v5487
      %v5519 = vsel %vm906, %v5487, %v5489
      %v5520 = vsel %vm906, %v5489, %v5491
      %v5521 = vsel %vm906, %v5491, %v5493
      %v5522 = vsel %vm906, %v5495, %v5497
      %v5523 = vsel %vm906, %v5497, %v5499
      %v5524 = vsel %vm906, %v5499, %v5501
      %v5525 = vsel %vm906, %v5501, %v5503
      %v5526 = vsel %vm906, %v5505, %v5507
      %v5527 = vsel %vm906, %v5507, %v5509
      %v5528 = vsel %vm906, %v5509, %v5511
      %v5529 = vsel %vm906, %v5511, %v5513
      %5530 = vrot.lane.b32.xlu0 %v5175, 111
      %v5531 = vpop.permute.xlu0 %5530
      %5532 = vrot.lane.b32.xlu0 %v5176, 111
      %v5533 = vpop.permute.xlu0 %5532
      %5534 = vrot.lane.b32.xlu0 %v5177, 111
      %v5535 = vpop.permute.xlu0 %5534
      %5536 = vrot.lane.b32.xlu0 %v5178, 111
      %v5537 = vpop.permute.xlu0 %5536
      %5538 = vrot.lane.b32.xlu0 %v5180, 111
      %v5539 = vpop.permute.xlu0 %5538
      %5540 = vrot.lane.b32.xlu0 %v5181, 111
      %v5541 = vpop.permute.xlu0 %5540
      %5542 = vrot.lane.b32.xlu0 %v5182, 111
      %v5543 = vpop.permute.xlu0 %5542
      %5544 = vrot.lane.b32.xlu0 %v5183, 111
      %v5545 = vpop.permute.xlu0 %5544
      %5546 = vrot.lane.b32.xlu0 %v5185, 111
      %v5547 = vpop.permute.xlu0 %5546
      %5548 = vrot.lane.b32.xlu0 %v5186, 111
      %v5549 = vpop.permute.xlu0 %5548
      %5550 = vrot.lane.b32.xlu0 %v5187, 111
      %v5551 = vpop.permute.xlu0 %5550
      %5552 = vrot.lane.b32.xlu0 %v5188, 111
      %v5553 = vpop.permute.xlu0 %5552
      %5554 = vrot.lane.b32.xlu0 %v5190, 111
      %v5555 = vpop.permute.xlu0 %5554
      %5556 = vrot.lane.b32.xlu0 %v5191, 111
      %v5557 = vpop.permute.xlu0 %5556
      %5558 = vrot.lane.b32.xlu0 %v5192, 111
      %v5559 = vpop.permute.xlu0 %5558
      %5560 = vrot.lane.b32.xlu0 %v5193, 111
      %v5561 = vpop.permute.xlu0 %5560
      %v5562 = vsel %vm718, %v5531, %v5533
      %v5563 = vsel %vm718, %v5533, %v5535
      %v5564 = vsel %vm718, %v5535, %v5537
      %v5565 = vsel %vm718, %v5539, %v5541
      %v5566 = vsel %vm718, %v5541, %v5543
      %v5567 = vsel %vm718, %v5543, %v5545
      %v5568 = vsel %vm718, %v5547, %v5549
      %v5569 = vsel %vm718, %v5549, %v5551
      %v5570 = vsel %vm718, %v5551, %v5553
      %v5571 = vsel %vm718, %v5555, %v5557
      %v5572 = vsel %vm718, %v5557, %v5559
      %v5573 = vsel %vm718, %v5559, %v5561
      %5590 = vrot.lane.b32.xlu0 %v5254, 110
      %v5591 = vpop.permute.xlu0 %5590
      %5592 = vrot.lane.b32.xlu0 %v5255, 110
      %v5593 = vpop.permute.xlu0 %5592
      %5594 = vrot.lane.b32.xlu0 %v5256, 110
      %v5595 = vpop.permute.xlu0 %5594
      %5596 = vrot.lane.b32.xlu0 %v5257, 110
      %v5597 = vpop.permute.xlu0 %5596
      %5598 = vrot.lane.b32.xlu0 %v5258, 110
      %v5599 = vpop.permute.xlu0 %5598
      %5600 = vrot.lane.b32.xlu0 %v5259, 110
      %v5601 = vpop.permute.xlu0 %5600
      %5602 = vrot.lane.b32.xlu0 %v5260, 110
      %v5603 = vpop.permute.xlu0 %5602
      %5604 = vrot.lane.b32.xlu0 %v5261, 110
      %v5605 = vpop.permute.xlu0 %5604
      %5606 = vrot.lane.b32.xlu0 %v5262, 110
      %v5607 = vpop.permute.xlu0 %5606
      %5608 = vrot.lane.b32.xlu0 %v5263, 110
      %v5609 = vpop.permute.xlu0 %5608
      %5610 = vrot.lane.b32.xlu0 %v5264, 110
      %v5611 = vpop.permute.xlu0 %5610
      %5612 = vrot.lane.b32.xlu0 %v5265, 110
      %v5613 = vpop.permute.xlu0 %5612
      %5614 = vrot.lane.b32.xlu0 %v5266, 110
      %v5615 = vpop.permute.xlu0 %5614
      %5616 = vrot.lane.b32.xlu0 %v5267, 110
      %v5617 = vpop.permute.xlu0 %5616
      %5618 = vrot.lane.b32.xlu0 %v5268, 110
      %v5619 = vpop.permute.xlu0 %5618
      %5620 = vrot.lane.b32.xlu0 %v5269, 110
      %v5621 = vpop.permute.xlu0 %5620
      %v5622 = vsel %vm934, %v5591, %v5593
      %v5623 = vsel %vm934, %v5593, %v5595
      %v5624 = vsel %vm934, %v5595, %v5597
      %v5625 = vsel %vm934, %v5599, %v5601
      %v5626 = vsel %vm934, %v5601, %v5603
      %v5627 = vsel %vm934, %v5603, %v5605
      %v5628 = vsel %vm934, %v5607, %v5609
      %v5629 = vsel %vm934, %v5609, %v5611
      %v5630 = vsel %vm934, %v5611, %v5613
      %v5631 = vsel %vm934, %v5615, %v5617
      %v5632 = vsel %vm934, %v5617, %v5619
      %v5633 = vsel %vm934, %v5619, %v5621
      %5650 = vrot.lane.b32.xlu0 %v5270, 96
      %v5651 = vpop.permute.xlu0 %5650
      %5652 = vrot.lane.b32.xlu0 %v5271, 96
      %v5653 = vpop.permute.xlu0 %5652
      %5654 = vrot.lane.b32.xlu0 %v5272, 96
      %v5655 = vpop.permute.xlu0 %5654
      %5656 = vrot.lane.b32.xlu0 %v5273, 96
      %v5657 = vpop.permute.xlu0 %5656
      %5658 = vrot.lane.b32.xlu0 %v5274, 96
      %v5659 = vpop.permute.xlu0 %5658
      %5660 = vrot.lane.b32.xlu0 %v5275, 96
      %v5661 = vpop.permute.xlu0 %5660
      %5662 = vrot.lane.b32.xlu0 %v5276, 96
      %v5663 = vpop.permute.xlu0 %5662
      %5664 = vrot.lane.b32.xlu0 %v5277, 96
      %v5665 = vpop.permute.xlu0 %5664
      %5666 = vrot.lane.b32.xlu0 %v5278, 96
      %v5667 = vpop.permute.xlu0 %5666
      %5668 = vrot.lane.b32.xlu0 %v5279, 96
      %v5669 = vpop.permute.xlu0 %5668
      %5670 = vrot.lane.b32.xlu0 %v5280, 96
      %v5671 = vpop.permute.xlu0 %5670
      %5672 = vrot.lane.b32.xlu0 %v5281, 96
      %v5673 = vpop.permute.xlu0 %5672
      %5674 = vrot.lane.b32.xlu0 %v5282, 96
      %v5675 = vpop.permute.xlu0 %5674
      %5676 = vrot.lane.b32.xlu0 %v5283, 96
      %v5677 = vpop.permute.xlu0 %5676
      %5678 = vrot.lane.b32.xlu0 %v5284, 96
      %v5679 = vpop.permute.xlu0 %5678
      %5680 = vrot.lane.b32.xlu0 %v5285, 96
      %v5681 = vpop.permute.xlu0 %5680
      %v5682 = vsel %vm657, %v5651, %v5653
      %v5683 = vsel %vm657, %v5653, %v5655
      %v5684 = vsel %vm657, %v5655, %v5657
      %v5685 = vsel %vm657, %v5659, %v5661
      %v5686 = vsel %vm657, %v5661, %v5663
      %v5687 = vsel %vm657, %v5663, %v5665
      %v5688 = vsel %vm657, %v5667, %v5669
      %v5689 = vsel %vm657, %v5669, %v5671
      %v5690 = vsel %vm657, %v5671, %v5673
      %v5691 = vsel %vm657, %v5675, %v5677
      %v5692 = vsel %vm657, %v5677, %v5679
      %v5693 = vsel %vm657, %v5679, %v5681
      %5694 = vrot.lane.b32.xlu0 %v5175, 95
      %v5695 = vpop.permute.xlu0 %5694
      %5696 = vrot.lane.b32.xlu0 %v5176, 95
      %v5697 = vpop.permute.xlu0 %5696
      %5698 = vrot.lane.b32.xlu0 %v5177, 95
      %v5699 = vpop.permute.xlu0 %5698
      %5700 = vrot.lane.b32.xlu0 %v5178, 95
      %v5701 = vpop.permute.xlu0 %5700
      %5702 = vrot.lane.b32.xlu0 %v5180, 95
      %v5703 = vpop.permute.xlu0 %5702
      %5704 = vrot.lane.b32.xlu0 %v5181, 95
      %v5705 = vpop.permute.xlu0 %5704
      %5706 = vrot.lane.b32.xlu0 %v5182, 95
      %v5707 = vpop.permute.xlu0 %5706
      %5708 = vrot.lane.b32.xlu0 %v5183, 95
      %v5709 = vpop.permute.xlu0 %5708
      %5710 = vrot.lane.b32.xlu0 %v5185, 95
      %v5711 = vpop.permute.xlu0 %5710
      %5712 = vrot.lane.b32.xlu0 %v5186, 95
      %v5713 = vpop.permute.xlu0 %5712
      %5714 = vrot.lane.b32.xlu0 %v5187, 95
      %v5715 = vpop.permute.xlu0 %5714
      %5716 = vrot.lane.b32.xlu0 %v5188, 95
      %v5717 = vpop.permute.xlu0 %5716
      %5718 = vrot.lane.b32.xlu0 %v5190, 95
      %v5719 = vpop.permute.xlu0 %5718
      %5720 = vrot.lane.b32.xlu0 %v5191, 95
      %v5721 = vpop.permute.xlu0 %5720
      %5722 = vrot.lane.b32.xlu0 %v5192, 95
      %v5723 = vpop.permute.xlu0 %5722
      %5724 = vrot.lane.b32.xlu0 %v5193, 95
      %v5725 = vpop.permute.xlu0 %5724
      %v5726 = vsel %vm961, %v5695, %v5697
      %v5727 = vsel %vm961, %v5697, %v5699
      %v5728 = vsel %vm961, %v5699, %v5701
      %v5729 = vsel %vm961, %v5703, %v5705
      %v5730 = vsel %vm961, %v5705, %v5707
      %v5731 = vsel %vm961, %v5707, %v5709
      %v5732 = vsel %vm961, %v5711, %v5713
      %v5733 = vsel %vm961, %v5713, %v5715
      %v5734 = vsel %vm961, %v5715, %v5717
      %v5735 = vsel %vm961, %v5719, %v5721
      %v5736 = vsel %vm961, %v5721, %v5723
      %v5737 = vsel %vm961, %v5723, %v5725
      %5754 = vrot.lane.b32.xlu0 %v5286, 94
      %v5755 = vpop.permute.xlu0 %5754
      %5756 = vrot.lane.b32.xlu0 %v5287, 94
      %v5757 = vpop.permute.xlu0 %5756
      %5758 = vrot.lane.b32.xlu0 %v5288, 94
      %v5759 = vpop.permute.xlu0 %5758
      %5760 = vrot.lane.b32.xlu0 %v5289, 94
      %v5761 = vpop.permute.xlu0 %5760
      %5762 = vrot.lane.b32.xlu0 %v5290, 94
      %v5763 = vpop.permute.xlu0 %5762
      %5764 = vrot.lane.b32.xlu0 %v5291, 94
      %v5765 = vpop.permute.xlu0 %5764
      %5766 = vrot.lane.b32.xlu0 %v5292, 94
      %v5767 = vpop.permute.xlu0 %5766
      %5768 = vrot.lane.b32.xlu0 %v5293, 94
      %v5769 = vpop.permute.xlu0 %5768
      %5770 = vrot.lane.b32.xlu0 %v5294, 94
      %v5771 = vpop.permute.xlu0 %5770
      %5772 = vrot.lane.b32.xlu0 %v5295, 94
      %v5773 = vpop.permute.xlu0 %5772
      %5774 = vrot.lane.b32.xlu0 %v5296, 94
      %v5775 = vpop.permute.xlu0 %5774
      %5776 = vrot.lane.b32.xlu0 %v5297, 94
      %v5777 = vpop.permute.xlu0 %5776
      %5778 = vrot.lane.b32.xlu0 %v5298, 94
      %v5779 = vpop.permute.xlu0 %5778
      %5780 = vrot.lane.b32.xlu0 %v5299, 94
      %v5781 = vpop.permute.xlu0 %5780
      %5782 = vrot.lane.b32.xlu0 %v5300, 94
      %v5783 = vpop.permute.xlu0 %5782
      %5784 = vrot.lane.b32.xlu0 %v5301, 94
      %v5785 = vpop.permute.xlu0 %5784
      %v5786 = vsel %vm977, %v5755, %v5757
      %v5787 = vsel %vm977, %v5757, %v5759
      %v5788 = vsel %vm977, %v5759, %v5761
      %v5789 = vsel %vm977, %v5763, %v5765
      %v5790 = vsel %vm977, %v5765, %v5767
      %v5791 = vsel %vm977, %v5767, %v5769
      %v5792 = vsel %vm977, %v5771, %v5773
      %v5793 = vsel %vm977, %v5773, %v5775
      %v5794 = vsel %vm977, %v5775, %v5777
      %v5795 = vsel %vm977, %v5779, %v5781
      %v5796 = vsel %vm977, %v5781, %v5783
      %v5797 = vsel %vm977, %v5783, %v5785
      %v5798 = vld [vmem:[%s14] sm:$0xff]
      %v5799 = vld [vmem:[%s14 + $0x8] sm:$0xff]
      %v5800 = vld [vmem:[%s14 + $0x10] sm:$0xff]
      %v5801 = vld [vmem:[%s14 + $0x18] sm:$0xff]
      %v5802 = vld [vmem:[%s14 + $0x20] sm:$0xff]
      %v5803 = vld [vmem:[%s14 + $0x28] sm:$0xff]
      %v5804 = vld [vmem:[%s14 + $0x30] sm:$0xff]
      %v5805 = vld [vmem:[%s14 + $0x38] sm:$0xff]
      %v5806 = vld [vmem:[%s14 + $0x40] sm:$0xff]
      %v5807 = vld [vmem:[%s14 + $0x48] sm:$0xff]
      %v5808 = vld [vmem:[%s14 + $0x50] sm:$0xff]
      %v5809 = vld [vmem:[%s14 + $0x58] sm:$0xff]
      %v5810 = vld [vmem:[%s15] sm:$0xff]
      %v5811 = vld [vmem:[%s15 + $0x8] sm:$0xff]
      %v5812 = vld [vmem:[%s15 + $0x10] sm:$0xff]
      %v5813 = vld [vmem:[%s15 + $0x18] sm:$0xff]
      %5815 = vset.pattern.permute.xlu0 0
      %5816 = vperm.xlu0 %5815, %v5810
      %v5817 = vpop.permute.xlu0 %5816
      %5820 = vset.pattern.permute.xlu0 0
      %5821 = vperm.xlu0 %5820, %v5811
      %v5822 = vpop.permute.xlu0 %5821
      %5825 = vset.pattern.permute.xlu0 0
      %5826 = vperm.xlu0 %5825, %v5812
      %v5827 = vpop.permute.xlu0 %5826
      %5830 = vset.pattern.permute.xlu0 0
      %5831 = vperm.xlu0 %5830, %v5813
      %v5832 = vpop.permute.xlu0 %5831
      %5854 = vrot.lane.b32.xlu0 %v5194, 17
      %v5855 = vpop.permute.xlu0 %5854
      %5856 = vrot.lane.b32.xlu0 %v5195, 17
      %v5857 = vpop.permute.xlu0 %5856
      %5858 = vrot.lane.b32.xlu0 %v5196, 17
      %v5859 = vpop.permute.xlu0 %5858
      %5860 = vrot.lane.b32.xlu0 %v5197, 17
      %v5861 = vpop.permute.xlu0 %5860
      %5862 = vrot.lane.b32.xlu0 %v5198, 17
      %v5863 = vpop.permute.xlu0 %5862
      %5864 = vrot.lane.b32.xlu0 %v5199, 17
      %v5865 = vpop.permute.xlu0 %5864
      %5866 = vrot.lane.b32.xlu0 %v5200, 17
      %v5867 = vpop.permute.xlu0 %5866
      %5868 = vrot.lane.b32.xlu0 %v5201, 17
      %v5869 = vpop.permute.xlu0 %5868
      %5870 = vrot.lane.b32.xlu0 %v5202, 17
      %v5871 = vpop.permute.xlu0 %5870
      %5872 = vrot.lane.b32.xlu0 %v5203, 17
      %v5873 = vpop.permute.xlu0 %5872
      %5874 = vrot.lane.b32.xlu0 %v5204, 17
      %v5875 = vpop.permute.xlu0 %5874
      %5876 = vrot.lane.b32.xlu0 %v5205, 17
      %v5877 = vpop.permute.xlu0 %5876
      %5878 = vrot.lane.b32.xlu0 %v5206, 17
      %v5879 = vpop.permute.xlu0 %5878
      %5880 = vrot.lane.b32.xlu0 %v5207, 17
      %v5881 = vpop.permute.xlu0 %5880
      %5882 = vrot.lane.b32.xlu0 %v5208, 17
      %v5883 = vpop.permute.xlu0 %5882
      %5884 = vrot.lane.b32.xlu0 %v5209, 17
      %v5885 = vpop.permute.xlu0 %5884
      %5886 = vrot.lane.b32.xlu0 %v5210, 17
      %v5887 = vpop.permute.xlu0 %5886
      %5888 = vrot.lane.b32.xlu0 %v5211, 17
      %v5889 = vpop.permute.xlu0 %5888
      %5890 = vrot.lane.b32.xlu0 %v5212, 17
      %v5891 = vpop.permute.xlu0 %5890
      %5892 = vrot.lane.b32.xlu0 %v5213, 17
      %v5893 = vpop.permute.xlu0 %5892
      %5894 = vrot.lane.b32.xlu0 %v5362, 17
      %v5895 = vpop.permute.xlu0 %5894
      %5896 = vrot.lane.b32.xlu0 %v5363, 17
      %v5897 = vpop.permute.xlu0 %5896
      %5898 = vrot.lane.b32.xlu0 %v5364, 17
      %v5899 = vpop.permute.xlu0 %5898
      %5900 = vrot.lane.b32.xlu0 %v5365, 17
      %v5901 = vpop.permute.xlu0 %5900
      %5902 = vrot.lane.b32.xlu0 %v5331, 17
      %v5903 = vpop.permute.xlu0 %5902
      %5904 = vrot.lane.b32.xlu0 %v5366, 17
      %v5905 = vpop.permute.xlu0 %5904
      %5906 = vrot.lane.b32.xlu0 %v5367, 17
      %v5907 = vpop.permute.xlu0 %5906
      %5908 = vrot.lane.b32.xlu0 %v5368, 17
      %v5909 = vpop.permute.xlu0 %5908
      %5910 = vrot.lane.b32.xlu0 %v5369, 17
      %v5911 = vpop.permute.xlu0 %5910
      %5912 = vrot.lane.b32.xlu0 %v5341, 17
      %v5913 = vpop.permute.xlu0 %5912
      %5914 = vrot.lane.b32.xlu0 %v5370, 17
      %v5915 = vpop.permute.xlu0 %5914
      %5916 = vrot.lane.b32.xlu0 %v5371, 17
      %v5917 = vpop.permute.xlu0 %5916
      %5918 = vrot.lane.b32.xlu0 %v5372, 17
      %v5919 = vpop.permute.xlu0 %5918
      %5920 = vrot.lane.b32.xlu0 %v5373, 17
      %v5921 = vpop.permute.xlu0 %5920
      %5922 = vrot.lane.b32.xlu0 %v5351, 17
      %v5923 = vpop.permute.xlu0 %5922
      %5924 = vrot.lane.b32.xlu0 %v5374, 17
      %v5925 = vpop.permute.xlu0 %5924
      %5926 = vrot.lane.b32.xlu0 %v5375, 17
      %v5927 = vpop.permute.xlu0 %5926
      %5928 = vrot.lane.b32.xlu0 %v5376, 17
      %v5929 = vpop.permute.xlu0 %5928
      %5930 = vrot.lane.b32.xlu0 %v5377, 17
      %v5931 = vpop.permute.xlu0 %5930
      %5932 = vrot.lane.b32.xlu0 %v5361, 17
      %v5933 = vpop.permute.xlu0 %5932
      %5934 = vrot.lane.b32.xlu0 %v5438, 17
      %v5935 = vpop.permute.xlu0 %5934
      %5936 = vrot.lane.b32.xlu0 %v5439, 17
      %v5937 = vpop.permute.xlu0 %5936
      %5938 = vrot.lane.b32.xlu0 %v5440, 17
      %v5939 = vpop.permute.xlu0 %5938
      %5940 = vrot.lane.b32.xlu0 %v5441, 17
      %v5941 = vpop.permute.xlu0 %5940
      %5942 = vrot.lane.b32.xlu0 %v5407, 17
      %v5943 = vpop.permute.xlu0 %5942
      %5944 = vrot.lane.b32.xlu0 %v5442, 17
      %v5945 = vpop.permute.xlu0 %5944
      %5946 = vrot.lane.b32.xlu0 %v5443, 17
      %v5947 = vpop.permute.xlu0 %5946
      %5948 = vrot.lane.b32.xlu0 %v5444, 17
      %v5949 = vpop.permute.xlu0 %5948
      %5950 = vrot.lane.b32.xlu0 %v5445, 17
      %v5951 = vpop.permute.xlu0 %5950
      %5952 = vrot.lane.b32.xlu0 %v5417, 17
      %v5953 = vpop.permute.xlu0 %5952
      %5954 = vrot.lane.b32.xlu0 %v5446, 17
      %v5955 = vpop.permute.xlu0 %5954
      %5956 = vrot.lane.b32.xlu0 %v5447, 17
      %v5957 = vpop.permute.xlu0 %5956
      %5958 = vrot.lane.b32.xlu0 %v5448, 17
      %v5959 = vpop.permute.xlu0 %5958
      %5960 = vrot.lane.b32.xlu0 %v5449, 17
      %v5961 = vpop.permute.xlu0 %5960
      %5962 = vrot.lane.b32.xlu0 %v5427, 17
      %v5963 = vpop.permute.xlu0 %5962
      %5964 = vrot.lane.b32.xlu0 %v5450, 17
      %v5965 = vpop.permute.xlu0 %5964
      %5966 = vrot.lane.b32.xlu0 %v5451, 17
      %v5967 = vpop.permute.xlu0 %5966
      %5968 = vrot.lane.b32.xlu0 %v5452, 17
      %v5969 = vpop.permute.xlu0 %5968
      %5970 = vrot.lane.b32.xlu0 %v5453, 17
      %v5971 = vpop.permute.xlu0 %5970
      %5972 = vrot.lane.b32.xlu0 %v5437, 17
      %v5973 = vpop.permute.xlu0 %5972
      %5974 = vrot.lane.b32.xlu0 %v5514, 17
      %v5975 = vpop.permute.xlu0 %5974
      %5976 = vrot.lane.b32.xlu0 %v5515, 17
      %v5977 = vpop.permute.xlu0 %5976
      %5978 = vrot.lane.b32.xlu0 %v5516, 17
      %v5979 = vpop.permute.xlu0 %5978
      %5980 = vrot.lane.b32.xlu0 %v5517, 17
      %v5981 = vpop.permute.xlu0 %5980
      %5982 = vrot.lane.b32.xlu0 %v5483, 17
      %v5983 = vpop.permute.xlu0 %5982
      %5984 = vrot.lane.b32.xlu0 %v5518, 17
      %v5985 = vpop.permute.xlu0 %5984
      %5986 = vrot.lane.b32.xlu0 %v5519, 17
      %v5987 = vpop.permute.xlu0 %5986
      %5988 = vrot.lane.b32.xlu0 %v5520, 17
      %v5989 = vpop.permute.xlu0 %5988
      %5990 = vrot.lane.b32.xlu0 %v5521, 17
      %v5991 = vpop.permute.xlu0 %5990
      %5992 = vrot.lane.b32.xlu0 %v5493, 17
      %v5993 = vpop.permute.xlu0 %5992
      %5994 = vrot.lane.b32.xlu0 %v5522, 17
      %v5995 = vpop.permute.xlu0 %5994
      %5996 = vrot.lane.b32.xlu0 %v5523, 17
      %v5997 = vpop.permute.xlu0 %5996
      %5998 = vrot.lane.b32.xlu0 %v5524, 17
      %v5999 = vpop.permute.xlu0 %5998
      %6000 = vrot.lane.b32.xlu0 %v5525, 17
      %v6001 = vpop.permute.xlu0 %6000
      %6002 = vrot.lane.b32.xlu0 %v5503, 17
      %v6003 = vpop.permute.xlu0 %6002
      %6004 = vrot.lane.b32.xlu0 %v5526, 17
      %v6005 = vpop.permute.xlu0 %6004
      %6006 = vrot.lane.b32.xlu0 %v5527, 17
      %v6007 = vpop.permute.xlu0 %6006
      %6008 = vrot.lane.b32.xlu0 %v5528, 17
      %v6009 = vpop.permute.xlu0 %6008
      %6010 = vrot.lane.b32.xlu0 %v5529, 17
      %v6011 = vpop.permute.xlu0 %6010
      %6012 = vrot.lane.b32.xlu0 %v5513, 17
      %v6013 = vpop.permute.xlu0 %6012
      %6014 = vrot.lane.b32.xlu0 %v5531, 17
      %v6015 = vpop.permute.xlu0 %6014
      %6016 = vrot.lane.b32.xlu0 %v5562, 17
      %v6017 = vpop.permute.xlu0 %6016
      %6018 = vrot.lane.b32.xlu0 %v5563, 17
      %v6019 = vpop.permute.xlu0 %6018
      %6020 = vrot.lane.b32.xlu0 %v5564, 17
      %v6021 = vpop.permute.xlu0 %6020
      %6022 = vrot.lane.b32.xlu0 %v5537, 17
      %v6023 = vpop.permute.xlu0 %6022
      %6024 = vrot.lane.b32.xlu0 %v5539, 17
      %v6025 = vpop.permute.xlu0 %6024
      %6026 = vrot.lane.b32.xlu0 %v5565, 17
      %v6027 = vpop.permute.xlu0 %6026
      %6028 = vrot.lane.b32.xlu0 %v5566, 17
      %v6029 = vpop.permute.xlu0 %6028
      %6030 = vrot.lane.b32.xlu0 %v5567, 17
      %v6031 = vpop.permute.xlu0 %6030
      %6032 = vrot.lane.b32.xlu0 %v5545, 17
      %v6033 = vpop.permute.xlu0 %6032
      %6034 = vrot.lane.b32.xlu0 %v5547, 17
      %v6035 = vpop.permute.xlu0 %6034
      %6036 = vrot.lane.b32.xlu0 %v5568, 17
      %v6037 = vpop.permute.xlu0 %6036
      %6038 = vrot.lane.b32.xlu0 %v5569, 17
      %v6039 = vpop.permute.xlu0 %6038
      %6040 = vrot.lane.b32.xlu0 %v5570, 17
      %v6041 = vpop.permute.xlu0 %6040
      %6042 = vrot.lane.b32.xlu0 %v5553, 17
      %v6043 = vpop.permute.xlu0 %6042
      %6044 = vrot.lane.b32.xlu0 %v5555, 17
      %v6045 = vpop.permute.xlu0 %6044
      %6046 = vrot.lane.b32.xlu0 %v5571, 17
      %v6047 = vpop.permute.xlu0 %6046
      %6048 = vrot.lane.b32.xlu0 %v5572, 17
      %v6049 = vpop.permute.xlu0 %6048
      %6050 = vrot.lane.b32.xlu0 %v5573, 17
      %v6051 = vpop.permute.xlu0 %6050
      %6052 = vrot.lane.b32.xlu0 %v5561, 17
      %v6053 = vpop.permute.xlu0 %6052
      %6054 = vrot.lane.b32.xlu0 %v5591, 17
      %v6055 = vpop.permute.xlu0 %6054
      %6056 = vrot.lane.b32.xlu0 %v5622, 17
      %v6057 = vpop.permute.xlu0 %6056
      %6058 = vrot.lane.b32.xlu0 %v5623, 17
      %v6059 = vpop.permute.xlu0 %6058
      %6060 = vrot.lane.b32.xlu0 %v5624, 17
      %v6061 = vpop.permute.xlu0 %6060
      %6062 = vrot.lane.b32.xlu0 %v5597, 17
      %v6063 = vpop.permute.xlu0 %6062
      %6064 = vrot.lane.b32.xlu0 %v5599, 17
      %v6065 = vpop.permute.xlu0 %6064
      %6066 = vrot.lane.b32.xlu0 %v5625, 17
      %v6067 = vpop.permute.xlu0 %6066
      %6068 = vrot.lane.b32.xlu0 %v5626, 17
      %v6069 = vpop.permute.xlu0 %6068
      %6070 = vrot.lane.b32.xlu0 %v5627, 17
      %v6071 = vpop.permute.xlu0 %6070
      %6072 = vrot.lane.b32.xlu0 %v5605, 17
      %v6073 = vpop.permute.xlu0 %6072
      %6074 = vrot.lane.b32.xlu0 %v5607, 17
      %v6075 = vpop.permute.xlu0 %6074
      %6076 = vrot.lane.b32.xlu0 %v5628, 17
      %v6077 = vpop.permute.xlu0 %6076
      %6078 = vrot.lane.b32.xlu0 %v5629, 17
      %v6079 = vpop.permute.xlu0 %6078
      %6080 = vrot.lane.b32.xlu0 %v5630, 17
      %v6081 = vpop.permute.xlu0 %6080
      %6082 = vrot.lane.b32.xlu0 %v5613, 17
      %v6083 = vpop.permute.xlu0 %6082
      %6084 = vrot.lane.b32.xlu0 %v5615, 17
      %v6085 = vpop.permute.xlu0 %6084
      %6086 = vrot.lane.b32.xlu0 %v5631, 17
      %v6087 = vpop.permute.xlu0 %6086
      %6088 = vrot.lane.b32.xlu0 %v5632, 17
      %v6089 = vpop.permute.xlu0 %6088
      %6090 = vrot.lane.b32.xlu0 %v5633, 17
      %v6091 = vpop.permute.xlu0 %6090
      %6092 = vrot.lane.b32.xlu0 %v5621, 17
      %v6093 = vpop.permute.xlu0 %6092
      %6094 = vrot.lane.b32.xlu0 %v5651, 17
      %v6095 = vpop.permute.xlu0 %6094
      %6096 = vrot.lane.b32.xlu0 %v5682, 17
      %v6097 = vpop.permute.xlu0 %6096
      %6098 = vrot.lane.b32.xlu0 %v5683, 17
      %v6099 = vpop.permute.xlu0 %6098
      %6100 = vrot.lane.b32.xlu0 %v5684, 17
      %v6101 = vpop.permute.xlu0 %6100
      %6102 = vrot.lane.b32.xlu0 %v5657, 17
      %v6103 = vpop.permute.xlu0 %6102
      %6104 = vrot.lane.b32.xlu0 %v5659, 17
      %v6105 = vpop.permute.xlu0 %6104
      %6106 = vrot.lane.b32.xlu0 %v5685, 17
      %v6107 = vpop.permute.xlu0 %6106
      %6108 = vrot.lane.b32.xlu0 %v5686, 17
      %v6109 = vpop.permute.xlu0 %6108
      %6110 = vrot.lane.b32.xlu0 %v5687, 17
      %v6111 = vpop.permute.xlu0 %6110
      %6112 = vrot.lane.b32.xlu0 %v5665, 17
      %v6113 = vpop.permute.xlu0 %6112
      %6114 = vrot.lane.b32.xlu0 %v5667, 17
      %v6115 = vpop.permute.xlu0 %6114
      %6116 = vrot.lane.b32.xlu0 %v5688, 17
      %v6117 = vpop.permute.xlu0 %6116
      %6118 = vrot.lane.b32.xlu0 %v5689, 17
      %v6119 = vpop.permute.xlu0 %6118
      %6120 = vrot.lane.b32.xlu0 %v5690, 17
      %v6121 = vpop.permute.xlu0 %6120
      %6122 = vrot.lane.b32.xlu0 %v5673, 17
      %v6123 = vpop.permute.xlu0 %6122
      %6124 = vrot.lane.b32.xlu0 %v5675, 17
      %v6125 = vpop.permute.xlu0 %6124
      %6126 = vrot.lane.b32.xlu0 %v5691, 17
      %v6127 = vpop.permute.xlu0 %6126
      %6128 = vrot.lane.b32.xlu0 %v5692, 17
      %v6129 = vpop.permute.xlu0 %6128
      %6130 = vrot.lane.b32.xlu0 %v5693, 17
      %v6131 = vpop.permute.xlu0 %6130
      %6132 = vrot.lane.b32.xlu0 %v5681, 17
      %v6133 = vpop.permute.xlu0 %6132
      %6134 = vrot.lane.b32.xlu0 %v5695, 17
      %v6135 = vpop.permute.xlu0 %6134
      %6136 = vrot.lane.b32.xlu0 %v5726, 17
      %v6137 = vpop.permute.xlu0 %6136
      %6138 = vrot.lane.b32.xlu0 %v5727, 17
      %v6139 = vpop.permute.xlu0 %6138
      %6140 = vrot.lane.b32.xlu0 %v5728, 17
      %v6141 = vpop.permute.xlu0 %6140
      %6142 = vrot.lane.b32.xlu0 %v5701, 17
      %v6143 = vpop.permute.xlu0 %6142
      %6144 = vrot.lane.b32.xlu0 %v5703, 17
      %v6145 = vpop.permute.xlu0 %6144
      %6146 = vrot.lane.b32.xlu0 %v5729, 17
      %v6147 = vpop.permute.xlu0 %6146
      %6148 = vrot.lane.b32.xlu0 %v5730, 17
      %v6149 = vpop.permute.xlu0 %6148
      %6150 = vrot.lane.b32.xlu0 %v5731, 17
      %v6151 = vpop.permute.xlu0 %6150
      %6152 = vrot.lane.b32.xlu0 %v5709, 17
      %v6153 = vpop.permute.xlu0 %6152
      %6154 = vrot.lane.b32.xlu0 %v5711, 17
      %v6155 = vpop.permute.xlu0 %6154
      %6156 = vrot.lane.b32.xlu0 %v5732, 17
      %v6157 = vpop.permute.xlu0 %6156
      %6158 = vrot.lane.b32.xlu0 %v5733, 17
      %v6159 = vpop.permute.xlu0 %6158
      %6160 = vrot.lane.b32.xlu0 %v5734, 17
      %v6161 = vpop.permute.xlu0 %6160
      %6162 = vrot.lane.b32.xlu0 %v5717, 17
      %v6163 = vpop.permute.xlu0 %6162
      %6164 = vrot.lane.b32.xlu0 %v5719, 17
      %v6165 = vpop.permute.xlu0 %6164
      %6166 = vrot.lane.b32.xlu0 %v5735, 17
      %v6167 = vpop.permute.xlu0 %6166
      %6168 = vrot.lane.b32.xlu0 %v5736, 17
      %v6169 = vpop.permute.xlu0 %6168
      %6170 = vrot.lane.b32.xlu0 %v5737, 17
      %v6171 = vpop.permute.xlu0 %6170
      %6172 = vrot.lane.b32.xlu0 %v5725, 17
      %v6173 = vpop.permute.xlu0 %6172
      %6174 = vrot.lane.b32.xlu0 %v5755, 17
      %v6175 = vpop.permute.xlu0 %6174
      %6176 = vrot.lane.b32.xlu0 %v5786, 17
      %v6177 = vpop.permute.xlu0 %6176
      %6178 = vrot.lane.b32.xlu0 %v5787, 17
      %v6179 = vpop.permute.xlu0 %6178
      %6180 = vrot.lane.b32.xlu0 %v5788, 17
      %v6181 = vpop.permute.xlu0 %6180
      %6182 = vrot.lane.b32.xlu0 %v5761, 17
      %v6183 = vpop.permute.xlu0 %6182
      %6184 = vrot.lane.b32.xlu0 %v5763, 17
      %v6185 = vpop.permute.xlu0 %6184
      %6186 = vrot.lane.b32.xlu0 %v5789, 17
      %v6187 = vpop.permute.xlu0 %6186
      %6188 = vrot.lane.b32.xlu0 %v5790, 17
      %v6189 = vpop.permute.xlu0 %6188
      %6190 = vrot.lane.b32.xlu0 %v5791, 17
      %v6191 = vpop.permute.xlu0 %6190
      %6192 = vrot.lane.b32.xlu0 %v5769, 17
      %v6193 = vpop.permute.xlu0 %6192
      %6194 = vrot.lane.b32.xlu0 %v5771, 17
      %v6195 = vpop.permute.xlu0 %6194
      %6196 = vrot.lane.b32.xlu0 %v5792, 17
      %v6197 = vpop.permute.xlu0 %6196
      %6198 = vrot.lane.b32.xlu0 %v5793, 17
      %v6199 = vpop.permute.xlu0 %6198
      %6200 = vrot.lane.b32.xlu0 %v5794, 17
      %v6201 = vpop.permute.xlu0 %6200
      %6202 = vrot.lane.b32.xlu0 %v5777, 17
      %v6203 = vpop.permute.xlu0 %6202
      %6204 = vrot.lane.b32.xlu0 %v5779, 17
      %v6205 = vpop.permute.xlu0 %6204
      %6206 = vrot.lane.b32.xlu0 %v5795, 17
      %v6207 = vpop.permute.xlu0 %6206
      %6208 = vrot.lane.b32.xlu0 %v5796, 17
      %v6209 = vpop.permute.xlu0 %6208
      %6210 = vrot.lane.b32.xlu0 %v5797, 17
      %v6211 = vpop.permute.xlu0 %6210
      %6212 = vrot.lane.b32.xlu0 %v5785, 17
      %v6213 = vpop.permute.xlu0 %6212
      %v6214 = vsel %vm840, %v5855, %v5857
      %v6215 = vsel %vm840, %v5857, %v5859
      %v6216 = vsel %vm840, %v5859, %v5861
      %v6217 = vsel %vm840, %v5861, %v5863
      %v6218 = vsel %vm840, %v5865, %v5867
      %v6219 = vsel %vm840, %v5867, %v5869
      %v6220 = vsel %vm840, %v5869, %v5871
      %v6221 = vsel %vm840, %v5871, %v5873
      %v6222 = vsel %vm840, %v5875, %v5877
      %v6223 = vsel %vm840, %v5877, %v5879
      %v6224 = vsel %vm840, %v5879, %v5881
      %v6225 = vsel %vm840, %v5881, %v5883
      %v6226 = vsel %vm840, %v5885, %v5887
      %v6227 = vsel %vm840, %v5887, %v5889
      %v6228 = vsel %vm840, %v5889, %v5891
      %v6229 = vsel %vm840, %v5891, %v5893
      %v6230 = vsel %vm840, %v5895, %v5897
      %v6231 = vsel %vm840, %v5897, %v5899
      %v6232 = vsel %vm840, %v5899, %v5901
      %v6233 = vsel %vm840, %v5901, %v5903
      %v6234 = vsel %vm840, %v5905, %v5907
      %v6235 = vsel %vm840, %v5907, %v5909
      %v6236 = vsel %vm840, %v5909, %v5911
      %v6237 = vsel %vm840, %v5911, %v5913
      %v6238 = vsel %vm840, %v5915, %v5917
      %v6239 = vsel %vm840, %v5917, %v5919
      %v6240 = vsel %vm840, %v5919, %v5921
      %v6241 = vsel %vm840, %v5921, %v5923
      %v6242 = vsel %vm840, %v5925, %v5927
      %v6243 = vsel %vm840, %v5927, %v5929
      %v6244 = vsel %vm840, %v5929, %v5931
      %v6245 = vsel %vm840, %v5931, %v5933
      %v6246 = vsel %vm840, %v5935, %v5937
      %v6247 = vsel %vm840, %v5937, %v5939
      %v6248 = vsel %vm840, %v5939, %v5941
      %v6249 = vsel %vm840, %v5941, %v5943
      %v6250 = vsel %vm840, %v5945, %v5947
      %v6251 = vsel %vm840, %v5947, %v5949
      %v6252 = vsel %vm840, %v5949, %v5951
      %v6253 = vsel %vm840, %v5951, %v5953
      %v6254 = vsel %vm840, %v5955, %v5957
      %v6255 = vsel %vm840, %v5957, %v5959
      %v6256 = vsel %vm840, %v5959, %v5961
      %v6257 = vsel %vm840, %v5961, %v5963
      %v6258 = vsel %vm840, %v5965, %v5967
      %v6259 = vsel %vm840, %v5967, %v5969
      %v6260 = vsel %vm840, %v5969, %v5971
      %v6261 = vsel %vm840, %v5971, %v5973
      %v6262 = vsel %vm840, %v5975, %v5977
      %v6263 = vsel %vm840, %v5977, %v5979
      %v6264 = vsel %vm840, %v5979, %v5981
      %v6265 = vsel %vm840, %v5981, %v5983
      %v6266 = vsel %vm840, %v5985, %v5987
      %v6267 = vsel %vm840, %v5987, %v5989
      %v6268 = vsel %vm840, %v5989, %v5991
      %v6269 = vsel %vm840, %v5991, %v5993
      %v6270 = vsel %vm840, %v5995, %v5997
      %v6271 = vsel %vm840, %v5997, %v5999
      %v6272 = vsel %vm840, %v5999, %v6001
      %v6273 = vsel %vm840, %v6001, %v6003
      %v6274 = vsel %vm840, %v6005, %v6007
      %v6275 = vsel %vm840, %v6007, %v6009
      %v6276 = vsel %vm840, %v6009, %v6011
      %v6277 = vsel %vm840, %v6011, %v6013
      %v6278 = vsel %vm840, %v6015, %v6017
      %v6279 = vsel %vm840, %v6017, %v6019
      %v6280 = vsel %vm840, %v6019, %v6021
      %v6281 = vsel %vm840, %v6021, %v6023
      %v6282 = vsel %vm840, %v6025, %v6027
      %v6283 = vsel %vm840, %v6027, %v6029
      %v6284 = vsel %vm840, %v6029, %v6031
      %v6285 = vsel %vm840, %v6031, %v6033
      %v6286 = vsel %vm840, %v6035, %v6037
      %v6287 = vsel %vm840, %v6037, %v6039
      %v6288 = vsel %vm840, %v6039, %v6041
      %v6289 = vsel %vm840, %v6041, %v6043
      %v6290 = vsel %vm840, %v6045, %v6047
      %v6291 = vsel %vm840, %v6047, %v6049
      %v6292 = vsel %vm840, %v6049, %v6051
      %v6293 = vsel %vm840, %v6051, %v6053
      %v6294 = vsel %vm840, %v6055, %v6057
      %v6295 = vsel %vm840, %v6057, %v6059
      %v6296 = vsel %vm840, %v6059, %v6061
      %v6297 = vsel %vm840, %v6061, %v6063
      %v6298 = vsel %vm840, %v6065, %v6067
      %v6299 = vsel %vm840, %v6067, %v6069
      %v6300 = vsel %vm840, %v6069, %v6071
      %v6301 = vsel %vm840, %v6071, %v6073
      %v6302 = vsel %vm840, %v6075, %v6077
      %v6303 = vsel %vm840, %v6077, %v6079
      %v6304 = vsel %vm840, %v6079, %v6081
      %v6305 = vsel %vm840, %v6081, %v6083
      %v6306 = vsel %vm840, %v6085, %v6087
      %v6307 = vsel %vm840, %v6087, %v6089
      %v6308 = vsel %vm840, %v6089, %v6091
      %v6309 = vsel %vm840, %v6091, %v6093
      %v6310 = vsel %vm840, %v6095, %v6097
      %v6311 = vsel %vm840, %v6097, %v6099
      %v6312 = vsel %vm840, %v6099, %v6101
      %v6313 = vsel %vm840, %v6101, %v6103
      %v6314 = vsel %vm840, %v6105, %v6107
      %v6315 = vsel %vm840, %v6107, %v6109
      %v6316 = vsel %vm840, %v6109, %v6111
      %v6317 = vsel %vm840, %v6111, %v6113
      %v6318 = vsel %vm840, %v6115, %v6117
      %v6319 = vsel %vm840, %v6117, %v6119
      %v6320 = vsel %vm840, %v6119, %v6121
      %v6321 = vsel %vm840, %v6121, %v6123
      %v6322 = vsel %vm840, %v6125, %v6127
      %v6323 = vsel %vm840, %v6127, %v6129
      %v6324 = vsel %vm840, %v6129, %v6131
      %v6325 = vsel %vm840, %v6131, %v6133
      %v6326 = vsel %vm840, %v6135, %v6137
      %v6327 = vsel %vm840, %v6137, %v6139
      %v6328 = vsel %vm840, %v6139, %v6141
      %v6329 = vsel %vm840, %v6141, %v6143
      %v6330 = vsel %vm840, %v6145, %v6147
      %v6331 = vsel %vm840, %v6147, %v6149
      %v6332 = vsel %vm840, %v6149, %v6151
      %v6333 = vsel %vm840, %v6151, %v6153
      %v6334 = vsel %vm840, %v6155, %v6157
      %v6335 = vsel %vm840, %v6157, %v6159
      %v6336 = vsel %vm840, %v6159, %v6161
      %v6337 = vsel %vm840, %v6161, %v6163
      %v6338 = vsel %vm840, %v6165, %v6167
      %v6339 = vsel %vm840, %v6167, %v6169
      %v6340 = vsel %vm840, %v6169, %v6171
      %v6341 = vsel %vm840, %v6171, %v6173
      %v6342 = vsel %vm840, %v6175, %v6177
      %v6343 = vsel %vm840, %v6177, %v6179
      %v6344 = vsel %vm840, %v6179, %v6181
      %v6345 = vsel %vm840, %v6181, %v6183
      %v6346 = vsel %vm840, %v6185, %v6187
      %v6347 = vsel %vm840, %v6187, %v6189
      %v6348 = vsel %vm840, %v6189, %v6191
      %v6349 = vsel %vm840, %v6191, %v6193
      %v6350 = vsel %vm840, %v6195, %v6197
      %v6351 = vsel %vm840, %v6197, %v6199
      %v6352 = vsel %vm840, %v6199, %v6201
      %v6353 = vsel %vm840, %v6201, %v6203
      %v6354 = vsel %vm840, %v6205, %v6207
      %v6355 = vsel %vm840, %v6207, %v6209
      %v6356 = vsel %vm840, %v6209, %v6211
      %v6357 = vsel %vm840, %v6211, %v6213
      %v6503 = vsel %vm4593, %v5800, 0
      %v6506 = vsel %vm4593, %v5803, 0
      %v6509 = vsel %vm4593, %v5806, 0
      %v6512 = vsel %vm4593, %v5809, 0
      %6514 = vmatpush.msra.mxu0 %v6274
      %6515 = vmatpush.msra.mxu0 %v6270
      %6516 = vmatpush.msra.mxu0 %v6266
      %6517 = vmatpush.msra.mxu0 %v6262
      %6518 = vmatpush.msra.mxu0 %v6258
      %6519 = vmatpush.msra.mxu0 %v6254
      %6520 = vmatpush.msra.mxu0 %v6250
      %6521 = vmatpush.msra.mxu0 %v6246
      %6522 = vmatpush.msra.mxu0 %v6242
      %6523 = vmatpush.msra.mxu0 %v6238
      %6524 = vmatpush.msra.mxu0 %v6234
      %6525 = vmatpush.msra.mxu0 %v6230
      %6526 = vmatpush.msra.mxu0 %v6226
      %6527 = vmatpush.msra.mxu0 %v6222
      %6528 = vmatpush.msra.mxu0 %v6218
      %6529 = vmatpush.msra.mxu0 %v6214
      %6530 = vmatmul.f32.gmra.mxu0 %v5798
      %v6531 = vpop.f32.mrf.mxu0
      %v6532 = vadd.f32 %v5817, %v6531
      %6533 = vmatmul.f32.gmra.mxu0 %v5801
      %v6534 = vpop.f32.mrf.mxu0
      %v6535 = vadd.f32 %v5822, %v6534
      %6536 = vmatmul.f32.gmra.mxu0 %v5804
      %v6537 = vpop.f32.mrf.mxu0
      %v6538 = vadd.f32 %v5827, %v6537
      %6539 = vmatmul.f32.gmra.mxu0 %v5807
      %v6540 = vpop.f32.mrf.mxu0
      %v6541 = vadd.f32 %v5832, %v6540
      %6542 = vdwg.mxu0
      %6543 = vmatpush.msra.mxu0 %v6338
      %6544 = vmatpush.msra.mxu0 %v6334
      %6545 = vmatpush.msra.mxu0 %v6330
      %6546 = vmatpush.msra.mxu0 %v6326
      %6547 = vmatpush.msra.mxu0 %v6322
      %6548 = vmatpush.msra.mxu0 %v6318
      %6549 = vmatpush.msra.mxu0 %v6314
      %6550 = vmatpush.msra.mxu0 %v6310
      %6551 = vmatpush.msra.mxu0 %v6306
      %6552 = vmatpush.msra.mxu0 %v6302
      %6553 = vmatpush.msra.mxu0 %v6298
      %6554 = vmatpush.msra.mxu0 %v6294
      %6555 = vmatpush.msra.mxu0 %v6290
      %6556 = vmatpush.msra.mxu0 %v6286
      %6557 = vmatpush.msra.mxu0 %v6282
      %6558 = vmatpush.msra.mxu0 %v6278
      %6559 = vmatmul.f32.gmra.mxu0 %v5799
      %v6560 = vpop.f32.mrf.mxu0
      %v6561 = vadd.f32 %v6532, %v6560
      %6562 = vmatmul.f32.gmra.mxu0 %v5802
      %v6563 = vpop.f32.mrf.mxu0
      %v6564 = vadd.f32 %v6535, %v6563
      %6565 = vmatmul.f32.gmra.mxu0 %v5805
      %v6566 = vpop.f32.mrf.mxu0
      %v6567 = vadd.f32 %v6538, %v6566
      %6568 = vmatmul.f32.gmra.mxu0 %v5808
      %v6569 = vpop.f32.mrf.mxu0
      %v6570 = vadd.f32 %v6541, %v6569
      %6571 = vdwg.mxu0
      %6572 = vmatpush.msra.mxu0 0.0
      %6573 = vmatpush.msra.mxu0 0.0
      %6574 = vmatpush.msra.mxu0 0.0
      %6575 = vmatpush.msra.mxu0 0.0
      %6576 = vmatpush.msra.mxu0 0.0
      %6577 = vmatpush.msra.mxu0 0.0
      %6578 = vmatpush.msra.mxu0 0.0
      %6579 = vmatpush.msra.mxu0 0.0
      %6580 = vmatpush.msra.mxu0 0.0
      %6581 = vmatpush.msra.mxu0 0.0
      %6582 = vmatpush.msra.mxu0 0.0
      %6583 = vmatpush.msra.mxu0 0.0
      %6584 = vmatpush.msra.mxu0 %v6354
      %6585 = vmatpush.msra.mxu0 %v6350
      %6586 = vmatpush.msra.mxu0 %v6346
      %6587 = vmatpush.msra.mxu0 %v6342
      %6588 = vmatmul.f32.gmra.mxu0 %v6503
      %v6589 = vpop.f32.mrf.mxu0
      %v6590 = vadd.f32 %v6561, %v6589
      %6591 = vmatmul.f32.gmra.mxu0 %v6506
      %v6592 = vpop.f32.mrf.mxu0
      %v6593 = vadd.f32 %v6564, %v6592
      %6594 = vmatmul.f32.gmra.mxu0 %v6509
      %v6595 = vpop.f32.mrf.mxu0
      %v6596 = vadd.f32 %v6567, %v6595
      %6597 = vmatmul.f32.gmra.mxu0 %v6512
      %v6598 = vpop.f32.mrf.mxu0
      %v6599 = vadd.f32 %v6570, %v6598
      %6600 = vdwg.mxu0
      %6601 = vmatpush.msra.mxu0 %v6275
      %6602 = vmatpush.msra.mxu0 %v6271
      %6603 = vmatpush.msra.mxu0 %v6267
      %6604 = vmatpush.msra.mxu0 %v6263
      %6605 = vmatpush.msra.mxu0 %v6259
      %6606 = vmatpush.msra.mxu0 %v6255
      %6607 = vmatpush.msra.mxu0 %v6251
      %6608 = vmatpush.msra.mxu0 %v6247
      %6609 = vmatpush.msra.mxu0 %v6243
      %6610 = vmatpush.msra.mxu0 %v6239
      %6611 = vmatpush.msra.mxu0 %v6235
      %6612 = vmatpush.msra.mxu0 %v6231
      %6613 = vmatpush.msra.mxu0 %v6227
      %6614 = vmatpush.msra.mxu0 %v6223
      %6615 = vmatpush.msra.mxu0 %v6219
      %6616 = vmatpush.msra.mxu0 %v6215
      %6617 = vmatmul.f32.gmra.mxu0 %v5798
      %v6618 = vpop.f32.mrf.mxu0
      %v6619 = vadd.f32 %v5817, %v6618
      %6620 = vmatmul.f32.gmra.mxu0 %v5801
      %v6621 = vpop.f32.mrf.mxu0
      %v6622 = vadd.f32 %v5822, %v6621
      %6623 = vmatmul.f32.gmra.mxu0 %v5804
      %v6624 = vpop.f32.mrf.mxu0
      %v6625 = vadd.f32 %v5827, %v6624
      %6626 = vmatmul.f32.gmra.mxu0 %v5807
      %v6627 = vpop.f32.mrf.mxu0
      %v6628 = vadd.f32 %v5832, %v6627
      %6629 = vdwg.mxu0
      %6630 = vmatpush.msra.mxu0 %v6339
      %6631 = vmatpush.msra.mxu0 %v6335
      %6632 = vmatpush.msra.mxu0 %v6331
      %6633 = vmatpush.msra.mxu0 %v6327
      %6634 = vmatpush.msra.mxu0 %v6323
      %6635 = vmatpush.msra.mxu0 %v6319
      %6636 = vmatpush.msra.mxu0 %v6315
      %6637 = vmatpush.msra.mxu0 %v6311
      %6638 = vmatpush.msra.mxu0 %v6307
      %6639 = vmatpush.msra.mxu0 %v6303
      %6640 = vmatpush.msra.mxu0 %v6299
      %6641 = vmatpush.msra.mxu0 %v6295
      %6642 = vmatpush.msra.mxu0 %v6291
      %6643 = vmatpush.msra.mxu0 %v6287
      %6644 = vmatpush.msra.mxu0 %v6283
      %6645 = vmatpush.msra.mxu0 %v6279
      %6646 = vmatmul.f32.gmra.mxu0 %v5799
      %v6647 = vpop.f32.mrf.mxu0
      %v6648 = vadd.f32 %v6619, %v6647
      %6649 = vmatmul.f32.gmra.mxu0 %v5802
      %v6650 = vpop.f32.mrf.mxu0
      %v6651 = vadd.f32 %v6622, %v6650
      %6652 = vmatmul.f32.gmra.mxu0 %v5805
      %v6653 = vpop.f32.mrf.mxu0
      %v6654 = vadd.f32 %v6625, %v6653
      %6655 = vmatmul.f32.gmra.mxu0 %v5808
      %v6656 = vpop.f32.mrf.mxu0
      %v6657 = vadd.f32 %v6628, %v6656
      %6658 = vdwg.mxu0
      %6659 = vmatpush.msra.mxu0 0.0
      %6660 = vmatpush.msra.mxu0 0.0
      %6661 = vmatpush.msra.mxu0 0.0
      %6662 = vmatpush.msra.mxu0 0.0
      %6663 = vmatpush.msra.mxu0 0.0
      %6664 = vmatpush.msra.mxu0 0.0
      %6665 = vmatpush.msra.mxu0 0.0
      %6666 = vmatpush.msra.mxu0 0.0
      %6667 = vmatpush.msra.mxu0 0.0
      %6668 = vmatpush.msra.mxu0 0.0
      %6669 = vmatpush.msra.mxu0 0.0
      %6670 = vmatpush.msra.mxu0 0.0
      %6671 = vmatpush.msra.mxu0 %v6355
      %6672 = vmatpush.msra.mxu0 %v6351
      %6673 = vmatpush.msra.mxu0 %v6347
      %6674 = vmatpush.msra.mxu0 %v6343
      %6675 = vmatmul.f32.gmra.mxu0 %v6503
      %v6676 = vpop.f32.mrf.mxu0
      %v6677 = vadd.f32 %v6648, %v6676
      %6678 = vmatmul.f32.gmra.mxu0 %v6506
      %v6679 = vpop.f32.mrf.mxu0
      %v6680 = vadd.f32 %v6651, %v6679
      %6681 = vmatmul.f32.gmra.mxu0 %v6509
      %v6682 = vpop.f32.mrf.mxu0
      %v6683 = vadd.f32 %v6654, %v6682
      %6684 = vmatmul.f32.gmra.mxu0 %v6512
      %v6685 = vpop.f32.mrf.mxu0
      %v6686 = vadd.f32 %v6657, %v6685
      %6687 = vdwg.mxu0
      %6688 = vmatpush.msra.mxu0 %v6276
      %6689 = vmatpush.msra.mxu0 %v6272
      %6690 = vmatpush.msra.mxu0 %v6268
      %6691 = vmatpush.msra.mxu0 %v6264
      %6692 = vmatpush.msra.mxu0 %v6260
      %6693 = vmatpush.msra.mxu0 %v6256
      %6694 = vmatpush.msra.mxu0 %v6252
      %6695 = vmatpush.msra.mxu0 %v6248
      %6696 = vmatpush.msra.mxu0 %v6244
      %6697 = vmatpush.msra.mxu0 %v6240
      %6698 = vmatpush.msra.mxu0 %v6236
      %6699 = vmatpush.msra.mxu0 %v6232
      %6700 = vmatpush.msra.mxu0 %v6228
      %6701 = vmatpush.msra.mxu0 %v6224
      %6702 = vmatpush.msra.mxu0 %v6220
      %6703 = vmatpush.msra.mxu0 %v6216
      %6704 = vmatmul.f32.gmra.mxu0 %v5798
      %v6705 = vpop.f32.mrf.mxu0
      %v6706 = vadd.f32 %v5817, %v6705
      %6707 = vmatmul.f32.gmra.mxu0 %v5801
      %v6708 = vpop.f32.mrf.mxu0
      %v6709 = vadd.f32 %v5822, %v6708
      %6710 = vmatmul.f32.gmra.mxu0 %v5804
      %v6711 = vpop.f32.mrf.mxu0
      %v6712 = vadd.f32 %v5827, %v6711
      %6713 = vmatmul.f32.gmra.mxu0 %v5807
      %v6714 = vpop.f32.mrf.mxu0
      %v6715 = vadd.f32 %v5832, %v6714
      %6716 = vdwg.mxu0
      %6717 = vmatpush.msra.mxu0 %v6340
      %6718 = vmatpush.msra.mxu0 %v6336
      %6719 = vmatpush.msra.mxu0 %v6332
      %6720 = vmatpush.msra.mxu0 %v6328
      %6721 = vmatpush.msra.mxu0 %v6324
      %6722 = vmatpush.msra.mxu0 %v6320
      %6723 = vmatpush.msra.mxu0 %v6316
      %6724 = vmatpush.msra.mxu0 %v6312
      %6725 = vmatpush.msra.mxu0 %v6308
      %6726 = vmatpush.msra.mxu0 %v6304
      %6727 = vmatpush.msra.mxu0 %v6300
      %6728 = vmatpush.msra.mxu0 %v6296
      %6729 = vmatpush.msra.mxu0 %v6292
      %6730 = vmatpush.msra.mxu0 %v6288
      %6731 = vmatpush.msra.mxu0 %v6284
      %6732 = vmatpush.msra.mxu0 %v6280
      %6733 = vmatmul.f32.gmra.mxu0 %v5799
      %v6734 = vpop.f32.mrf.mxu0
      %v6735 = vadd.f32 %v6706, %v6734
      %6736 = vmatmul.f32.gmra.mxu0 %v5802
      %v6737 = vpop.f32.mrf.mxu0
      %v6738 = vadd.f32 %v6709, %v6737
      %6739 = vmatmul.f32.gmra.mxu0 %v5805
      %v6740 = vpop.f32.mrf.mxu0
      %v6741 = vadd.f32 %v6712, %v6740
      %6742 = vmatmul.f32.gmra.mxu0 %v5808
      %v6743 = vpop.f32.mrf.mxu0
      %v6744 = vadd.f32 %v6715, %v6743
      %6745 = vdwg.mxu0
      %6746 = vmatpush.msra.mxu0 0.0
      %6747 = vmatpush.msra.mxu0 0.0
      %6748 = vmatpush.msra.mxu0 0.0
      %6749 = vmatpush.msra.mxu0 0.0
      %6750 = vmatpush.msra.mxu0 0.0
      %6751 = vmatpush.msra.mxu0 0.0
      %6752 = vmatpush.msra.mxu0 0.0
      %6753 = vmatpush.msra.mxu0 0.0
      %6754 = vmatpush.msra.mxu0 0.0
      %6755 = vmatpush.msra.mxu0 0.0
      %6756 = vmatpush.msra.mxu0 0.0
      %6757 = vmatpush.msra.mxu0 0.0
      %6758 = vmatpush.msra.mxu0 %v6356
      %6759 = vmatpush.msra.mxu0 %v6352
      %6760 = vmatpush.msra.mxu0 %v6348
      %6761 = vmatpush.msra.mxu0 %v6344
      %6762 = vmatmul.f32.gmra.mxu0 %v6503
      %v6763 = vpop.f32.mrf.mxu0
      %v6764 = vadd.f32 %v6735, %v6763
      %6765 = vmatmul.f32.gmra.mxu0 %v6506
      %v6766 = vpop.f32.mrf.mxu0
      %v6767 = vadd.f32 %v6738, %v6766
      %6768 = vmatmul.f32.gmra.mxu0 %v6509
      %v6769 = vpop.f32.mrf.mxu0
      %v6770 = vadd.f32 %v6741, %v6769
      %6771 = vmatmul.f32.gmra.mxu0 %v6512
      %v6772 = vpop.f32.mrf.mxu0
      %v6773 = vadd.f32 %v6744, %v6772
      %6774 = vdwg.mxu0
      %6775 = vmatpush.msra.mxu0 %v6277
      %6776 = vmatpush.msra.mxu0 %v6273
      %6777 = vmatpush.msra.mxu0 %v6269
      %6778 = vmatpush.msra.mxu0 %v6265
      %6779 = vmatpush.msra.mxu0 %v6261
      %6780 = vmatpush.msra.mxu0 %v6257
      %6781 = vmatpush.msra.mxu0 %v6253
      %6782 = vmatpush.msra.mxu0 %v6249
      %6783 = vmatpush.msra.mxu0 %v6245
      %6784 = vmatpush.msra.mxu0 %v6241
      %6785 = vmatpush.msra.mxu0 %v6237
      %6786 = vmatpush.msra.mxu0 %v6233
      %6787 = vmatpush.msra.mxu0 %v6229
      %6788 = vmatpush.msra.mxu0 %v6225
      %6789 = vmatpush.msra.mxu0 %v6221
      %6790 = vmatpush.msra.mxu0 %v6217
      %6791 = vmatmul.f32.gmra.mxu0 %v5798
      %v6792 = vpop.f32.mrf.mxu0
      %v6793 = vadd.f32 %v5817, %v6792
      %6794 = vmatmul.f32.gmra.mxu0 %v5801
      %v6795 = vpop.f32.mrf.mxu0
      %v6796 = vadd.f32 %v5822, %v6795
      %6797 = vmatmul.f32.gmra.mxu0 %v5804
      %v6798 = vpop.f32.mrf.mxu0
      %v6799 = vadd.f32 %v5827, %v6798
      %6800 = vmatmul.f32.gmra.mxu0 %v5807
      %v6801 = vpop.f32.mrf.mxu0
      %v6802 = vadd.f32 %v5832, %v6801
      %6803 = vdwg.mxu0
      %6804 = vmatpush.msra.mxu0 %v6341
      %6805 = vmatpush.msra.mxu0 %v6337
      %6806 = vmatpush.msra.mxu0 %v6333
      %6807 = vmatpush.msra.mxu0 %v6329
      %6808 = vmatpush.msra.mxu0 %v6325
      %6809 = vmatpush.msra.mxu0 %v6321
      %6810 = vmatpush.msra.mxu0 %v6317
      %6811 = vmatpush.msra.mxu0 %v6313
      %6812 = vmatpush.msra.mxu0 %v6309
      %6813 = vmatpush.msra.mxu0 %v6305
      %6814 = vmatpush.msra.mxu0 %v6301
      %6815 = vmatpush.msra.mxu0 %v6297
      %6816 = vmatpush.msra.mxu0 %v6293
      %6817 = vmatpush.msra.mxu0 %v6289
      %6818 = vmatpush.msra.mxu0 %v6285
      %6819 = vmatpush.msra.mxu0 %v6281
      %6820 = vmatmul.f32.gmra.mxu0 %v5799
      %v6821 = vpop.f32.mrf.mxu0
      %v6822 = vadd.f32 %v6793, %v6821
      %6823 = vmatmul.f32.gmra.mxu0 %v5802
      %v6824 = vpop.f32.mrf.mxu0
      %v6825 = vadd.f32 %v6796, %v6824
      %6826 = vmatmul.f32.gmra.mxu0 %v5805
      %v6827 = vpop.f32.mrf.mxu0
      %v6828 = vadd.f32 %v6799, %v6827
      %6829 = vmatmul.f32.gmra.mxu0 %v5808
      %v6830 = vpop.f32.mrf.mxu0
      %v6831 = vadd.f32 %v6802, %v6830
      %6832 = vdwg.mxu0
      %6833 = vmatpush.msra.mxu0 0.0
      %6834 = vmatpush.msra.mxu0 0.0
      %6835 = vmatpush.msra.mxu0 0.0
      %6836 = vmatpush.msra.mxu0 0.0
      %6837 = vmatpush.msra.mxu0 0.0
      %6838 = vmatpush.msra.mxu0 0.0
      %6839 = vmatpush.msra.mxu0 0.0
      %6840 = vmatpush.msra.mxu0 0.0
      %6841 = vmatpush.msra.mxu0 0.0
      %6842 = vmatpush.msra.mxu0 0.0
      %6843 = vmatpush.msra.mxu0 0.0
      %6844 = vmatpush.msra.mxu0 0.0
      %6845 = vmatpush.msra.mxu0 %v6357
      %6846 = vmatpush.msra.mxu0 %v6353
      %6847 = vmatpush.msra.mxu0 %v6349
      %6848 = vmatpush.msra.mxu0 %v6345
      %6849 = vmatmul.f32.gmra.mxu0 %v6503
      %v6850 = vpop.f32.mrf.mxu0
      %v6851 = vadd.f32 %v6822, %v6850
      %6852 = vmatmul.f32.gmra.mxu0 %v6506
      %v6853 = vpop.f32.mrf.mxu0
      %v6854 = vadd.f32 %v6825, %v6853
      %6855 = vmatmul.f32.gmra.mxu0 %v6509
      %v6856 = vpop.f32.mrf.mxu0
      %v6857 = vadd.f32 %v6828, %v6856
      %6858 = vmatmul.f32.gmra.mxu0 %v6512
      %v6859 = vpop.f32.mrf.mxu0
      %v6860 = vadd.f32 %v6831, %v6859
      %6861 = vdwg.mxu0
      %v6862 = vmax.f32 %v6590, 0.0
      %v6863 = vmax.f32 %v6677, 0.0
      %v6864 = vmax.f32 %v6764, 0.0
      %v6865 = vmax.f32 %v6851, 0.0
      %v6866 = vmax.f32 %v6593, 0.0
      %v6867 = vmax.f32 %v6680, 0.0
      %v6868 = vmax.f32 %v6767, 0.0
      %v6869 = vmax.f32 %v6854, 0.0
      %v6870 = vmax.f32 %v6596, 0.0
      %v6871 = vmax.f32 %v6683, 0.0
      %v6872 = vmax.f32 %v6770, 0.0
      %v6873 = vmax.f32 %v6857, 0.0
      %v6874 = vmax.f32 %v6599, 0.0
      %v6875 = vmax.f32 %v6686, 0.0
      %v6876 = vmax.f32 %v6773, 0.0
      %v6877 = vmax.f32 %v6860, 0.0
      %v6878 = vmul.f32 %v6862, %v1277
      %v6879 = vmul.f32 %v6863, %v1278
      %v6880 = vmul.f32 %v6864, %v1279
      %v6881 = vmul.f32 %v6865, %v1280
      %v6882 = vmul.f32 %v6866, %v1277
      %v6883 = vmul.f32 %v6867, %v1278
      %v6884 = vmul.f32 %v6868, %v1279
      %v6885 = vmul.f32 %v6869, %v1280
      %v6886 = vmul.f32 %v6870, %v1277
      %v6887 = vmul.f32 %v6871, %v1278
      %v6888 = vmul.f32 %v6872, %v1279
      %v6889 = vmul.f32 %v6873, %v1280
      %v6890 = vmul.f32 %v6874, %v1277
      %v6891 = vmul.f32 %v6875, %v1278
      %v6892 = vmul.f32 %v6876, %v1279
      %v6893 = vmul.f32 %v6877, %v1280
      %6894 = vst [vmem:[#allocation2 + $0x8] sm:$0xff] %v6878
      %6895 = vst [vmem:[#allocation2 + $0x10] sm:$0xff] %v6879
      %6896 = vst [vmem:[#allocation2 + $0x18] sm:$0xff] %v6880
      %6897 = vst.msk [vmem:[#allocation2 + $0x20] sm:$0xff] %vm657, %v6881
      %6898 = vst [vmem:[#allocation2 + $0x38] sm:$0xff] %v6882
      %6899 = vst [vmem:[#allocation2 + $0x40] sm:$0xff] %v6883
      %6900 = vst [vmem:[#allocation2 + $0x48] sm:$0xff] %v6884
      %6901 = vst.msk [vmem:[#allocation2 + $0x50] sm:$0xff] %vm657, %v6885
      %6902 = vst [vmem:[#allocation2 + $0x68] sm:$0xff] %v6886
      %6903 = vst [vmem:[#allocation2 + $0x70] sm:$0xff] %v6887
      %6904 = vst [vmem:[#allocation2 + $0x78] sm:$0xff] %v6888
      %6905 = vst.msk [vmem:[#allocation2 + $0x80] sm:$0xff] %vm657, %v6889
      %6906 = vst [vmem:[#allocation2 + $0x98] sm:$0xff] %v6890
      %6907 = vst [vmem:[#allocation2 + $0xa0] sm:$0xff] %v6891
      %6908 = vst [vmem:[#allocation2 + $0xa8] sm:$0xff] %v6892
      %6909 = vst.msk [vmem:[#allocation2 + $0xb0] sm:$0xff] %vm657, %v6893
      %v6910 = vld [vmem:[#allocation2] sm:$0xff]
      %v6911 = vld [vmem:[#allocation2 + $0x8] sm:$0xff]
      %v6912 = vld [vmem:[#allocation2 + $0x10] sm:$0xff]
      %v6913 = vld [vmem:[#allocation2 + $0x18] sm:$0xff]
      %v6914 = vld [vmem:[#allocation2 + $0x20] sm:$0xff]
      %v6915 = vld [vmem:[#allocation2 + $0x30] sm:$0xff]
      %v6916 = vld [vmem:[#allocation2 + $0x38] sm:$0xff]
      %v6917 = vld [vmem:[#allocation2 + $0x40] sm:$0xff]
      %v6918 = vld [vmem:[#allocation2 + $0x48] sm:$0xff]
      %v6919 = vld [vmem:[#allocation2 + $0x50] sm:$0xff]
      %v6920 = vld [vmem:[#allocation2 + $0x60] sm:$0xff]
      %v6921 = vld [vmem:[#allocation2 + $0x68] sm:$0xff]
      %v6922 = vld [vmem:[#allocation2 + $0x70] sm:$0xff]
      %v6923 = vld [vmem:[#allocation2 + $0x78] sm:$0xff]
      %v6924 = vld [vmem:[#allocation2 + $0x80] sm:$0xff]
      %v6925 = vld [vmem:[#allocation2 + $0x90] sm:$0xff]
      %v6926 = vld [vmem:[#allocation2 + $0x98] sm:$0xff]
      %v6927 = vld [vmem:[#allocation2 + $0xa0] sm:$0xff]
      %v6928 = vld [vmem:[#allocation2 + $0xa8] sm:$0xff]
      %v6929 = vld [vmem:[#allocation2 + $0xb0] sm:$0xff]
      %v6930 = vmul.f32 %v6910, %v711
      %v6931 = vmul.f32 %v6911, %v719
      %v6932 = vmul.f32 %v6912, %v720
      %v6933 = vmul.f32 %v6913, %v721
      %v6934 = vmul.f32 %v6914, %v717
      %v6935 = vmul.f32 %v6915, %v711
      %v6936 = vmul.f32 %v6916, %v719
      %v6937 = vmul.f32 %v6917, %v720
      %v6938 = vmul.f32 %v6918, %v721
      %v6939 = vmul.f32 %v6919, %v717
      %v6940 = vmul.f32 %v6920, %v711
      %v6941 = vmul.f32 %v6921, %v719
      %v6942 = vmul.f32 %v6922, %v720
      %v6943 = vmul.f32 %v6923, %v721
      %v6944 = vmul.f32 %v6924, %v717
      %v6945 = vmul.f32 %v6925, %v711
      %v6946 = vmul.f32 %v6926, %v719
      %v6947 = vmul.f32 %v6927, %v720
      %v6948 = vmul.f32 %v6928, %v721
      %v6949 = vmul.f32 %v6929, %v717
      %v6950 = vmul.f32 %v6910, %v749
      %v6951 = vmul.f32 %v6911, %v757
      %v6952 = vmul.f32 %v6912, %v758
      %v6953 = vmul.f32 %v6913, %v759
      %v6954 = vmul.f32 %v6914, %v755
      %v6955 = vmul.f32 %v6915, %v749
      %v6956 = vmul.f32 %v6916, %v757
      %v6957 = vmul.f32 %v6917, %v758
      %v6958 = vmul.f32 %v6918, %v759
      %v6959 = vmul.f32 %v6919, %v755
      %v6960 = vmul.f32 %v6920, %v749
      %v6961 = vmul.f32 %v6921, %v757
      %v6962 = vmul.f32 %v6922, %v758
      %v6963 = vmul.f32 %v6923, %v759
      %v6964 = vmul.f32 %v6924, %v755
      %v6965 = vmul.f32 %v6925, %v749
      %v6966 = vmul.f32 %v6926, %v757
      %v6967 = vmul.f32 %v6927, %v758
      %v6968 = vmul.f32 %v6928, %v759
      %v6969 = vmul.f32 %v6929, %v755
      %v6970 = vmul.f32 %v6910, %v771
      %v6971 = vmul.f32 %v6911, %v779
      %v6972 = vmul.f32 %v6912, %v780
      %v6973 = vmul.f32 %v6913, %v781
      %v6974 = vmul.f32 %v6914, %v777
      %v6975 = vmul.f32 %v6915, %v771
      %v6976 = vmul.f32 %v6916, %v779
      %v6977 = vmul.f32 %v6917, %v780
      %v6978 = vmul.f32 %v6918, %v781
      %v6979 = vmul.f32 %v6919, %v777
      %v6980 = vmul.f32 %v6920, %v771
      %v6981 = vmul.f32 %v6921, %v779
      %v6982 = vmul.f32 %v6922, %v780
      %v6983 = vmul.f32 %v6923, %v781
      %v6984 = vmul.f32 %v6924, %v777
      %v6985 = vmul.f32 %v6925, %v771
      %v6986 = vmul.f32 %v6926, %v779
      %v6987 = vmul.f32 %v6927, %v780
      %v6988 = vmul.f32 %v6928, %v781
      %v6989 = vmul.f32 %v6929, %v777
      %v6990 = vmul.f32 %v6911, %v793
      %v6991 = vmul.f32 %v6912, %v801
      %v6992 = vmul.f32 %v6913, %v802
      %v6993 = vmul.f32 %v6914, %v803
      %v6994 = vmul.f32 %v6916, %v793
      %v6995 = vmul.f32 %v6917, %v801
      %v6996 = vmul.f32 %v6918, %v802
      %v6997 = vmul.f32 %v6919, %v803
      %v6998 = vmul.f32 %v6921, %v793
      %v6999 = vmul.f32 %v6922, %v801
      %v7000 = vmul.f32 %v6923, %v802
      %v7001 = vmul.f32 %v6924, %v803
      %v7002 = vmul.f32 %v6926, %v793
      %v7003 = vmul.f32 %v6927, %v801
      %v7004 = vmul.f32 %v6928, %v802
      %v7005 = vmul.f32 %v6929, %v803
      %v7006 = vmul.f32 %v6911, %v813
      %v7007 = vmul.f32 %v6912, %v821
      %v7008 = vmul.f32 %v6913, %v822
      %v7009 = vmul.f32 %v6914, %v823
      %v7010 = vmul.f32 %v6916, %v813
      %v7011 = vmul.f32 %v6917, %v821
      %v7012 = vmul.f32 %v6918, %v822
      %v7013 = vmul.f32 %v6919, %v823
      %v7014 = vmul.f32 %v6921, %v813
      %v7015 = vmul.f32 %v6922, %v821
      %v7016 = vmul.f32 %v6923, %v822
      %v7017 = vmul.f32 %v6924, %v823
      %v7018 = vmul.f32 %v6926, %v813
      %v7019 = vmul.f32 %v6927, %v821
      %v7020 = vmul.f32 %v6928, %v822
      %v7021 = vmul.f32 %v6929, %v823
      %v7022 = vmul.f32 %v6911, %v833
      %v7023 = vmul.f32 %v6912, %v841
      %v7024 = vmul.f32 %v6913, %v842
      %v7025 = vmul.f32 %v6914, %v843
      %v7026 = vmul.f32 %v6916, %v833
      %v7027 = vmul.f32 %v6917, %v841
      %v7028 = vmul.f32 %v6918, %v842
      %v7029 = vmul.f32 %v6919, %v843
      %v7030 = vmul.f32 %v6921, %v833
      %v7031 = vmul.f32 %v6922, %v841
      %v7032 = vmul.f32 %v6923, %v842
      %v7033 = vmul.f32 %v6924, %v843
      %v7034 = vmul.f32 %v6926, %v833
      %v7035 = vmul.f32 %v6927, %v841
      %v7036 = vmul.f32 %v6928, %v842
      %v7037 = vmul.f32 %v6929, %v843
      %7058 = vrot.lane.b32.xlu0 %v6910, 127
      %v7059 = vpop.permute.xlu0 %7058
      %7060 = vrot.lane.b32.xlu0 %v6911, 127
      %v7061 = vpop.permute.xlu0 %7060
      %7062 = vrot.lane.b32.xlu0 %v6912, 127
      %v7063 = vpop.permute.xlu0 %7062
      %7064 = vrot.lane.b32.xlu0 %v6913, 127
      %v7065 = vpop.permute.xlu0 %7064
      %7066 = vrot.lane.b32.xlu0 %v6914, 127
      %v7067 = vpop.permute.xlu0 %7066
      %7068 = vrot.lane.b32.xlu0 %v6915, 127
      %v7069 = vpop.permute.xlu0 %7068
      %7070 = vrot.lane.b32.xlu0 %v6916, 127
      %v7071 = vpop.permute.xlu0 %7070
      %7072 = vrot.lane.b32.xlu0 %v6917, 127
      %v7073 = vpop.permute.xlu0 %7072
      %7074 = vrot.lane.b32.xlu0 %v6918, 127
      %v7075 = vpop.permute.xlu0 %7074
      %7076 = vrot.lane.b32.xlu0 %v6919, 127
      %v7077 = vpop.permute.xlu0 %7076
      %7078 = vrot.lane.b32.xlu0 %v6920, 127
      %v7079 = vpop.permute.xlu0 %7078
      %7080 = vrot.lane.b32.xlu0 %v6921, 127
      %v7081 = vpop.permute.xlu0 %7080
      %7082 = vrot.lane.b32.xlu0 %v6922, 127
      %v7083 = vpop.permute.xlu0 %7082
      %7084 = vrot.lane.b32.xlu0 %v6923, 127
      %v7085 = vpop.permute.xlu0 %7084
      %7086 = vrot.lane.b32.xlu0 %v6924, 127
      %v7087 = vpop.permute.xlu0 %7086
      %7088 = vrot.lane.b32.xlu0 %v6925, 127
      %v7089 = vpop.permute.xlu0 %7088
      %7090 = vrot.lane.b32.xlu0 %v6926, 127
      %v7091 = vpop.permute.xlu0 %7090
      %7092 = vrot.lane.b32.xlu0 %v6927, 127
      %v7093 = vpop.permute.xlu0 %7092
      %7094 = vrot.lane.b32.xlu0 %v6928, 127
      %v7095 = vpop.permute.xlu0 %7094
      %7096 = vrot.lane.b32.xlu0 %v6929, 127
      %v7097 = vpop.permute.xlu0 %7096
      %v7098 = vsel %vm778, %v7059, %v7061
      %v7099 = vsel %vm778, %v7061, %v7063
      %v7100 = vsel %vm778, %v7063, %v7065
      %v7101 = vsel %vm778, %v7065, %v7067
      %v7102 = vsel %vm778, %v7069, %v7071
      %v7103 = vsel %vm778, %v7071, %v7073
      %v7104 = vsel %vm778, %v7073, %v7075
      %v7105 = vsel %vm778, %v7075, %v7077
      %v7106 = vsel %vm778, %v7079, %v7081
      %v7107 = vsel %vm778, %v7081, %v7083
      %v7108 = vsel %vm778, %v7083, %v7085
      %v7109 = vsel %vm778, %v7085, %v7087
      %v7110 = vsel %vm778, %v7089, %v7091
      %v7111 = vsel %vm778, %v7091, %v7093
      %v7112 = vsel %vm778, %v7093, %v7095
      %v7113 = vsel %vm778, %v7095, %v7097
      %7134 = vrot.lane.b32.xlu0 %v6950, 126
      %v7135 = vpop.permute.xlu0 %7134
      %7136 = vrot.lane.b32.xlu0 %v6951, 126
      %v7137 = vpop.permute.xlu0 %7136
      %7138 = vrot.lane.b32.xlu0 %v6952, 126
      %v7139 = vpop.permute.xlu0 %7138
      %7140 = vrot.lane.b32.xlu0 %v6953, 126
      %v7141 = vpop.permute.xlu0 %7140
      %7142 = vrot.lane.b32.xlu0 %v6954, 126
      %v7143 = vpop.permute.xlu0 %7142
      %7144 = vrot.lane.b32.xlu0 %v6955, 126
      %v7145 = vpop.permute.xlu0 %7144
      %7146 = vrot.lane.b32.xlu0 %v6956, 126
      %v7147 = vpop.permute.xlu0 %7146
      %7148 = vrot.lane.b32.xlu0 %v6957, 126
      %v7149 = vpop.permute.xlu0 %7148
      %7150 = vrot.lane.b32.xlu0 %v6958, 126
      %v7151 = vpop.permute.xlu0 %7150
      %7152 = vrot.lane.b32.xlu0 %v6959, 126
      %v7153 = vpop.permute.xlu0 %7152
      %7154 = vrot.lane.b32.xlu0 %v6960, 126
      %v7155 = vpop.permute.xlu0 %7154
      %7156 = vrot.lane.b32.xlu0 %v6961, 126
      %v7157 = vpop.permute.xlu0 %7156
      %7158 = vrot.lane.b32.xlu0 %v6962, 126
      %v7159 = vpop.permute.xlu0 %7158
      %7160 = vrot.lane.b32.xlu0 %v6963, 126
      %v7161 = vpop.permute.xlu0 %7160
      %7162 = vrot.lane.b32.xlu0 %v6964, 126
      %v7163 = vpop.permute.xlu0 %7162
      %7164 = vrot.lane.b32.xlu0 %v6965, 126
      %v7165 = vpop.permute.xlu0 %7164
      %7166 = vrot.lane.b32.xlu0 %v6966, 126
      %v7167 = vpop.permute.xlu0 %7166
      %7168 = vrot.lane.b32.xlu0 %v6967, 126
      %v7169 = vpop.permute.xlu0 %7168
      %7170 = vrot.lane.b32.xlu0 %v6968, 126
      %v7171 = vpop.permute.xlu0 %7170
      %7172 = vrot.lane.b32.xlu0 %v6969, 126
      %v7173 = vpop.permute.xlu0 %7172
      %v7174 = vsel %vm886, %v7135, %v7137
      %v7175 = vsel %vm886, %v7137, %v7139
      %v7176 = vsel %vm886, %v7139, %v7141
      %v7177 = vsel %vm886, %v7141, %v7143
      %v7178 = vsel %vm886, %v7145, %v7147
      %v7179 = vsel %vm886, %v7147, %v7149
      %v7180 = vsel %vm886, %v7149, %v7151
      %v7181 = vsel %vm886, %v7151, %v7153
      %v7182 = vsel %vm886, %v7155, %v7157
      %v7183 = vsel %vm886, %v7157, %v7159
      %v7184 = vsel %vm886, %v7159, %v7161
      %v7185 = vsel %vm886, %v7161, %v7163
      %v7186 = vsel %vm886, %v7165, %v7167
      %v7187 = vsel %vm886, %v7167, %v7169
      %v7188 = vsel %vm886, %v7169, %v7171
      %v7189 = vsel %vm886, %v7171, %v7173
      %7210 = vrot.lane.b32.xlu0 %v6970, 112
      %v7211 = vpop.permute.xlu0 %7210
      %7212 = vrot.lane.b32.xlu0 %v6971, 112
      %v7213 = vpop.permute.xlu0 %7212
      %7214 = vrot.lane.b32.xlu0 %v6972, 112
      %v7215 = vpop.permute.xlu0 %7214
      %7216 = vrot.lane.b32.xlu0 %v6973, 112
      %v7217 = vpop.permute.xlu0 %7216
      %7218 = vrot.lane.b32.xlu0 %v6974, 112
      %v7219 = vpop.permute.xlu0 %7218
      %7220 = vrot.lane.b32.xlu0 %v6975, 112
      %v7221 = vpop.permute.xlu0 %7220
      %7222 = vrot.lane.b32.xlu0 %v6976, 112
      %v7223 = vpop.permute.xlu0 %7222
      %7224 = vrot.lane.b32.xlu0 %v6977, 112
      %v7225 = vpop.permute.xlu0 %7224
      %7226 = vrot.lane.b32.xlu0 %v6978, 112
      %v7227 = vpop.permute.xlu0 %7226
      %7228 = vrot.lane.b32.xlu0 %v6979, 112
      %v7229 = vpop.permute.xlu0 %7228
      %7230 = vrot.lane.b32.xlu0 %v6980, 112
      %v7231 = vpop.permute.xlu0 %7230
      %7232 = vrot.lane.b32.xlu0 %v6981, 112
      %v7233 = vpop.permute.xlu0 %7232
      %7234 = vrot.lane.b32.xlu0 %v6982, 112
      %v7235 = vpop.permute.xlu0 %7234
      %7236 = vrot.lane.b32.xlu0 %v6983, 112
      %v7237 = vpop.permute.xlu0 %7236
      %7238 = vrot.lane.b32.xlu0 %v6984, 112
      %v7239 = vpop.permute.xlu0 %7238
      %7240 = vrot.lane.b32.xlu0 %v6985, 112
      %v7241 = vpop.permute.xlu0 %7240
      %7242 = vrot.lane.b32.xlu0 %v6986, 112
      %v7243 = vpop.permute.xlu0 %7242
      %7244 = vrot.lane.b32.xlu0 %v6987, 112
      %v7245 = vpop.permute.xlu0 %7244
      %7246 = vrot.lane.b32.xlu0 %v6988, 112
      %v7247 = vpop.permute.xlu0 %7246
      %7248 = vrot.lane.b32.xlu0 %v6989, 112
      %v7249 = vpop.permute.xlu0 %7248
      %v7250 = vsel %vm906, %v7211, %v7213
      %v7251 = vsel %vm906, %v7213, %v7215
      %v7252 = vsel %vm906, %v7215, %v7217
      %v7253 = vsel %vm906, %v7217, %v7219
      %v7254 = vsel %vm906, %v7221, %v7223
      %v7255 = vsel %vm906, %v7223, %v7225
      %v7256 = vsel %vm906, %v7225, %v7227
      %v7257 = vsel %vm906, %v7227, %v7229
      %v7258 = vsel %vm906, %v7231, %v7233
      %v7259 = vsel %vm906, %v7233, %v7235
      %v7260 = vsel %vm906, %v7235, %v7237
      %v7261 = vsel %vm906, %v7237, %v7239
      %v7262 = vsel %vm906, %v7241, %v7243
      %v7263 = vsel %vm906, %v7243, %v7245
      %v7264 = vsel %vm906, %v7245, %v7247
      %v7265 = vsel %vm906, %v7247, %v7249
      %7266 = vrot.lane.b32.xlu0 %v6911, 111
      %v7267 = vpop.permute.xlu0 %7266
      %7268 = vrot.lane.b32.xlu0 %v6912, 111
      %v7269 = vpop.permute.xlu0 %7268
      %7270 = vrot.lane.b32.xlu0 %v6913, 111
      %v7271 = vpop.permute.xlu0 %7270
      %7272 = vrot.lane.b32.xlu0 %v6914, 111
      %v7273 = vpop.permute.xlu0 %7272
      %7274 = vrot.lane.b32.xlu0 %v6916, 111
      %v7275 = vpop.permute.xlu0 %7274
      %7276 = vrot.lane.b32.xlu0 %v6917, 111
      %v7277 = vpop.permute.xlu0 %7276
      %7278 = vrot.lane.b32.xlu0 %v6918, 111
      %v7279 = vpop.permute.xlu0 %7278
      %7280 = vrot.lane.b32.xlu0 %v6919, 111
      %v7281 = vpop.permute.xlu0 %7280
      %7282 = vrot.lane.b32.xlu0 %v6921, 111
      %v7283 = vpop.permute.xlu0 %7282
      %7284 = vrot.lane.b32.xlu0 %v6922, 111
      %v7285 = vpop.permute.xlu0 %7284
      %7286 = vrot.lane.b32.xlu0 %v6923, 111
      %v7287 = vpop.permute.xlu0 %7286
      %7288 = vrot.lane.b32.xlu0 %v6924, 111
      %v7289 = vpop.permute.xlu0 %7288
      %7290 = vrot.lane.b32.xlu0 %v6926, 111
      %v7291 = vpop.permute.xlu0 %7290
      %7292 = vrot.lane.b32.xlu0 %v6927, 111
      %v7293 = vpop.permute.xlu0 %7292
      %7294 = vrot.lane.b32.xlu0 %v6928, 111
      %v7295 = vpop.permute.xlu0 %7294
      %7296 = vrot.lane.b32.xlu0 %v6929, 111
      %v7297 = vpop.permute.xlu0 %7296
      %v7298 = vsel %vm718, %v7267, %v7269
      %v7299 = vsel %vm718, %v7269, %v7271
      %v7300 = vsel %vm718, %v7271, %v7273
      %v7301 = vsel %vm718, %v7275, %v7277
      %v7302 = vsel %vm718, %v7277, %v7279
      %v7303 = vsel %vm718, %v7279, %v7281
      %v7304 = vsel %vm718, %v7283, %v7285
      %v7305 = vsel %vm718, %v7285, %v7287
      %v7306 = vsel %vm718, %v7287, %v7289
      %v7307 = vsel %vm718, %v7291, %v7293
      %v7308 = vsel %vm718, %v7293, %v7295
      %v7309 = vsel %vm718, %v7295, %v7297
      %7326 = vrot.lane.b32.xlu0 %v6990, 110
      %v7327 = vpop.permute.xlu0 %7326
      %7328 = vrot.lane.b32.xlu0 %v6991, 110
      %v7329 = vpop.permute.xlu0 %7328
      %7330 = vrot.lane.b32.xlu0 %v6992, 110
      %v7331 = vpop.permute.xlu0 %7330
      %7332 = vrot.lane.b32.xlu0 %v6993, 110
      %v7333 = vpop.permute.xlu0 %7332
      %7334 = vrot.lane.b32.xlu0 %v6994, 110
      %v7335 = vpop.permute.xlu0 %7334
      %7336 = vrot.lane.b32.xlu0 %v6995, 110
      %v7337 = vpop.permute.xlu0 %7336
      %7338 = vrot.lane.b32.xlu0 %v6996, 110
      %v7339 = vpop.permute.xlu0 %7338
      %7340 = vrot.lane.b32.xlu0 %v6997, 110
      %v7341 = vpop.permute.xlu0 %7340
      %7342 = vrot.lane.b32.xlu0 %v6998, 110
      %v7343 = vpop.permute.xlu0 %7342
      %7344 = vrot.lane.b32.xlu0 %v6999, 110
      %v7345 = vpop.permute.xlu0 %7344
      %7346 = vrot.lane.b32.xlu0 %v7000, 110
      %v7347 = vpop.permute.xlu0 %7346
      %7348 = vrot.lane.b32.xlu0 %v7001, 110
      %v7349 = vpop.permute.xlu0 %7348
      %7350 = vrot.lane.b32.xlu0 %v7002, 110
      %v7351 = vpop.permute.xlu0 %7350
      %7352 = vrot.lane.b32.xlu0 %v7003, 110
      %v7353 = vpop.permute.xlu0 %7352
      %7354 = vrot.lane.b32.xlu0 %v7004, 110
      %v7355 = vpop.permute.xlu0 %7354
      %7356 = vrot.lane.b32.xlu0 %v7005, 110
      %v7357 = vpop.permute.xlu0 %7356
      %v7358 = vsel %vm934, %v7327, %v7329
      %v7359 = vsel %vm934, %v7329, %v7331
      %v7360 = vsel %vm934, %v7331, %v7333
      %v7361 = vsel %vm934, %v7335, %v7337
      %v7362 = vsel %vm934, %v7337, %v7339
      %v7363 = vsel %vm934, %v7339, %v7341
      %v7364 = vsel %vm934, %v7343, %v7345
      %v7365 = vsel %vm934, %v7345, %v7347
      %v7366 = vsel %vm934, %v7347, %v7349
      %v7367 = vsel %vm934, %v7351, %v7353
      %v7368 = vsel %vm934, %v7353, %v7355
      %v7369 = vsel %vm934, %v7355, %v7357
      %7386 = vrot.lane.b32.xlu0 %v7006, 96
      %v7387 = vpop.permute.xlu0 %7386
      %7388 = vrot.lane.b32.xlu0 %v7007, 96
      %v7389 = vpop.permute.xlu0 %7388
      %7390 = vrot.lane.b32.xlu0 %v7008, 96
      %v7391 = vpop.permute.xlu0 %7390
      %7392 = vrot.lane.b32.xlu0 %v7009, 96
      %v7393 = vpop.permute.xlu0 %7392
      %7394 = vrot.lane.b32.xlu0 %v7010, 96
      %v7395 = vpop.permute.xlu0 %7394
      %7396 = vrot.lane.b32.xlu0 %v7011, 96
      %v7397 = vpop.permute.xlu0 %7396
      %7398 = vrot.lane.b32.xlu0 %v7012, 96
      %v7399 = vpop.permute.xlu0 %7398
      %7400 = vrot.lane.b32.xlu0 %v7013, 96
      %v7401 = vpop.permute.xlu0 %7400
      %7402 = vrot.lane.b32.xlu0 %v7014, 96
      %v7403 = vpop.permute.xlu0 %7402
      %7404 = vrot.lane.b32.xlu0 %v7015, 96
      %v7405 = vpop.permute.xlu0 %7404
      %7406 = vrot.lane.b32.xlu0 %v7016, 96
      %v7407 = vpop.permute.xlu0 %7406
      %7408 = vrot.lane.b32.xlu0 %v7017, 96
      %v7409 = vpop.permute.xlu0 %7408
      %7410 = vrot.lane.b32.xlu0 %v7018, 96
      %v7411 = vpop.permute.xlu0 %7410
      %7412 = vrot.lane.b32.xlu0 %v7019, 96
      %v7413 = vpop.permute.xlu0 %7412
      %7414 = vrot.lane.b32.xlu0 %v7020, 96
      %v7415 = vpop.permute.xlu0 %7414
      %7416 = vrot.lane.b32.xlu0 %v7021, 96
      %v7417 = vpop.permute.xlu0 %7416
      %v7418 = vsel %vm657, %v7387, %v7389
      %v7419 = vsel %vm657, %v7389, %v7391
      %v7420 = vsel %vm657, %v7391, %v7393
      %v7421 = vsel %vm657, %v7395, %v7397
      %v7422 = vsel %vm657, %v7397, %v7399
      %v7423 = vsel %vm657, %v7399, %v7401
      %v7424 = vsel %vm657, %v7403, %v7405
      %v7425 = vsel %vm657, %v7405, %v7407
      %v7426 = vsel %vm657, %v7407, %v7409
      %v7427 = vsel %vm657, %v7411, %v7413
      %v7428 = vsel %vm657, %v7413, %v7415
      %v7429 = vsel %vm657, %v7415, %v7417
      %7430 = vrot.lane.b32.xlu0 %v6911, 95
      %v7431 = vpop.permute.xlu0 %7430
      %7432 = vrot.lane.b32.xlu0 %v6912, 95
      %v7433 = vpop.permute.xlu0 %7432
      %7434 = vrot.lane.b32.xlu0 %v6913, 95
      %v7435 = vpop.permute.xlu0 %7434
      %7436 = vrot.lane.b32.xlu0 %v6914, 95
      %v7437 = vpop.permute.xlu0 %7436
      %7438 = vrot.lane.b32.xlu0 %v6916, 95
      %v7439 = vpop.permute.xlu0 %7438
      %7440 = vrot.lane.b32.xlu0 %v6917, 95
      %v7441 = vpop.permute.xlu0 %7440
      %7442 = vrot.lane.b32.xlu0 %v6918, 95
      %v7443 = vpop.permute.xlu0 %7442
      %7444 = vrot.lane.b32.xlu0 %v6919, 95
      %v7445 = vpop.permute.xlu0 %7444
      %7446 = vrot.lane.b32.xlu0 %v6921, 95
      %v7447 = vpop.permute.xlu0 %7446
      %7448 = vrot.lane.b32.xlu0 %v6922, 95
      %v7449 = vpop.permute.xlu0 %7448
      %7450 = vrot.lane.b32.xlu0 %v6923, 95
      %v7451 = vpop.permute.xlu0 %7450
      %7452 = vrot.lane.b32.xlu0 %v6924, 95
      %v7453 = vpop.permute.xlu0 %7452
      %7454 = vrot.lane.b32.xlu0 %v6926, 95
      %v7455 = vpop.permute.xlu0 %7454
      %7456 = vrot.lane.b32.xlu0 %v6927, 95
      %v7457 = vpop.permute.xlu0 %7456
      %7458 = vrot.lane.b32.xlu0 %v6928, 95
      %v7459 = vpop.permute.xlu0 %7458
      %7460 = vrot.lane.b32.xlu0 %v6929, 95
      %v7461 = vpop.permute.xlu0 %7460
      %v7462 = vsel %vm961, %v7431, %v7433
      %v7463 = vsel %vm961, %v7433, %v7435
      %v7464 = vsel %vm961, %v7435, %v7437
      %v7465 = vsel %vm961, %v7439, %v7441
      %v7466 = vsel %vm961, %v7441, %v7443
      %v7467 = vsel %vm961, %v7443, %v7445
      %v7468 = vsel %vm961, %v7447, %v7449
      %v7469 = vsel %vm961, %v7449, %v7451
      %v7470 = vsel %vm961, %v7451, %v7453
      %v7471 = vsel %vm961, %v7455, %v7457
      %v7472 = vsel %vm961, %v7457, %v7459
      %v7473 = vsel %vm961, %v7459, %v7461
      %7490 = vrot.lane.b32.xlu0 %v7022, 94
      %v7491 = vpop.permute.xlu0 %7490
      %7492 = vrot.lane.b32.xlu0 %v7023, 94
      %v7493 = vpop.permute.xlu0 %7492
      %7494 = vrot.lane.b32.xlu0 %v7024, 94
      %v7495 = vpop.permute.xlu0 %7494
      %7496 = vrot.lane.b32.xlu0 %v7025, 94
      %v7497 = vpop.permute.xlu0 %7496
      %7498 = vrot.lane.b32.xlu0 %v7026, 94
      %v7499 = vpop.permute.xlu0 %7498
      %7500 = vrot.lane.b32.xlu0 %v7027, 94
      %v7501 = vpop.permute.xlu0 %7500
      %7502 = vrot.lane.b32.xlu0 %v7028, 94
      %v7503 = vpop.permute.xlu0 %7502
      %7504 = vrot.lane.b32.xlu0 %v7029, 94
      %v7505 = vpop.permute.xlu0 %7504
      %7506 = vrot.lane.b32.xlu0 %v7030, 94
      %v7507 = vpop.permute.xlu0 %7506
      %7508 = vrot.lane.b32.xlu0 %v7031, 94
      %v7509 = vpop.permute.xlu0 %7508
      %7510 = vrot.lane.b32.xlu0 %v7032, 94
      %v7511 = vpop.permute.xlu0 %7510
      %7512 = vrot.lane.b32.xlu0 %v7033, 94
      %v7513 = vpop.permute.xlu0 %7512
      %7514 = vrot.lane.b32.xlu0 %v7034, 94
      %v7515 = vpop.permute.xlu0 %7514
      %7516 = vrot.lane.b32.xlu0 %v7035, 94
      %v7517 = vpop.permute.xlu0 %7516
      %7518 = vrot.lane.b32.xlu0 %v7036, 94
      %v7519 = vpop.permute.xlu0 %7518
      %7520 = vrot.lane.b32.xlu0 %v7037, 94
      %v7521 = vpop.permute.xlu0 %7520
      %v7522 = vsel %vm977, %v7491, %v7493
      %v7523 = vsel %vm977, %v7493, %v7495
      %v7524 = vsel %vm977, %v7495, %v7497
      %v7525 = vsel %vm977, %v7499, %v7501
      %v7526 = vsel %vm977, %v7501, %v7503
      %v7527 = vsel %vm977, %v7503, %v7505
      %v7528 = vsel %vm977, %v7507, %v7509
      %v7529 = vsel %vm977, %v7509, %v7511
      %v7530 = vsel %vm977, %v7511, %v7513
      %v7531 = vsel %vm977, %v7515, %v7517
      %v7532 = vsel %vm977, %v7517, %v7519
      %v7533 = vsel %vm977, %v7519, %v7521
      %v7534 = vld [vmem:[%s16] sm:$0xff]
      %v7535 = vld [vmem:[%s16 + $0x8] sm:$0xff]
      %v7536 = vld [vmem:[%s16 + $0x10] sm:$0xff]
      %v7537 = vld [vmem:[%s16 + $0x18] sm:$0xff]
      %v7538 = vld [vmem:[%s16 + $0x20] sm:$0xff]
      %v7539 = vld [vmem:[%s16 + $0x28] sm:$0xff]
      %v7540 = vld [vmem:[%s16 + $0x30] sm:$0xff]
      %v7541 = vld [vmem:[%s16 + $0x38] sm:$0xff]
      %v7542 = vld [vmem:[%s16 + $0x40] sm:$0xff]
      %v7543 = vld [vmem:[%s16 + $0x48] sm:$0xff]
      %v7544 = vld [vmem:[%s16 + $0x50] sm:$0xff]
      %v7545 = vld [vmem:[%s16 + $0x58] sm:$0xff]
      %v7546 = vld [vmem:[%s17] sm:$0xff]
      %v7547 = vld [vmem:[%s17 + $0x8] sm:$0xff]
      %v7548 = vld [vmem:[%s17 + $0x10] sm:$0xff]
      %v7549 = vld [vmem:[%s17 + $0x18] sm:$0xff]
      %7551 = vset.pattern.permute.xlu0 0
      %7552 = vperm.xlu0 %7551, %v7546
      %v7553 = vpop.permute.xlu0 %7552
      %7556 = vset.pattern.permute.xlu0 0
      %7557 = vperm.xlu0 %7556, %v7547
      %v7558 = vpop.permute.xlu0 %7557
      %7561 = vset.pattern.permute.xlu0 0
      %7562 = vperm.xlu0 %7561, %v7548
      %v7563 = vpop.permute.xlu0 %7562
      %7566 = vset.pattern.permute.xlu0 0
      %7567 = vperm.xlu0 %7566, %v7549
      %v7568 = vpop.permute.xlu0 %7567
      %7590 = vrot.lane.b32.xlu0 %v6930, 17
      %v7591 = vpop.permute.xlu0 %7590
      %7592 = vrot.lane.b32.xlu0 %v6931, 17
      %v7593 = vpop.permute.xlu0 %7592
      %7594 = vrot.lane.b32.xlu0 %v6932, 17
      %v7595 = vpop.permute.xlu0 %7594
      %7596 = vrot.lane.b32.xlu0 %v6933, 17
      %v7597 = vpop.permute.xlu0 %7596
      %7598 = vrot.lane.b32.xlu0 %v6934, 17
      %v7599 = vpop.permute.xlu0 %7598
      %7600 = vrot.lane.b32.xlu0 %v6935, 17
      %v7601 = vpop.permute.xlu0 %7600
      %7602 = vrot.lane.b32.xlu0 %v6936, 17
      %v7603 = vpop.permute.xlu0 %7602
      %7604 = vrot.lane.b32.xlu0 %v6937, 17
      %v7605 = vpop.permute.xlu0 %7604
      %7606 = vrot.lane.b32.xlu0 %v6938, 17
      %v7607 = vpop.permute.xlu0 %7606
      %7608 = vrot.lane.b32.xlu0 %v6939, 17
      %v7609 = vpop.permute.xlu0 %7608
      %7610 = vrot.lane.b32.xlu0 %v6940, 17
      %v7611 = vpop.permute.xlu0 %7610
      %7612 = vrot.lane.b32.xlu0 %v6941, 17
      %v7613 = vpop.permute.xlu0 %7612
      %7614 = vrot.lane.b32.xlu0 %v6942, 17
      %v7615 = vpop.permute.xlu0 %7614
      %7616 = vrot.lane.b32.xlu0 %v6943, 17
      %v7617 = vpop.permute.xlu0 %7616
      %7618 = vrot.lane.b32.xlu0 %v6944, 17
      %v7619 = vpop.permute.xlu0 %7618
      %7620 = vrot.lane.b32.xlu0 %v6945, 17
      %v7621 = vpop.permute.xlu0 %7620
      %7622 = vrot.lane.b32.xlu0 %v6946, 17
      %v7623 = vpop.permute.xlu0 %7622
      %7624 = vrot.lane.b32.xlu0 %v6947, 17
      %v7625 = vpop.permute.xlu0 %7624
      %7626 = vrot.lane.b32.xlu0 %v6948, 17
      %v7627 = vpop.permute.xlu0 %7626
      %7628 = vrot.lane.b32.xlu0 %v6949, 17
      %v7629 = vpop.permute.xlu0 %7628
      %7630 = vrot.lane.b32.xlu0 %v7098, 17
      %v7631 = vpop.permute.xlu0 %7630
      %7632 = vrot.lane.b32.xlu0 %v7099, 17
      %v7633 = vpop.permute.xlu0 %7632
      %7634 = vrot.lane.b32.xlu0 %v7100, 17
      %v7635 = vpop.permute.xlu0 %7634
      %7636 = vrot.lane.b32.xlu0 %v7101, 17
      %v7637 = vpop.permute.xlu0 %7636
      %7638 = vrot.lane.b32.xlu0 %v7067, 17
      %v7639 = vpop.permute.xlu0 %7638
      %7640 = vrot.lane.b32.xlu0 %v7102, 17
      %v7641 = vpop.permute.xlu0 %7640
      %7642 = vrot.lane.b32.xlu0 %v7103, 17
      %v7643 = vpop.permute.xlu0 %7642
      %7644 = vrot.lane.b32.xlu0 %v7104, 17
      %v7645 = vpop.permute.xlu0 %7644
      %7646 = vrot.lane.b32.xlu0 %v7105, 17
      %v7647 = vpop.permute.xlu0 %7646
      %7648 = vrot.lane.b32.xlu0 %v7077, 17
      %v7649 = vpop.permute.xlu0 %7648
      %7650 = vrot.lane.b32.xlu0 %v7106, 17
      %v7651 = vpop.permute.xlu0 %7650
      %7652 = vrot.lane.b32.xlu0 %v7107, 17
      %v7653 = vpop.permute.xlu0 %7652
      %7654 = vrot.lane.b32.xlu0 %v7108, 17
      %v7655 = vpop.permute.xlu0 %7654
      %7656 = vrot.lane.b32.xlu0 %v7109, 17
      %v7657 = vpop.permute.xlu0 %7656
      %7658 = vrot.lane.b32.xlu0 %v7087, 17
      %v7659 = vpop.permute.xlu0 %7658
      %7660 = vrot.lane.b32.xlu0 %v7110, 17
      %v7661 = vpop.permute.xlu0 %7660
      %7662 = vrot.lane.b32.xlu0 %v7111, 17
      %v7663 = vpop.permute.xlu0 %7662
      %7664 = vrot.lane.b32.xlu0 %v7112, 17
      %v7665 = vpop.permute.xlu0 %7664
      %7666 = vrot.lane.b32.xlu0 %v7113, 17
      %v7667 = vpop.permute.xlu0 %7666
      %7668 = vrot.lane.b32.xlu0 %v7097, 17
      %v7669 = vpop.permute.xlu0 %7668
      %7670 = vrot.lane.b32.xlu0 %v7174, 17
      %v7671 = vpop.permute.xlu0 %7670
      %7672 = vrot.lane.b32.xlu0 %v7175, 17
      %v7673 = vpop.permute.xlu0 %7672
      %7674 = vrot.lane.b32.xlu0 %v7176, 17
      %v7675 = vpop.permute.xlu0 %7674
      %7676 = vrot.lane.b32.xlu0 %v7177, 17
      %v7677 = vpop.permute.xlu0 %7676
      %7678 = vrot.lane.b32.xlu0 %v7143, 17
      %v7679 = vpop.permute.xlu0 %7678
      %7680 = vrot.lane.b32.xlu0 %v7178, 17
      %v7681 = vpop.permute.xlu0 %7680
      %7682 = vrot.lane.b32.xlu0 %v7179, 17
      %v7683 = vpop.permute.xlu0 %7682
      %7684 = vrot.lane.b32.xlu0 %v7180, 17
      %v7685 = vpop.permute.xlu0 %7684
      %7686 = vrot.lane.b32.xlu0 %v7181, 17
      %v7687 = vpop.permute.xlu0 %7686
      %7688 = vrot.lane.b32.xlu0 %v7153, 17
      %v7689 = vpop.permute.xlu0 %7688
      %7690 = vrot.lane.b32.xlu0 %v7182, 17
      %v7691 = vpop.permute.xlu0 %7690
      %7692 = vrot.lane.b32.xlu0 %v7183, 17
      %v7693 = vpop.permute.xlu0 %7692
      %7694 = vrot.lane.b32.xlu0 %v7184, 17
      %v7695 = vpop.permute.xlu0 %7694
      %7696 = vrot.lane.b32.xlu0 %v7185, 17
      %v7697 = vpop.permute.xlu0 %7696
      %7698 = vrot.lane.b32.xlu0 %v7163, 17
      %v7699 = vpop.permute.xlu0 %7698
      %7700 = vrot.lane.b32.xlu0 %v7186, 17
      %v7701 = vpop.permute.xlu0 %7700
      %7702 = vrot.lane.b32.xlu0 %v7187, 17
      %v7703 = vpop.permute.xlu0 %7702
      %7704 = vrot.lane.b32.xlu0 %v7188, 17
      %v7705 = vpop.permute.xlu0 %7704
      %7706 = vrot.lane.b32.xlu0 %v7189, 17
      %v7707 = vpop.permute.xlu0 %7706
      %7708 = vrot.lane.b32.xlu0 %v7173, 17
      %v7709 = vpop.permute.xlu0 %7708
      %7710 = vrot.lane.b32.xlu0 %v7250, 17
      %v7711 = vpop.permute.xlu0 %7710
      %7712 = vrot.lane.b32.xlu0 %v7251, 17
      %v7713 = vpop.permute.xlu0 %7712
      %7714 = vrot.lane.b32.xlu0 %v7252, 17
      %v7715 = vpop.permute.xlu0 %7714
      %7716 = vrot.lane.b32.xlu0 %v7253, 17
      %v7717 = vpop.permute.xlu0 %7716
      %7718 = vrot.lane.b32.xlu0 %v7219, 17
      %v7719 = vpop.permute.xlu0 %7718
      %7720 = vrot.lane.b32.xlu0 %v7254, 17
      %v7721 = vpop.permute.xlu0 %7720
      %7722 = vrot.lane.b32.xlu0 %v7255, 17
      %v7723 = vpop.permute.xlu0 %7722
      %7724 = vrot.lane.b32.xlu0 %v7256, 17
      %v7725 = vpop.permute.xlu0 %7724
      %7726 = vrot.lane.b32.xlu0 %v7257, 17
      %v7727 = vpop.permute.xlu0 %7726
      %7728 = vrot.lane.b32.xlu0 %v7229, 17
      %v7729 = vpop.permute.xlu0 %7728
      %7730 = vrot.lane.b32.xlu0 %v7258, 17
      %v7731 = vpop.permute.xlu0 %7730
      %7732 = vrot.lane.b32.xlu0 %v7259, 17
      %v7733 = vpop.permute.xlu0 %7732
      %7734 = vrot.lane.b32.xlu0 %v7260, 17
      %v7735 = vpop.permute.xlu0 %7734
      %7736 = vrot.lane.b32.xlu0 %v7261, 17
      %v7737 = vpop.permute.xlu0 %7736
      %7738 = vrot.lane.b32.xlu0 %v7239, 17
      %v7739 = vpop.permute.xlu0 %7738
      %7740 = vrot.lane.b32.xlu0 %v7262, 17
      %v7741 = vpop.permute.xlu0 %7740
      %7742 = vrot.lane.b32.xlu0 %v7263, 17
      %v7743 = vpop.permute.xlu0 %7742
      %7744 = vrot.lane.b32.xlu0 %v7264, 17
      %v7745 = vpop.permute.xlu0 %7744
      %7746 = vrot.lane.b32.xlu0 %v7265, 17
      %v7747 = vpop.permute.xlu0 %7746
      %7748 = vrot.lane.b32.xlu0 %v7249, 17
      %v7749 = vpop.permute.xlu0 %7748
      %7750 = vrot.lane.b32.xlu0 %v7267, 17
      %v7751 = vpop.permute.xlu0 %7750
      %7752 = vrot.lane.b32.xlu0 %v7298, 17
      %v7753 = vpop.permute.xlu0 %7752
      %7754 = vrot.lane.b32.xlu0 %v7299, 17
      %v7755 = vpop.permute.xlu0 %7754
      %7756 = vrot.lane.b32.xlu0 %v7300, 17
      %v7757 = vpop.permute.xlu0 %7756
      %7758 = vrot.lane.b32.xlu0 %v7273, 17
      %v7759 = vpop.permute.xlu0 %7758
      %7760 = vrot.lane.b32.xlu0 %v7275, 17
      %v7761 = vpop.permute.xlu0 %7760
      %7762 = vrot.lane.b32.xlu0 %v7301, 17
      %v7763 = vpop.permute.xlu0 %7762
      %7764 = vrot.lane.b32.xlu0 %v7302, 17
      %v7765 = vpop.permute.xlu0 %7764
      %7766 = vrot.lane.b32.xlu0 %v7303, 17
      %v7767 = vpop.permute.xlu0 %7766
      %7768 = vrot.lane.b32.xlu0 %v7281, 17
      %v7769 = vpop.permute.xlu0 %7768
      %7770 = vrot.lane.b32.xlu0 %v7283, 17
      %v7771 = vpop.permute.xlu0 %7770
      %7772 = vrot.lane.b32.xlu0 %v7304, 17
      %v7773 = vpop.permute.xlu0 %7772
      %7774 = vrot.lane.b32.xlu0 %v7305, 17
      %v7775 = vpop.permute.xlu0 %7774
      %7776 = vrot.lane.b32.xlu0 %v7306, 17
      %v7777 = vpop.permute.xlu0 %7776
      %7778 = vrot.lane.b32.xlu0 %v7289, 17
      %v7779 = vpop.permute.xlu0 %7778
      %7780 = vrot.lane.b32.xlu0 %v7291, 17
      %v7781 = vpop.permute.xlu0 %7780
      %7782 = vrot.lane.b32.xlu0 %v7307, 17
      %v7783 = vpop.permute.xlu0 %7782
      %7784 = vrot.lane.b32.xlu0 %v7308, 17
      %v7785 = vpop.permute.xlu0 %7784
      %7786 = vrot.lane.b32.xlu0 %v7309, 17
      %v7787 = vpop.permute.xlu0 %7786
      %7788 = vrot.lane.b32.xlu0 %v7297, 17
      %v7789 = vpop.permute.xlu0 %7788
      %7790 = vrot.lane.b32.xlu0 %v7327, 17
      %v7791 = vpop.permute.xlu0 %7790
      %7792 = vrot.lane.b32.xlu0 %v7358, 17
      %v7793 = vpop.permute.xlu0 %7792
      %7794 = vrot.lane.b32.xlu0 %v7359, 17
      %v7795 = vpop.permute.xlu0 %7794
      %7796 = vrot.lane.b32.xlu0 %v7360, 17
      %v7797 = vpop.permute.xlu0 %7796
      %7798 = vrot.lane.b32.xlu0 %v7333, 17
      %v7799 = vpop.permute.xlu0 %7798
      %7800 = vrot.lane.b32.xlu0 %v7335, 17
      %v7801 = vpop.permute.xlu0 %7800
      %7802 = vrot.lane.b32.xlu0 %v7361, 17
      %v7803 = vpop.permute.xlu0 %7802
      %7804 = vrot.lane.b32.xlu0 %v7362, 17
      %v7805 = vpop.permute.xlu0 %7804
      %7806 = vrot.lane.b32.xlu0 %v7363, 17
      %v7807 = vpop.permute.xlu0 %7806
      %7808 = vrot.lane.b32.xlu0 %v7341, 17
      %v7809 = vpop.permute.xlu0 %7808
      %7810 = vrot.lane.b32.xlu0 %v7343, 17
      %v7811 = vpop.permute.xlu0 %7810
      %7812 = vrot.lane.b32.xlu0 %v7364, 17
      %v7813 = vpop.permute.xlu0 %7812
      %7814 = vrot.lane.b32.xlu0 %v7365, 17
      %v7815 = vpop.permute.xlu0 %7814
      %7816 = vrot.lane.b32.xlu0 %v7366, 17
      %v7817 = vpop.permute.xlu0 %7816
      %7818 = vrot.lane.b32.xlu0 %v7349, 17
      %v7819 = vpop.permute.xlu0 %7818
      %7820 = vrot.lane.b32.xlu0 %v7351, 17
      %v7821 = vpop.permute.xlu0 %7820
      %7822 = vrot.lane.b32.xlu0 %v7367, 17
      %v7823 = vpop.permute.xlu0 %7822
      %7824 = vrot.lane.b32.xlu0 %v7368, 17
      %v7825 = vpop.permute.xlu0 %7824
      %7826 = vrot.lane.b32.xlu0 %v7369, 17
      %v7827 = vpop.permute.xlu0 %7826
      %7828 = vrot.lane.b32.xlu0 %v7357, 17
      %v7829 = vpop.permute.xlu0 %7828
      %7830 = vrot.lane.b32.xlu0 %v7387, 17
      %v7831 = vpop.permute.xlu0 %7830
      %7832 = vrot.lane.b32.xlu0 %v7418, 17
      %v7833 = vpop.permute.xlu0 %7832
      %7834 = vrot.lane.b32.xlu0 %v7419, 17
      %v7835 = vpop.permute.xlu0 %7834
      %7836 = vrot.lane.b32.xlu0 %v7420, 17
      %v7837 = vpop.permute.xlu0 %7836
      %7838 = vrot.lane.b32.xlu0 %v7393, 17
      %v7839 = vpop.permute.xlu0 %7838
      %7840 = vrot.lane.b32.xlu0 %v7395, 17
      %v7841 = vpop.permute.xlu0 %7840
      %7842 = vrot.lane.b32.xlu0 %v7421, 17
      %v7843 = vpop.permute.xlu0 %7842
      %7844 = vrot.lane.b32.xlu0 %v7422, 17
      %v7845 = vpop.permute.xlu0 %7844
      %7846 = vrot.lane.b32.xlu0 %v7423, 17
      %v7847 = vpop.permute.xlu0 %7846
      %7848 = vrot.lane.b32.xlu0 %v7401, 17
      %v7849 = vpop.permute.xlu0 %7848
      %7850 = vrot.lane.b32.xlu0 %v7403, 17
      %v7851 = vpop.permute.xlu0 %7850
      %7852 = vrot.lane.b32.xlu0 %v7424, 17
      %v7853 = vpop.permute.xlu0 %7852
      %7854 = vrot.lane.b32.xlu0 %v7425, 17
      %v7855 = vpop.permute.xlu0 %7854
      %7856 = vrot.lane.b32.xlu0 %v7426, 17
      %v7857 = vpop.permute.xlu0 %7856
      %7858 = vrot.lane.b32.xlu0 %v7409, 17
      %v7859 = vpop.permute.xlu0 %7858
      %7860 = vrot.lane.b32.xlu0 %v7411, 17
      %v7861 = vpop.permute.xlu0 %7860
      %7862 = vrot.lane.b32.xlu0 %v7427, 17
      %v7863 = vpop.permute.xlu0 %7862
      %7864 = vrot.lane.b32.xlu0 %v7428, 17
      %v7865 = vpop.permute.xlu0 %7864
      %7866 = vrot.lane.b32.xlu0 %v7429, 17
      %v7867 = vpop.permute.xlu0 %7866
      %7868 = vrot.lane.b32.xlu0 %v7417, 17
      %v7869 = vpop.permute.xlu0 %7868
      %7870 = vrot.lane.b32.xlu0 %v7431, 17
      %v7871 = vpop.permute.xlu0 %7870
      %7872 = vrot.lane.b32.xlu0 %v7462, 17
      %v7873 = vpop.permute.xlu0 %7872
      %7874 = vrot.lane.b32.xlu0 %v7463, 17
      %v7875 = vpop.permute.xlu0 %7874
      %7876 = vrot.lane.b32.xlu0 %v7464, 17
      %v7877 = vpop.permute.xlu0 %7876
      %7878 = vrot.lane.b32.xlu0 %v7437, 17
      %v7879 = vpop.permute.xlu0 %7878
      %7880 = vrot.lane.b32.xlu0 %v7439, 17
      %v7881 = vpop.permute.xlu0 %7880
      %7882 = vrot.lane.b32.xlu0 %v7465, 17
      %v7883 = vpop.permute.xlu0 %7882
      %7884 = vrot.lane.b32.xlu0 %v7466, 17
      %v7885 = vpop.permute.xlu0 %7884
      %7886 = vrot.lane.b32.xlu0 %v7467, 17
      %v7887 = vpop.permute.xlu0 %7886
      %7888 = vrot.lane.b32.xlu0 %v7445, 17
      %v7889 = vpop.permute.xlu0 %7888
      %7890 = vrot.lane.b32.xlu0 %v7447, 17
      %v7891 = vpop.permute.xlu0 %7890
      %7892 = vrot.lane.b32.xlu0 %v7468, 17
      %v7893 = vpop.permute.xlu0 %7892
      %7894 = vrot.lane.b32.xlu0 %v7469, 17
      %v7895 = vpop.permute.xlu0 %7894
      %7896 = vrot.lane.b32.xlu0 %v7470, 17
      %v7897 = vpop.permute.xlu0 %7896
      %7898 = vrot.lane.b32.xlu0 %v7453, 17
      %v7899 = vpop.permute.xlu0 %7898
      %7900 = vrot.lane.b32.xlu0 %v7455, 17
      %v7901 = vpop.permute.xlu0 %7900
      %7902 = vrot.lane.b32.xlu0 %v7471, 17
      %v7903 = vpop.permute.xlu0 %7902
      %7904 = vrot.lane.b32.xlu0 %v7472, 17
      %v7905 = vpop.permute.xlu0 %7904
      %7906 = vrot.lane.b32.xlu0 %v7473, 17
      %v7907 = vpop.permute.xlu0 %7906
      %7908 = vrot.lane.b32.xlu0 %v7461, 17
      %v7909 = vpop.permute.xlu0 %7908
      %7910 = vrot.lane.b32.xlu0 %v7491, 17
      %v7911 = vpop.permute.xlu0 %7910
      %7912 = vrot.lane.b32.xlu0 %v7522, 17
      %v7913 = vpop.permute.xlu0 %7912
      %7914 = vrot.lane.b32.xlu0 %v7523, 17
      %v7915 = vpop.permute.xlu0 %7914
      %7916 = vrot.lane.b32.xlu0 %v7524, 17
      %v7917 = vpop.permute.xlu0 %7916
      %7918 = vrot.lane.b32.xlu0 %v7497, 17
      %v7919 = vpop.permute.xlu0 %7918
      %7920 = vrot.lane.b32.xlu0 %v7499, 17
      %v7921 = vpop.permute.xlu0 %7920
      %7922 = vrot.lane.b32.xlu0 %v7525, 17
      %v7923 = vpop.permute.xlu0 %7922
      %7924 = vrot.lane.b32.xlu0 %v7526, 17
      %v7925 = vpop.permute.xlu0 %7924
      %7926 = vrot.lane.b32.xlu0 %v7527, 17
      %v7927 = vpop.permute.xlu0 %7926
      %7928 = vrot.lane.b32.xlu0 %v7505, 17
      %v7929 = vpop.permute.xlu0 %7928
      %7930 = vrot.lane.b32.xlu0 %v7507, 17
      %v7931 = vpop.permute.xlu0 %7930
      %7932 = vrot.lane.b32.xlu0 %v7528, 17
      %v7933 = vpop.permute.xlu0 %7932
      %7934 = vrot.lane.b32.xlu0 %v7529, 17
      %v7935 = vpop.permute.xlu0 %7934
      %7936 = vrot.lane.b32.xlu0 %v7530, 17
      %v7937 = vpop.permute.xlu0 %7936
      %7938 = vrot.lane.b32.xlu0 %v7513, 17
      %v7939 = vpop.permute.xlu0 %7938
      %7940 = vrot.lane.b32.xlu0 %v7515, 17
      %v7941 = vpop.permute.xlu0 %7940
      %7942 = vrot.lane.b32.xlu0 %v7531, 17
      %v7943 = vpop.permute.xlu0 %7942
      %7944 = vrot.lane.b32.xlu0 %v7532, 17
      %v7945 = vpop.permute.xlu0 %7944
      %7946 = vrot.lane.b32.xlu0 %v7533, 17
      %v7947 = vpop.permute.xlu0 %7946
      %7948 = vrot.lane.b32.xlu0 %v7521, 17
      %v7949 = vpop.permute.xlu0 %7948
      %v7950 = vsel %vm840, %v7591, %v7593
      %v7951 = vsel %vm840, %v7593, %v7595
      %v7952 = vsel %vm840, %v7595, %v7597
      %v7953 = vsel %vm840, %v7597, %v7599
      %v7954 = vsel %vm840, %v7601, %v7603
      %v7955 = vsel %vm840, %v7603, %v7605
      %v7956 = vsel %vm840, %v7605, %v7607
      %v7957 = vsel %vm840, %v7607, %v7609
      %v7958 = vsel %vm840, %v7611, %v7613
      %v7959 = vsel %vm840, %v7613, %v7615
      %v7960 = vsel %vm840, %v7615, %v7617
      %v7961 = vsel %vm840, %v7617, %v7619
      %v7962 = vsel %vm840, %v7621, %v7623
      %v7963 = vsel %vm840, %v7623, %v7625
      %v7964 = vsel %vm840, %v7625, %v7627
      %v7965 = vsel %vm840, %v7627, %v7629
      %v7966 = vsel %vm840, %v7631, %v7633
      %v7967 = vsel %vm840, %v7633, %v7635
      %v7968 = vsel %vm840, %v7635, %v7637
      %v7969 = vsel %vm840, %v7637, %v7639
      %v7970 = vsel %vm840, %v7641, %v7643
      %v7971 = vsel %vm840, %v7643, %v7645
      %v7972 = vsel %vm840, %v7645, %v7647
      %v7973 = vsel %vm840, %v7647, %v7649
      %v7974 = vsel %vm840, %v7651, %v7653
      %v7975 = vsel %vm840, %v7653, %v7655
      %v7976 = vsel %vm840, %v7655, %v7657
      %v7977 = vsel %vm840, %v7657, %v7659
      %v7978 = vsel %vm840, %v7661, %v7663
      %v7979 = vsel %vm840, %v7663, %v7665
      %v7980 = vsel %vm840, %v7665, %v7667
      %v7981 = vsel %vm840, %v7667, %v7669
      %v7982 = vsel %vm840, %v7671, %v7673
      %v7983 = vsel %vm840, %v7673, %v7675
      %v7984 = vsel %vm840, %v7675, %v7677
      %v7985 = vsel %vm840, %v7677, %v7679
      %v7986 = vsel %vm840, %v7681, %v7683
      %v7987 = vsel %vm840, %v7683, %v7685
      %v7988 = vsel %vm840, %v7685, %v7687
      %v7989 = vsel %vm840, %v7687, %v7689
      %v7990 = vsel %vm840, %v7691, %v7693
      %v7991 = vsel %vm840, %v7693, %v7695
      %v7992 = vsel %vm840, %v7695, %v7697
      %v7993 = vsel %vm840, %v7697, %v7699
      %v7994 = vsel %vm840, %v7701, %v7703
      %v7995 = vsel %vm840, %v7703, %v7705
      %v7996 = vsel %vm840, %v7705, %v7707
      %v7997 = vsel %vm840, %v7707, %v7709
      %v7998 = vsel %vm840, %v7711, %v7713
      %v7999 = vsel %vm840, %v7713, %v7715
      %v8000 = vsel %vm840, %v7715, %v7717
      %v8001 = vsel %vm840, %v7717, %v7719
      %v8002 = vsel %vm840, %v7721, %v7723
      %v8003 = vsel %vm840, %v7723, %v7725
      %v8004 = vsel %vm840, %v7725, %v7727
      %v8005 = vsel %vm840, %v7727, %v7729
      %v8006 = vsel %vm840, %v7731, %v7733
      %v8007 = vsel %vm840, %v7733, %v7735
      %v8008 = vsel %vm840, %v7735, %v7737
      %v8009 = vsel %vm840, %v7737, %v7739
      %v8010 = vsel %vm840, %v7741, %v7743
      %v8011 = vsel %vm840, %v7743, %v7745
      %v8012 = vsel %vm840, %v7745, %v7747
      %v8013 = vsel %vm840, %v7747, %v7749
      %v8014 = vsel %vm840, %v7751, %v7753
      %v8015 = vsel %vm840, %v7753, %v7755
      %v8016 = vsel %vm840, %v7755, %v7757
      %v8017 = vsel %vm840, %v7757, %v7759
      %v8018 = vsel %vm840, %v7761, %v7763
      %v8019 = vsel %vm840, %v7763, %v7765
      %v8020 = vsel %vm840, %v7765, %v7767
      %v8021 = vsel %vm840, %v7767, %v7769
      %v8022 = vsel %vm840, %v7771, %v7773
      %v8023 = vsel %vm840, %v7773, %v7775
      %v8024 = vsel %vm840, %v7775, %v7777
      %v8025 = vsel %vm840, %v7777, %v7779
      %v8026 = vsel %vm840, %v7781, %v7783
      %v8027 = vsel %vm840, %v7783, %v7785
      %v8028 = vsel %vm840, %v7785, %v7787
      %v8029 = vsel %vm840, %v7787, %v7789
      %v8030 = vsel %vm840, %v7791, %v7793
      %v8031 = vsel %vm840, %v7793, %v7795
      %v8032 = vsel %vm840, %v7795, %v7797
      %v8033 = vsel %vm840, %v7797, %v7799
      %v8034 = vsel %vm840, %v7801, %v7803
      %v8035 = vsel %vm840, %v7803, %v7805
      %v8036 = vsel %vm840, %v7805, %v7807
      %v8037 = vsel %vm840, %v7807, %v7809
      %v8038 = vsel %vm840, %v7811, %v7813
      %v8039 = vsel %vm840, %v7813, %v7815
      %v8040 = vsel %vm840, %v7815, %v7817
      %v8041 = vsel %vm840, %v7817, %v7819
      %v8042 = vsel %vm840, %v7821, %v7823
      %v8043 = vsel %vm840, %v7823, %v7825
      %v8044 = vsel %vm840, %v7825, %v7827
      %v8045 = vsel %vm840, %v7827, %v7829
      %v8046 = vsel %vm840, %v7831, %v7833
      %v8047 = vsel %vm840, %v7833, %v7835
      %v8048 = vsel %vm840, %v7835, %v7837
      %v8049 = vsel %vm840, %v7837, %v7839
      %v8050 = vsel %vm840, %v7841, %v7843
      %v8051 = vsel %vm840, %v7843, %v7845
      %v8052 = vsel %vm840, %v7845, %v7847
      %v8053 = vsel %vm840, %v7847, %v7849
      %v8054 = vsel %vm840, %v7851, %v7853
      %v8055 = vsel %vm840, %v7853, %v7855
      %v8056 = vsel %vm840, %v7855, %v7857
      %v8057 = vsel %vm840, %v7857, %v7859
      %v8058 = vsel %vm840, %v7861, %v7863
      %v8059 = vsel %vm840, %v7863, %v7865
      %v8060 = vsel %vm840, %v7865, %v7867
      %v8061 = vsel %vm840, %v7867, %v7869
      %v8062 = vsel %vm840, %v7871, %v7873
      %v8063 = vsel %vm840, %v7873, %v7875
      %v8064 = vsel %vm840, %v7875, %v7877
      %v8065 = vsel %vm840, %v7877, %v7879
      %v8066 = vsel %vm840, %v7881, %v7883
      %v8067 = vsel %vm840, %v7883, %v7885
      %v8068 = vsel %vm840, %v7885, %v7887
      %v8069 = vsel %vm840, %v7887, %v7889
      %v8070 = vsel %vm840, %v7891, %v7893
      %v8071 = vsel %vm840, %v7893, %v7895
      %v8072 = vsel %vm840, %v7895, %v7897
      %v8073 = vsel %vm840, %v7897, %v7899
      %v8074 = vsel %vm840, %v7901, %v7903
      %v8075 = vsel %vm840, %v7903, %v7905
      %v8076 = vsel %vm840, %v7905, %v7907
      %v8077 = vsel %vm840, %v7907, %v7909
      %v8078 = vsel %vm840, %v7911, %v7913
      %v8079 = vsel %vm840, %v7913, %v7915
      %v8080 = vsel %vm840, %v7915, %v7917
      %v8081 = vsel %vm840, %v7917, %v7919
      %v8082 = vsel %vm840, %v7921, %v7923
      %v8083 = vsel %vm840, %v7923, %v7925
      %v8084 = vsel %vm840, %v7925, %v7927
      %v8085 = vsel %vm840, %v7927, %v7929
      %v8086 = vsel %vm840, %v7931, %v7933
      %v8087 = vsel %vm840, %v7933, %v7935
      %v8088 = vsel %vm840, %v7935, %v7937
      %v8089 = vsel %vm840, %v7937, %v7939
      %v8090 = vsel %vm840, %v7941, %v7943
      %v8091 = vsel %vm840, %v7943, %v7945
      %v8092 = vsel %vm840, %v7945, %v7947
      %v8093 = vsel %vm840, %v7947, %v7949
      %v8239 = vsel %vm4593, %v7536, 0
      %v8242 = vsel %vm4593, %v7539, 0
      %v8245 = vsel %vm4593, %v7542, 0
      %v8248 = vsel %vm4593, %v7545, 0
      %8250 = vmatpush.msra.mxu0 %v8010
      %8251 = vmatpush.msra.mxu0 %v8006
      %8252 = vmatpush.msra.mxu0 %v8002
      %8253 = vmatpush.msra.mxu0 %v7998
      %8254 = vmatpush.msra.mxu0 %v7994
      %8255 = vmatpush.msra.mxu0 %v7990
      %8256 = vmatpush.msra.mxu0 %v7986
      %8257 = vmatpush.msra.mxu0 %v7982
      %8258 = vmatpush.msra.mxu0 %v7978
      %8259 = vmatpush.msra.mxu0 %v7974
      %8260 = vmatpush.msra.mxu0 %v7970
      %8261 = vmatpush.msra.mxu0 %v7966
      %8262 = vmatpush.msra.mxu0 %v7962
      %8263 = vmatpush.msra.mxu0 %v7958
      %8264 = vmatpush.msra.mxu0 %v7954
      %8265 = vmatpush.msra.mxu0 %v7950
      %8266 = vmatmul.f32.gmra.mxu0 %v7534
      %v8267 = vpop.f32.mrf.mxu0
      %v8268 = vadd.f32 %v7553, %v8267
      %8269 = vmatmul.f32.gmra.mxu0 %v7537
      %v8270 = vpop.f32.mrf.mxu0
      %v8271 = vadd.f32 %v7558, %v8270
      %8272 = vmatmul.f32.gmra.mxu0 %v7540
      %v8273 = vpop.f32.mrf.mxu0
      %v8274 = vadd.f32 %v7563, %v8273
      %8275 = vmatmul.f32.gmra.mxu0 %v7543
      %v8276 = vpop.f32.mrf.mxu0
      %v8277 = vadd.f32 %v7568, %v8276
      %8278 = vdwg.mxu0
      %8279 = vmatpush.msra.mxu0 %v8074
      %8280 = vmatpush.msra.mxu0 %v8070
      %8281 = vmatpush.msra.mxu0 %v8066
      %8282 = vmatpush.msra.mxu0 %v8062
      %8283 = vmatpush.msra.mxu0 %v8058
      %8284 = vmatpush.msra.mxu0 %v8054
      %8285 = vmatpush.msra.mxu0 %v8050
      %8286 = vmatpush.msra.mxu0 %v8046
      %8287 = vmatpush.msra.mxu0 %v8042
      %8288 = vmatpush.msra.mxu0 %v8038
      %8289 = vmatpush.msra.mxu0 %v8034
      %8290 = vmatpush.msra.mxu0 %v8030
      %8291 = vmatpush.msra.mxu0 %v8026
      %8292 = vmatpush.msra.mxu0 %v8022
      %8293 = vmatpush.msra.mxu0 %v8018
      %8294 = vmatpush.msra.mxu0 %v8014
      %8295 = vmatmul.f32.gmra.mxu0 %v7535
      %v8296 = vpop.f32.mrf.mxu0
      %v8297 = vadd.f32 %v8268, %v8296
      %8298 = vmatmul.f32.gmra.mxu0 %v7538
      %v8299 = vpop.f32.mrf.mxu0
      %v8300 = vadd.f32 %v8271, %v8299
      %8301 = vmatmul.f32.gmra.mxu0 %v7541
      %v8302 = vpop.f32.mrf.mxu0
      %v8303 = vadd.f32 %v8274, %v8302
      %8304 = vmatmul.f32.gmra.mxu0 %v7544
      %v8305 = vpop.f32.mrf.mxu0
      %v8306 = vadd.f32 %v8277, %v8305
      %8307 = vdwg.mxu0
      %8308 = vmatpush.msra.mxu0 0.0
      %8309 = vmatpush.msra.mxu0 0.0
      %8310 = vmatpush.msra.mxu0 0.0
      %8311 = vmatpush.msra.mxu0 0.0
      %8312 = vmatpush.msra.mxu0 0.0
      %8313 = vmatpush.msra.mxu0 0.0
      %8314 = vmatpush.msra.mxu0 0.0
      %8315 = vmatpush.msra.mxu0 0.0
      %8316 = vmatpush.msra.mxu0 0.0
      %8317 = vmatpush.msra.mxu0 0.0
      %8318 = vmatpush.msra.mxu0 0.0
      %8319 = vmatpush.msra.mxu0 0.0
      %8320 = vmatpush.msra.mxu0 %v8090
      %8321 = vmatpush.msra.mxu0 %v8086
      %8322 = vmatpush.msra.mxu0 %v8082
      %8323 = vmatpush.msra.mxu0 %v8078
      %8324 = vmatmul.f32.gmra.mxu0 %v8239
      %v8325 = vpop.f32.mrf.mxu0
      %v8326 = vadd.f32 %v8297, %v8325
      %8327 = vmatmul.f32.gmra.mxu0 %v8242
      %v8328 = vpop.f32.mrf.mxu0
      %v8329 = vadd.f32 %v8300, %v8328
      %8330 = vmatmul.f32.gmra.mxu0 %v8245
      %v8331 = vpop.f32.mrf.mxu0
      %v8332 = vadd.f32 %v8303, %v8331
      %8333 = vmatmul.f32.gmra.mxu0 %v8248
      %v8334 = vpop.f32.mrf.mxu0
      %v8335 = vadd.f32 %v8306, %v8334
      %8336 = vdwg.mxu0
      %8337 = vmatpush.msra.mxu0 %v8011
      %8338 = vmatpush.msra.mxu0 %v8007
      %8339 = vmatpush.msra.mxu0 %v8003
      %8340 = vmatpush.msra.mxu0 %v7999
      %8341 = vmatpush.msra.mxu0 %v7995
      %8342 = vmatpush.msra.mxu0 %v7991
      %8343 = vmatpush.msra.mxu0 %v7987
      %8344 = vmatpush.msra.mxu0 %v7983
      %8345 = vmatpush.msra.mxu0 %v7979
      %8346 = vmatpush.msra.mxu0 %v7975
      %8347 = vmatpush.msra.mxu0 %v7971
      %8348 = vmatpush.msra.mxu0 %v7967
      %8349 = vmatpush.msra.mxu0 %v7963
      %8350 = vmatpush.msra.mxu0 %v7959
      %8351 = vmatpush.msra.mxu0 %v7955
      %8352 = vmatpush.msra.mxu0 %v7951
      %8353 = vmatmul.f32.gmra.mxu0 %v7534
      %v8354 = vpop.f32.mrf.mxu0
      %v8355 = vadd.f32 %v7553, %v8354
      %8356 = vmatmul.f32.gmra.mxu0 %v7537
      %v8357 = vpop.f32.mrf.mxu0
      %v8358 = vadd.f32 %v7558, %v8357
      %8359 = vmatmul.f32.gmra.mxu0 %v7540
      %v8360 = vpop.f32.mrf.mxu0
      %v8361 = vadd.f32 %v7563, %v8360
      %8362 = vmatmul.f32.gmra.mxu0 %v7543
      %v8363 = vpop.f32.mrf.mxu0
      %v8364 = vadd.f32 %v7568, %v8363
      %8365 = vdwg.mxu0
      %8366 = vmatpush.msra.mxu0 %v8075
      %8367 = vmatpush.msra.mxu0 %v8071
      %8368 = vmatpush.msra.mxu0 %v8067
      %8369 = vmatpush.msra.mxu0 %v8063
      %8370 = vmatpush.msra.mxu0 %v8059
      %8371 = vmatpush.msra.mxu0 %v8055
      %8372 = vmatpush.msra.mxu0 %v8051
      %8373 = vmatpush.msra.mxu0 %v8047
      %8374 = vmatpush.msra.mxu0 %v8043
      %8375 = vmatpush.msra.mxu0 %v8039
      %8376 = vmatpush.msra.mxu0 %v8035
      %8377 = vmatpush.msra.mxu0 %v8031
      %8378 = vmatpush.msra.mxu0 %v8027
      %8379 = vmatpush.msra.mxu0 %v8023
      %8380 = vmatpush.msra.mxu0 %v8019
      %8381 = vmatpush.msra.mxu0 %v8015
      %8382 = vmatmul.f32.gmra.mxu0 %v7535
      %v8383 = vpop.f32.mrf.mxu0
      %v8384 = vadd.f32 %v8355, %v8383
      %8385 = vmatmul.f32.gmra.mxu0 %v7538
      %v8386 = vpop.f32.mrf.mxu0
      %v8387 = vadd.f32 %v8358, %v8386
      %8388 = vmatmul.f32.gmra.mxu0 %v7541
      %v8389 = vpop.f32.mrf.mxu0
      %v8390 = vadd.f32 %v8361, %v8389
      %8391 = vmatmul.f32.gmra.mxu0 %v7544
      %v8392 = vpop.f32.mrf.mxu0
      %v8393 = vadd.f32 %v8364, %v8392
      %8394 = vdwg.mxu0
      %8395 = vmatpush.msra.mxu0 0.0
      %8396 = vmatpush.msra.mxu0 0.0
      %8397 = vmatpush.msra.mxu0 0.0
      %8398 = vmatpush.msra.mxu0 0.0
      %8399 = vmatpush.msra.mxu0 0.0
      %8400 = vmatpush.msra.mxu0 0.0
      %8401 = vmatpush.msra.mxu0 0.0
      %8402 = vmatpush.msra.mxu0 0.0
      %8403 = vmatpush.msra.mxu0 0.0
      %8404 = vmatpush.msra.mxu0 0.0
      %8405 = vmatpush.msra.mxu0 0.0
      %8406 = vmatpush.msra.mxu0 0.0
      %8407 = vmatpush.msra.mxu0 %v8091
      %8408 = vmatpush.msra.mxu0 %v8087
      %8409 = vmatpush.msra.mxu0 %v8083
      %8410 = vmatpush.msra.mxu0 %v8079
      %8411 = vmatmul.f32.gmra.mxu0 %v8239
      %v8412 = vpop.f32.mrf.mxu0
      %v8413 = vadd.f32 %v8384, %v8412
      %8414 = vmatmul.f32.gmra.mxu0 %v8242
      %v8415 = vpop.f32.mrf.mxu0
      %v8416 = vadd.f32 %v8387, %v8415
      %8417 = vmatmul.f32.gmra.mxu0 %v8245
      %v8418 = vpop.f32.mrf.mxu0
      %v8419 = vadd.f32 %v8390, %v8418
      %8420 = vmatmul.f32.gmra.mxu0 %v8248
      %v8421 = vpop.f32.mrf.mxu0
      %v8422 = vadd.f32 %v8393, %v8421
      %8423 = vdwg.mxu0
      %8424 = vmatpush.msra.mxu0 %v8012
      %8425 = vmatpush.msra.mxu0 %v8008
      %8426 = vmatpush.msra.mxu0 %v8004
      %8427 = vmatpush.msra.mxu0 %v8000
      %8428 = vmatpush.msra.mxu0 %v7996
      %8429 = vmatpush.msra.mxu0 %v7992
      %8430 = vmatpush.msra.mxu0 %v7988
      %8431 = vmatpush.msra.mxu0 %v7984
      %8432 = vmatpush.msra.mxu0 %v7980
      %8433 = vmatpush.msra.mxu0 %v7976
      %8434 = vmatpush.msra.mxu0 %v7972
      %8435 = vmatpush.msra.mxu0 %v7968
      %8436 = vmatpush.msra.mxu0 %v7964
      %8437 = vmatpush.msra.mxu0 %v7960
      %8438 = vmatpush.msra.mxu0 %v7956
      %8439 = vmatpush.msra.mxu0 %v7952
      %8440 = vmatmul.f32.gmra.mxu0 %v7534
      %v8441 = vpop.f32.mrf.mxu0
      %v8442 = vadd.f32 %v7553, %v8441
      %8443 = vmatmul.f32.gmra.mxu0 %v7537
      %v8444 = vpop.f32.mrf.mxu0
      %v8445 = vadd.f32 %v7558, %v8444
      %8446 = vmatmul.f32.gmra.mxu0 %v7540
      %v8447 = vpop.f32.mrf.mxu0
      %v8448 = vadd.f32 %v7563, %v8447
      %8449 = vmatmul.f32.gmra.mxu0 %v7543
      %v8450 = vpop.f32.mrf.mxu0
      %v8451 = vadd.f32 %v7568, %v8450
      %8452 = vdwg.mxu0
      %8453 = vmatpush.msra.mxu0 %v8076
      %8454 = vmatpush.msra.mxu0 %v8072
      %8455 = vmatpush.msra.mxu0 %v8068
      %8456 = vmatpush.msra.mxu0 %v8064
      %8457 = vmatpush.msra.mxu0 %v8060
      %8458 = vmatpush.msra.mxu0 %v8056
      %8459 = vmatpush.msra.mxu0 %v8052
      %8460 = vmatpush.msra.mxu0 %v8048
      %8461 = vmatpush.msra.mxu0 %v8044
      %8462 = vmatpush.msra.mxu0 %v8040
      %8463 = vmatpush.msra.mxu0 %v8036
      %8464 = vmatpush.msra.mxu0 %v8032
      %8465 = vmatpush.msra.mxu0 %v8028
      %8466 = vmatpush.msra.mxu0 %v8024
      %8467 = vmatpush.msra.mxu0 %v8020
      %8468 = vmatpush.msra.mxu0 %v8016
      %8469 = vmatmul.f32.gmra.mxu0 %v7535
      %v8470 = vpop.f32.mrf.mxu0
      %v8471 = vadd.f32 %v8442, %v8470
      %8472 = vmatmul.f32.gmra.mxu0 %v7538
      %v8473 = vpop.f32.mrf.mxu0
      %v8474 = vadd.f32 %v8445, %v8473
      %8475 = vmatmul.f32.gmra.mxu0 %v7541
      %v8476 = vpop.f32.mrf.mxu0
      %v8477 = vadd.f32 %v8448, %v8476
      %8478 = vmatmul.f32.gmra.mxu0 %v7544
      %v8479 = vpop.f32.mrf.mxu0
      %v8480 = vadd.f32 %v8451, %v8479
      %8481 = vdwg.mxu0
      %8482 = vmatpush.msra.mxu0 0.0
      %8483 = vmatpush.msra.mxu0 0.0
      %8484 = vmatpush.msra.mxu0 0.0
      %8485 = vmatpush.msra.mxu0 0.0
      %8486 = vmatpush.msra.mxu0 0.0
      %8487 = vmatpush.msra.mxu0 0.0
      %8488 = vmatpush.msra.mxu0 0.0
      %8489 = vmatpush.msra.mxu0 0.0
      %8490 = vmatpush.msra.mxu0 0.0
      %8491 = vmatpush.msra.mxu0 0.0
      %8492 = vmatpush.msra.mxu0 0.0
      %8493 = vmatpush.msra.mxu0 0.0
      %8494 = vmatpush.msra.mxu0 %v8092
      %8495 = vmatpush.msra.mxu0 %v8088
      %8496 = vmatpush.msra.mxu0 %v8084
      %8497 = vmatpush.msra.mxu0 %v8080
      %8498 = vmatmul.f32.gmra.mxu0 %v8239
      %v8499 = vpop.f32.mrf.mxu0
      %v8500 = vadd.f32 %v8471, %v8499
      %8501 = vmatmul.f32.gmra.mxu0 %v8242
      %v8502 = vpop.f32.mrf.mxu0
      %v8503 = vadd.f32 %v8474, %v8502
      %8504 = vmatmul.f32.gmra.mxu0 %v8245
      %v8505 = vpop.f32.mrf.mxu0
      %v8506 = vadd.f32 %v8477, %v8505
      %8507 = vmatmul.f32.gmra.mxu0 %v8248
      %v8508 = vpop.f32.mrf.mxu0
      %v8509 = vadd.f32 %v8480, %v8508
      %8510 = vdwg.mxu0
      %8511 = vmatpush.msra.mxu0 %v8013
      %8512 = vmatpush.msra.mxu0 %v8009
      %8513 = vmatpush.msra.mxu0 %v8005
      %8514 = vmatpush.msra.mxu0 %v8001
      %8515 = vmatpush.msra.mxu0 %v7997
      %8516 = vmatpush.msra.mxu0 %v7993
      %8517 = vmatpush.msra.mxu0 %v7989
      %8518 = vmatpush.msra.mxu0 %v7985
      %8519 = vmatpush.msra.mxu0 %v7981
      %8520 = vmatpush.msra.mxu0 %v7977
      %8521 = vmatpush.msra.mxu0 %v7973
      %8522 = vmatpush.msra.mxu0 %v7969
      %8523 = vmatpush.msra.mxu0 %v7965
      %8524 = vmatpush.msra.mxu0 %v7961
      %8525 = vmatpush.msra.mxu0 %v7957
      %8526 = vmatpush.msra.mxu0 %v7953
      %8527 = vmatmul.f32.gmra.mxu0 %v7534
      %v8528 = vpop.f32.mrf.mxu0
      %v8529 = vadd.f32 %v7553, %v8528
      %8530 = vmatmul.f32.gmra.mxu0 %v7537
      %v8531 = vpop.f32.mrf.mxu0
      %v8532 = vadd.f32 %v7558, %v8531
      %8533 = vmatmul.f32.gmra.mxu0 %v7540
      %v8534 = vpop.f32.mrf.mxu0
      %v8535 = vadd.f32 %v7563, %v8534
      %8536 = vmatmul.f32.gmra.mxu0 %v7543
      %v8537 = vpop.f32.mrf.mxu0
      %v8538 = vadd.f32 %v7568, %v8537
      %8539 = vdwg.mxu0
      %8540 = vmatpush.msra.mxu0 %v8077
      %8541 = vmatpush.msra.mxu0 %v8073
      %8542 = vmatpush.msra.mxu0 %v8069
      %8543 = vmatpush.msra.mxu0 %v8065
      %8544 = vmatpush.msra.mxu0 %v8061
      %8545 = vmatpush.msra.mxu0 %v8057
      %8546 = vmatpush.msra.mxu0 %v8053
      %8547 = vmatpush.msra.mxu0 %v8049
      %8548 = vmatpush.msra.mxu0 %v8045
      %8549 = vmatpush.msra.mxu0 %v8041
      %8550 = vmatpush.msra.mxu0 %v8037
      %8551 = vmatpush.msra.mxu0 %v8033
      %8552 = vmatpush.msra.mxu0 %v8029
      %8553 = vmatpush.msra.mxu0 %v8025
      %8554 = vmatpush.msra.mxu0 %v8021
      %8555 = vmatpush.msra.mxu0 %v8017
      %8556 = vmatmul.f32.gmra.mxu0 %v7535
      %v8557 = vpop.f32.mrf.mxu0
      %v8558 = vadd.f32 %v8529, %v8557
      %8559 = vmatmul.f32.gmra.mxu0 %v7538
      %v8560 = vpop.f32.mrf.mxu0
      %v8561 = vadd.f32 %v8532, %v8560
      %8562 = vmatmul.f32.gmra.mxu0 %v7541
      %v8563 = vpop.f32.mrf.mxu0
      %v8564 = vadd.f32 %v8535, %v8563
      %8565 = vmatmul.f32.gmra.mxu0 %v7544
      %v8566 = vpop.f32.mrf.mxu0
      %v8567 = vadd.f32 %v8538, %v8566
      %8568 = vdwg.mxu0
      %8569 = vmatpush.msra.mxu0 0.0
      %8570 = vmatpush.msra.mxu0 0.0
      %8571 = vmatpush.msra.mxu0 0.0
      %8572 = vmatpush.msra.mxu0 0.0
      %8573 = vmatpush.msra.mxu0 0.0
      %8574 = vmatpush.msra.mxu0 0.0
      %8575 = vmatpush.msra.mxu0 0.0
      %8576 = vmatpush.msra.mxu0 0.0
      %8577 = vmatpush.msra.mxu0 0.0
      %8578 = vmatpush.msra.mxu0 0.0
      %8579 = vmatpush.msra.mxu0 0.0
      %8580 = vmatpush.msra.mxu0 0.0
      %8581 = vmatpush.msra.mxu0 %v8093
      %8582 = vmatpush.msra.mxu0 %v8089
      %8583 = vmatpush.msra.mxu0 %v8085
      %8584 = vmatpush.msra.mxu0 %v8081
      %8585 = vmatmul.f32.gmra.mxu0 %v8239
      %v8586 = vpop.f32.mrf.mxu0
      %v8587 = vadd.f32 %v8558, %v8586
      %8588 = vmatmul.f32.gmra.mxu0 %v8242
      %v8589 = vpop.f32.mrf.mxu0
      %v8590 = vadd.f32 %v8561, %v8589
      %8591 = vmatmul.f32.gmra.mxu0 %v8245
      %v8592 = vpop.f32.mrf.mxu0
      %v8593 = vadd.f32 %v8564, %v8592
      %8594 = vmatmul.f32.gmra.mxu0 %v8248
      %v8595 = vpop.f32.mrf.mxu0
      %v8596 = vadd.f32 %v8567, %v8595
      %8597 = vdwg.mxu0
      %v8598 = vadd.f32 %v8326, %v5142
      %v8599 = vadd.f32 %v8413, %v5143
      %v8600 = vadd.f32 %v8500, %v5144
      %v8601 = vadd.f32 %v8587, %v5145
      %v8602 = vadd.f32 %v8329, %v5146
      %v8603 = vadd.f32 %v8416, %v5147
      %v8604 = vadd.f32 %v8503, %v5148
      %v8605 = vadd.f32 %v8590, %v5149
      %v8606 = vadd.f32 %v8332, %v5150
      %v8607 = vadd.f32 %v8419, %v5151
      %v8608 = vadd.f32 %v8506, %v5152
      %v8609 = vadd.f32 %v8593, %v5153
      %v8610 = vadd.f32 %v8335, %v5154
      %v8611 = vadd.f32 %v8422, %v5155
      %v8612 = vadd.f32 %v8509, %v5156
      %v8613 = vadd.f32 %v8596, %v5157
      %v8614 = vmax.f32 %v8598, 0.0
      %v8615 = vmax.f32 %v8599, 0.0
      %v8616 = vmax.f32 %v8600, 0.0
      %v8617 = vmax.f32 %v8601, 0.0
      %v8618 = vmax.f32 %v8602, 0.0
      %v8619 = vmax.f32 %v8603, 0.0
      %v8620 = vmax.f32 %v8604, 0.0
      %v8621 = vmax.f32 %v8605, 0.0
      %v8622 = vmax.f32 %v8606, 0.0
      %v8623 = vmax.f32 %v8607, 0.0
      %v8624 = vmax.f32 %v8608, 0.0
      %v8625 = vmax.f32 %v8609, 0.0
      %v8626 = vmax.f32 %v8610, 0.0
      %v8627 = vmax.f32 %v8611, 0.0
      %v8628 = vmax.f32 %v8612, 0.0
      %v8629 = vmax.f32 %v8613, 0.0
      %v8630 = vmul.f32 %v8614, %v1277
      %v8631 = vmul.f32 %v8615, %v1278
      %v8632 = vmul.f32 %v8616, %v1279
      %v8633 = vmul.f32 %v8617, %v1280
      %v8634 = vmul.f32 %v8618, %v1277
      %v8635 = vmul.f32 %v8619, %v1278
      %v8636 = vmul.f32 %v8620, %v1279
      %v8637 = vmul.f32 %v8621, %v1280
      %v8638 = vmul.f32 %v8622, %v1277
      %v8639 = vmul.f32 %v8623, %v1278
      %v8640 = vmul.f32 %v8624, %v1279
      %v8641 = vmul.f32 %v8625, %v1280
      %v8642 = vmul.f32 %v8626, %v1277
      %v8643 = vmul.f32 %v8627, %v1278
      %v8644 = vmul.f32 %v8628, %v1279
      %v8645 = vmul.f32 %v8629, %v1280
      %8646 = vst [vmem:[#allocation2 + $0x8] sm:$0xff] %v8630
      %8647 = vst [vmem:[#allocation2 + $0x10] sm:$0xff] %v8631
      %8648 = vst [vmem:[#allocation2 + $0x18] sm:$0xff] %v8632
      %8649 = vst.msk [vmem:[#allocation2 + $0x20] sm:$0xff] %vm657, %v8633
      %8650 = vst [vmem:[#allocation2 + $0x38] sm:$0xff] %v8634
      %8651 = vst [vmem:[#allocation2 + $0x40] sm:$0xff] %v8635
      %8652 = vst [vmem:[#allocation2 + $0x48] sm:$0xff] %v8636
      %8653 = vst.msk [vmem:[#allocation2 + $0x50] sm:$0xff] %vm657, %v8637
      %8654 = vst [vmem:[#allocation2 + $0x68] sm:$0xff] %v8638
      %8655 = vst [vmem:[#allocation2 + $0x70] sm:$0xff] %v8639
      %8656 = vst [vmem:[#allocation2 + $0x78] sm:$0xff] %v8640
      %8657 = vst.msk [vmem:[#allocation2 + $0x80] sm:$0xff] %vm657, %v8641
      %8658 = vst [vmem:[#allocation2 + $0x98] sm:$0xff] %v8642
      %8659 = vst [vmem:[#allocation2 + $0xa0] sm:$0xff] %v8643
      %8660 = vst [vmem:[#allocation2 + $0xa8] sm:$0xff] %v8644
      %8661 = vst.msk [vmem:[#allocation2 + $0xb0] sm:$0xff] %vm657, %v8645
      %v8662 = vld [vmem:[#allocation2] sm:$0xff]
      %v8663 = vld [vmem:[#allocation2 + $0x8] sm:$0xff]
      %v8664 = vld [vmem:[#allocation2 + $0x10] sm:$0xff]
      %v8665 = vld [vmem:[#allocation2 + $0x18] sm:$0xff]
      %v8666 = vld [vmem:[#allocation2 + $0x20] sm:$0xff]
      %v8667 = vld [vmem:[#allocation2 + $0x30] sm:$0xff]
      %v8668 = vld [vmem:[#allocation2 + $0x38] sm:$0xff]
      %v8669 = vld [vmem:[#allocation2 + $0x40] sm:$0xff]
      %v8670 = vld [vmem:[#allocation2 + $0x48] sm:$0xff]
      %v8671 = vld [vmem:[#allocation2 + $0x50] sm:$0xff]
      %v8672 = vld [vmem:[#allocation2 + $0x60] sm:$0xff]
      %v8673 = vld [vmem:[#allocation2 + $0x68] sm:$0xff]
      %v8674 = vld [vmem:[#allocation2 + $0x70] sm:$0xff]
      %v8675 = vld [vmem:[#allocation2 + $0x78] sm:$0xff]
      %v8676 = vld [vmem:[#allocation2 + $0x80] sm:$0xff]
      %v8677 = vld [vmem:[#allocation2 + $0x90] sm:$0xff]
      %v8678 = vld [vmem:[#allocation2 + $0x98] sm:$0xff]
      %v8679 = vld [vmem:[#allocation2 + $0xa0] sm:$0xff]
      %v8680 = vld [vmem:[#allocation2 + $0xa8] sm:$0xff]
      %v8681 = vld [vmem:[#allocation2 + $0xb0] sm:$0xff]
      %v8682 = vmul.f32 %v8662, %v711
      %v8683 = vmul.f32 %v8663, %v719
      %v8684 = vmul.f32 %v8664, %v720
      %v8685 = vmul.f32 %v8665, %v721
      %v8686 = vmul.f32 %v8667, %v711
      %v8687 = vmul.f32 %v8668, %v719
      %v8688 = vmul.f32 %v8669, %v720
      %v8689 = vmul.f32 %v8670, %v721
      %v8690 = vmul.f32 %v8672, %v711
      %v8691 = vmul.f32 %v8673, %v719
      %v8692 = vmul.f32 %v8674, %v720
      %v8693 = vmul.f32 %v8675, %v721
      %v8694 = vmul.f32 %v8677, %v711
      %v8695 = vmul.f32 %v8678, %v719
      %v8696 = vmul.f32 %v8679, %v720
      %v8697 = vmul.f32 %v8680, %v721
      %v8698 = vmul.f32 %v8662, %v749
      %v8699 = vmul.f32 %v8663, %v757
      %v8700 = vmul.f32 %v8664, %v758
      %v8701 = vmul.f32 %v8665, %v759
      %v8702 = vmul.f32 %v8666, %v755
      %v8703 = vmul.f32 %v8667, %v749
      %v8704 = vmul.f32 %v8668, %v757
      %v8705 = vmul.f32 %v8669, %v758
      %v8706 = vmul.f32 %v8670, %v759
      %v8707 = vmul.f32 %v8671, %v755
      %v8708 = vmul.f32 %v8672, %v749
      %v8709 = vmul.f32 %v8673, %v757
      %v8710 = vmul.f32 %v8674, %v758
      %v8711 = vmul.f32 %v8675, %v759
      %v8712 = vmul.f32 %v8676, %v755
      %v8713 = vmul.f32 %v8677, %v749
      %v8714 = vmul.f32 %v8678, %v757
      %v8715 = vmul.f32 %v8679, %v758
      %v8716 = vmul.f32 %v8680, %v759
      %v8717 = vmul.f32 %v8681, %v755
      %v8718 = vmul.f32 %v8662, %v771
      %v8719 = vmul.f32 %v8663, %v779
      %v8720 = vmul.f32 %v8664, %v780
      %v8721 = vmul.f32 %v8665, %v781
      %v8722 = vmul.f32 %v8666, %v777
      %v8723 = vmul.f32 %v8667, %v771
      %v8724 = vmul.f32 %v8668, %v779
      %v8725 = vmul.f32 %v8669, %v780
      %v8726 = vmul.f32 %v8670, %v781
      %v8727 = vmul.f32 %v8671, %v777
      %v8728 = vmul.f32 %v8672, %v771
      %v8729 = vmul.f32 %v8673, %v779
      %v8730 = vmul.f32 %v8674, %v780
      %v8731 = vmul.f32 %v8675, %v781
      %v8732 = vmul.f32 %v8676, %v777
      %v8733 = vmul.f32 %v8677, %v771
      %v8734 = vmul.f32 %v8678, %v779
      %v8735 = vmul.f32 %v8679, %v780
      %v8736 = vmul.f32 %v8680, %v781
      %v8737 = vmul.f32 %v8681, %v777
      %v8738 = vmul.f32 %v8663, %v793
      %v8739 = vmul.f32 %v8664, %v801
      %v8740 = vmul.f32 %v8665, %v802
      %v8741 = vmul.f32 %v8666, %v803
      %v8742 = vmul.f32 %v8668, %v793
      %v8743 = vmul.f32 %v8669, %v801
      %v8744 = vmul.f32 %v8670, %v802
      %v8745 = vmul.f32 %v8671, %v803
      %v8746 = vmul.f32 %v8673, %v793
      %v8747 = vmul.f32 %v8674, %v801
      %v8748 = vmul.f32 %v8675, %v802
      %v8749 = vmul.f32 %v8676, %v803
      %v8750 = vmul.f32 %v8678, %v793
      %v8751 = vmul.f32 %v8679, %v801
      %v8752 = vmul.f32 %v8680, %v802
      %v8753 = vmul.f32 %v8681, %v803
      %v8754 = vmul.f32 %v8663, %v813
      %v8755 = vmul.f32 %v8664, %v821
      %v8756 = vmul.f32 %v8665, %v822
      %v8757 = vmul.f32 %v8666, %v823
      %v8758 = vmul.f32 %v8668, %v813
      %v8759 = vmul.f32 %v8669, %v821
      %v8760 = vmul.f32 %v8670, %v822
      %v8761 = vmul.f32 %v8671, %v823
      %v8762 = vmul.f32 %v8673, %v813
      %v8763 = vmul.f32 %v8674, %v821
      %v8764 = vmul.f32 %v8675, %v822
      %v8765 = vmul.f32 %v8676, %v823
      %v8766 = vmul.f32 %v8678, %v813
      %v8767 = vmul.f32 %v8679, %v821
      %v8768 = vmul.f32 %v8680, %v822
      %v8769 = vmul.f32 %v8681, %v823
      %v8770 = vmul.f32 %v8663, %v833
      %v8771 = vmul.f32 %v8664, %v841
      %v8772 = vmul.f32 %v8665, %v842
      %v8773 = vmul.f32 %v8666, %v843
      %v8774 = vmul.f32 %v8668, %v833
      %v8775 = vmul.f32 %v8669, %v841
      %v8776 = vmul.f32 %v8670, %v842
      %v8777 = vmul.f32 %v8671, %v843
      %v8778 = vmul.f32 %v8673, %v833
      %v8779 = vmul.f32 %v8674, %v841
      %v8780 = vmul.f32 %v8675, %v842
      %v8781 = vmul.f32 %v8676, %v843
      %v8782 = vmul.f32 %v8678, %v833
      %v8783 = vmul.f32 %v8679, %v841
      %v8784 = vmul.f32 %v8680, %v842
      %v8785 = vmul.f32 %v8681, %v843
      %8806 = vrot.lane.b32.xlu0 %v8662, 127
      %v8807 = vpop.permute.xlu0 %8806
      %8808 = vrot.lane.b32.xlu0 %v8663, 127
      %v8809 = vpop.permute.xlu0 %8808
      %8810 = vrot.lane.b32.xlu0 %v8664, 127
      %v8811 = vpop.permute.xlu0 %8810
      %8812 = vrot.lane.b32.xlu0 %v8665, 127
      %v8813 = vpop.permute.xlu0 %8812
      %8814 = vrot.lane.b32.xlu0 %v8666, 127
      %v8815 = vpop.permute.xlu0 %8814
      %8816 = vrot.lane.b32.xlu0 %v8667, 127
      %v8817 = vpop.permute.xlu0 %8816
      %8818 = vrot.lane.b32.xlu0 %v8668, 127
      %v8819 = vpop.permute.xlu0 %8818
      %8820 = vrot.lane.b32.xlu0 %v8669, 127
      %v8821 = vpop.permute.xlu0 %8820
      %8822 = vrot.lane.b32.xlu0 %v8670, 127
      %v8823 = vpop.permute.xlu0 %8822
      %8824 = vrot.lane.b32.xlu0 %v8671, 127
      %v8825 = vpop.permute.xlu0 %8824
      %8826 = vrot.lane.b32.xlu0 %v8672, 127
      %v8827 = vpop.permute.xlu0 %8826
      %8828 = vrot.lane.b32.xlu0 %v8673, 127
      %v8829 = vpop.permute.xlu0 %8828
      %8830 = vrot.lane.b32.xlu0 %v8674, 127
      %v8831 = vpop.permute.xlu0 %8830
      %8832 = vrot.lane.b32.xlu0 %v8675, 127
      %v8833 = vpop.permute.xlu0 %8832
      %8834 = vrot.lane.b32.xlu0 %v8676, 127
      %v8835 = vpop.permute.xlu0 %8834
      %8836 = vrot.lane.b32.xlu0 %v8677, 127
      %v8837 = vpop.permute.xlu0 %8836
      %8838 = vrot.lane.b32.xlu0 %v8678, 127
      %v8839 = vpop.permute.xlu0 %8838
      %8840 = vrot.lane.b32.xlu0 %v8679, 127
      %v8841 = vpop.permute.xlu0 %8840
      %8842 = vrot.lane.b32.xlu0 %v8680, 127
      %v8843 = vpop.permute.xlu0 %8842
      %8844 = vrot.lane.b32.xlu0 %v8681, 127
      %v8845 = vpop.permute.xlu0 %8844
      %v8846 = vsel %vm778, %v8807, %v8809
      %v8847 = vsel %vm778, %v8809, %v8811
      %v8848 = vsel %vm778, %v8811, %v8813
      %v8849 = vsel %vm778, %v8813, %v8815
      %v8850 = vsel %vm778, %v8817, %v8819
      %v8851 = vsel %vm778, %v8819, %v8821
      %v8852 = vsel %vm778, %v8821, %v8823
      %v8853 = vsel %vm778, %v8823, %v8825
      %v8854 = vsel %vm778, %v8827, %v8829
      %v8855 = vsel %vm778, %v8829, %v8831
      %v8856 = vsel %vm778, %v8831, %v8833
      %v8857 = vsel %vm778, %v8833, %v8835
      %v8858 = vsel %vm778, %v8837, %v8839
      %v8859 = vsel %vm778, %v8839, %v8841
      %v8860 = vsel %vm778, %v8841, %v8843
      %v8861 = vsel %vm778, %v8843, %v8845
      %8882 = vrot.lane.b32.xlu0 %v8698, 126
      %v8883 = vpop.permute.xlu0 %8882
      %8884 = vrot.lane.b32.xlu0 %v8699, 126
      %v8885 = vpop.permute.xlu0 %8884
      %8886 = vrot.lane.b32.xlu0 %v8700, 126
      %v8887 = vpop.permute.xlu0 %8886
      %8888 = vrot.lane.b32.xlu0 %v8701, 126
      %v8889 = vpop.permute.xlu0 %8888
      %8890 = vrot.lane.b32.xlu0 %v8702, 126
      %v8891 = vpop.permute.xlu0 %8890
      %8892 = vrot.lane.b32.xlu0 %v8703, 126
      %v8893 = vpop.permute.xlu0 %8892
      %8894 = vrot.lane.b32.xlu0 %v8704, 126
      %v8895 = vpop.permute.xlu0 %8894
      %8896 = vrot.lane.b32.xlu0 %v8705, 126
      %v8897 = vpop.permute.xlu0 %8896
      %8898 = vrot.lane.b32.xlu0 %v8706, 126
      %v8899 = vpop.permute.xlu0 %8898
      %8900 = vrot.lane.b32.xlu0 %v8707, 126
      %v8901 = vpop.permute.xlu0 %8900
      %8902 = vrot.lane.b32.xlu0 %v8708, 126
      %v8903 = vpop.permute.xlu0 %8902
      %8904 = vrot.lane.b32.xlu0 %v8709, 126
      %v8905 = vpop.permute.xlu0 %8904
      %8906 = vrot.lane.b32.xlu0 %v8710, 126
      %v8907 = vpop.permute.xlu0 %8906
      %8908 = vrot.lane.b32.xlu0 %v8711, 126
      %v8909 = vpop.permute.xlu0 %8908
      %8910 = vrot.lane.b32.xlu0 %v8712, 126
      %v8911 = vpop.permute.xlu0 %8910
      %8912 = vrot.lane.b32.xlu0 %v8713, 126
      %v8913 = vpop.permute.xlu0 %8912
      %8914 = vrot.lane.b32.xlu0 %v8714, 126
      %v8915 = vpop.permute.xlu0 %8914
      %8916 = vrot.lane.b32.xlu0 %v8715, 126
      %v8917 = vpop.permute.xlu0 %8916
      %8918 = vrot.lane.b32.xlu0 %v8716, 126
      %v8919 = vpop.permute.xlu0 %8918
      %8920 = vrot.lane.b32.xlu0 %v8717, 126
      %v8921 = vpop.permute.xlu0 %8920
      %v8922 = vsel %vm886, %v8883, %v8885
      %v8923 = vsel %vm886, %v8885, %v8887
      %v8924 = vsel %vm886, %v8887, %v8889
      %v8925 = vsel %vm886, %v8889, %v8891
      %v8926 = vsel %vm886, %v8893, %v8895
      %v8927 = vsel %vm886, %v8895, %v8897
      %v8928 = vsel %vm886, %v8897, %v8899
      %v8929 = vsel %vm886, %v8899, %v8901
      %v8930 = vsel %vm886, %v8903, %v8905
      %v8931 = vsel %vm886, %v8905, %v8907
      %v8932 = vsel %vm886, %v8907, %v8909
      %v8933 = vsel %vm886, %v8909, %v8911
      %v8934 = vsel %vm886, %v8913, %v8915
      %v8935 = vsel %vm886, %v8915, %v8917
      %v8936 = vsel %vm886, %v8917, %v8919
      %v8937 = vsel %vm886, %v8919, %v8921
      %8958 = vrot.lane.b32.xlu0 %v8718, 112
      %v8959 = vpop.permute.xlu0 %8958
      %8960 = vrot.lane.b32.xlu0 %v8719, 112
      %v8961 = vpop.permute.xlu0 %8960
      %8962 = vrot.lane.b32.xlu0 %v8720, 112
      %v8963 = vpop.permute.xlu0 %8962
      %8964 = vrot.lane.b32.xlu0 %v8721, 112
      %v8965 = vpop.permute.xlu0 %8964
      %8966 = vrot.lane.b32.xlu0 %v8722, 112
      %v8967 = vpop.permute.xlu0 %8966
      %8968 = vrot.lane.b32.xlu0 %v8723, 112
      %v8969 = vpop.permute.xlu0 %8968
      %8970 = vrot.lane.b32.xlu0 %v8724, 112
      %v8971 = vpop.permute.xlu0 %8970
      %8972 = vrot.lane.b32.xlu0 %v8725, 112
      %v8973 = vpop.permute.xlu0 %8972
      %8974 = vrot.lane.b32.xlu0 %v8726, 112
      %v8975 = vpop.permute.xlu0 %8974
      %8976 = vrot.lane.b32.xlu0 %v8727, 112
      %v8977 = vpop.permute.xlu0 %8976
      %8978 = vrot.lane.b32.xlu0 %v8728, 112
      %v8979 = vpop.permute.xlu0 %8978
      %8980 = vrot.lane.b32.xlu0 %v8729, 112
      %v8981 = vpop.permute.xlu0 %8980
      %8982 = vrot.lane.b32.xlu0 %v8730, 112
      %v8983 = vpop.permute.xlu0 %8982
      %8984 = vrot.lane.b32.xlu0 %v8731, 112
      %v8985 = vpop.permute.xlu0 %8984
      %8986 = vrot.lane.b32.xlu0 %v8732, 112
      %v8987 = vpop.permute.xlu0 %8986
      %8988 = vrot.lane.b32.xlu0 %v8733, 112
      %v8989 = vpop.permute.xlu0 %8988
      %8990 = vrot.lane.b32.xlu0 %v8734, 112
      %v8991 = vpop.permute.xlu0 %8990
      %8992 = vrot.lane.b32.xlu0 %v8735, 112
      %v8993 = vpop.permute.xlu0 %8992
      %8994 = vrot.lane.b32.xlu0 %v8736, 112
      %v8995 = vpop.permute.xlu0 %8994
      %8996 = vrot.lane.b32.xlu0 %v8737, 112
      %v8997 = vpop.permute.xlu0 %8996
      %v8998 = vsel %vm906, %v8959, %v8961
      %v8999 = vsel %vm906, %v8961, %v8963
      %v9000 = vsel %vm906, %v8963, %v8965
      %v9001 = vsel %vm906, %v8965, %v8967
      %v9002 = vsel %vm906, %v8969, %v8971
      %v9003 = vsel %vm906, %v8971, %v8973
      %v9004 = vsel %vm906, %v8973, %v8975
      %v9005 = vsel %vm906, %v8975, %v8977
      %v9006 = vsel %vm906, %v8979, %v8981
      %v9007 = vsel %vm906, %v8981, %v8983
      %v9008 = vsel %vm906, %v8983, %v8985
      %v9009 = vsel %vm906, %v8985, %v8987
      %v9010 = vsel %vm906, %v8989, %v8991
      %v9011 = vsel %vm906, %v8991, %v8993
      %v9012 = vsel %vm906, %v8993, %v8995
      %v9013 = vsel %vm906, %v8995, %v8997
      %9014 = vrot.lane.b32.xlu0 %v8663, 111
      %v9015 = vpop.permute.xlu0 %9014
      %9016 = vrot.lane.b32.xlu0 %v8664, 111
      %v9017 = vpop.permute.xlu0 %9016
      %9018 = vrot.lane.b32.xlu0 %v8665, 111
      %v9019 = vpop.permute.xlu0 %9018
      %9020 = vrot.lane.b32.xlu0 %v8666, 111
      %v9021 = vpop.permute.xlu0 %9020
      %9022 = vrot.lane.b32.xlu0 %v8668, 111
      %v9023 = vpop.permute.xlu0 %9022
      %9024 = vrot.lane.b32.xlu0 %v8669, 111
      %v9025 = vpop.permute.xlu0 %9024
      %9026 = vrot.lane.b32.xlu0 %v8670, 111
      %v9027 = vpop.permute.xlu0 %9026
      %9028 = vrot.lane.b32.xlu0 %v8671, 111
      %v9029 = vpop.permute.xlu0 %9028
      %9030 = vrot.lane.b32.xlu0 %v8673, 111
      %v9031 = vpop.permute.xlu0 %9030
      %9032 = vrot.lane.b32.xlu0 %v8674, 111
      %v9033 = vpop.permute.xlu0 %9032
      %9034 = vrot.lane.b32.xlu0 %v8675, 111
      %v9035 = vpop.permute.xlu0 %9034
      %9036 = vrot.lane.b32.xlu0 %v8676, 111
      %v9037 = vpop.permute.xlu0 %9036
      %9038 = vrot.lane.b32.xlu0 %v8678, 111
      %v9039 = vpop.permute.xlu0 %9038
      %9040 = vrot.lane.b32.xlu0 %v8679, 111
      %v9041 = vpop.permute.xlu0 %9040
      %9042 = vrot.lane.b32.xlu0 %v8680, 111
      %v9043 = vpop.permute.xlu0 %9042
      %9044 = vrot.lane.b32.xlu0 %v8681, 111
      %v9045 = vpop.permute.xlu0 %9044
      %v9046 = vsel %vm718, %v9015, %v9017
      %v9047 = vsel %vm718, %v9017, %v9019
      %v9048 = vsel %vm718, %v9019, %v9021
      %v9049 = vsel %vm718, %v9023, %v9025
      %v9050 = vsel %vm718, %v9025, %v9027
      %v9051 = vsel %vm718, %v9027, %v9029
      %v9052 = vsel %vm718, %v9031, %v9033
      %v9053 = vsel %vm718, %v9033, %v9035
      %v9054 = vsel %vm718, %v9035, %v9037
      %v9055 = vsel %vm718, %v9039, %v9041
      %v9056 = vsel %vm718, %v9041, %v9043
      %v9057 = vsel %vm718, %v9043, %v9045
      %9074 = vrot.lane.b32.xlu0 %v8738, 110
      %v9075 = vpop.permute.xlu0 %9074
      %9076 = vrot.lane.b32.xlu0 %v8739, 110
      %v9077 = vpop.permute.xlu0 %9076
      %9078 = vrot.lane.b32.xlu0 %v8740, 110
      %v9079 = vpop.permute.xlu0 %9078
      %9080 = vrot.lane.b32.xlu0 %v8741, 110
      %v9081 = vpop.permute.xlu0 %9080
      %9082 = vrot.lane.b32.xlu0 %v8742, 110
      %v9083 = vpop.permute.xlu0 %9082
      %9084 = vrot.lane.b32.xlu0 %v8743, 110
      %v9085 = vpop.permute.xlu0 %9084
      %9086 = vrot.lane.b32.xlu0 %v8744, 110
      %v9087 = vpop.permute.xlu0 %9086
      %9088 = vrot.lane.b32.xlu0 %v8745, 110
      %v9089 = vpop.permute.xlu0 %9088
      %9090 = vrot.lane.b32.xlu0 %v8746, 110
      %v9091 = vpop.permute.xlu0 %9090
      %9092 = vrot.lane.b32.xlu0 %v8747, 110
      %v9093 = vpop.permute.xlu0 %9092
      %9094 = vrot.lane.b32.xlu0 %v8748, 110
      %v9095 = vpop.permute.xlu0 %9094
      %9096 = vrot.lane.b32.xlu0 %v8749, 110
      %v9097 = vpop.permute.xlu0 %9096
      %9098 = vrot.lane.b32.xlu0 %v8750, 110
      %v9099 = vpop.permute.xlu0 %9098
      %9100 = vrot.lane.b32.xlu0 %v8751, 110
      %v9101 = vpop.permute.xlu0 %9100
      %9102 = vrot.lane.b32.xlu0 %v8752, 110
      %v9103 = vpop.permute.xlu0 %9102
      %9104 = vrot.lane.b32.xlu0 %v8753, 110
      %v9105 = vpop.permute.xlu0 %9104
      %v9106 = vsel %vm934, %v9075, %v9077
      %v9107 = vsel %vm934, %v9077, %v9079
      %v9108 = vsel %vm934, %v9079, %v9081
      %v9109 = vsel %vm934, %v9083, %v9085
      %v9110 = vsel %vm934, %v9085, %v9087
      %v9111 = vsel %vm934, %v9087, %v9089
      %v9112 = vsel %vm934, %v9091, %v9093
      %v9113 = vsel %vm934, %v9093, %v9095
      %v9114 = vsel %vm934, %v9095, %v9097
      %v9115 = vsel %vm934, %v9099, %v9101
      %v9116 = vsel %vm934, %v9101, %v9103
      %v9117 = vsel %vm934, %v9103, %v9105
      %9134 = vrot.lane.b32.xlu0 %v8754, 96
      %v9135 = vpop.permute.xlu0 %9134
      %9136 = vrot.lane.b32.xlu0 %v8755, 96
      %v9137 = vpop.permute.xlu0 %9136
      %9138 = vrot.lane.b32.xlu0 %v8756, 96
      %v9139 = vpop.permute.xlu0 %9138
      %9140 = vrot.lane.b32.xlu0 %v8757, 96
      %v9141 = vpop.permute.xlu0 %9140
      %9142 = vrot.lane.b32.xlu0 %v8758, 96
      %v9143 = vpop.permute.xlu0 %9142
      %9144 = vrot.lane.b32.xlu0 %v8759, 96
      %v9145 = vpop.permute.xlu0 %9144
      %9146 = vrot.lane.b32.xlu0 %v8760, 96
      %v9147 = vpop.permute.xlu0 %9146
      %9148 = vrot.lane.b32.xlu0 %v8761, 96
      %v9149 = vpop.permute.xlu0 %9148
      %9150 = vrot.lane.b32.xlu0 %v8762, 96
      %v9151 = vpop.permute.xlu0 %9150
      %9152 = vrot.lane.b32.xlu0 %v8763, 96
      %v9153 = vpop.permute.xlu0 %9152
      %9154 = vrot.lane.b32.xlu0 %v8764, 96
      %v9155 = vpop.permute.xlu0 %9154
      %9156 = vrot.lane.b32.xlu0 %v8765, 96
      %v9157 = vpop.permute.xlu0 %9156
      %9158 = vrot.lane.b32.xlu0 %v8766, 96
      %v9159 = vpop.permute.xlu0 %9158
      %9160 = vrot.lane.b32.xlu0 %v8767, 96
      %v9161 = vpop.permute.xlu0 %9160
      %9162 = vrot.lane.b32.xlu0 %v8768, 96
      %v9163 = vpop.permute.xlu0 %9162
      %9164 = vrot.lane.b32.xlu0 %v8769, 96
      %v9165 = vpop.permute.xlu0 %9164
      %v9166 = vsel %vm657, %v9135, %v9137
      %v9167 = vsel %vm657, %v9137, %v9139
      %v9168 = vsel %vm657, %v9139, %v9141
      %v9169 = vsel %vm657, %v9143, %v9145
      %v9170 = vsel %vm657, %v9145, %v9147
      %v9171 = vsel %vm657, %v9147, %v9149
      %v9172 = vsel %vm657, %v9151, %v9153
      %v9173 = vsel %vm657, %v9153, %v9155
      %v9174 = vsel %vm657, %v9155, %v9157
      %v9175 = vsel %vm657, %v9159, %v9161
      %v9176 = vsel %vm657, %v9161, %v9163
      %v9177 = vsel %vm657, %v9163, %v9165
      %9178 = vrot.lane.b32.xlu0 %v8663, 95
      %v9179 = vpop.permute.xlu0 %9178
      %9180 = vrot.lane.b32.xlu0 %v8664, 95
      %v9181 = vpop.permute.xlu0 %9180
      %9182 = vrot.lane.b32.xlu0 %v8665, 95
      %v9183 = vpop.permute.xlu0 %9182
      %9184 = vrot.lane.b32.xlu0 %v8666, 95
      %v9185 = vpop.permute.xlu0 %9184
      %9186 = vrot.lane.b32.xlu0 %v8668, 95
      %v9187 = vpop.permute.xlu0 %9186
      %9188 = vrot.lane.b32.xlu0 %v8669, 95
      %v9189 = vpop.permute.xlu0 %9188
      %9190 = vrot.lane.b32.xlu0 %v8670, 95
      %v9191 = vpop.permute.xlu0 %9190
      %9192 = vrot.lane.b32.xlu0 %v8671, 95
      %v9193 = vpop.permute.xlu0 %9192
      %9194 = vrot.lane.b32.xlu0 %v8673, 95
      %v9195 = vpop.permute.xlu0 %9194
      %9196 = vrot.lane.b32.xlu0 %v8674, 95
      %v9197 = vpop.permute.xlu0 %9196
      %9198 = vrot.lane.b32.xlu0 %v8675, 95
      %v9199 = vpop.permute.xlu0 %9198
      %9200 = vrot.lane.b32.xlu0 %v8676, 95
      %v9201 = vpop.permute.xlu0 %9200
      %9202 = vrot.lane.b32.xlu0 %v8678, 95
      %v9203 = vpop.permute.xlu0 %9202
      %9204 = vrot.lane.b32.xlu0 %v8679, 95
      %v9205 = vpop.permute.xlu0 %9204
      %9206 = vrot.lane.b32.xlu0 %v8680, 95
      %v9207 = vpop.permute.xlu0 %9206
      %9208 = vrot.lane.b32.xlu0 %v8681, 95
      %v9209 = vpop.permute.xlu0 %9208
      %v9210 = vsel %vm961, %v9179, %v9181
      %v9211 = vsel %vm961, %v9181, %v9183
      %v9212 = vsel %vm961, %v9183, %v9185
      %v9213 = vsel %vm961, %v9187, %v9189
      %v9214 = vsel %vm961, %v9189, %v9191
      %v9215 = vsel %vm961, %v9191, %v9193
      %v9216 = vsel %vm961, %v9195, %v9197
      %v9217 = vsel %vm961, %v9197, %v9199
      %v9218 = vsel %vm961, %v9199, %v9201
      %v9219 = vsel %vm961, %v9203, %v9205
      %v9220 = vsel %vm961, %v9205, %v9207
      %v9221 = vsel %vm961, %v9207, %v9209
      %9238 = vrot.lane.b32.xlu0 %v8770, 94
      %v9239 = vpop.permute.xlu0 %9238
      %9240 = vrot.lane.b32.xlu0 %v8771, 94
      %v9241 = vpop.permute.xlu0 %9240
      %9242 = vrot.lane.b32.xlu0 %v8772, 94
      %v9243 = vpop.permute.xlu0 %9242
      %9244 = vrot.lane.b32.xlu0 %v8773, 94
      %v9245 = vpop.permute.xlu0 %9244
      %9246 = vrot.lane.b32.xlu0 %v8774, 94
      %v9247 = vpop.permute.xlu0 %9246
      %9248 = vrot.lane.b32.xlu0 %v8775, 94
      %v9249 = vpop.permute.xlu0 %9248
      %9250 = vrot.lane.b32.xlu0 %v8776, 94
      %v9251 = vpop.permute.xlu0 %9250
      %9252 = vrot.lane.b32.xlu0 %v8777, 94
      %v9253 = vpop.permute.xlu0 %9252
      %9254 = vrot.lane.b32.xlu0 %v8778, 94
      %v9255 = vpop.permute.xlu0 %9254
      %9256 = vrot.lane.b32.xlu0 %v8779, 94
      %v9257 = vpop.permute.xlu0 %9256
      %9258 = vrot.lane.b32.xlu0 %v8780, 94
      %v9259 = vpop.permute.xlu0 %9258
      %9260 = vrot.lane.b32.xlu0 %v8781, 94
      %v9261 = vpop.permute.xlu0 %9260
      %9262 = vrot.lane.b32.xlu0 %v8782, 94
      %v9263 = vpop.permute.xlu0 %9262
      %9264 = vrot.lane.b32.xlu0 %v8783, 94
      %v9265 = vpop.permute.xlu0 %9264
      %9266 = vrot.lane.b32.xlu0 %v8784, 94
      %v9267 = vpop.permute.xlu0 %9266
      %9268 = vrot.lane.b32.xlu0 %v8785, 94
      %v9269 = vpop.permute.xlu0 %9268
      %v9270 = vsel %vm977, %v9239, %v9241
      %v9271 = vsel %vm977, %v9241, %v9243
      %v9272 = vsel %vm977, %v9243, %v9245
      %v9273 = vsel %vm977, %v9247, %v9249
      %v9274 = vsel %vm977, %v9249, %v9251
      %v9275 = vsel %vm977, %v9251, %v9253
      %v9276 = vsel %vm977, %v9255, %v9257
      %v9277 = vsel %vm977, %v9257, %v9259
      %v9278 = vsel %vm977, %v9259, %v9261
      %v9279 = vsel %vm977, %v9263, %v9265
      %v9280 = vsel %vm977, %v9265, %v9267
      %v9281 = vsel %vm977, %v9267, %v9269
      %v9282 = vld [vmem:[%s18] sm:$0x7]
      %v9283 = vld [vmem:[#allocation3] sm:$0x1]
      %9285 = vset.pattern.permute.xlu0 0
      %9286 = vperm.xlu0 %9285, %v9283
      %v9287 = vpop.permute.xlu0 %9286
      %v9289 = vperm.slane %v9287, 0
      %v9291 = vperm.slane %v9282, 0
      %v9292 = vperm.slane %v9282, 1
      %v9293 = vperm.slane %v9282, 2
      %9312 = vrot.lane.b32.xlu0 %v8682, 17
      %v9313 = vpop.permute.xlu0 %9312
      %9314 = vrot.lane.b32.xlu0 %v8683, 17
      %v9315 = vpop.permute.xlu0 %9314
      %9316 = vrot.lane.b32.xlu0 %v8684, 17
      %v9317 = vpop.permute.xlu0 %9316
      %9318 = vrot.lane.b32.xlu0 %v8685, 17
      %v9319 = vpop.permute.xlu0 %9318
      %9320 = vrot.lane.b32.xlu0 %v8686, 17
      %v9321 = vpop.permute.xlu0 %9320
      %9322 = vrot.lane.b32.xlu0 %v8687, 17
      %v9323 = vpop.permute.xlu0 %9322
      %9324 = vrot.lane.b32.xlu0 %v8688, 17
      %v9325 = vpop.permute.xlu0 %9324
      %9326 = vrot.lane.b32.xlu0 %v8689, 17
      %v9327 = vpop.permute.xlu0 %9326
      %9328 = vrot.lane.b32.xlu0 %v8690, 17
      %v9329 = vpop.permute.xlu0 %9328
      %9330 = vrot.lane.b32.xlu0 %v8691, 17
      %v9331 = vpop.permute.xlu0 %9330
      %9332 = vrot.lane.b32.xlu0 %v8692, 17
      %v9333 = vpop.permute.xlu0 %9332
      %9334 = vrot.lane.b32.xlu0 %v8693, 17
      %v9335 = vpop.permute.xlu0 %9334
      %9336 = vrot.lane.b32.xlu0 %v8694, 17
      %v9337 = vpop.permute.xlu0 %9336
      %9338 = vrot.lane.b32.xlu0 %v8695, 17
      %v9339 = vpop.permute.xlu0 %9338
      %9340 = vrot.lane.b32.xlu0 %v8696, 17
      %v9341 = vpop.permute.xlu0 %9340
      %9342 = vrot.lane.b32.xlu0 %v8697, 17
      %v9343 = vpop.permute.xlu0 %9342
      %9344 = vrot.lane.b32.xlu0 %v8846, 17
      %v9345 = vpop.permute.xlu0 %9344
      %9346 = vrot.lane.b32.xlu0 %v8847, 17
      %v9347 = vpop.permute.xlu0 %9346
      %9348 = vrot.lane.b32.xlu0 %v8848, 17
      %v9349 = vpop.permute.xlu0 %9348
      %9350 = vrot.lane.b32.xlu0 %v8849, 17
      %v9351 = vpop.permute.xlu0 %9350
      %9352 = vrot.lane.b32.xlu0 %v8850, 17
      %v9353 = vpop.permute.xlu0 %9352
      %9354 = vrot.lane.b32.xlu0 %v8851, 17
      %v9355 = vpop.permute.xlu0 %9354
      %9356 = vrot.lane.b32.xlu0 %v8852, 17
      %v9357 = vpop.permute.xlu0 %9356
      %9358 = vrot.lane.b32.xlu0 %v8853, 17
      %v9359 = vpop.permute.xlu0 %9358
      %9360 = vrot.lane.b32.xlu0 %v8854, 17
      %v9361 = vpop.permute.xlu0 %9360
      %9362 = vrot.lane.b32.xlu0 %v8855, 17
      %v9363 = vpop.permute.xlu0 %9362
      %9364 = vrot.lane.b32.xlu0 %v8856, 17
      %v9365 = vpop.permute.xlu0 %9364
      %9366 = vrot.lane.b32.xlu0 %v8857, 17
      %v9367 = vpop.permute.xlu0 %9366
      %9368 = vrot.lane.b32.xlu0 %v8858, 17
      %v9369 = vpop.permute.xlu0 %9368
      %9370 = vrot.lane.b32.xlu0 %v8859, 17
      %v9371 = vpop.permute.xlu0 %9370
      %9372 = vrot.lane.b32.xlu0 %v8860, 17
      %v9373 = vpop.permute.xlu0 %9372
      %9374 = vrot.lane.b32.xlu0 %v8861, 17
      %v9375 = vpop.permute.xlu0 %9374
      %9376 = vrot.lane.b32.xlu0 %v8922, 17
      %v9377 = vpop.permute.xlu0 %9376
      %9378 = vrot.lane.b32.xlu0 %v8923, 17
      %v9379 = vpop.permute.xlu0 %9378
      %9380 = vrot.lane.b32.xlu0 %v8924, 17
      %v9381 = vpop.permute.xlu0 %9380
      %9382 = vrot.lane.b32.xlu0 %v8925, 17
      %v9383 = vpop.permute.xlu0 %9382
      %9384 = vrot.lane.b32.xlu0 %v8926, 17
      %v9385 = vpop.permute.xlu0 %9384
      %9386 = vrot.lane.b32.xlu0 %v8927, 17
      %v9387 = vpop.permute.xlu0 %9386
      %9388 = vrot.lane.b32.xlu0 %v8928, 17
      %v9389 = vpop.permute.xlu0 %9388
      %9390 = vrot.lane.b32.xlu0 %v8929, 17
      %v9391 = vpop.permute.xlu0 %9390
      %9392 = vrot.lane.b32.xlu0 %v8930, 17
      %v9393 = vpop.permute.xlu0 %9392
      %9394 = vrot.lane.b32.xlu0 %v8931, 17
      %v9395 = vpop.permute.xlu0 %9394
      %9396 = vrot.lane.b32.xlu0 %v8932, 17
      %v9397 = vpop.permute.xlu0 %9396
      %9398 = vrot.lane.b32.xlu0 %v8933, 17
      %v9399 = vpop.permute.xlu0 %9398
      %9400 = vrot.lane.b32.xlu0 %v8934, 17
      %v9401 = vpop.permute.xlu0 %9400
      %9402 = vrot.lane.b32.xlu0 %v8935, 17
      %v9403 = vpop.permute.xlu0 %9402
      %9404 = vrot.lane.b32.xlu0 %v8936, 17
      %v9405 = vpop.permute.xlu0 %9404
      %9406 = vrot.lane.b32.xlu0 %v8937, 17
      %v9407 = vpop.permute.xlu0 %9406
      %9408 = vrot.lane.b32.xlu0 %v8998, 17
      %v9409 = vpop.permute.xlu0 %9408
      %9410 = vrot.lane.b32.xlu0 %v8999, 17
      %v9411 = vpop.permute.xlu0 %9410
      %9412 = vrot.lane.b32.xlu0 %v9000, 17
      %v9413 = vpop.permute.xlu0 %9412
      %9414 = vrot.lane.b32.xlu0 %v9001, 17
      %v9415 = vpop.permute.xlu0 %9414
      %9416 = vrot.lane.b32.xlu0 %v9002, 17
      %v9417 = vpop.permute.xlu0 %9416
      %9418 = vrot.lane.b32.xlu0 %v9003, 17
      %v9419 = vpop.permute.xlu0 %9418
      %9420 = vrot.lane.b32.xlu0 %v9004, 17
      %v9421 = vpop.permute.xlu0 %9420
      %9422 = vrot.lane.b32.xlu0 %v9005, 17
      %v9423 = vpop.permute.xlu0 %9422
      %9424 = vrot.lane.b32.xlu0 %v9006, 17
      %v9425 = vpop.permute.xlu0 %9424
      %9426 = vrot.lane.b32.xlu0 %v9007, 17
      %v9427 = vpop.permute.xlu0 %9426
      %9428 = vrot.lane.b32.xlu0 %v9008, 17
      %v9429 = vpop.permute.xlu0 %9428
      %9430 = vrot.lane.b32.xlu0 %v9009, 17
      %v9431 = vpop.permute.xlu0 %9430
      %9432 = vrot.lane.b32.xlu0 %v9010, 17
      %v9433 = vpop.permute.xlu0 %9432
      %9434 = vrot.lane.b32.xlu0 %v9011, 17
      %v9435 = vpop.permute.xlu0 %9434
      %9436 = vrot.lane.b32.xlu0 %v9012, 17
      %v9437 = vpop.permute.xlu0 %9436
      %9438 = vrot.lane.b32.xlu0 %v9013, 17
      %v9439 = vpop.permute.xlu0 %9438
      %9440 = vrot.lane.b32.xlu0 %v9015, 17
      %v9441 = vpop.permute.xlu0 %9440
      %9442 = vrot.lane.b32.xlu0 %v9046, 17
      %v9443 = vpop.permute.xlu0 %9442
      %9444 = vrot.lane.b32.xlu0 %v9047, 17
      %v9445 = vpop.permute.xlu0 %9444
      %9446 = vrot.lane.b32.xlu0 %v9048, 17
      %v9447 = vpop.permute.xlu0 %9446
      %9448 = vrot.lane.b32.xlu0 %v9023, 17
      %v9449 = vpop.permute.xlu0 %9448
      %9450 = vrot.lane.b32.xlu0 %v9049, 17
      %v9451 = vpop.permute.xlu0 %9450
      %9452 = vrot.lane.b32.xlu0 %v9050, 17
      %v9453 = vpop.permute.xlu0 %9452
      %9454 = vrot.lane.b32.xlu0 %v9051, 17
      %v9455 = vpop.permute.xlu0 %9454
      %9456 = vrot.lane.b32.xlu0 %v9031, 17
      %v9457 = vpop.permute.xlu0 %9456
      %9458 = vrot.lane.b32.xlu0 %v9052, 17
      %v9459 = vpop.permute.xlu0 %9458
      %9460 = vrot.lane.b32.xlu0 %v9053, 17
      %v9461 = vpop.permute.xlu0 %9460
      %9462 = vrot.lane.b32.xlu0 %v9054, 17
      %v9463 = vpop.permute.xlu0 %9462
      %9464 = vrot.lane.b32.xlu0 %v9039, 17
      %v9465 = vpop.permute.xlu0 %9464
      %9466 = vrot.lane.b32.xlu0 %v9055, 17
      %v9467 = vpop.permute.xlu0 %9466
      %9468 = vrot.lane.b32.xlu0 %v9056, 17
      %v9469 = vpop.permute.xlu0 %9468
      %9470 = vrot.lane.b32.xlu0 %v9057, 17
      %v9471 = vpop.permute.xlu0 %9470
      %9472 = vrot.lane.b32.xlu0 %v9075, 17
      %v9473 = vpop.permute.xlu0 %9472
      %9474 = vrot.lane.b32.xlu0 %v9106, 17
      %v9475 = vpop.permute.xlu0 %9474
      %9476 = vrot.lane.b32.xlu0 %v9107, 17
      %v9477 = vpop.permute.xlu0 %9476
      %9478 = vrot.lane.b32.xlu0 %v9108, 17
      %v9479 = vpop.permute.xlu0 %9478
      %9480 = vrot.lane.b32.xlu0 %v9083, 17
      %v9481 = vpop.permute.xlu0 %9480
      %9482 = vrot.lane.b32.xlu0 %v9109, 17
      %v9483 = vpop.permute.xlu0 %9482
      %9484 = vrot.lane.b32.xlu0 %v9110, 17
      %v9485 = vpop.permute.xlu0 %9484
      %9486 = vrot.lane.b32.xlu0 %v9111, 17
      %v9487 = vpop.permute.xlu0 %9486
      %9488 = vrot.lane.b32.xlu0 %v9091, 17
      %v9489 = vpop.permute.xlu0 %9488
      %9490 = vrot.lane.b32.xlu0 %v9112, 17
      %v9491 = vpop.permute.xlu0 %9490
      %9492 = vrot.lane.b32.xlu0 %v9113, 17
      %v9493 = vpop.permute.xlu0 %9492
      %9494 = vrot.lane.b32.xlu0 %v9114, 17
      %v9495 = vpop.permute.xlu0 %9494
      %9496 = vrot.lane.b32.xlu0 %v9099, 17
      %v9497 = vpop.permute.xlu0 %9496
      %9498 = vrot.lane.b32.xlu0 %v9115, 17
      %v9499 = vpop.permute.xlu0 %9498
      %9500 = vrot.lane.b32.xlu0 %v9116, 17
      %v9501 = vpop.permute.xlu0 %9500
      %9502 = vrot.lane.b32.xlu0 %v9117, 17
      %v9503 = vpop.permute.xlu0 %9502
      %9504 = vrot.lane.b32.xlu0 %v9135, 17
      %v9505 = vpop.permute.xlu0 %9504
      %9506 = vrot.lane.b32.xlu0 %v9166, 17
      %v9507 = vpop.permute.xlu0 %9506
      %9508 = vrot.lane.b32.xlu0 %v9167, 17
      %v9509 = vpop.permute.xlu0 %9508
      %9510 = vrot.lane.b32.xlu0 %v9168, 17
      %v9511 = vpop.permute.xlu0 %9510
      %9512 = vrot.lane.b32.xlu0 %v9143, 17
      %v9513 = vpop.permute.xlu0 %9512
      %9514 = vrot.lane.b32.xlu0 %v9169, 17
      %v9515 = vpop.permute.xlu0 %9514
      %9516 = vrot.lane.b32.xlu0 %v9170, 17
      %v9517 = vpop.permute.xlu0 %9516
      %9518 = vrot.lane.b32.xlu0 %v9171, 17
      %v9519 = vpop.permute.xlu0 %9518
      %9520 = vrot.lane.b32.xlu0 %v9151, 17
      %v9521 = vpop.permute.xlu0 %9520
      %9522 = vrot.lane.b32.xlu0 %v9172, 17
      %v9523 = vpop.permute.xlu0 %9522
      %9524 = vrot.lane.b32.xlu0 %v9173, 17
      %v9525 = vpop.permute.xlu0 %9524
      %9526 = vrot.lane.b32.xlu0 %v9174, 17
      %v9527 = vpop.permute.xlu0 %9526
      %9528 = vrot.lane.b32.xlu0 %v9159, 17
      %v9529 = vpop.permute.xlu0 %9528
      %9530 = vrot.lane.b32.xlu0 %v9175, 17
      %v9531 = vpop.permute.xlu0 %9530
      %9532 = vrot.lane.b32.xlu0 %v9176, 17
      %v9533 = vpop.permute.xlu0 %9532
      %9534 = vrot.lane.b32.xlu0 %v9177, 17
      %v9535 = vpop.permute.xlu0 %9534
      %9536 = vrot.lane.b32.xlu0 %v9179, 17
      %v9537 = vpop.permute.xlu0 %9536
      %9538 = vrot.lane.b32.xlu0 %v9210, 17
      %v9539 = vpop.permute.xlu0 %9538
      %9540 = vrot.lane.b32.xlu0 %v9211, 17
      %v9541 = vpop.permute.xlu0 %9540
      %9542 = vrot.lane.b32.xlu0 %v9212, 17
      %v9543 = vpop.permute.xlu0 %9542
      %9544 = vrot.lane.b32.xlu0 %v9187, 17
      %v9545 = vpop.permute.xlu0 %9544
      %9546 = vrot.lane.b32.xlu0 %v9213, 17
      %v9547 = vpop.permute.xlu0 %9546
      %9548 = vrot.lane.b32.xlu0 %v9214, 17
      %v9549 = vpop.permute.xlu0 %9548
      %9550 = vrot.lane.b32.xlu0 %v9215, 17
      %v9551 = vpop.permute.xlu0 %9550
      %9552 = vrot.lane.b32.xlu0 %v9195, 17
      %v9553 = vpop.permute.xlu0 %9552
      %9554 = vrot.lane.b32.xlu0 %v9216, 17
      %v9555 = vpop.permute.xlu0 %9554
      %9556 = vrot.lane.b32.xlu0 %v9217, 17
      %v9557 = vpop.permute.xlu0 %9556
      %9558 = vrot.lane.b32.xlu0 %v9218, 17
      %v9559 = vpop.permute.xlu0 %9558
      %9560 = vrot.lane.b32.xlu0 %v9203, 17
      %v9561 = vpop.permute.xlu0 %9560
      %9562 = vrot.lane.b32.xlu0 %v9219, 17
      %v9563 = vpop.permute.xlu0 %9562
      %9564 = vrot.lane.b32.xlu0 %v9220, 17
      %v9565 = vpop.permute.xlu0 %9564
      %9566 = vrot.lane.b32.xlu0 %v9221, 17
      %v9567 = vpop.permute.xlu0 %9566
      %9568 = vrot.lane.b32.xlu0 %v9239, 17
      %v9569 = vpop.permute.xlu0 %9568
      %9570 = vrot.lane.b32.xlu0 %v9270, 17
      %v9571 = vpop.permute.xlu0 %9570
      %9572 = vrot.lane.b32.xlu0 %v9271, 17
      %v9573 = vpop.permute.xlu0 %9572
      %9574 = vrot.lane.b32.xlu0 %v9272, 17
      %v9575 = vpop.permute.xlu0 %9574
      %9576 = vrot.lane.b32.xlu0 %v9247, 17
      %v9577 = vpop.permute.xlu0 %9576
      %9578 = vrot.lane.b32.xlu0 %v9273, 17
      %v9579 = vpop.permute.xlu0 %9578
      %9580 = vrot.lane.b32.xlu0 %v9274, 17
      %v9581 = vpop.permute.xlu0 %9580
      %9582 = vrot.lane.b32.xlu0 %v9275, 17
      %v9583 = vpop.permute.xlu0 %9582
      %9584 = vrot.lane.b32.xlu0 %v9255, 17
      %v9585 = vpop.permute.xlu0 %9584
      %9586 = vrot.lane.b32.xlu0 %v9276, 17
      %v9587 = vpop.permute.xlu0 %9586
      %9588 = vrot.lane.b32.xlu0 %v9277, 17
      %v9589 = vpop.permute.xlu0 %9588
      %9590 = vrot.lane.b32.xlu0 %v9278, 17
      %v9591 = vpop.permute.xlu0 %9590
      %9592 = vrot.lane.b32.xlu0 %v9263, 17
      %v9593 = vpop.permute.xlu0 %9592
      %9594 = vrot.lane.b32.xlu0 %v9279, 17
      %v9595 = vpop.permute.xlu0 %9594
      %9596 = vrot.lane.b32.xlu0 %v9280, 17
      %v9597 = vpop.permute.xlu0 %9596
      %9598 = vrot.lane.b32.xlu0 %v9281, 17
      %v9599 = vpop.permute.xlu0 %9598
      %v9600 = vsel %vm840, %v9313, %v9315
      %v9601 = vsel %vm840, %v9315, %v9317
      %v9602 = vsel %vm840, %v9317, %v9319
      %v9603 = vsel %vm840, %v9321, %v9323
      %v9604 = vsel %vm840, %v9323, %v9325
      %v9605 = vsel %vm840, %v9325, %v9327
      %v9606 = vsel %vm840, %v9329, %v9331
      %v9607 = vsel %vm840, %v9331, %v9333
      %v9608 = vsel %vm840, %v9333, %v9335
      %v9609 = vsel %vm840, %v9337, %v9339
      %v9610 = vsel %vm840, %v9339, %v9341
      %v9611 = vsel %vm840, %v9341, %v9343
      %v9612 = vsel %vm840, %v9345, %v9347
      %v9613 = vsel %vm840, %v9347, %v9349
      %v9614 = vsel %vm840, %v9349, %v9351
      %v9615 = vsel %vm840, %v9353, %v9355
      %v9616 = vsel %vm840, %v9355, %v9357
      %v9617 = vsel %vm840, %v9357, %v9359
      %v9618 = vsel %vm840, %v9361, %v9363
      %v9619 = vsel %vm840, %v9363, %v9365
      %v9620 = vsel %vm840, %v9365, %v9367
      %v9621 = vsel %vm840, %v9369, %v9371
      %v9622 = vsel %vm840, %v9371, %v9373
      %v9623 = vsel %vm840, %v9373, %v9375
      %v9624 = vsel %vm840, %v9377, %v9379
      %v9625 = vsel %vm840, %v9379, %v9381
      %v9626 = vsel %vm840, %v9381, %v9383
      %v9627 = vsel %vm840, %v9385, %v9387
      %v9628 = vsel %vm840, %v9387, %v9389
      %v9629 = vsel %vm840, %v9389, %v9391
      %v9630 = vsel %vm840, %v9393, %v9395
      %v9631 = vsel %vm840, %v9395, %v9397
      %v9632 = vsel %vm840, %v9397, %v9399
      %v9633 = vsel %vm840, %v9401, %v9403
      %v9634 = vsel %vm840, %v9403, %v9405
      %v9635 = vsel %vm840, %v9405, %v9407
      %v9636 = vsel %vm840, %v9409, %v9411
      %v9637 = vsel %vm840, %v9411, %v9413
      %v9638 = vsel %vm840, %v9413, %v9415
      %v9639 = vsel %vm840, %v9417, %v9419
      %v9640 = vsel %vm840, %v9419, %v9421
      %v9641 = vsel %vm840, %v9421, %v9423
      %v9642 = vsel %vm840, %v9425, %v9427
      %v9643 = vsel %vm840, %v9427, %v9429
      %v9644 = vsel %vm840, %v9429, %v9431
      %v9645 = vsel %vm840, %v9433, %v9435
      %v9646 = vsel %vm840, %v9435, %v9437
      %v9647 = vsel %vm840, %v9437, %v9439
      %v9648 = vsel %vm840, %v9441, %v9443
      %v9649 = vsel %vm840, %v9443, %v9445
      %v9650 = vsel %vm840, %v9445, %v9447
      %v9651 = vsel %vm840, %v9449, %v9451
      %v9652 = vsel %vm840, %v9451, %v9453
      %v9653 = vsel %vm840, %v9453, %v9455
      %v9654 = vsel %vm840, %v9457, %v9459
      %v9655 = vsel %vm840, %v9459, %v9461
      %v9656 = vsel %vm840, %v9461, %v9463
      %v9657 = vsel %vm840, %v9465, %v9467
      %v9658 = vsel %vm840, %v9467, %v9469
      %v9659 = vsel %vm840, %v9469, %v9471
      %v9660 = vsel %vm840, %v9473, %v9475
      %v9661 = vsel %vm840, %v9475, %v9477
      %v9662 = vsel %vm840, %v9477, %v9479
      %v9663 = vsel %vm840, %v9481, %v9483
      %v9664 = vsel %vm840, %v9483, %v9485
      %v9665 = vsel %vm840, %v9485, %v9487
      %v9666 = vsel %vm840, %v9489, %v9491
      %v9667 = vsel %vm840, %v9491, %v9493
      %v9668 = vsel %vm840, %v9493, %v9495
      %v9669 = vsel %vm840, %v9497, %v9499
      %v9670 = vsel %vm840, %v9499, %v9501
      %v9671 = vsel %vm840, %v9501, %v9503
      %v9672 = vsel %vm840, %v9505, %v9507
      %v9673 = vsel %vm840, %v9507, %v9509
      %v9674 = vsel %vm840, %v9509, %v9511
      %v9675 = vsel %vm840, %v9513, %v9515
      %v9676 = vsel %vm840, %v9515, %v9517
      %v9677 = vsel %vm840, %v9517, %v9519
      %v9678 = vsel %vm840, %v9521, %v9523
      %v9679 = vsel %vm840, %v9523, %v9525
      %v9680 = vsel %vm840, %v9525, %v9527
      %v9681 = vsel %vm840, %v9529, %v9531
      %v9682 = vsel %vm840, %v9531, %v9533
      %v9683 = vsel %vm840, %v9533, %v9535
      %v9684 = vsel %vm840, %v9537, %v9539
      %v9685 = vsel %vm840, %v9539, %v9541
      %v9686 = vsel %vm840, %v9541, %v9543
      %v9687 = vsel %vm840, %v9545, %v9547
      %v9688 = vsel %vm840, %v9547, %v9549
      %v9689 = vsel %vm840, %v9549, %v9551
      %v9690 = vsel %vm840, %v9553, %v9555
      %v9691 = vsel %vm840, %v9555, %v9557
      %v9692 = vsel %vm840, %v9557, %v9559
      %v9693 = vsel %vm840, %v9561, %v9563
      %v9694 = vsel %vm840, %v9563, %v9565
      %v9695 = vsel %vm840, %v9565, %v9567
      %v9696 = vsel %vm840, %v9569, %v9571
      %v9697 = vsel %vm840, %v9571, %v9573
      %v9698 = vsel %vm840, %v9573, %v9575
      %v9699 = vsel %vm840, %v9577, %v9579
      %v9700 = vsel %vm840, %v9579, %v9581
      %v9701 = vsel %vm840, %v9581, %v9583
      %v9702 = vsel %vm840, %v9585, %v9587
      %v9703 = vsel %vm840, %v9587, %v9589
      %v9704 = vsel %vm840, %v9589, %v9591
      %v9705 = vsel %vm840, %v9593, %v9595
      %v9706 = vsel %vm840, %v9595, %v9597
      %v9707 = vsel %vm840, %v9597, %v9599
      %v9816 = vsel %vm4593, %v9293, 0
      %9818 = vmatpush.msra.mxu0 %v9645
      %9819 = vmatpush.msra.mxu0 %v9642
      %9820 = vmatpush.msra.mxu0 %v9639
      %9821 = vmatpush.msra.mxu0 %v9636
      %9822 = vmatpush.msra.mxu0 %v9633
      %9823 = vmatpush.msra.mxu0 %v9630
      %9824 = vmatpush.msra.mxu0 %v9627
      %9825 = vmatpush.msra.mxu0 %v9624
      %9826 = vmatpush.msra.mxu0 %v9621
      %9827 = vmatpush.msra.mxu0 %v9618
      %9828 = vmatpush.msra.mxu0 %v9615
      %9829 = vmatpush.msra.mxu0 %v9612
      %9830 = vmatpush.msra.mxu0 %v9609
      %9831 = vmatpush.msra.mxu0 %v9606
      %9832 = vmatpush.msra.mxu0 %v9603
      %9833 = vmatpush.msra.mxu0 %v9600
      %9834 = vmatmul.f32.gmra.mxu0 %v9291
      %v9835 = vpop.f32.mrf.mxu0
      %v9836 = vadd.f32 %v9289, %v9835
      %9837 = vdwg.mxu0
      %9838 = vmatpush.msra.mxu0 %v9693
      %9839 = vmatpush.msra.mxu0 %v9690
      %9840 = vmatpush.msra.mxu0 %v9687
      %9841 = vmatpush.msra.mxu0 %v9684
      %9842 = vmatpush.msra.mxu0 %v9681
      %9843 = vmatpush.msra.mxu0 %v9678
      %9844 = vmatpush.msra.mxu0 %v9675
      %9845 = vmatpush.msra.mxu0 %v9672
      %9846 = vmatpush.msra.mxu0 %v9669
      %9847 = vmatpush.msra.mxu0 %v9666
      %9848 = vmatpush.msra.mxu0 %v9663
      %9849 = vmatpush.msra.mxu0 %v9660
      %9850 = vmatpush.msra.mxu0 %v9657
      %9851 = vmatpush.msra.mxu0 %v9654
      %9852 = vmatpush.msra.mxu0 %v9651
      %9853 = vmatpush.msra.mxu0 %v9648
      %9854 = vmatmul.f32.gmra.mxu0 %v9292
      %v9855 = vpop.f32.mrf.mxu0
      %v9856 = vadd.f32 %v9836, %v9855
      %9857 = vdwg.mxu0
      %9858 = vmatpush.msra.mxu0 0.0
      %9859 = vmatpush.msra.mxu0 0.0
      %9860 = vmatpush.msra.mxu0 0.0
      %9861 = vmatpush.msra.mxu0 0.0
      %9862 = vmatpush.msra.mxu0 0.0
      %9863 = vmatpush.msra.mxu0 0.0
      %9864 = vmatpush.msra.mxu0 0.0
      %9865 = vmatpush.msra.mxu0 0.0
      %9866 = vmatpush.msra.mxu0 0.0
      %9867 = vmatpush.msra.mxu0 0.0
      %9868 = vmatpush.msra.mxu0 0.0
      %9869 = vmatpush.msra.mxu0 0.0
      %9870 = vmatpush.msra.mxu0 %v9705
      %9871 = vmatpush.msra.mxu0 %v9702
      %9872 = vmatpush.msra.mxu0 %v9699
      %9873 = vmatpush.msra.mxu0 %v9696
      %9874 = vmatmul.f32.gmra.mxu0 %v9816
      %v9875 = vpop.f32.mrf.mxu0
      %v9876 = vadd.f32 %v9856, %v9875
      %9877 = vdwg.mxu0
      %9878 = vmatpush.msra.mxu0 %v9646
      %9879 = vmatpush.msra.mxu0 %v9643
      %9880 = vmatpush.msra.mxu0 %v9640
      %9881 = vmatpush.msra.mxu0 %v9637
      %9882 = vmatpush.msra.mxu0 %v9634
      %9883 = vmatpush.msra.mxu0 %v9631
      %9884 = vmatpush.msra.mxu0 %v9628
      %9885 = vmatpush.msra.mxu0 %v9625
      %9886 = vmatpush.msra.mxu0 %v9622
      %9887 = vmatpush.msra.mxu0 %v9619
      %9888 = vmatpush.msra.mxu0 %v9616
      %9889 = vmatpush.msra.mxu0 %v9613
      %9890 = vmatpush.msra.mxu0 %v9610
      %9891 = vmatpush.msra.mxu0 %v9607
      %9892 = vmatpush.msra.mxu0 %v9604
      %9893 = vmatpush.msra.mxu0 %v9601
      %9894 = vmatmul.f32.gmra.mxu0 %v9291
      %v9895 = vpop.f32.mrf.mxu0
      %v9896 = vadd.f32 %v9289, %v9895
      %9897 = vdwg.mxu0
      %9898 = vmatpush.msra.mxu0 %v9694
      %9899 = vmatpush.msra.mxu0 %v9691
      %9900 = vmatpush.msra.mxu0 %v9688
      %9901 = vmatpush.msra.mxu0 %v9685
      %9902 = vmatpush.msra.mxu0 %v9682
      %9903 = vmatpush.msra.mxu0 %v9679
      %9904 = vmatpush.msra.mxu0 %v9676
      %9905 = vmatpush.msra.mxu0 %v9673
      %9906 = vmatpush.msra.mxu0 %v9670
      %9907 = vmatpush.msra.mxu0 %v9667
      %9908 = vmatpush.msra.mxu0 %v9664
      %9909 = vmatpush.msra.mxu0 %v9661
      %9910 = vmatpush.msra.mxu0 %v9658
      %9911 = vmatpush.msra.mxu0 %v9655
      %9912 = vmatpush.msra.mxu0 %v9652
      %9913 = vmatpush.msra.mxu0 %v9649
      %9914 = vmatmul.f32.gmra.mxu0 %v9292
      %v9915 = vpop.f32.mrf.mxu0
      %v9916 = vadd.f32 %v9896, %v9915
      %9917 = vdwg.mxu0
      %9918 = vmatpush.msra.mxu0 0.0
      %9919 = vmatpush.msra.mxu0 0.0
      %9920 = vmatpush.msra.mxu0 0.0
      %9921 = vmatpush.msra.mxu0 0.0
      %9922 = vmatpush.msra.mxu0 0.0
      %9923 = vmatpush.msra.mxu0 0.0
      %9924 = vmatpush.msra.mxu0 0.0
      %9925 = vmatpush.msra.mxu0 0.0
      %9926 = vmatpush.msra.mxu0 0.0
      %9927 = vmatpush.msra.mxu0 0.0
      %9928 = vmatpush.msra.mxu0 0.0
      %9929 = vmatpush.msra.mxu0 0.0
      %9930 = vmatpush.msra.mxu0 %v9706
      %9931 = vmatpush.msra.mxu0 %v9703
      %9932 = vmatpush.msra.mxu0 %v9700
      %9933 = vmatpush.msra.mxu0 %v9697
      %9934 = vmatmul.f32.gmra.mxu0 %v9816
      %v9935 = vpop.f32.mrf.mxu0
      %v9936 = vadd.f32 %v9916, %v9935
      %9937 = vdwg.mxu0
      %9938 = vmatpush.msra.mxu0 %v9647
      %9939 = vmatpush.msra.mxu0 %v9644
      %9940 = vmatpush.msra.mxu0 %v9641
      %9941 = vmatpush.msra.mxu0 %v9638
      %9942 = vmatpush.msra.mxu0 %v9635
      %9943 = vmatpush.msra.mxu0 %v9632
      %9944 = vmatpush.msra.mxu0 %v9629
      %9945 = vmatpush.msra.mxu0 %v9626
      %9946 = vmatpush.msra.mxu0 %v9623
      %9947 = vmatpush.msra.mxu0 %v9620
      %9948 = vmatpush.msra.mxu0 %v9617
      %9949 = vmatpush.msra.mxu0 %v9614
      %9950 = vmatpush.msra.mxu0 %v9611
      %9951 = vmatpush.msra.mxu0 %v9608
      %9952 = vmatpush.msra.mxu0 %v9605
      %9953 = vmatpush.msra.mxu0 %v9602
      %9954 = vmatmul.f32.gmra.mxu0 %v9291
      %v9955 = vpop.f32.mrf.mxu0
      %v9956 = vadd.f32 %v9289, %v9955
      %9957 = vdwg.mxu0
      %9958 = vmatpush.msra.mxu0 %v9695
      %9959 = vmatpush.msra.mxu0 %v9692
      %9960 = vmatpush.msra.mxu0 %v9689
      %9961 = vmatpush.msra.mxu0 %v9686
      %9962 = vmatpush.msra.mxu0 %v9683
      %9963 = vmatpush.msra.mxu0 %v9680
      %9964 = vmatpush.msra.mxu0 %v9677
      %9965 = vmatpush.msra.mxu0 %v9674
      %9966 = vmatpush.msra.mxu0 %v9671
      %9967 = vmatpush.msra.mxu0 %v9668
      %9968 = vmatpush.msra.mxu0 %v9665
      %9969 = vmatpush.msra.mxu0 %v9662
      %9970 = vmatpush.msra.mxu0 %v9659
      %9971 = vmatpush.msra.mxu0 %v9656
      %9972 = vmatpush.msra.mxu0 %v9653
      %9973 = vmatpush.msra.mxu0 %v9650
      %9974 = vmatmul.f32.gmra.mxu0 %v9292
      %v9975 = vpop.f32.mrf.mxu0
      %v9976 = vadd.f32 %v9956, %v9975
      %9977 = vdwg.mxu0
      %9978 = vmatpush.msra.mxu0 0.0
      %9979 = vmatpush.msra.mxu0 0.0
      %9980 = vmatpush.msra.mxu0 0.0
      %9981 = vmatpush.msra.mxu0 0.0
      %9982 = vmatpush.msra.mxu0 0.0
      %9983 = vmatpush.msra.mxu0 0.0
      %9984 = vmatpush.msra.mxu0 0.0
      %9985 = vmatpush.msra.mxu0 0.0
      %9986 = vmatpush.msra.mxu0 0.0
      %9987 = vmatpush.msra.mxu0 0.0
      %9988 = vmatpush.msra.mxu0 0.0
      %9989 = vmatpush.msra.mxu0 0.0
      %9990 = vmatpush.msra.mxu0 %v9707
      %9991 = vmatpush.msra.mxu0 %v9704
      %9992 = vmatpush.msra.mxu0 %v9701
      %9993 = vmatpush.msra.mxu0 %v9698
      %9994 = vmatmul.f32.gmra.mxu0 %v9816
      %v9995 = vpop.f32.mrf.mxu0
      %v9996 = vadd.f32 %v9976, %v9995
      %9997 = vdwg.mxu0
      %v9998 = vsub.f32 0.0, %v9876
      %v9999 = vsub.f32 0.0, %v9936
      %v10000 = vsub.f32 0.0, %v9996
      %v10001 = vmul.f32 %v9998, 1.442695
      %v10002 = vpow.pop %v10001
      %v10003 = vmul.f32 %v9999, 1.442695
      %v10004 = vpow.pop %v10003
      %v10005 = vmul.f32 %v10000, 1.442695
      %v10006 = vpow.pop %v10005
      %v10007 = vadd.f32 %v10002, 1.0
      %v10008 = vadd.f32 %v10004, 1.0
      %v10009 = vadd.f32 %v10006, 1.0
      %v10010 = vrcp.pop %v10007
      %v10011 = vrcp.pop %v10008
      %v10012 = vrcp.pop %v10009
      %v10016 = vrot.slane %v679, 4
      %v10017 = vrot.slane %v680, 4
      %v10018 = vrot.slane %v681, 4
      %v10022 = vsub.f32 %v679, %v10016
      %v10023 = vsub.f32 %v680, %v10017
      %v10024 = vsub.f32 %v681, %v10018
      %v10025 = vperm.slane %v10010, 0
      %v10026 = vperm.slane %v10011, 0
      %v10027 = vperm.slane %v10012, 0
      %v10028 = vmul.f32 %v10022, %v10025
      %v10029 = vmul.f32 %v10023, %v10026
      %v10030 = vmul.f32 %v10024, %v10027
      %v10034 = vrot.slane %v10028, 4
      %v10035 = vrot.slane %v10029, 4
      %v10036 = vrot.slane %v10030, 4
      %v10040 = vadd.f32 %v679, %v10034
      %v10041 = vadd.f32 %v680, %v10035
      %v10042 = vadd.f32 %v681, %v10036
      %v10046 = vrot.slane %v10041, 4
      %vm10047 = vcmask 1043456
      %v10048 = vsel %vm10047, %v10040, %v10046
      %10049 = vrot.lane.b32.xlu0 %v10048, 16
      %v10050 = vpop.permute.xlu0 %10049
      %10051 = vrot.lane.b32.xlu0 %v10042, 16
      %v10052 = vpop.permute.xlu0 %10051
      %v10053 = vrot.slane %v10050, 4
      %v10054 = vrot.slane %v10052, 4
      %v10055 = vsel %vm10047, %v10053, %v10054
      %v10056 = vsel %vm1959, %v10050, %v10055
      %10058 = vst [vmem:[%s651] sm:$0xff] %v10056
      %p10059 = scmp.lt.s32.totalorder %s33, 1
      %s10060 = scalar_select %p10059, %s33, 1
      %s10061 = smul.addr %s10060, 2
      %s10062 = smul.addr %s10061, 4
      %s10063 = scalar_lea.vmem %s20, %s10062
      // Predicated region
      $region101: #{merge_net_forward.1} parent=99 // pred_check
        %p10064 = pneg %p481
      $region102: #{merge_net_forward.1} parent=99 // pred_check_branch
        %10066 = sbr.rel (%p10064) target = $region104
      $region103: #{merge_net_forward.1} parent=99 // pred_region
        _
      $region104: #{merge_net_forward.1} parent=99 // pred_fallthru
        _
    $region100: #{merge_net_forward.1} parent=5 // pred_fallthru
      _
    %p10067 = scmp.le.s32.totalorder 2, %s28
    // Predicated region
    $region105: #{merge_net_forward.1} parent=5 // pred_check
      %p10068 = pneg %p10067
    $region106: #{merge_net_forward.1} parent=5 // pred_check_branch
      %10070 = sbr.rel (%p10068) target = $region108
    $region107: #{merge_net_forward.1} parent=5 // pred_region
      %s10071 = ssub.s32 %s28, 2
      // Predicated region
      $region109: #{merge_net_forward.1} parent=107 // pred_check
        %p10072 = pneg %p487
      $region110: #{merge_net_forward.1} parent=107 // pred_check_branch
        %10074 = sbr.rel (%p10072) target = $region112
      $region111: #{merge_net_forward.1} parent=107 // pred_region
        %p10075 = scmp.lt.s32.totalorder %s34, 1
        %s10076 = scalar_select %p10075, %s34, 1
        %s10077 = smul.addr %s10076, 2
        %s10078 = smul.addr %s10077, 4
        %s10079 = scalar_lea.vmem %s20, %s10078
      $region112: #{merge_net_forward.1} parent=107 // pred_fallthru
        _
    $region108: #{merge_net_forward.1} parent=5 // pred_fallthru
      _
  $region6: #{merge_net_forward.1} parent=0 // loop_footer
    %s32 = sadd.s32 1, %s28
  $region7: #{merge_net_forward.1} parent=0 // loop_footer_branch
    %27 = sbr.rel target = $region3
  $region8: #{merge_net_forward.1} parent=0 // loop_exit
    _

</llo_original>
